<compile_context>
chip_gen: v7x
topology: tpu7x:2x2x1
jax: 0.10.0
libtpu: 0.0.40
codegen_flags: <defaults>
</compile_context>

<pallas_src>
import jax
import jax.numpy as jnp
from jax.experimental import pallas as pl
from jax.experimental.pallas import tpu as pltpu

BN_EPS = 1e-5                       # nn.BatchNorm1d default eps
_VMEM_LIMIT = 32 * 1024 * 1024      # explicit scoped-VMEM budget (safe on v5e/v6e/v7x)


# ----------------------------------------------------------------------------------
# Kernel bodies.  Activation tiles are (channels, tokens): channels on sublanes,
# tokens on the 128-wide lane axis.
# ----------------------------------------------------------------------------------

def _forward_chain(kp, sc, layer_refs):
    """Run the Conv1d(k=1) chain on one token tile.

    layer_refs = (wk0, ws0, b0, W1, b1, W2, b2, ...).  The first layer's weight is
    split into its keypoint (C0, 3) and score (C0, 1) columns and applied as rank-1
    broadcasts (C_in is tiny, so the VPU beats a K=3 MXU matmul); remaining layers are
    MXU matmuls.  ReLU is applied after every layer except the last (BN has already
    been folded into W, b by the wrapper).
    """
    wk = layer_refs[0][...]                                   # (C0, 3)
    h = (wk[:, 0:1] * kp[0:1, :]
         + wk[:, 1:2] * kp[1:2, :]
         + wk[:, 2:3] * kp[2:3, :]
         + layer_refs[1][...] * sc                            # (C0, 1) * (1, T)
         + layer_refs[2][...])                                # (C0, 1) bias
    rest = layer_refs[3:]
    for j in range(len(rest) // 2):
        h = jnp.maximum(h, 0.0)                               # ReLU of the previous layer
        h = jnp.dot(rest[2 * j][...], h,
                    preferred_element_type=jnp.float32) + rest[2 * j + 1][...]
    return h


def _stats_kernel(*refs):
    """Pre-BN activation statistics of the *last* layer in `layer_refs`.

    Accumulates running per-channel (mean, M2) over the whole sequential (B, N//TILE)
    grid with Chan's parallel-variance update (stable, one pass per BN layer).  The two
    outputs use a constant index_map so they stay resident in VMEM as accumulators.
    """
    kp_ref, sc_ref = refs[0], refs[1]
    layer_refs = refs[2:-2]
    mean_ref, m2_ref = refs[-2], refs[-1]

    z = _forward_chain(kp_ref[...], sc_ref[...], layer_refs)       # (C, TILE)
    tile_n = z.shape[-1]

    t_mean = jnp.sum(z, axis=-1, keepdims=True) * (1.0 / tile_n)   # (C, 1)
    zc = z - t_mean
    t_m2 = jnp.sum(zc * zc, axis=-1, keepdims=True)                # (C, 1)

    b = pl.program_id(0)
    t = pl.program_id(1)
    is_first = jnp.logical_and(b == 0, t == 0)

    @pl.when(is_first)
    def _():
        mean_ref[...] = t_mean
        m2_ref[...] = t_m2

    @pl.when(jnp.logical_not(is_first))
    def _():
        n_a = ((b * pl.num_programs(1) + t) * tile_n).astype(jnp.float32)
        n_b = float(tile_n)
        tot = n_a + n_b
        delta = t_mean - mean_ref[...]
        mean_ref[...] = mean_ref[...] + delta * (n_b / tot)
        m2_ref[...] = m2_ref[...] + t_m2 + (delta * delta) * (n_a * n_b / tot)


def _apply_kernel(*refs):
    """Fully folded forward for one token tile; writes (feature_dim, TILE) lane-dense."""
    kp_ref, sc_ref = refs[0], refs[1]
    layer_refs = refs[2:-1]
    out_ref = refs[-1]
    y = _forward_chain(kp_ref[...], sc_ref[...], layer_refs)
    out_ref[...] = y.astype(out_ref.dtype)


# ----------------------------------------------------------------------------------
# Host-side wrapper.
# ----------------------------------------------------------------------------------

def _choose_tile(n):
    """Largest token tile in {512, 256, 128} dividing N (no partial tiles -> no masking
    needed for BN statistics); falls back to one full-row tile otherwise."""
    for t in (512, 256, 128):
        if n % t == 0:
            return t
    return n


def _flatten_layer_arrays(layer_list):
    """[(W, b), ...] -> [wk0, ws0, b0, W1, b1, ...]; W0 split into kpt/score columns."""
    w0, b0 = layer_list[0]
    flat = [w0[:, :3], w0[:, 3:4], b0]
    for w, b in layer_list[1:]:
        flat.extend((w, b))
    return flat


def _full_spec(arr):
    """Small parameter array, whole-array block with a constant index_map (fetched once)."""
    return pl.BlockSpec(arr.shape, lambda b, t: (0,) * arr.ndim)


def keypoint_encoder(kpts, scores, params):
    """kpts (B, N, 3), scores (B, N)  ->  (B, feature_dim, N), matching
    KeypointEncoder.forward(kpts, scores) with BatchNorm in training mode.

    params: [(W, b, gamma, beta)] per hidden layer + (W_final, b_final); W is the k=1
    Conv1d kernel stored as (C_out, C_in), per-channel vectors as (C_out, 1).
    """
    B, N, _ = kpts.shape
    tile = _choose_tile(N)
    grid = (B, N // tile)
    n_total = float(B * N)

    # Tiny input glue (3*B*N + B*N floats): channels-first views of the raw inputs.
    kpts_cf = jnp.transpose(kpts.astype(jnp.float32), (0, 2, 1))     # (B, 3, N)
    scores_cf = scores.astype(jnp.float32).reshape(B, 1, N)          # (B, 1, N)

    kp_spec = pl.BlockSpec((None, 3, tile), lambda b, t: (b, 0, t))
    sc_spec = pl.BlockSpec((None, 1, tile), lambda b, t: (b, 0, t))

    hidden = params[:-1]
    w_final, b_final = params[-1]
    feature_dim = w_final.shape[0]

    def stats_pass(layer_arrays, c_out):
        stat_shape = jax.ShapeDtypeStruct((c_out, 1), jnp.float32)
        stat_spec = pl.BlockSpec((c_out, 1), lambda b, t: (0, 0))
        return pl.pallas_call(
            _stats_kernel,
            grid=grid,
            in_specs=[kp_spec, sc_spec] + [_full_spec(a) for a in layer_arrays],
            out_specs=(stat_spec, stat_spec),
            out_shape=(stat_shape, stat_shape),
            compiler_params=pltpu.CompilerParams(
                dimension_semantics=("arbitrary", "arbitrary"),   # sequential accumulation
                vmem_limit_bytes=_VMEM_LIMIT),
        )(kpts_cf, scores_cf, *layer_arrays)

    # One stats pass per hidden layer, then fold BN (scale/shift) into that layer's conv.
    folded = []
    for w, b, gamma, beta in hidden:
        mean, m2 = stats_pass(_flatten_layer_arrays(folded + [(w, b)]), w.shape[0])
        var = m2 * (1.0 / n_total)                      # biased variance (training-mode BN)
        scale = gamma * jax.lax.rsqrt(var + BN_EPS)     # (C, 1)
        shift = beta - mean * scale
        folded.append((w * scale, b * scale + shift))

    # Final pass: fully folded MLP, output written directly as (B, feature_dim, N).
    apply_arrays = _flatten_layer_arrays(folded + [(w_final, b_final)])
    return pl.pallas_call(
        _apply_kernel,
        grid=grid,
        in_specs=[kp_spec, sc_spec] + [_full_spec(a) for a in apply_arrays],
        out_specs=pl.BlockSpec((None, feature_dim, tile), lambda b, t: (b, 0, t)),
        out_shape=jax.ShapeDtypeStruct((B, feature_dim, N), jnp.float32),
        compiler_params=pltpu.CompilerParams(
            dimension_semantics=("parallel", "parallel"),  # independent tiles -> both TCs on v7x
            vmem_limit_bytes=_VMEM_LIMIT),
    )(kpts_cf, scores_cf, *apply_arrays)


# ----------------------------------------------------------------------------------
# Synthetic parameters + pure-JAX reference (for a correctness check in __main__).
# ----------------------------------------------------------------------------------

def init_params(key, layers, feature_dim, input_dim=4):
    """Parameters with the PyTorch module's shapes: Conv1d(k=1) weights as (C_out, C_in),
    biases / BN affine as (C_out, 1); final-layer bias = 0 (nn.init.constant_)."""
    dims = [input_dim] + list(layers) + [feature_dim]
    params = []
    for i in range(1, len(dims)):
        c_in, c_out = dims[i - 1], dims[i]
        key, kw, kb = jax.random.split(key, 3)
        w = jax.random.normal(kw, (c_out, c_in), jnp.float32) * 0.1
        if i == len(dims) - 1:
            params.append((w, jnp.zeros((c_out, 1), jnp.float32)))
        else:
            bias = jax.random.normal(kb, (c_out, 1), jnp.float32) * 0.1
            gamma = jnp.ones((c_out, 1), jnp.float32)
            beta = jnp.zeros((c_out, 1), jnp.float32)
            params.append((w, bias, gamma, beta))
    return params


def keypoint_encoder_reference(kpts, scores, params):
    """Plain-JAX replica of the PyTorch forward (training-mode BatchNorm1d)."""
    h = jnp.concatenate([jnp.transpose(kpts, (0, 2, 1)), scores[:, None, :]],
                        axis=1).astype(jnp.float32)                       # (B, 4, N)
    for w, b, gamma, beta in params[:-1]:
        z = jnp.einsum("oc,bcn->bon", w, h,
                       precision=jax.lax.Precision.HIGHEST) + b[None]
        mean = jnp.mean(z, axis=(0, 2), keepdims=True)
        var = jnp.mean((z - mean) ** 2, axis=(0, 2), keepdims=True)
        z = (z - mean) * jax.lax.rsqrt(var + BN_EPS) * gamma[None] + beta[None]
        h = jnp.maximum(z, 0.0)
    w, b = params[-1]
    return jnp.einsum("oc,bcn->bon", w, h,
                      precision=jax.lax.Precision.HIGHEST) + b[None]


if __name__ == "__main__":
    B, N = 2, 1024                      # 2 point clouds, 1024 keypoints each
    layers = [32, 64, 128]              # hidden widths of MLP([4] + layers + [feature_dim])
    feature_dim = 128

    key = jax.random.PRNGKey(0)
    k_kpts, k_scores, k_params = jax.random.split(key, 3)
    kpts = jax.random.normal(k_kpts, (B, N, 3), jnp.float32)
    scores = jax.random.uniform(k_scores, (B, N), jnp.float32)
    params = init_params(k_params, layers, feature_dim)

    out = jax.jit(keypoint_encoder)(kpts, scores, params)
    out = jax.block_until_ready(out)

    assert out.shape == (B, feature_dim, N), out.shape
    assert bool(jnp.all(jnp.isfinite(out)))

    ref = keypoint_encoder_reference(kpts, scores, params)
    max_err = float(jnp.max(jnp.abs(out - ref)))
    assert max_err < 5e-2, f"mismatch vs reference: max abs err = {max_err}"
    print("KERNEL_OK")
</pallas_src>

<mosaic_0001>
module attributes {stable_mosaic.version = 11 : i64} {
  func.func @_stats_kernel(%arg0: i32, %arg1: i32, %arg2: memref<1x3x512xf32, #tpu.memory_space<vmem>>, %arg3: memref<1x1x512xf32, #tpu.memory_space<vmem>>, %arg4: memref<32x3xf32, #tpu.memory_space<vmem>>, %arg5: memref<32x1xf32, #tpu.memory_space<vmem>>, %arg6: memref<32x1xf32, #tpu.memory_space<vmem>>, %arg7: memref<32x1xf32, #tpu.memory_space<vmem>>, %arg8: memref<32x1xf32, #tpu.memory_space<vmem>>) attributes {dimension_semantics = [#tpu.dimension_semantics<arbitrary>, #tpu.dimension_semantics<arbitrary>], iteration_bounds = array<i64: 2, 2>, scalar_prefetch = 0 : i64, scratch_operands = 0 : i64, tpu.core_type = #tpu.core_type<tc>, window_params = [{transform_indices = @transform_0, window_bounds = array<i64: 1, 3, 512>}, {transform_indices = @transform_1, window_bounds = array<i64: 1, 1, 512>}, {pipeline_mode = #tpu.pipeline_mode<synchronous>, transform_indices = @transform_2, window_bounds = array<i64: 32, 3>}, {pipeline_mode = #tpu.pipeline_mode<synchronous>, transform_indices = @transform_3, window_bounds = array<i64: 32, 1>}, {pipeline_mode = #tpu.pipeline_mode<synchronous>, transform_indices = @transform_4, window_bounds = array<i64: 32, 1>}, {pipeline_mode = #tpu.pipeline_mode<synchronous>, transform_indices = @transform_5, window_bounds = array<i64: 32, 1>}, {pipeline_mode = #tpu.pipeline_mode<synchronous>, transform_indices = @transform_6, window_bounds = array<i64: 32, 1>}]} {
    %c0 = arith.constant 0 : index
    %c0_0 = arith.constant 0 : index
    %c0_1 = arith.constant 0 : index
    %0 = vector.load %arg2[%c0, %c0_0, %c0_1] : memref<1x3x512xf32, #tpu.memory_space<vmem>>, vector<1x3x512xf32>
    %1 = vector.shape_cast %0 : vector<1x3x512xf32> to vector<3x512xf32>
    %c0_2 = arith.constant 0 : index
    %c0_3 = arith.constant 0 : index
    %c0_4 = arith.constant 0 : index
    %2 = vector.load %arg3[%c0_2, %c0_3, %c0_4] : memref<1x1x512xf32, #tpu.memory_space<vmem>>, vector<1x1x512xf32>
    %3 = vector.shape_cast %2 : vector<1x1x512xf32> to vector<1x512xf32>
    %c0_5 = arith.constant 0 : index
    %c0_6 = arith.constant 0 : index
    %4 = vector.load %arg4[%c0_5, %c0_6] : memref<32x3xf32, #tpu.memory_space<vmem>>, vector<32x3xf32>
    %5 = vector.extract_strided_slice %4 {offsets = [0, 0], sizes = [32, 1], strides = [1, 1]} : vector<32x3xf32> to vector<32x1xf32>
    %6 = vector.extract_strided_slice %1 {offsets = [0, 0], sizes = [1, 512], strides = [1, 1]} : vector<3x512xf32> to vector<1x512xf32>
    %7 = vector.broadcast %5 : vector<32x1xf32> to vector<32x512xf32>
    %8 = vector.broadcast %6 : vector<1x512xf32> to vector<32x512xf32>
    %9 = arith.mulf %7, %8 : vector<32x512xf32>
    %10 = vector.extract_strided_slice %4 {offsets = [0, 1], sizes = [32, 1], strides = [1, 1]} : vector<32x3xf32> to vector<32x1xf32>
    %11 = vector.extract_strided_slice %1 {offsets = [1, 0], sizes = [1, 512], strides = [1, 1]} : vector<3x512xf32> to vector<1x512xf32>
    %12 = vector.broadcast %10 : vector<32x1xf32> to vector<32x512xf32>
    %13 = vector.broadcast %11 : vector<1x512xf32> to vector<32x512xf32>
    %14 = arith.mulf %12, %13 : vector<32x512xf32>
    %15 = arith.addf %9, %14 : vector<32x512xf32>
    %16 = vector.extract_strided_slice %4 {offsets = [0, 2], sizes = [32, 1], strides = [1, 1]} : vector<32x3xf32> to vector<32x1xf32>
    %17 = vector.extract_strided_slice %1 {offsets = [2, 0], sizes = [1, 512], strides = [1, 1]} : vector<3x512xf32> to vector<1x512xf32>
    %18 = vector.broadcast %16 : vector<32x1xf32> to vector<32x512xf32>
    %19 = vector.broadcast %17 : vector<1x512xf32> to vector<32x512xf32>
    %20 = arith.mulf %18, %19 : vector<32x512xf32>
    %21 = arith.addf %15, %20 : vector<32x512xf32>
    %c0_7 = arith.constant 0 : index
    %c0_8 = arith.constant 0 : index
    %22 = vector.load %arg5[%c0_7, %c0_8] : memref<32x1xf32, #tpu.memory_space<vmem>>, vector<32x1xf32>
    %23 = vector.broadcast %22 : vector<32x1xf32> to vector<32x512xf32>
    %24 = vector.broadcast %3 : vector<1x512xf32> to vector<32x512xf32>
    %25 = arith.mulf %23, %24 : vector<32x512xf32>
    %26 = arith.addf %21, %25 : vector<32x512xf32>
    %c0_9 = arith.constant 0 : index
    %c0_10 = arith.constant 0 : index
    %27 = vector.load %arg6[%c0_9, %c0_10] : memref<32x1xf32, #tpu.memory_space<vmem>>, vector<32x1xf32>
    %28 = vector.broadcast %27 : vector<32x1xf32> to vector<32x512xf32>
    %29 = arith.addf %26, %28 : vector<32x512xf32>
    %cst = arith.constant dense<0.000000e+00> : vector<32xf32>
    %30 = vector.multi_reduction <add>, %29, %cst [1] : vector<32x512xf32> to vector<32xf32>
    %31 = vector.shape_cast %30 : vector<32xf32> to vector<32x1xf32>
    %cst_11 = arith.constant 0.001953125 : f32
    %32 = vector.broadcast %cst_11 : f32 to vector<32x1xf32>
    %33 = arith.mulf %31, %32 : vector<32x1xf32>
    %34 = vector.broadcast %33 : vector<32x1xf32> to vector<32x512xf32>
    %35 = arith.subf %29, %34 : vector<32x512xf32>
    %36 = arith.mulf %35, %35 : vector<32x512xf32>
    %cst_12 = arith.constant dense<0.000000e+00> : vector<32xf32>
    %37 = vector.multi_reduction <add>, %36, %cst_12 [1] : vector<32x512xf32> to vector<32xf32>
    %38 = vector.shape_cast %37 : vector<32xf32> to vector<32x1xf32>
    %c0_i32 = arith.constant 0 : i32
    %39 = arith.cmpi eq, %arg0, %c0_i32 : i32
    %c0_i32_13 = arith.constant 0 : i32
    %40 = arith.cmpi eq, %arg1, %c0_i32_13 : i32
    %41 = arith.andi %39, %40 : i1
    %42 = arith.extui %41 : i1 to i32
    %c0_i32_14 = arith.constant 0 : i32
    %43 = arith.cmpi ne, %42, %c0_i32_14 : i32
    scf.if %43 {
      %c0_16 = arith.constant 0 : index
      %c0_17 = arith.constant 0 : index
      %47 = vector.load %arg7[%c0_16, %c0_17] : memref<32x1xf32, #tpu.memory_space<vmem>>, vector<32x1xf32>
      tpu.vector_store %arg7[%c0_16, %c0_17], %33 {strides = array<i32>} : memref<32x1xf32, #tpu.memory_space<vmem>>, vector<32x1xf32>,
      %c0_18 = arith.constant 0 : index
      %c0_19 = arith.constant 0 : index
      %48 = vector.load %arg8[%c0_18, %c0_19] : memref<32x1xf32, #tpu.memory_space<vmem>>, vector<32x1xf32>
      tpu.vector_store %arg8[%c0_18, %c0_19], %38 {strides = array<i32>} : memref<32x1xf32, #tpu.memory_space<vmem>>, vector<32x1xf32>,
    } else {
    }
    %true = arith.constant true
    %44 = arith.xori %41, %true : i1
    %45 = arith.extui %44 : i1 to i32
    %c0_i32_15 = arith.constant 0 : i32
    %46 = arith.cmpi ne, %45, %c0_i32_15 : i32
    scf.if %46 {
      %c2_i32 = arith.constant 2 : i32
      %47 = arith.muli %arg0, %c2_i32 : i32
      %48 = arith.addi %47, %arg1 : i32
      %c512_i32 = arith.constant 512 : i32
      %49 = arith.muli %48, %c512_i32 : i32
      %50 = arith.sitofp %49 : i32 to f32
      %cst_16 = arith.constant 5.120000e+02 : f32
      %51 = arith.addf %50, %cst_16 : f32
      %c0_17 = arith.constant 0 : index
      %c0_18 = arith.constant 0 : index
      %52 = vector.load %arg7[%c0_17, %c0_18] : memref<32x1xf32, #tpu.memory_space<vmem>>, vector<32x1xf32>
      %53 = arith.subf %33, %52 : vector<32x1xf32>
      %c0_19 = arith.constant 0 : index
      %c0_20 = arith.constant 0 : index
      %54 = vector.load %arg7[%c0_19, %c0_20] : memref<32x1xf32, #tpu.memory_space<vmem>>, vector<32x1xf32>
      %cst_21 = arith.constant 5.120000e+02 : f32
      %55 = arith.divf %cst_21, %51 : f32
      %56 = vector.broadcast %55 : f32 to vector<32x1xf32>
      %57 = arith.mulf %53, %56 : vector<32x1xf32>
      %58 = arith.addf %54, %57 : vector<32x1xf32>
      %c0_22 = arith.constant 0 : index
      %c0_23 = arith.constant 0 : index
      %59 = vector.load %arg7[%c0_22, %c0_23] : memref<32x1xf32, #tpu.memory_space<vmem>>, vector<32x1xf32>
      tpu.vector_store %arg7[%c0_22, %c0_23], %58 {strides = array<i32>} : memref<32x1xf32, #tpu.memory_space<vmem>>, vector<32x1xf32>,
      %c0_24 = arith.constant 0 : index
      %c0_25 = arith.constant 0 : index
      %60 = vector.load %arg8[%c0_24, %c0_25] : memref<32x1xf32, #tpu.memory_space<vmem>>, vector<32x1xf32>
      %61 = arith.addf %60, %38 : vector<32x1xf32>
      %62 = arith.mulf %53, %53 : vector<32x1xf32>
      %cst_26 = arith.constant 5.120000e+02 : f32
      %63 = arith.mulf %50, %cst_26 : f32
      %64 = arith.divf %63, %51 : f32
      %65 = vector.broadcast %64 : f32 to vector<32x1xf32>
      %66 = arith.mulf %62, %65 : vector<32x1xf32>
      %67 = arith.addf %61, %66 : vector<32x1xf32>
      %c0_27 = arith.constant 0 : index
      %c0_28 = arith.constant 0 : index
      %68 = vector.load %arg8[%c0_27, %c0_28] : memref<32x1xf32, #tpu.memory_space<vmem>>, vector<32x1xf32>
      tpu.vector_store %arg8[%c0_27, %c0_28], %67 {strides = array<i32>} : memref<32x1xf32, #tpu.memory_space<vmem>>, vector<32x1xf32>,
    } else {
    }
    return
  }
  func.func @transform_0(%arg0: i32, %arg1: i32) -> (i32, i32, i32) {
    %c0_i32 = arith.constant 0 : i32
    %c0_i32_0 = arith.constant 0 : i32
    return %arg0, %c0_i32, %arg1 : i32, i32, i32
  }
  func.func @transform_1(%arg0: i32, %arg1: i32) -> (i32, i32, i32) {
    %c0_i32 = arith.constant 0 : i32
    %c0_i32_0 = arith.constant 0 : i32
    return %arg0, %c0_i32, %arg1 : i32, i32, i32
  }
  func.func @transform_2(%arg0: i32, %arg1: i32) -> (i32, i32) {
    %c0_i32 = arith.constant 0 : i32
    %c0_i32_0 = arith.constant 0 : i32
    %c0_i32_1 = arith.constant 0 : i32
    return %c0_i32, %c0_i32_0 : i32, i32
  }
  func.func @transform_3(%arg0: i32, %arg1: i32) -> (i32, i32) {
    %c0_i32 = arith.constant 0 : i32
    %c0_i32_0 = arith.constant 0 : i32
    %c0_i32_1 = arith.constant 0 : i32
    return %c0_i32, %c0_i32_0 : i32, i32
  }
  func.func @transform_4(%arg0: i32, %arg1: i32) -> (i32, i32) {
    %c0_i32 = arith.constant 0 : i32
    %c0_i32_0 = arith.constant 0 : i32
    %c0_i32_1 = arith.constant 0 : i32
    return %c0_i32, %c0_i32_0 : i32, i32
  }
  func.func @transform_5(%arg0: i32, %arg1: i32) -> (i32, i32) {
    %c0_i32 = arith.constant 0 : i32
    %c0_i32_0 = arith.constant 0 : i32
    %c0_i32_1 = arith.constant 0 : i32
    return %c0_i32, %c0_i32_0 : i32, i32
  }
  func.func @transform_6(%arg0: i32, %arg1: i32) -> (i32, i32) {
    %c0_i32 = arith.constant 0 : i32
    %c0_i32_0 = arith.constant 0 : i32
    %c0_i32_1 = arith.constant 0 : i32
    return %c0_i32, %c0_i32_0 : i32, i32
  }
}

module attributes {stable_mosaic.version = 11 : i64} {
  func.func @_stats_kernel(%arg0: i32, %arg1: i32, %arg2: memref<1x3x512xf32, #tpu.memory_space<vmem>>, %arg3: memref<1x1x512xf32, #tpu.memory_space<vmem>>, %arg4: memref<32x3xf32, #tpu.memory_space<vmem>>, %arg5: memref<32x1xf32, #tpu.memory_space<vmem>>, %arg6: memref<32x1xf32, #tpu.memory_space<vmem>>, %arg7: memref<64x32xf32, #tpu.memory_space<vmem>>, %arg8: memref<64x1xf32, #tpu.memory_space<vmem>>, %arg9: memref<64x1xf32, #tpu.memory_space<vmem>>, %arg10: memref<64x1xf32, #tpu.memory_space<vmem>>) attributes {dimension_semantics = [#tpu.dimension_semantics<arbitrary>, #tpu.dimension_semantics<arbitrary>], iteration_bounds = array<i64: 2, 2>, scalar_prefetch = 0 : i64, scratch_operands = 0 : i64, tpu.core_type = #tpu.core_type<tc>, window_params = [{transform_indices = @transform_0, window_bounds = array<i64: 1, 3, 512>}, {transform_indices = @transform_1, window_bounds = array<i64: 1, 1, 512>}, {pipeline_mode = #tpu.pipeline_mode<synchronous>, transform_indices = @transform_2, window_bounds = array<i64: 32, 3>}, {pipeline_mode = #tpu.pipeline_mode<synchronous>, transform_indices = @transform_3, window_bounds = array<i64: 32, 1>}, {pipeline_mode = #tpu.pipeline_mode<synchronous>, transform_indices = @transform_4, window_bounds = array<i64: 32, 1>}, {pipeline_mode = #tpu.pipeline_mode<synchronous>, transform_indices = @transform_5, window_bounds = array<i64: 64, 32>}, {pipeline_mode = #tpu.pipeline_mode<synchronous>, transform_indices = @transform_6, window_bounds = array<i64: 64, 1>}, {pipeline_mode = #tpu.pipeline_mode<synchronous>, transform_indices = @transform_7, window_bounds = array<i64: 64, 1>}, {pipeline_mode = #tpu.pipeline_mode<synchronous>, transform_indices = @transform_8, window_bounds = array<i64: 64, 1>}]} {
    %c0 = arith.constant 0 : index
    %c0_0 = arith.constant 0 : index
    %c0_1 = arith.constant 0 : index
    %0 = vector.load %arg2[%c0, %c0_0, %c0_1] : memref<1x3x512xf32, #tpu.memory_space<vmem>>, vector<1x3x512xf32>
    %1 = vector.shape_cast %0 : vector<1x3x512xf32> to vector<3x512xf32>
    %c0_2 = arith.constant 0 : index
    %c0_3 = arith.constant 0 : index
    %c0_4 = arith.constant 0 : index
    %2 = vector.load %arg3[%c0_2, %c0_3, %c0_4] : memref<1x1x512xf32, #tpu.memory_space<vmem>>, vector<1x1x512xf32>
    %3 = vector.shape_cast %2 : vector<1x1x512xf32> to vector<1x512xf32>
    %c0_5 = arith.constant 0 : index
    %c0_6 = arith.constant 0 : index
    %4 = vector.load %arg4[%c0_5, %c0_6] : memref<32x3xf32, #tpu.memory_space<vmem>>, vector<32x3xf32>
    %5 = vector.extract_strided_slice %4 {offsets = [0, 0], sizes = [32, 1], strides = [1, 1]} : vector<32x3xf32> to vector<32x1xf32>
    %6 = vector.extract_strided_slice %1 {offsets = [0, 0], sizes = [1, 512], strides = [1, 1]} : vector<3x512xf32> to vector<1x512xf32>
    %7 = vector.broadcast %5 : vector<32x1xf32> to vector<32x512xf32>
    %8 = vector.broadcast %6 : vector<1x512xf32> to vector<32x512xf32>
    %9 = arith.mulf %7, %8 : vector<32x512xf32>
    %10 = vector.extract_strided_slice %4 {offsets = [0, 1], sizes = [32, 1], strides = [1, 1]} : vector<32x3xf32> to vector<32x1xf32>
    %11 = vector.extract_strided_slice %1 {offsets = [1, 0], sizes = [1, 512], strides = [1, 1]} : vector<3x512xf32> to vector<1x512xf32>
    %12 = vector.broadcast %10 : vector<32x1xf32> to vector<32x512xf32>
    %13 = vector.broadcast %11 : vector<1x512xf32> to vector<32x512xf32>
    %14 = arith.mulf %12, %13 : vector<32x512xf32>
    %15 = arith.addf %9, %14 : vector<32x512xf32>
    %16 = vector.extract_strided_slice %4 {offsets = [0, 2], sizes = [32, 1], strides = [1, 1]} : vector<32x3xf32> to vector<32x1xf32>
    %17 = vector.extract_strided_slice %1 {offsets = [2, 0], sizes = [1, 512], strides = [1, 1]} : vector<3x512xf32> to vector<1x512xf32>
    %18 = vector.broadcast %16 : vector<32x1xf32> to vector<32x512xf32>
    %19 = vector.broadcast %17 : vector<1x512xf32> to vector<32x512xf32>
    %20 = arith.mulf %18, %19 : vector<32x512xf32>
    %21 = arith.addf %15, %20 : vector<32x512xf32>
    %c0_7 = arith.constant 0 : index
    %c0_8 = arith.constant 0 : index
    %22 = vector.load %arg5[%c0_7, %c0_8] : memref<32x1xf32, #tpu.memory_space<vmem>>, vector<32x1xf32>
    %23 = vector.broadcast %22 : vector<32x1xf32> to vector<32x512xf32>
    %24 = vector.broadcast %3 : vector<1x512xf32> to vector<32x512xf32>
    %25 = arith.mulf %23, %24 : vector<32x512xf32>
    %26 = arith.addf %21, %25 : vector<32x512xf32>
    %c0_9 = arith.constant 0 : index
    %c0_10 = arith.constant 0 : index
    %27 = vector.load %arg6[%c0_9, %c0_10] : memref<32x1xf32, #tpu.memory_space<vmem>>, vector<32x1xf32>
    %28 = vector.broadcast %27 : vector<32x1xf32> to vector<32x512xf32>
    %29 = arith.addf %26, %28 : vector<32x512xf32>
    %cst = arith.constant 0.000000e+00 : f32
    %30 = vector.broadcast %cst : f32 to vector<32x512xf32>
    %31 = arith.maximumf %29, %30 : vector<32x512xf32>
    %c0_11 = arith.constant 0 : index
    %c0_12 = arith.constant 0 : index
    %32 = vector.load %arg7[%c0_11, %c0_12] : memref<64x32xf32, #tpu.memory_space<vmem>>, vector<64x32xf32>
    %cst_13 = arith.constant dense<0.000000e+00> : vector<64x512xf32>
    %33 = tpu.matmul %32, %31, %cst_13 {dimension_numbers = #tpu.dot_dimension_numbers<[1], [0], [0], [1], [0, 0, 1, 1], [], []>} : vector<64x32xf32>, vector<32x512xf32>, vector<64x512xf32> -> vector<64x512xf32>
    %c0_14 = arith.constant 0 : index
    %c0_15 = arith.constant 0 : index
    %34 = vector.load %arg8[%c0_14, %c0_15] : memref<64x1xf32, #tpu.memory_space<vmem>>, vector<64x1xf32>
    %35 = vector.broadcast %34 : vector<64x1xf32> to vector<64x512xf32>
    %36 = arith.addf %33, %35 : vector<64x512xf32>
    %cst_16 = arith.constant dense<0.000000e+00> : vector<64xf32>
    %37 = vector.multi_reduction <add>, %36, %cst_16 [1] : vector<64x512xf32> to vector<64xf32>
    %38 = vector.shape_cast %37 : vector<64xf32> to vector<64x1xf32>
    %cst_17 = arith.constant 0.001953125 : f32
    %39 = vector.broadcast %cst_17 : f32 to vector<64x1xf32>
    %40 = arith.mulf %38, %39 : vector<64x1xf32>
    %41 = vector.broadcast %40 : vector<64x1xf32> to vector<64x512xf32>
    %42 = arith.subf %36, %41 : vector<64x512xf32>
    %43 = arith.mulf %42, %42 : vector<64x512xf32>
    %cst_18 = arith.constant dense<0.000000e+00> : vector<64xf32>
    %44 = vector.multi_reduction <add>, %43, %cst_18 [1] : vector<64x512xf32> to vector<64xf32>
    %45 = vector.shape_cast %44 : vector<64xf32> to vector<64x1xf32>
    %c0_i32 = arith.constant 0 : i32
    %46 = arith.cmpi eq, %arg0, %c0_i32 : i32
    %c0_i32_19 = arith.constant 0 : i32
    %47 = arith.cmpi eq, %arg1, %c0_i32_19 : i32
    %48 = arith.andi %46, %47 : i1
    %49 = arith.extui %48 : i1 to i32
    %c0_i32_20 = arith.constant 0 : i32
    %50 = arith.cmpi ne, %49, %c0_i32_20 : i32
    scf.if %50 {
      %c0_22 = arith.constant 0 : index
      %c0_23 = arith.constant 0 : index
      %54 = vector.load %arg9[%c0_22, %c0_23] : memref<64x1xf32, #tpu.memory_space<vmem>>, vector<64x1xf32>
      tpu.vector_store %arg9[%c0_22, %c0_23], %40 {strides = array<i32>} : memref<64x1xf32, #tpu.memory_space<vmem>>, vector<64x1xf32>,
      %c0_24 = arith.constant 0 : index
      %c0_25 = arith.constant 0 : index
      %55 = vector.load %arg10[%c0_24, %c0_25] : memref<64x1xf32, #tpu.memory_space<vmem>>, vector<64x1xf32>
      tpu.vector_store %arg10[%c0_24, %c0_25], %45 {strides = array<i32>} : memref<64x1xf32, #tpu.memory_space<vmem>>, vector<64x1xf32>,
    } else {
    }
    %true = arith.constant true
    %51 = arith.xori %48, %true : i1
    %52 = arith.extui %51 : i1 to i32
    %c0_i32_21 = arith.constant 0 : i32
    %53 = arith.cmpi ne, %52, %c0_i32_21 : i32
    scf.if %53 {
      %c2_i32 = arith.constant 2 : i32
      %54 = arith.muli %arg0, %c2_i32 : i32
      %55 = arith.addi %54, %arg1 : i32
      %c512_i32 = arith.constant 512 : i32
      %56 = arith.muli %55, %c512_i32 : i32
      %57 = arith.sitofp %56 : i32 to f32
      %cst_22 = arith.constant 5.120000e+02 : f32
      %58 = arith.addf %57, %cst_22 : f32
      %c0_23 = arith.constant 0 : index
      %c0_24 = arith.constant 0 : index
      %59 = vector.load %arg9[%c0_23, %c0_24] : memref<64x1xf32, #tpu.memory_space<vmem>>, vector<64x1xf32>
      %60 = arith.subf %40, %59 : vector<64x1xf32>
      %c0_25 = arith.constant 0 : index
      %c0_26 = arith.constant 0 : index
      %61 = vector.load %arg9[%c0_25, %c0_26] : memref<64x1xf32, #tpu.memory_space<vmem>>, vector<64x1xf32>
      %cst_27 = arith.constant 5.120000e+02 : f32
      %62 = arith.divf %cst_27, %58 : f32
      %63 = vector.broadcast %62 : f32 to vector<64x1xf32>
      %64 = arith.mulf %60, %63 : vector<64x1xf32>
      %65 = arith.addf %61, %64 : vector<64x1xf32>
      %c0_28 = arith.constant 0 : index
      %c0_29 = arith.constant 0 : index
      %66 = vector.load %arg9[%c0_28, %c0_29] : memref<64x1xf32, #tpu.memory_space<vmem>>, vector<64x1xf32>
      tpu.vector_store %arg9[%c0_28, %c0_29], %65 {strides = array<i32>} : memref<64x1xf32, #tpu.memory_space<vmem>>, vector<64x1xf32>,
      %c0_30 = arith.constant 0 : index
      %c0_31 = arith.constant 0 : index
      %67 = vector.load %arg10[%c0_30, %c0_31] : memref<64x1xf32, #tpu.memory_space<vmem>>, vector<64x1xf32>
      %68 = arith.addf %67, %45 : vector<64x1xf32>
      %69 = arith.mulf %60, %60 : vector<64x1xf32>
      %cst_32 = arith.constant 5.120000e+02 : f32
      %70 = arith.mulf %57, %cst_32 : f32
      %71 = arith.divf %70, %58 : f32
      %72 = vector.broadcast %71 : f32 to vector<64x1xf32>
      %73 = arith.mulf %69, %72 : vector<64x1xf32>
      %74 = arith.addf %68, %73 : vector<64x1xf32>
      %c0_33 = arith.constant 0 : index
      %c0_34 = arith.constant 0 : index
      %75 = vector.load %arg10[%c0_33, %c0_34] : memref<64x1xf32, #tpu.memory_space<vmem>>, vector<64x1xf32>
      tpu.vector_store %arg10[%c0_33, %c0_34], %74 {strides = array<i32>} : memref<64x1xf32, #tpu.memory_space<vmem>>, vector<64x1xf32>,
    } else {
    }
    return
  }
  func.func @transform_0(%arg0: i32, %arg1: i32) -> (i32, i32, i32) {
    %c0_i32 = arith.constant 0 : i32
    %c0_i32_0 = arith.constant 0 : i32
    return %arg0, %c0_i32, %arg1 : i32, i32, i32
  }
  func.func @transform_1(%arg0: i32, %arg1: i32) -> (i32, i32, i32) {
    %c0_i32 = arith.constant 0 : i32
    %c0_i32_0 = arith.constant 0 : i32
    return %arg0, %c0_i32, %arg1 : i32, i32, i32
  }
  func.func @transform_2(%arg0: i32, %arg1: i32) -> (i32, i32) {
    %c0_i32 = arith.constant 0 : i32
    %c0_i32_0 = arith.constant 0 : i32
    %c0_i32_1 = arith.constant 0 : i32
    return %c0_i32, %c0_i32_0 : i32, i32
  }
  func.func @transform_3(%arg0: i32, %arg1: i32) -> (i32, i32) {
    %c0_i32 = arith.constant 0 : i32
    %c0_i32_0 = arith.constant 0 : i32
    %c0_i32_1 = arith.constant 0 : i32
    return %c0_i32, %c0_i32_0 : i32, i32
  }
  func.func @transform_4(%arg0: i32, %arg1: i32) -> (i32, i32) {
    %c0_i32 = arith.constant 0 : i32
    %c0_i32_0 = arith.constant 0 : i32
    %c0_i32_1 = arith.constant 0 : i32
    return %c0_i32, %c0_i32_0 : i32, i32
  }
  func.func @transform_5(%arg0: i32, %arg1: i32) -> (i32, i32) {
    %c0_i32 = arith.constant 0 : i32
    %c0_i32_0 = arith.constant 0 : i32
    %c0_i32_1 = arith.constant 0 : i32
    return %c0_i32, %c0_i32_0 : i32, i32
  }
  func.func @transform_6(%arg0: i32, %arg1: i32) -> (i32, i32) {
    %c0_i32 = arith.constant 0 : i32
    %c0_i32_0 = arith.constant 0 : i32
    %c0_i32_1 = arith.constant 0 : i32
    return %c0_i32, %c0_i32_0 : i32, i32
  }
  func.func @transform_7(%arg0: i32, %arg1: i32) -> (i32, i32) {
    %c0_i32 = arith.constant 0 : i32
    %c0_i32_0 = arith.constant 0 : i32
    %c0_i32_1 = arith.constant 0 : i32
    return %c0_i32, %c0_i32_0 : i32, i32
  }
  func.func @transform_8(%arg0: i32, %arg1: i32) -> (i32, i32) {
    %c0_i32 = arith.constant 0 : i32
    %c0_i32_0 = arith.constant 0 : i32
    %c0_i32_1 = arith.constant 0 : i32
    return %c0_i32, %c0_i32_0 : i32, i32
  }
}

module attributes {stable_mosaic.version = 11 : i64} {
  func.func @_stats_kernel(%arg0: i32, %arg1: i32, %arg2: memref<1x3x512xf32, #tpu.memory_space<vmem>>, %arg3: memref<1x1x512xf32, #tpu.memory_space<vmem>>, %arg4: memref<32x3xf32, #tpu.memory_space<vmem>>, %arg5: memref<32x1xf32, #tpu.memory_space<vmem>>, %arg6: memref<32x1xf32, #tpu.memory_space<vmem>>, %arg7: memref<64x32xf32, #tpu.memory_space<vmem>>, %arg8: memref<64x1xf32, #tpu.memory_space<vmem>>, %arg9: memref<128x64xf32, #tpu.memory_space<vmem>>, %arg10: memref<128x1xf32, #tpu.memory_space<vmem>>, %arg11: memref<128x1xf32, #tpu.memory_space<vmem>>, %arg12: memref<128x1xf32, #tpu.memory_space<vmem>>) attributes {dimension_semantics = [#tpu.dimension_semantics<arbitrary>, #tpu.dimension_semantics<arbitrary>], iteration_bounds = array<i64: 2, 2>, scalar_prefetch = 0 : i64, scratch_operands = 0 : i64, tpu.core_type = #tpu.core_type<tc>, window_params = [{transform_indices = @transform_0, window_bounds = array<i64: 1, 3, 512>}, {transform_indices = @transform_1, window_bounds = array<i64: 1, 1, 512>}, {pipeline_mode = #tpu.pipeline_mode<synchronous>, transform_indices = @transform_2, window_bounds = array<i64: 32, 3>}, {pipeline_mode = #tpu.pipeline_mode<synchronous>, transform_indices = @transform_3, window_bounds = array<i64: 32, 1>}, {pipeline_mode = #tpu.pipeline_mode<synchronous>, transform_indices = @transform_4, window_bounds = array<i64: 32, 1>}, {pipeline_mode = #tpu.pipeline_mode<synchronous>, transform_indices = @transform_5, window_bounds = array<i64: 64, 32>}, {pipeline_mode = #tpu.pipeline_mode<synchronous>, transform_indices = @transform_6, window_bounds = array<i64: 64, 1>}, {pipeline_mode = #tpu.pipeline_mode<synchronous>, transform_indices = @transform_7, window_bounds = array<i64: 128, 64>}, {pipeline_mode = #tpu.pipeline_mode<synchronous>, transform_indices = @transform_8, window_bounds = array<i64: 128, 1>}, {pipeline_mode = #tpu.pipeline_mode<synchronous>, transform_indices = @transform_9, window_bounds = array<i64: 128, 1>}, {pipeline_mode = #tpu.pipeline_mode<synchronous>, transform_indices = @transform_10, window_bounds = array<i64: 128, 1>}]} {
    %c0 = arith.constant 0 : index
    %c0_0 = arith.constant 0 : index
    %c0_1 = arith.constant 0 : index
    %0 = vector.load %arg2[%c0, %c0_0, %c0_1] : memref<1x3x512xf32, #tpu.memory_space<vmem>>, vector<1x3x512xf32>
    %1 = vector.shape_cast %0 : vector<1x3x512xf32> to vector<3x512xf32>
    %c0_2 = arith.constant 0 : index
    %c0_3 = arith.constant 0 : index
    %c0_4 = arith.constant 0 : index
    %2 = vector.load %arg3[%c0_2, %c0_3, %c0_4] : memref<1x1x512xf32, #tpu.memory_space<vmem>>, vector<1x1x512xf32>
    %3 = vector.shape_cast %2 : vector<1x1x512xf32> to vector<1x512xf32>
    %c0_5 = arith.constant 0 : index
    %c0_6 = arith.constant 0 : index
    %4 = vector.load %arg4[%c0_5, %c0_6] : memref<32x3xf32, #tpu.memory_space<vmem>>, vector<32x3xf32>
    %5 = vector.extract_strided_slice %4 {offsets = [0, 0], sizes = [32, 1], strides = [1, 1]} : vector<32x3xf32> to vector<32x1xf32>
    %6 = vector.extract_strided_slice %1 {offsets = [0, 0], sizes = [1, 512], strides = [1, 1]} : vector<3x512xf32> to vector<1x512xf32>
    %7 = vector.broadcast %5 : vector<32x1xf32> to vector<32x512xf32>
    %8 = vector.broadcast %6 : vector<1x512xf32> to vector<32x512xf32>
    %9 = arith.mulf %7, %8 : vector<32x512xf32>
    %10 = vector.extract_strided_slice %4 {offsets = [0, 1], sizes = [32, 1], strides = [1, 1]} : vector<32x3xf32> to vector<32x1xf32>
    %11 = vector.extract_strided_slice %1 {offsets = [1, 0], sizes = [1, 512], strides = [1, 1]} : vector<3x512xf32> to vector<1x512xf32>
    %12 = vector.broadcast %10 : vector<32x1xf32> to vector<32x512xf32>
    %13 = vector.broadcast %11 : vector<1x512xf32> to vector<32x512xf32>
    %14 = arith.mulf %12, %13 : vector<32x512xf32>
    %15 = arith.addf %9, %14 : vector<32x512xf32>
    %16 = vector.extract_strided_slice %4 {offsets = [0, 2], sizes = [32, 1], strides = [1, 1]} : vector<32x3xf32> to vector<32x1xf32>
    %17 = vector.extract_strided_slice %1 {offsets = [2, 0], sizes = [1, 512], strides = [1, 1]} : vector<3x512xf32> to vector<1x512xf32>
    %18 = vector.broadcast %16 : vector<32x1xf32> to vector<32x512xf32>
    %19 = vector.broadcast %17 : vector<1x512xf32> to vector<32x512xf32>
    %20 = arith.mulf %18, %19 : vector<32x512xf32>
    %21 = arith.addf %15, %20 : vector<32x512xf32>
    %c0_7 = arith.constant 0 : index
    %c0_8 = arith.constant 0 : index
    %22 = vector.load %arg5[%c0_7, %c0_8] : memref<32x1xf32, #tpu.memory_space<vmem>>, vector<32x1xf32>
    %23 = vector.broadcast %22 : vector<32x1xf32> to vector<32x512xf32>
    %24 = vector.broadcast %3 : vector<1x512xf32> to vector<32x512xf32>
    %25 = arith.mulf %23, %24 : vector<32x512xf32>
    %26 = arith.addf %21, %25 : vector<32x512xf32>
    %c0_9 = arith.constant 0 : index
    %c0_10 = arith.constant 0 : index
    %27 = vector.load %arg6[%c0_9, %c0_10] : memref<32x1xf32, #tpu.memory_space<vmem>>, vector<32x1xf32>
    %28 = vector.broadcast %27 : vector<32x1xf32> to vector<32x512xf32>
    %29 = arith.addf %26, %28 : vector<32x512xf32>
    %cst = arith.constant 0.000000e+00 : f32
    %30 = vector.broadcast %cst : f32 to vector<32x512xf32>
    %31 = arith.maximumf %29, %30 : vector<32x512xf32>
    %c0_11 = arith.constant 0 : index
    %c0_12 = arith.constant 0 : index
    %32 = vector.load %arg7[%c0_11, %c0_12] : memref<64x32xf32, #tpu.memory_space<vmem>>, vector<64x32xf32>
    %cst_13 = arith.constant dense<0.000000e+00> : vector<64x512xf32>
    %33 = tpu.matmul %32, %31, %cst_13 {dimension_numbers = #tpu.dot_dimension_numbers<[1], [0], [0], [1], [0, 0, 1, 1], [], []>} : vector<64x32xf32>, vector<32x512xf32>, vector<64x512xf32> -> vector<64x512xf32>
    %c0_14 = arith.constant 0 : index
    %c0_15 = arith.constant 0 : index
    %34 = vector.load %arg8[%c0_14, %c0_15] : memref<64x1xf32, #tpu.memory_space<vmem>>, vector<64x1xf32>
    %35 = vector.broadcast %34 : vector<64x1xf32> to vector<64x512xf32>
    %36 = arith.addf %33, %35 : vector<64x512xf32>
    %cst_16 = arith.constant 0.000000e+00 : f32
    %37 = vector.broadcast %cst_16 : f32 to vector<64x512xf32>
    %38 = arith.maximumf %36, %37 : vector<64x512xf32>
    %c0_17 = arith.constant 0 : index
    %c0_18 = arith.constant 0 : index
    %39 = vector.load %arg9[%c0_17, %c0_18] : memref<128x64xf32, #tpu.memory_space<vmem>>, vector<128x64xf32>
    %cst_19 = arith.constant dense<0.000000e+00> : vector<128x512xf32>
    %40 = tpu.matmul %39, %38, %cst_19 {dimension_numbers = #tpu.dot_dimension_numbers<[1], [0], [0], [1], [0, 0, 1, 1], [], []>} : vector<128x64xf32>, vector<64x512xf32>, vector<128x512xf32> -> vector<128x512xf32>
    %c0_20 = arith.constant 0 : index
    %c0_21 = arith.constant 0 : index
    %41 = vector.load %arg10[%c0_20, %c0_21] : memref<128x1xf32, #tpu.memory_space<vmem>>, vector<128x1xf32>
    %42 = vector.broadcast %41 : vector<128x1xf32> to vector<128x512xf32>
    %43 = arith.addf %40, %42 : vector<128x512xf32>
    %cst_22 = arith.constant dense<0.000000e+00> : vector<128xf32>
    %44 = vector.multi_reduction <add>, %43, %cst_22 [1] : vector<128x512xf32> to vector<128xf32>
    %45 = vector.shape_cast %44 : vector<128xf32> to vector<128x1xf32>
    %cst_23 = arith.constant 0.001953125 : f32
    %46 = vector.broadcast %cst_23 : f32 to vector<128x1xf32>
    %47 = arith.mulf %45, %46 : vector<128x1xf32>
    %48 = vector.broadcast %47 : vector<128x1xf32> to vector<128x512xf32>
    %49 = arith.subf %43, %48 : vector<128x512xf32>
    %50 = arith.mulf %49, %49 : vector<128x512xf32>
    %cst_24 = arith.constant dense<0.000000e+00> : vector<128xf32>
    %51 = vector.multi_reduction <add>, %50, %cst_24 [1] : vector<128x512xf32> to vector<128xf32>
    %52 = vector.shape_cast %51 : vector<128xf32> to vector<128x1xf32>
    %c0_i32 = arith.constant 0 : i32
    %53 = arith.cmpi eq, %arg0, %c0_i32 : i32
    %c0_i32_25 = arith.constant 0 : i32
    %54 = arith.cmpi eq, %arg1, %c0_i32_25 : i32
    %55 = arith.andi %53, %54 : i1
    %56 = arith.extui %55 : i1 to i32
    %c0_i32_26 = arith.constant 0 : i32
    %57 = arith.cmpi ne, %56, %c0_i32_26 : i32
    scf.if %57 {
      %c0_28 = arith.constant 0 : index
      %c0_29 = arith.constant 0 : index
      %61 = vector.load %arg11[%c0_28, %c0_29] : memref<128x1xf32, #tpu.memory_space<vmem>>, vector<128x1xf32>
      tpu.vector_store %arg11[%c0_28, %c0_29], %47 {strides = array<i32>} : memref<128x1xf32, #tpu.memory_space<vmem>>, vector<128x1xf32>,
      %c0_30 = arith.constant 0 : index
      %c0_31 = arith.constant 0 : index
      %62 = vector.load %arg12[%c0_30, %c0_31] : memref<128x1xf32, #tpu.memory_space<vmem>>, vector<128x1xf32>
      tpu.vector_store %arg12[%c0_30, %c0_31], %52 {strides = array<i32>} : memref<128x1xf32, #tpu.memory_space<vmem>>, vector<128x1xf32>,
    } else {
    }
    %true = arith.constant true
    %58 = arith.xori %55, %true : i1
    %59 = arith.extui %58 : i1 to i32
    %c0_i32_27 = arith.constant 0 : i32
    %60 = arith.cmpi ne, %59, %c0_i32_27 : i32
    scf.if %60 {
      %c2_i32 = arith.constant 2 : i32
      %61 = arith.muli %arg0, %c2_i32 : i32
      %62 = arith.addi %61, %arg1 : i32
      %c512_i32 = arith.constant 512 : i32
      %63 = arith.muli %62, %c512_i32 : i32
      %64 = arith.sitofp %63 : i32 to f32
      %cst_28 = arith.constant 5.120000e+02 : f32
      %65 = arith.addf %64, %cst_28 : f32
      %c0_29 = arith.constant 0 : index
      %c0_30 = arith.constant 0 : index
      %66 = vector.load %arg11[%c0_29, %c0_30] : memref<128x1xf32, #tpu.memory_space<vmem>>, vector<128x1xf32>
      %67 = arith.subf %47, %66 : vector<128x1xf32>
      %c0_31 = arith.constant 0 : index
      %c0_32 = arith.constant 0 : index
      %68 = vector.load %arg11[%c0_31, %c0_32] : memref<128x1xf32, #tpu.memory_space<vmem>>, vector<128x1xf32>
      %cst_33 = arith.constant 5.120000e+02 : f32
      %69 = arith.divf %cst_33, %65 : f32
      %70 = vector.broadcast %69 : f32 to vector<128x1xf32>
      %71 = arith.mulf %67, %70 : vector<128x1xf32>
      %72 = arith.addf %68, %71 : vector<128x1xf32>
      %c0_34 = arith.constant 0 : index
      %c0_35 = arith.constant 0 : index
      %73 = vector.load %arg11[%c0_34, %c0_35] : memref<128x1xf32, #tpu.memory_space<vmem>>, vector<128x1xf32>
      tpu.vector_store %arg11[%c0_34, %c0_35], %72 {strides = array<i32>} : memref<128x1xf32, #tpu.memory_space<vmem>>, vector<128x1xf32>,
      %c0_36 = arith.constant 0 : index
      %c0_37 = arith.constant 0 : index
      %74 = vector.load %arg12[%c0_36, %c0_37] : memref<128x1xf32, #tpu.memory_space<vmem>>, vector<128x1xf32>
      %75 = arith.addf %74, %52 : vector<128x1xf32>
      %76 = arith.mulf %67, %67 : vector<128x1xf32>
      %cst_38 = arith.constant 5.120000e+02 : f32
      %77 = arith.mulf %64, %cst_38 : f32
      %78 = arith.divf %77, %65 : f32
      %79 = vector.broadcast %78 : f32 to vector<128x1xf32>
      %80 = arith.mulf %76, %79 : vector<128x1xf32>
      %81 = arith.addf %75, %80 : vector<128x1xf32>
      %c0_39 = arith.constant 0 : index
      %c0_40 = arith.constant 0 : index
      %82 = vector.load %arg12[%c0_39, %c0_40] : memref<128x1xf32, #tpu.memory_space<vmem>>, vector<128x1xf32>
      tpu.vector_store %arg12[%c0_39, %c0_40], %81 {strides = array<i32>} : memref<128x1xf32, #tpu.memory_space<vmem>>, vector<128x1xf32>,
    } else {
    }
    return
  }
  func.func @transform_0(%arg0: i32, %arg1: i32) -> (i32, i32, i32) {
    %c0_i32 = arith.constant 0 : i32
    %c0_i32_0 = arith.constant 0 : i32
    return %arg0, %c0_i32, %arg1 : i32, i32, i32
  }
  func.func @transform_1(%arg0: i32, %arg1: i32) -> (i32, i32, i32) {
    %c0_i32 = arith.constant 0 : i32
    %c0_i32_0 = arith.constant 0 : i32
    return %arg0, %c0_i32, %arg1 : i32, i32, i32
  }
  func.func @transform_2(%arg0: i32, %arg1: i32) -> (i32, i32) {
    %c0_i32 = arith.constant 0 : i32
    %c0_i32_0 = arith.constant 0 : i32
    %c0_i32_1 = arith.constant 0 : i32
    return %c0_i32, %c0_i32_0 : i32, i32
  }
  func.func @transform_3(%arg0: i32, %arg1: i32) -> (i32, i32) {
    %c0_i32 = arith.constant 0 : i32
    %c0_i32_0 = arith.constant 0 : i32
    %c0_i32_1 = arith.constant 0 : i32
    return %c0_i32, %c0_i32_0 : i32, i32
  }
  func.func @transform_4(%arg0: i32, %arg1: i32) -> (i32, i32) {
    %c0_i32 = arith.constant 0 : i32
    %c0_i32_0 = arith.constant 0 : i32
    %c0_i32_1 = arith.constant 0 : i32
    return %c0_i32, %c0_i32_0 : i32, i32
  }
  func.func @transform_5(%arg0: i32, %arg1: i32) -> (i32, i32) {
    %c0_i32 = arith.constant 0 : i32
    %c0_i32_0 = arith.constant 0 : i32
    %c0_i32_1 = arith.constant 0 : i32
    return %c0_i32, %c0_i32_0 : i32, i32
  }
  func.func @transform_6(%arg0: i32, %arg1: i32) -> (i32, i32) {
    %c0_i32 = arith.constant 0 : i32
    %c0_i32_0 = arith.constant 0 : i32
    %c0_i32_1 = arith.constant 0 : i32
    return %c0_i32, %c0_i32_0 : i32, i32
  }
  func.func @transform_7(%arg0: i32, %arg1: i32) -> (i32, i32) {
    %c0_i32 = arith.constant 0 : i32
    %c0_i32_0 = arith.constant 0 : i32
    %c0_i32_1 = arith.constant 0 : i32
    return %c0_i32, %c0_i32_0 : i32, i32
  }
  func.func @transform_8(%arg0: i32, %arg1: i32) -> (i32, i32) {
    %c0_i32 = arith.constant 0 : i32
    %c0_i32_0 = arith.constant 0 : i32
    %c0_i32_1 = arith.constant 0 : i32
    return %c0_i32, %c0_i32_0 : i32, i32
  }
  func.func @transform_9(%arg0: i32, %arg1: i32) -> (i32, i32) {
    %c0_i32 = arith.constant 0 : i32
    %c0_i32_0 = arith.constant 0 : i32
    %c0_i32_1 = arith.constant 0 : i32
    return %c0_i32, %c0_i32_0 : i32, i32
  }
  func.func @transform_10(%arg0: i32, %arg1: i32) -> (i32, i32) {
    %c0_i32 = arith.constant 0 : i32
    %c0_i32_0 = arith.constant 0 : i32
    %c0_i32_1 = arith.constant 0 : i32
    return %c0_i32, %c0_i32_0 : i32, i32
  }
}

module attributes {stable_mosaic.version = 11 : i64} {
  func.func @_apply_kernel(%arg0: i32, %arg1: i32, %arg2: memref<1x3x512xf32, #tpu.memory_space<vmem>>, %arg3: memref<1x1x512xf32, #tpu.memory_space<vmem>>, %arg4: memref<32x3xf32, #tpu.memory_space<vmem>>, %arg5: memref<32x1xf32, #tpu.memory_space<vmem>>, %arg6: memref<32x1xf32, #tpu.memory_space<vmem>>, %arg7: memref<64x32xf32, #tpu.memory_space<vmem>>, %arg8: memref<64x1xf32, #tpu.memory_space<vmem>>, %arg9: memref<128x64xf32, #tpu.memory_space<vmem>>, %arg10: memref<128x1xf32, #tpu.memory_space<vmem>>, %arg11: memref<128x128xf32, #tpu.memory_space<vmem>>, %arg12: memref<128x1xf32, #tpu.memory_space<vmem>>, %arg13: memref<1x128x512xf32, #tpu.memory_space<vmem>>) attributes {dimension_semantics = [#tpu.dimension_semantics<parallel>, #tpu.dimension_semantics<parallel>], iteration_bounds = array<i64: 2, 2>, scalar_prefetch = 0 : i64, scratch_operands = 0 : i64, tpu.core_type = #tpu.core_type<tc>, window_params = [{transform_indices = @transform_0, window_bounds = array<i64: 1, 3, 512>}, {transform_indices = @transform_1, window_bounds = array<i64: 1, 1, 512>}, {pipeline_mode = #tpu.pipeline_mode<synchronous>, transform_indices = @transform_2, window_bounds = array<i64: 32, 3>}, {pipeline_mode = #tpu.pipeline_mode<synchronous>, transform_indices = @transform_3, window_bounds = array<i64: 32, 1>}, {pipeline_mode = #tpu.pipeline_mode<synchronous>, transform_indices = @transform_4, window_bounds = array<i64: 32, 1>}, {pipeline_mode = #tpu.pipeline_mode<synchronous>, transform_indices = @transform_5, window_bounds = array<i64: 64, 32>}, {pipeline_mode = #tpu.pipeline_mode<synchronous>, transform_indices = @transform_6, window_bounds = array<i64: 64, 1>}, {pipeline_mode = #tpu.pipeline_mode<synchronous>, transform_indices = @transform_7, window_bounds = array<i64: 128, 64>}, {pipeline_mode = #tpu.pipeline_mode<synchronous>, transform_indices = @transform_8, window_bounds = array<i64: 128, 1>}, {pipeline_mode = #tpu.pipeline_mode<synchronous>, transform_indices = @transform_9, window_bounds = array<i64: 128, 128>}, {pipeline_mode = #tpu.pipeline_mode<synchronous>, transform_indices = @transform_10, window_bounds = array<i64: 128, 1>}, {transform_indices = @transform_11, window_bounds = array<i64: 1, 128, 512>}]} {
    %c0 = arith.constant 0 : index
    %c0_0 = arith.constant 0 : index
    %c0_1 = arith.constant 0 : index
    %0 = vector.load %arg2[%c0, %c0_0, %c0_1] : memref<1x3x512xf32, #tpu.memory_space<vmem>>, vector<1x3x512xf32>
    %1 = vector.shape_cast %0 : vector<1x3x512xf32> to vector<3x512xf32>
    %c0_2 = arith.constant 0 : index
    %c0_3 = arith.constant 0 : index
    %c0_4 = arith.constant 0 : index
    %2 = vector.load %arg3[%c0_2, %c0_3, %c0_4] : memref<1x1x512xf32, #tpu.memory_space<vmem>>, vector<1x1x512xf32>
    %3 = vector.shape_cast %2 : vector<1x1x512xf32> to vector<1x512xf32>
    %c0_5 = arith.constant 0 : index
    %c0_6 = arith.constant 0 : index
    %4 = vector.load %arg4[%c0_5, %c0_6] : memref<32x3xf32, #tpu.memory_space<vmem>>, vector<32x3xf32>
    %5 = vector.extract_strided_slice %4 {offsets = [0, 0], sizes = [32, 1], strides = [1, 1]} : vector<32x3xf32> to vector<32x1xf32>
    %6 = vector.extract_strided_slice %1 {offsets = [0, 0], sizes = [1, 512], strides = [1, 1]} : vector<3x512xf32> to vector<1x512xf32>
    %7 = vector.broadcast %5 : vector<32x1xf32> to vector<32x512xf32>
    %8 = vector.broadcast %6 : vector<1x512xf32> to vector<32x512xf32>
    %9 = arith.mulf %7, %8 : vector<32x512xf32>
    %10 = vector.extract_strided_slice %4 {offsets = [0, 1], sizes = [32, 1], strides = [1, 1]} : vector<32x3xf32> to vector<32x1xf32>
    %11 = vector.extract_strided_slice %1 {offsets = [1, 0], sizes = [1, 512], strides = [1, 1]} : vector<3x512xf32> to vector<1x512xf32>
    %12 = vector.broadcast %10 : vector<32x1xf32> to vector<32x512xf32>
    %13 = vector.broadcast %11 : vector<1x512xf32> to vector<32x512xf32>
    %14 = arith.mulf %12, %13 : vector<32x512xf32>
    %15 = arith.addf %9, %14 : vector<32x512xf32>
    %16 = vector.extract_strided_slice %4 {offsets = [0, 2], sizes = [32, 1], strides = [1, 1]} : vector<32x3xf32> to vector<32x1xf32>
    %17 = vector.extract_strided_slice %1 {offsets = [2, 0], sizes = [1, 512], strides = [1, 1]} : vector<3x512xf32> to vector<1x512xf32>
    %18 = vector.broadcast %16 : vector<32x1xf32> to vector<32x512xf32>
    %19 = vector.broadcast %17 : vector<1x512xf32> to vector<32x512xf32>
    %20 = arith.mulf %18, %19 : vector<32x512xf32>
    %21 = arith.addf %15, %20 : vector<32x512xf32>
    %c0_7 = arith.constant 0 : index
    %c0_8 = arith.constant 0 : index
    %22 = vector.load %arg5[%c0_7, %c0_8] : memref<32x1xf32, #tpu.memory_space<vmem>>, vector<32x1xf32>
    %23 = vector.broadcast %22 : vector<32x1xf32> to vector<32x512xf32>
    %24 = vector.broadcast %3 : vector<1x512xf32> to vector<32x512xf32>
    %25 = arith.mulf %23, %24 : vector<32x512xf32>
    %26 = arith.addf %21, %25 : vector<32x512xf32>
    %c0_9 = arith.constant 0 : index
    %c0_10 = arith.constant 0 : index
    %27 = vector.load %arg6[%c0_9, %c0_10] : memref<32x1xf32, #tpu.memory_space<vmem>>, vector<32x1xf32>
    %28 = vector.broadcast %27 : vector<32x1xf32> to vector<32x512xf32>
    %29 = arith.addf %26, %28 : vector<32x512xf32>
    %cst = arith.constant 0.000000e+00 : f32
    %30 = vector.broadcast %cst : f32 to vector<32x512xf32>
    %31 = arith.maximumf %29, %30 : vector<32x512xf32>
    %c0_11 = arith.constant 0 : index
    %c0_12 = arith.constant 0 : index
    %32 = vector.load %arg7[%c0_11, %c0_12] : memref<64x32xf32, #tpu.memory_space<vmem>>, vector<64x32xf32>
    %cst_13 = arith.constant dense<0.000000e+00> : vector<64x512xf32>
    %33 = tpu.matmul %32, %31, %cst_13 {dimension_numbers = #tpu.dot_dimension_numbers<[1], [0], [0], [1], [0, 0, 1, 1], [], []>} : vector<64x32xf32>, vector<32x512xf32>, vector<64x512xf32> -> vector<64x512xf32>
    %c0_14 = arith.constant 0 : index
    %c0_15 = arith.constant 0 : index
    %34 = vector.load %arg8[%c0_14, %c0_15] : memref<64x1xf32, #tpu.memory_space<vmem>>, vector<64x1xf32>
    %35 = vector.broadcast %34 : vector<64x1xf32> to vector<64x512xf32>
    %36 = arith.addf %33, %35 : vector<64x512xf32>
    %cst_16 = arith.constant 0.000000e+00 : f32
    %37 = vector.broadcast %cst_16 : f32 to vector<64x512xf32>
    %38 = arith.maximumf %36, %37 : vector<64x512xf32>
    %c0_17 = arith.constant 0 : index
    %c0_18 = arith.constant 0 : index
    %39 = vector.load %arg9[%c0_17, %c0_18] : memref<128x64xf32, #tpu.memory_space<vmem>>, vector<128x64xf32>
    %cst_19 = arith.constant dense<0.000000e+00> : vector<128x512xf32>
    %40 = tpu.matmul %39, %38, %cst_19 {dimension_numbers = #tpu.dot_dimension_numbers<[1], [0], [0], [1], [0, 0, 1, 1], [], []>} : vector<128x64xf32>, vector<64x512xf32>, vector<128x512xf32> -> vector<128x512xf32>
    %c0_20 = arith.constant 0 : index
    %c0_21 = arith.constant 0 : index
    %41 = vector.load %arg10[%c0_20, %c0_21] : memref<128x1xf32, #tpu.memory_space<vmem>>, vector<128x1xf32>
    %42 = vector.broadcast %41 : vector<128x1xf32> to vector<128x512xf32>
    %43 = arith.addf %40, %42 : vector<128x512xf32>
    %cst_22 = arith.constant 0.000000e+00 : f32
    %44 = vector.broadcast %cst_22 : f32 to vector<128x512xf32>
    %45 = arith.maximumf %43, %44 : vector<128x512xf32>
    %c0_23 = arith.constant 0 : index
    %c0_24 = arith.constant 0 : index
    %46 = vector.load %arg11[%c0_23, %c0_24] : memref<128x128xf32, #tpu.memory_space<vmem>>, vector<128x128xf32>
    %cst_25 = arith.constant dense<0.000000e+00> : vector<128x512xf32>
    %47 = tpu.matmul %46, %45, %cst_25 {dimension_numbers = #tpu.dot_dimension_numbers<[1], [0], [0], [1], [0, 0, 1, 1], [], []>} : vector<128x128xf32>, vector<128x512xf32>, vector<128x512xf32> -> vector<128x512xf32>
    %c0_26 = arith.constant 0 : index
    %c0_27 = arith.constant 0 : index
    %48 = vector.load %arg12[%c0_26, %c0_27] : memref<128x1xf32, #tpu.memory_space<vmem>>, vector<128x1xf32>
    %49 = vector.broadcast %48 : vector<128x1xf32> to vector<128x512xf32>
    %50 = arith.addf %47, %49 : vector<128x512xf32>
    %c0_28 = arith.constant 0 : index
    %c0_29 = arith.constant 0 : index
    %c0_30 = arith.constant 0 : index
    %51 = vector.load %arg13[%c0_28, %c0_29, %c0_30] : memref<1x128x512xf32, #tpu.memory_space<vmem>>, vector<1x128x512xf32>
    %52 = vector.shape_cast %51 : vector<1x128x512xf32> to vector<128x512xf32>
    %53 = vector.shape_cast %50 : vector<128x512xf32> to vector<1x128x512xf32>
    tpu.vector_store %arg13[%c0_28, %c0_29, %c0_30], %53 {strides = array<i32>} : memref<1x128x512xf32, #tpu.memory_space<vmem>>, vector<1x128x512xf32>,
    return
  }
  func.func @transform_0(%arg0: i32, %arg1: i32) -> (i32, i32, i32) {
    %c0_i32 = arith.constant 0 : i32
    %c0_i32_0 = arith.constant 0 : i32
    return %arg0, %c0_i32, %arg1 : i32, i32, i32
  }
  func.func @transform_1(%arg0: i32, %arg1: i32) -> (i32, i32, i32) {
    %c0_i32 = arith.constant 0 : i32
    %c0_i32_0 = arith.constant 0 : i32
    return %arg0, %c0_i32, %arg1 : i32, i32, i32
  }
  func.func @transform_2(%arg0: i32, %arg1: i32) -> (i32, i32) {
    %c0_i32 = arith.constant 0 : i32
    %c0_i32_0 = arith.constant 0 : i32
    %c0_i32_1 = arith.constant 0 : i32
    return %c0_i32, %c0_i32_0 : i32, i32
  }
  func.func @transform_3(%arg0: i32, %arg1: i32) -> (i32, i32) {
    %c0_i32 = arith.constant 0 : i32
    %c0_i32_0 = arith.constant 0 : i32
    %c0_i32_1 = arith.constant 0 : i32
    return %c0_i32, %c0_i32_0 : i32, i32
  }
  func.func @transform_4(%arg0: i32, %arg1: i32) -> (i32, i32) {
    %c0_i32 = arith.constant 0 : i32
    %c0_i32_0 = arith.constant 0 : i32
    %c0_i32_1 = arith.constant 0 : i32
    return %c0_i32, %c0_i32_0 : i32, i32
  }
  func.func @transform_5(%arg0: i32, %arg1: i32) -> (i32, i32) {
    %c0_i32 = arith.constant 0 : i32
    %c0_i32_0 = arith.constant 0 : i32
    %c0_i32_1 = arith.constant 0 : i32
    return %c0_i32, %c0_i32_0 : i32, i32
  }
  func.func @transform_6(%arg0: i32, %arg1: i32) -> (i32, i32) {
    %c0_i32 = arith.constant 0 : i32
    %c0_i32_0 = arith.constant 0 : i32
    %c0_i32_1 = arith.constant 0 : i32
    return %c0_i32, %c0_i32_0 : i32, i32
  }
  func.func @transform_7(%arg0: i32, %arg1: i32) -> (i32, i32) {
    %c0_i32 = arith.constant 0 : i32
    %c0_i32_0 = arith.constant 0 : i32
    %c0_i32_1 = arith.constant 0 : i32
    return %c0_i32, %c0_i32_0 : i32, i32
  }
  func.func @transform_8(%arg0: i32, %arg1: i32) -> (i32, i32) {
    %c0_i32 = arith.constant 0 : i32
    %c0_i32_0 = arith.constant 0 : i32
    %c0_i32_1 = arith.constant 0 : i32
    return %c0_i32, %c0_i32_0 : i32, i32
  }
  func.func @transform_9(%arg0: i32, %arg1: i32) -> (i32, i32) {
    %c0_i32 = arith.constant 0 : i32
    %c0_i32_0 = arith.constant 0 : i32
    %c0_i32_1 = arith.constant 0 : i32
    return %c0_i32, %c0_i32_0 : i32, i32
  }
  func.func @transform_10(%arg0: i32, %arg1: i32) -> (i32, i32) {
    %c0_i32 = arith.constant 0 : i32
    %c0_i32_0 = arith.constant 0 : i32
    %c0_i32_1 = arith.constant 0 : i32
    return %c0_i32, %c0_i32_0 : i32, i32
  }
  func.func @transform_11(%arg0: i32, %arg1: i32) -> (i32, i32, i32) {
    %c0_i32 = arith.constant 0 : i32
    %c0_i32_0 = arith.constant 0 : i32
    return %arg0, %c0_i32, %arg1 : i32, i32, i32
  }
}

</mosaic_0001>

<llo_original>
// kernel: sub.3
$region0: #{sub.3}
  #allocation0 [shape = 's32[1]{0}', space=sflag, size = 0x4, scoped, tag = 'scoped memory for sub.3']
  %s0 = inlined_call_operand.vmem [shape: f32[32,1], index: 0, kind: input, shape index: {}]
  %s1 = inlined_call_operand.vmem [shape: f32[32,1], index: 1, kind: input, shape index: {}]
  %s2 = inlined_call_operand.vmem [shape: f32[32,1], index: 2, kind: output, shape index: {}]
  %v3 = vld [vmem:[%s0] sm:$0x1]
  %v4 = vld [vmem:[%s1] sm:$0x1]
  %5 = xla_tuple %v3, %v4
  %6 = xla_tuple %5
  %v7 = vsub.f32 %v3, %v4
  %8 = xla_tuple %v7
  %9 = vst [vmem:[%s2] sm:$0x1] %v7

// kernel: sub.4
$region0: #{sub.4}
  #allocation0 [shape = 's32[1]{0}', space=sflag, size = 0x4, scoped, tag = 'scoped memory for sub.4']
  %s0 = inlined_call_operand.vmem [shape: f32[64,1], index: 0, kind: input, shape index: {}]
  %s1 = inlined_call_operand.vmem [shape: f32[64,1], index: 1, kind: input, shape index: {}]
  %s2 = inlined_call_operand.vmem [shape: f32[64,1], index: 2, kind: output, shape index: {}]
  %v3 = vld [vmem:[%s0] sm:$0x1]
  %v4 = vld [vmem:[%s1] sm:$0x1]
  %5 = xla_tuple %v3, %v4
  %6 = xla_tuple %5
  %v7 = vsub.f32 %v3, %v4
  %8 = xla_tuple %v7
  %9 = vst [vmem:[%s2] sm:$0x1] %v7

// kernel: sub.5
$region0: #{sub.5}
  #allocation0 [shape = 's32[1]{0}', space=sflag, size = 0x4, scoped, tag = 'scoped memory for sub.5']
  %s0 = inlined_call_operand.vmem [shape: f32[128,1], index: 0, kind: input, shape index: {}]
  %s1 = inlined_call_operand.vmem [shape: f32[128,1], index: 1, kind: input, shape index: {}]
  %s2 = inlined_call_operand.vmem [shape: f32[128,1], index: 2, kind: output, shape index: {}]
  %v3 = vld [vmem:[%s0] sm:$0x1]
  %v4 = vld [vmem:[%s1] sm:$0x1]
  %5 = xla_tuple %v3, %v4
  %6 = xla_tuple %5
  %v7 = vsub.f32 %v3, %v4
  %8 = xla_tuple %v7
  %9 = vst [vmem:[%s2] sm:$0x1] %v7

// kernel: keypoint_encoder.4
$region0: #{keypoint_encoder.4}
  #allocation0 [shape = 'u32[]', space=smem, size = 0x4, offset = 0x4, fixed_abs, tag = 'smem constant byte address 0x4 - core index']
  #allocation1 [shape = 'u32[144,128]{1,0:T(1,128)}', space=vmem, size = 0x12000, scoped, tag = 'internal scratch']
  %s0 = inlined_call_operand.vmem [shape: f32[2,3,1024], index: 0, kind: input, shape index: {}]
  %s1 = inlined_call_operand.vmem [shape: f32[2,1,1024], index: 1, kind: input, shape index: {}]
  %s2 = inlined_call_operand.vmem [shape: f32[32,3], index: 2, kind: input, shape index: {}]
  %s3 = inlined_call_operand.vmem [shape: f32[32,1], index: 3, kind: input, shape index: {}]
  %s4 = inlined_call_operand.vmem [shape: f32[32,1], index: 4, kind: input, shape index: {}]
  %s5 = inlined_call_operand.vmem [shape: f32[32,1], index: 5, kind: output, shape index: {0}]
  %s6 = inlined_call_operand.vmem [shape: f32[32,1], index: 6, kind: output, shape index: {1}]
  %7 = xla_tuple %s5, %s6
  %s8 = sld [smem:[#allocation0]]
  $region69: #{keypoint_encoder.4} parent=0
    _
  %s10 = ssub.s32 1, %s8
  %s11 = scalar_select 0, %s10, %s8
  loop: start=0, step=1, limit=6
  $region2: #{keypoint_encoder.4} parent=0 // loop_pre_header
    _
  $region3: #{keypoint_encoder.4} parent=0 // loop_header
    %s13 = sphi 0, %s17
    %p14 = scmp.ge.s32.totalorder %s13, 6
    %s20 = sphi 0, %s32
    %s21 = sphi 0, %s28
    %s22 = sphi 0, %s20
    %s23 = sphi 0, %s21
    %s24 = sphi 0, %s22
    %s25 = sphi 0, %s23
    %s37 = sphi 0, %s39
    %s40 = sphi 0, %s37
    %s41 = sphi 0, %s40
    %s57 = sphi 0, %s41
    %s65 = sphi 0, %s67
    %s68 = sphi 0, %s65
    %s69 = sphi 0, %s68
    %s85 = sphi 0, %s69
    %s89 = sphi 0, %s89
    %s91 = sphi 0, %s89
    %s92 = sphi 0, %s91
    %s106 = sphi 0, %s92
    %s110 = sphi 0, %s110
    %s112 = sphi 0, %s110
    %s113 = sphi 0, %s112
    %s127 = sphi 0, %s113
    %s131 = sphi 0, %s131
    %s133 = sphi 0, %s131
    %s134 = sphi 0, %s133
    %s148 = sphi 0, %s134
    %s152 = sphi 0, %s152
    %s154 = sphi 0, %s152
    %s155 = sphi 0, %s154
    %s169 = sphi 0, %s155
    %s173 = sphi 0, %s173
    %s175 = sphi 0, %s173
    %s176 = sphi 0, %s175
    %s190 = sphi 0, %s176
  $region4: #{keypoint_encoder.4} parent=0 // loop_header_branch
    %16 = sbr.rel (%p14) target = $region8
  $region5: #{keypoint_encoder.4} parent=0 // loop_body
    %s18 = ssub.s32 %s13, 1
    %s19 = ssub.s32 %s13, 2
    %s26 = sadd.s32 1, %s21
    %p27 = scmp.ge.s32.totalorder %s26, 2
    %s28 = scalar_select %p27, 0, %s26
    %s29 = sadd.s32 1, %s20
    %s30 = scalar_select %p27, %s29, %s20
    %p31 = scmp.ge.s32.totalorder %s30, 2
    %s32 = scalar_select %p31, 0, %s30
    %s33 = ssub.s32 %s20, %s32
    %s34 = ssub.s32 %s21, %s28
    %s35 = sor.u32 %s33, %s34
    %p36 = scmp.eq.s32.totalorder %s35, 0
    %s38 = sadd.s32 %s37, 1
    %s39 = scalar_select %p36, %s37, %s38
    %p42 = pneg %p36
    %p43 = scmp.eq.s32.totalorder %s13, 3
    %p44 = por %p42, %p43
    %p45 = scmp.ne.s32.totalorder %s37, %s40
    %p46 = scmp.eq.s32.totalorder %s13, 0
    %p47 = por %p45, %p46
    %p48 = scmp.ne.s32.totalorder %s37, %s40
    %p49 = scmp.eq.s32.totalorder %s18, 3
    %p50 = por %p48, %p49
    %p51 = scmp.ne.s32.totalorder %s40, %s41
    %p52 = scmp.eq.s32.totalorder %s18, 0
    %p53 = por %p51, %p52
    %p54 = scmp.ne.s32.totalorder %s40, %s41
    %p55 = scmp.eq.s32.totalorder %s19, 3
    %p56 = por %p54, %p55
    %p58 = scmp.ne.s32.totalorder %s41, %s57
    %p59 = scmp.eq.s32.totalorder %s19, 0
    %p60 = por %p58, %p59
    %s61 = ssub.s32 %s20, %s32
    %s62 = ssub.s32 %s21, %s28
    %s63 = sor.u32 %s61, %s62
    %p64 = scmp.eq.s32.totalorder %s63, 0
    %s66 = sadd.s32 %s65, 1
    %s67 = scalar_select %p64, %s65, %s66
    %p70 = pneg %p64
    %p71 = scmp.eq.s32.totalorder %s13, 3
    %p72 = por %p70, %p71
    %p73 = scmp.ne.s32.totalorder %s65, %s68
    %p74 = scmp.eq.s32.totalorder %s13, 0
    %p75 = por %p73, %p74
    %p76 = scmp.ne.s32.totalorder %s65, %s68
    %p77 = scmp.eq.s32.totalorder %s18, 3
    %p78 = por %p76, %p77
    %p79 = scmp.ne.s32.totalorder %s68, %s69
    %p80 = scmp.eq.s32.totalorder %s18, 0
    %p81 = por %p79, %p80
    %p82 = scmp.ne.s32.totalorder %s68, %s69
    %p83 = scmp.eq.s32.totalorder %s19, 3
    %p84 = por %p82, %p83
    %p86 = scmp.ne.s32.totalorder %s69, %s85
    %p87 = scmp.eq.s32.totalorder %s19, 0
    %p88 = por %p86, %p87
    %s90 = sadd.s32 %s89, 1
    %p93 = scmp.eq.s32.totalorder %s13, 3
    %p94 = scmp.ne.s32.totalorder %s89, %s91
    %p95 = scmp.eq.s32.totalorder %s13, 0
    %p96 = por %p94, %p95
    %p97 = scmp.ne.s32.totalorder %s89, %s91
    %p98 = scmp.eq.s32.totalorder %s18, 3
    %p99 = por %p97, %p98
    %p100 = scmp.ne.s32.totalorder %s91, %s92
    %p101 = scmp.eq.s32.totalorder %s18, 0
    %p102 = por %p100, %p101
    %p103 = scmp.ne.s32.totalorder %s91, %s92
    %p104 = scmp.eq.s32.totalorder %s19, 3
    %p105 = por %p103, %p104
    %p107 = scmp.ne.s32.totalorder %s92, %s106
    %p108 = scmp.eq.s32.totalorder %s19, 0
    %p109 = por %p107, %p108
    %s111 = sadd.s32 %s110, 1
    %p114 = scmp.eq.s32.totalorder %s13, 3
    %p115 = scmp.ne.s32.totalorder %s110, %s112
    %p116 = scmp.eq.s32.totalorder %s13, 0
    %p117 = por %p115, %p116
    %p118 = scmp.ne.s32.totalorder %s110, %s112
    %p119 = scmp.eq.s32.totalorder %s18, 3
    %p120 = por %p118, %p119
    %p121 = scmp.ne.s32.totalorder %s112, %s113
    %p122 = scmp.eq.s32.totalorder %s18, 0
    %p123 = por %p121, %p122
    %p124 = scmp.ne.s32.totalorder %s112, %s113
    %p125 = scmp.eq.s32.totalorder %s19, 3
    %p126 = por %p124, %p125
    %p128 = scmp.ne.s32.totalorder %s113, %s127
    %p129 = scmp.eq.s32.totalorder %s19, 0
    %p130 = por %p128, %p129
    %s132 = sadd.s32 %s131, 1
    %p135 = scmp.eq.s32.totalorder %s13, 3
    %p136 = scmp.ne.s32.totalorder %s131, %s133
    %p137 = scmp.eq.s32.totalorder %s13, 0
    %p138 = por %p136, %p137
    %p139 = scmp.ne.s32.totalorder %s131, %s133
    %p140 = scmp.eq.s32.totalorder %s18, 3
    %p141 = por %p139, %p140
    %p142 = scmp.ne.s32.totalorder %s133, %s134
    %p143 = scmp.eq.s32.totalorder %s18, 0
    %p144 = por %p142, %p143
    %p145 = scmp.ne.s32.totalorder %s133, %s134
    %p146 = scmp.eq.s32.totalorder %s19, 3
    %p147 = por %p145, %p146
    %p149 = scmp.ne.s32.totalorder %s134, %s148
    %p150 = scmp.eq.s32.totalorder %s19, 0
    %p151 = por %p149, %p150
    %s153 = sadd.s32 %s152, 1
    %p156 = scmp.eq.s32.totalorder %s13, 3
    %p157 = scmp.ne.s32.totalorder %s152, %s154
    %p158 = scmp.eq.s32.totalorder %s13, 0
    %p159 = por %p157, %p158
    %p160 = scmp.ne.s32.totalorder %s152, %s154
    %p161 = scmp.eq.s32.totalorder %s18, 3
    %p162 = por %p160, %p161
    %p163 = scmp.ne.s32.totalorder %s154, %s155
    %p164 = scmp.eq.s32.totalorder %s18, 0
    %p165 = por %p163, %p164
    %p166 = scmp.ne.s32.totalorder %s154, %s155
    %p167 = scmp.eq.s32.totalorder %s19, 3
    %p168 = por %p166, %p167
    %p170 = scmp.ne.s32.totalorder %s155, %s169
    %p171 = scmp.eq.s32.totalorder %s19, 0
    %p172 = por %p170, %p171
    %s174 = sadd.s32 %s173, 1
    %p177 = scmp.eq.s32.totalorder %s13, 3
    %p178 = scmp.ne.s32.totalorder %s173, %s175
    %p179 = scmp.eq.s32.totalorder %s13, 0
    %p180 = por %p178, %p179
    %p181 = scmp.ne.s32.totalorder %s173, %s175
    %p182 = scmp.eq.s32.totalorder %s18, 3
    %p183 = por %p181, %p182
    %p184 = scmp.ne.s32.totalorder %s175, %s176
    %p185 = scmp.eq.s32.totalorder %s18, 0
    %p186 = por %p184, %p185
    %p187 = scmp.ne.s32.totalorder %s175, %s176
    %p188 = scmp.eq.s32.totalorder %s19, 3
    %p189 = por %p187, %p188
    %p191 = scmp.ne.s32.totalorder %s176, %s190
    %p192 = scmp.eq.s32.totalorder %s19, 0
    %p193 = por %p191, %p192
    %p194 = scmp.le.s32.totalorder 1, %s13
    %p195 = scmp.lt.s32.totalorder %s13, 5
    %p196 = pnand %p194, %p195
    %p197 = pneg %p196
    // Predicated region
    $region9: #{keypoint_encoder.4} parent=5 // pred_check
      _
    $region10: #{keypoint_encoder.4} parent=5 // pred_check_branch
      %199 = sbr.rel (%p196) target = $region12
    $region11: #{keypoint_encoder.4} parent=5 // pred_region
      %s200 = ssub.s32 %s13, 1
      // Predicated region
      $region13: #{keypoint_encoder.4} parent=11 // pred_check
        %p201 = pneg %p102
      $region14: #{keypoint_encoder.4} parent=11 // pred_check_branch
        %203 = sbr.rel (%p201) target = $region16
      $region15: #{keypoint_encoder.4} parent=11 // pred_region
        _
      $region16: #{keypoint_encoder.4} parent=11 // pred_fallthru
        _
      // Predicated region
      $region17: #{keypoint_encoder.4} parent=11 // pred_check
        %p204 = pneg %p123
      $region18: #{keypoint_encoder.4} parent=11 // pred_check_branch
        %206 = sbr.rel (%p204) target = $region20
      $region19: #{keypoint_encoder.4} parent=11 // pred_region
        _
      $region20: #{keypoint_encoder.4} parent=11 // pred_fallthru
        _
      // Predicated region
      $region21: #{keypoint_encoder.4} parent=11 // pred_check
        %p207 = pneg %p144
      $region22: #{keypoint_encoder.4} parent=11 // pred_check_branch
        %209 = sbr.rel (%p207) target = $region24
      $region23: #{keypoint_encoder.4} parent=11 // pred_region
        _
      $region24: #{keypoint_encoder.4} parent=11 // pred_fallthru
        _
    $region12: #{keypoint_encoder.4} parent=5 // pred_fallthru
      _
    %p210 = scmp.lt.s32.totalorder %s13, 4
    // Predicated region
    $region25: #{keypoint_encoder.4} parent=5 // pred_check
      %p211 = pneg %p210
    $region26: #{keypoint_encoder.4} parent=5 // pred_check_branch
      %213 = sbr.rel (%p211) target = $region28
    $region27: #{keypoint_encoder.4} parent=5 // pred_region
      // Predicated region
      $region29: #{keypoint_encoder.4} parent=27 // pred_check
        %p214 = pneg %p47
      $region30: #{keypoint_encoder.4} parent=27 // pred_check_branch
        %216 = sbr.rel (%p214) target = $region32
      $region31: #{keypoint_encoder.4} parent=27 // pred_region
        %s217 = smul.u32 4, %s21
        %p218 = scmp.lt.s32.totalorder %s20, 1
        %s219 = scalar_select %p218, %s20, 1
        %p220 = scmp.lt.s32.totalorder %s217, 7
        %s221 = scalar_select %p220, %s217, 7
        %s222 = smul.addr %s219, 8
        %s223 = sadd.s32 %s221, %s222
        %s224 = smul.addr %s223, 4
        %s225 = scalar_lea.vmem %s0, %s224
        %s226 = smul.u32 4, %s21
      $region32: #{keypoint_encoder.4} parent=27 // pred_fallthru
        _
      // Predicated region
      $region33: #{keypoint_encoder.4} parent=27 // pred_check
        %p227 = pneg %p75
      $region34: #{keypoint_encoder.4} parent=27 // pred_check_branch
        %229 = sbr.rel (%p227) target = $region36
      $region35: #{keypoint_encoder.4} parent=27 // pred_region
        %s230 = smul.u32 4, %s21
        %p231 = scmp.lt.s32.totalorder %s20, 1
        %s232 = scalar_select %p231, %s20, 1
        %p233 = scmp.lt.s32.totalorder %s230, 7
        %s234 = scalar_select %p233, %s230, 7
        %s235 = smul.addr %s232, 8
        %s236 = sadd.s32 %s234, %s235
        %s237 = scalar_lea.vmem %s1, %s236
        %s238 = smul.u32 4, %s21
      $region36: #{keypoint_encoder.4} parent=27 // pred_fallthru
        _
    $region28: #{keypoint_encoder.4} parent=5 // pred_fallthru
      _
    %p239 = scmp.le.s32.totalorder 1, %s13
    %p240 = scmp.lt.s32.totalorder %s13, 5
    %p241 = pnand %p239, %p240
    %p242 = pneg %p241
    // Predicated region
    $region37: #{keypoint_encoder.4} parent=5 // pred_check
      _
    $region38: #{keypoint_encoder.4} parent=5 // pred_check_branch
      %244 = sbr.rel (%p241) target = $region40
    $region39: #{keypoint_encoder.4} parent=5 // pred_region
      %s245 = ssub.s32 %s13, 1
      %s246 = smul.u32 4, %s23
      %p247 = scmp.lt.s32.totalorder %s22, 1
      %s248 = scalar_select %p247, %s22, 1
      %p249 = scmp.lt.s32.totalorder %s246, 7
      %s250 = scalar_select %p249, %s246, 7
      %s251 = smul.addr %s248, 8
      %s252 = sadd.s32 %s250, %s251
      %s253 = smul.addr %s252, 4
      %s254 = scalar_lea.vmem %s0, %s253
      %p255 = pneg %p53
      %p256 = pneg %p50
      %s257 = smul.u32 4, %s23
      %p258 = scmp.lt.s32.totalorder %s22, 1
      %s259 = scalar_select %p258, %s22, 1
      %p260 = scmp.lt.s32.totalorder %s257, 7
      %s261 = scalar_select %p260, %s257, 7
      %s262 = smul.addr %s259, 8
      %s263 = sadd.s32 %s261, %s262
      %s264 = scalar_lea.vmem %s1, %s263
      %p265 = pneg %p81
      %p266 = pneg %p78
      %p267 = pneg %p102
      %p268 = pneg %p99
      %p269 = pneg %p123
      %p270 = pneg %p120
      %p271 = pneg %p144
      %p272 = pneg %p141
      %p273 = pneg %p165
      %p274 = pneg %p162
      %p275 = pneg %p186
      %p276 = pneg %p183
      %s277 = smul.u32 4, %s23
      %p278 = scmp.lt.s32.totalorder %s22, 1
      %s279 = scalar_select %p278, %s22, 1
      %p280 = scmp.lt.s32.totalorder %s277, 7
      %s281 = scalar_select %p280, %s277, 7
      %s282 = smul.addr %s279, 8
      %s283 = sadd.s32 %s281, %s282
      %s284 = smul.addr %s283, 4
      %s285 = scalar_lea.vmem %s0, %s284
      %s286 = smul.u32 4, %s23
      %s287 = smul.u32 4, %s23
      %p288 = scmp.lt.s32.totalorder %s22, 1
      %s289 = scalar_select %p288, %s22, 1
      %p290 = scmp.lt.s32.totalorder %s287, 7
      %s291 = scalar_select %p290, %s287, 7
      %s292 = smul.addr %s289, 8
      %s293 = sadd.s32 %s291, %s292
      %s294 = scalar_lea.vmem %s1, %s293
      %s295 = smul.u32 4, %s23
      %v296 = vld [vmem:[%s285] sm:$0x77]
      %v297 = vld [vmem:[%s285 + $0x8] sm:$0x77]
      %v298 = vld [vmem:[%s294] sm:$0xf]
      %v299 = vld [vmem:[%s2] sm:$0xff]
      %v300 = vld [vmem:[%s2 + $0x8] sm:$0xff]
      %v301 = vld [vmem:[%s2 + $0x10] sm:$0xff]
      %v302 = vld [vmem:[%s2 + $0x18] sm:$0xff]
      %304 = vset.pattern.permute.xlu0 0
      %305 = vperm.xlu0 %304, %v299
      %v306 = vpop.permute.xlu0 %305
      %309 = vset.pattern.permute.xlu0 0
      %310 = vperm.xlu0 %309, %v300
      %v311 = vpop.permute.xlu0 %310
      %314 = vset.pattern.permute.xlu0 0
      %315 = vperm.xlu0 %314, %v301
      %v316 = vpop.permute.xlu0 %315
      %319 = vset.pattern.permute.xlu0 0
      %320 = vperm.xlu0 %319, %v302
      %v321 = vpop.permute.xlu0 %320
      %v325 = vlaneseq
      %v326 = vshrl.u32 %v325, 7
      %v327 = vsub.s32 0, %v326
      %v328 = vrot.slane %v296, %v327
      %v329 = vlaneseq
      %v330 = vshrl.u32 %v329, 7
      %v331 = vsub.s32 4, %v330
      %v332 = vrot.slane %v296, %v331
      %v333 = vlaneseq
      %v334 = vshrl.u32 %v333, 7
      %v335 = vsub.s32 0, %v334
      %v336 = vrot.slane %v297, %v335
      %v337 = vlaneseq
      %v338 = vshrl.u32 %v337, 7
      %v339 = vsub.s32 4, %v338
      %v340 = vrot.slane %v297, %v339
      %v345 = vlaneseq
      %v346 = vshrl.u32 %v345, 7
      %v347 = vsub.s32 0, %v346
      %v348 = vrot.slane %v328, %v347
      %v349 = vlaneseq
      %v350 = vshrl.u32 %v349, 7
      %v351 = vsub.s32 0, %v350
      %v352 = vrot.slane %v332, %v351
      %v353 = vlaneseq
      %v354 = vshrl.u32 %v353, 7
      %v355 = vsub.s32 0, %v354
      %v356 = vrot.slane %v336, %v355
      %v357 = vlaneseq
      %v358 = vshrl.u32 %v357, 7
      %v359 = vsub.s32 0, %v358
      %v360 = vrot.slane %v340, %v359
      %v361 = vmul.f32 %v306, %v348
      %v362 = vmul.f32 %v306, %v352
      %v363 = vmul.f32 %v306, %v356
      %v364 = vmul.f32 %v306, %v360
      %v365 = vmul.f32 %v311, %v348
      %v366 = vmul.f32 %v311, %v352
      %v367 = vmul.f32 %v311, %v356
      %v368 = vmul.f32 %v311, %v360
      %v369 = vmul.f32 %v316, %v348
      %v370 = vmul.f32 %v316, %v352
      %v371 = vmul.f32 %v316, %v356
      %v372 = vmul.f32 %v316, %v360
      %v373 = vmul.f32 %v321, %v348
      %v374 = vmul.f32 %v321, %v352
      %v375 = vmul.f32 %v321, %v356
      %v376 = vmul.f32 %v321, %v360
      %377 = vset.pattern.permute.xlu0 1
      %378 = vperm.xlu0 %377, %v299
      %v379 = vpop.permute.xlu0 %378
      %381 = vset.pattern.permute.xlu0 1
      %382 = vperm.xlu0 %381, %v300
      %v383 = vpop.permute.xlu0 %382
      %385 = vset.pattern.permute.xlu0 1
      %386 = vperm.xlu0 %385, %v301
      %v387 = vpop.permute.xlu0 %386
      %389 = vset.pattern.permute.xlu0 1
      %390 = vperm.xlu0 %389, %v302
      %v391 = vpop.permute.xlu0 %390
      %v393 = vlaneseq
      %v394 = vshrl.u32 %v393, 7
      %v395 = vsub.s32 1, %v394
      %v396 = vrot.slane %v296, %v395
      %v397 = vlaneseq
      %v398 = vshrl.u32 %v397, 7
      %v399 = vsub.s32 5, %v398
      %v400 = vrot.slane %v296, %v399
      %v401 = vlaneseq
      %v402 = vshrl.u32 %v401, 7
      %v403 = vsub.s32 1, %v402
      %v404 = vrot.slane %v297, %v403
      %v405 = vlaneseq
      %v406 = vshrl.u32 %v405, 7
      %v407 = vsub.s32 5, %v406
      %v408 = vrot.slane %v297, %v407
      %v413 = vlaneseq
      %v414 = vshrl.u32 %v413, 7
      %v415 = vsub.s32 1, %v414
      %v416 = vrot.slane %v396, %v415
      %v417 = vlaneseq
      %v418 = vshrl.u32 %v417, 7
      %v419 = vsub.s32 1, %v418
      %v420 = vrot.slane %v400, %v419
      %v421 = vlaneseq
      %v422 = vshrl.u32 %v421, 7
      %v423 = vsub.s32 1, %v422
      %v424 = vrot.slane %v404, %v423
      %v425 = vlaneseq
      %v426 = vshrl.u32 %v425, 7
      %v427 = vsub.s32 1, %v426
      %v428 = vrot.slane %v408, %v427
      %v429 = vmul.f32 %v379, %v416
      %v430 = vmul.f32 %v379, %v420
      %v431 = vmul.f32 %v379, %v424
      %v432 = vmul.f32 %v379, %v428
      %v433 = vmul.f32 %v383, %v416
      %v434 = vmul.f32 %v383, %v420
      %v435 = vmul.f32 %v383, %v424
      %v436 = vmul.f32 %v383, %v428
      %v437 = vmul.f32 %v387, %v416
      %v438 = vmul.f32 %v387, %v420
      %v439 = vmul.f32 %v387, %v424
      %v440 = vmul.f32 %v387, %v428
      %v441 = vmul.f32 %v391, %v416
      %v442 = vmul.f32 %v391, %v420
      %v443 = vmul.f32 %v391, %v424
      %v444 = vmul.f32 %v391, %v428
      %v445 = vadd.f32 %v361, %v429
      %v446 = vadd.f32 %v362, %v430
      %v447 = vadd.f32 %v363, %v431
      %v448 = vadd.f32 %v364, %v432
      %v449 = vadd.f32 %v365, %v433
      %v450 = vadd.f32 %v366, %v434
      %v451 = vadd.f32 %v367, %v435
      %v452 = vadd.f32 %v368, %v436
      %v453 = vadd.f32 %v369, %v437
      %v454 = vadd.f32 %v370, %v438
      %v455 = vadd.f32 %v371, %v439
      %v456 = vadd.f32 %v372, %v440
      %v457 = vadd.f32 %v373, %v441
      %v458 = vadd.f32 %v374, %v442
      %v459 = vadd.f32 %v375, %v443
      %v460 = vadd.f32 %v376, %v444
      %461 = vset.pattern.permute.xlu0 2
      %462 = vperm.xlu0 %461, %v299
      %v463 = vpop.permute.xlu0 %462
      %465 = vset.pattern.permute.xlu0 2
      %466 = vperm.xlu0 %465, %v300
      %v467 = vpop.permute.xlu0 %466
      %469 = vset.pattern.permute.xlu0 2
      %470 = vperm.xlu0 %469, %v301
      %v471 = vpop.permute.xlu0 %470
      %473 = vset.pattern.permute.xlu0 2
      %474 = vperm.xlu0 %473, %v302
      %v475 = vpop.permute.xlu0 %474
      %v477 = vlaneseq
      %v478 = vshrl.u32 %v477, 7
      %v479 = vsub.s32 2, %v478
      %v480 = vrot.slane %v296, %v479
      %v481 = vlaneseq
      %v482 = vshrl.u32 %v481, 7
      %v483 = vsub.s32 6, %v482
      %v484 = vrot.slane %v296, %v483
      %v485 = vlaneseq
      %v486 = vshrl.u32 %v485, 7
      %v487 = vsub.s32 2, %v486
      %v488 = vrot.slane %v297, %v487
      %v489 = vlaneseq
      %v490 = vshrl.u32 %v489, 7
      %v491 = vsub.s32 6, %v490
      %v492 = vrot.slane %v297, %v491
      %v497 = vlaneseq
      %v498 = vshrl.u32 %v497, 7
      %v499 = vsub.s32 2, %v498
      %v500 = vrot.slane %v480, %v499
      %v501 = vlaneseq
      %v502 = vshrl.u32 %v501, 7
      %v503 = vsub.s32 2, %v502
      %v504 = vrot.slane %v484, %v503
      %v505 = vlaneseq
      %v506 = vshrl.u32 %v505, 7
      %v507 = vsub.s32 2, %v506
      %v508 = vrot.slane %v488, %v507
      %v509 = vlaneseq
      %v510 = vshrl.u32 %v509, 7
      %v511 = vsub.s32 2, %v510
      %v512 = vrot.slane %v492, %v511
      %v513 = vmul.f32 %v463, %v500
      %v514 = vmul.f32 %v463, %v504
      %v515 = vmul.f32 %v463, %v508
      %v516 = vmul.f32 %v463, %v512
      %v517 = vmul.f32 %v467, %v500
      %v518 = vmul.f32 %v467, %v504
      %v519 = vmul.f32 %v467, %v508
      %v520 = vmul.f32 %v467, %v512
      %v521 = vmul.f32 %v471, %v500
      %v522 = vmul.f32 %v471, %v504
      %v523 = vmul.f32 %v471, %v508
      %v524 = vmul.f32 %v471, %v512
      %v525 = vmul.f32 %v475, %v500
      %v526 = vmul.f32 %v475, %v504
      %v527 = vmul.f32 %v475, %v508
      %v528 = vmul.f32 %v475, %v512
      %v529 = vadd.f32 %v445, %v513
      %v530 = vadd.f32 %v446, %v514
      %v531 = vadd.f32 %v447, %v515
      %v532 = vadd.f32 %v448, %v516
      %v533 = vadd.f32 %v449, %v517
      %v534 = vadd.f32 %v450, %v518
      %v535 = vadd.f32 %v451, %v519
      %v536 = vadd.f32 %v452, %v520
      %v537 = vadd.f32 %v453, %v521
      %v538 = vadd.f32 %v454, %v522
      %v539 = vadd.f32 %v455, %v523
      %v540 = vadd.f32 %v456, %v524
      %v541 = vadd.f32 %v457, %v525
      %v542 = vadd.f32 %v458, %v526
      %v543 = vadd.f32 %v459, %v527
      %v544 = vadd.f32 %v460, %v528
      %v545 = vld [vmem:[%s3] sm:$0xff]
      %v546 = vld [vmem:[%s3 + $0x8] sm:$0xff]
      %v547 = vld [vmem:[%s3 + $0x10] sm:$0xff]
      %v548 = vld [vmem:[%s3 + $0x18] sm:$0xff]
      %550 = vset.pattern.permute.xlu0 0
      %551 = vperm.xlu0 %550, %v545
      %v552 = vpop.permute.xlu0 %551
      %555 = vset.pattern.permute.xlu0 0
      %556 = vperm.xlu0 %555, %v546
      %v557 = vpop.permute.xlu0 %556
      %560 = vset.pattern.permute.xlu0 0
      %561 = vperm.xlu0 %560, %v547
      %v562 = vpop.permute.xlu0 %561
      %565 = vset.pattern.permute.xlu0 0
      %566 = vperm.xlu0 %565, %v548
      %v567 = vpop.permute.xlu0 %566
      %v570 = vlaneseq
      %v571 = vshrl.u32 %v570, 7
      %v572 = vsub.s32 0, %v571
      %v573 = vrot.slane %v298, %v572
      %v574 = vlaneseq
      %v575 = vshrl.u32 %v574, 7
      %v576 = vsub.s32 1, %v575
      %v577 = vrot.slane %v298, %v576
      %v578 = vlaneseq
      %v579 = vshrl.u32 %v578, 7
      %v580 = vsub.s32 2, %v579
      %v581 = vrot.slane %v298, %v580
      %v582 = vlaneseq
      %v583 = vshrl.u32 %v582, 7
      %v584 = vsub.s32 3, %v583
      %v585 = vrot.slane %v298, %v584
      %v590 = vmul.f32 %v552, %v573
      %v591 = vmul.f32 %v552, %v577
      %v592 = vmul.f32 %v552, %v581
      %v593 = vmul.f32 %v552, %v585
      %v594 = vmul.f32 %v557, %v573
      %v595 = vmul.f32 %v557, %v577
      %v596 = vmul.f32 %v557, %v581
      %v597 = vmul.f32 %v557, %v585
      %v598 = vmul.f32 %v562, %v573
      %v599 = vmul.f32 %v562, %v577
      %v600 = vmul.f32 %v562, %v581
      %v601 = vmul.f32 %v562, %v585
      %v602 = vmul.f32 %v567, %v573
      %v603 = vmul.f32 %v567, %v577
      %v604 = vmul.f32 %v567, %v581
      %v605 = vmul.f32 %v567, %v585
      %v606 = vadd.f32 %v529, %v590
      %v607 = vadd.f32 %v530, %v591
      %v608 = vadd.f32 %v531, %v592
      %v609 = vadd.f32 %v532, %v593
      %v610 = vadd.f32 %v533, %v594
      %v611 = vadd.f32 %v534, %v595
      %v612 = vadd.f32 %v535, %v596
      %v613 = vadd.f32 %v536, %v597
      %v614 = vadd.f32 %v537, %v598
      %v615 = vadd.f32 %v538, %v599
      %v616 = vadd.f32 %v539, %v600
      %v617 = vadd.f32 %v540, %v601
      %v618 = vadd.f32 %v541, %v602
      %v619 = vadd.f32 %v542, %v603
      %v620 = vadd.f32 %v543, %v604
      %v621 = vadd.f32 %v544, %v605
      %v622 = vld [vmem:[%s4] sm:$0xff]
      %v623 = vld [vmem:[%s4 + $0x8] sm:$0xff]
      %v624 = vld [vmem:[%s4 + $0x10] sm:$0xff]
      %v625 = vld [vmem:[%s4 + $0x18] sm:$0xff]
      %627 = vset.pattern.permute.xlu0 0
      %628 = vperm.xlu0 %627, %v622
      %v629 = vpop.permute.xlu0 %628
      %632 = vset.pattern.permute.xlu0 0
      %633 = vperm.xlu0 %632, %v623
      %v634 = vpop.permute.xlu0 %633
      %637 = vset.pattern.permute.xlu0 0
      %638 = vperm.xlu0 %637, %v624
      %v639 = vpop.permute.xlu0 %638
      %642 = vset.pattern.permute.xlu0 0
      %643 = vperm.xlu0 %642, %v625
      %v644 = vpop.permute.xlu0 %643
      %v646 = vadd.f32 %v606, %v629
      %v647 = vadd.f32 %v607, %v629
      %v648 = vadd.f32 %v608, %v629
      %v649 = vadd.f32 %v609, %v629
      %v650 = vadd.f32 %v610, %v634
      %v651 = vadd.f32 %v611, %v634
      %v652 = vadd.f32 %v612, %v634
      %v653 = vadd.f32 %v613, %v634
      %v654 = vadd.f32 %v614, %v639
      %v655 = vadd.f32 %v615, %v639
      %v656 = vadd.f32 %v616, %v639
      %v657 = vadd.f32 %v617, %v639
      %v658 = vadd.f32 %v618, %v644
      %v659 = vadd.f32 %v619, %v644
      %v660 = vadd.f32 %v620, %v644
      %v661 = vadd.f32 %v621, %v644
      %v662 = vadd.f32 %v646, %v647
      %v663 = vadd.f32 %v662, %v648
      %v664 = vadd.f32 %v663, %v649
      %665 = vadd.xlane.f32.xlu0 %v664
      %v666 = vpop.xlane.xlu0 %665
      %v667 = vadd.f32 %v650, %v651
      %v668 = vadd.f32 %v667, %v652
      %v669 = vadd.f32 %v668, %v653
      %670 = vadd.xlane.f32.xlu0 %v669
      %v671 = vpop.xlane.xlu0 %670
      %v672 = vadd.f32 %v654, %v655
      %v673 = vadd.f32 %v672, %v656
      %v674 = vadd.f32 %v673, %v657
      %675 = vadd.xlane.f32.xlu0 %v674
      %v676 = vpop.xlane.xlu0 %675
      %v677 = vadd.f32 %v658, %v659
      %v678 = vadd.f32 %v677, %v660
      %v679 = vadd.f32 %v678, %v661
      %680 = vadd.xlane.f32.xlu0 %v679
      %v681 = vpop.xlane.xlu0 %680
      %v682 = vmul.f32 %v666, 0.001953125
      %v683 = vmul.f32 %v671, 0.001953125
      %v684 = vmul.f32 %v676, 0.001953125
      %v685 = vmul.f32 %v681, 0.001953125
      %v686 = vsub.f32 %v646, %v682
      %v687 = vsub.f32 %v647, %v682
      %v688 = vsub.f32 %v648, %v682
      %v689 = vsub.f32 %v649, %v682
      %v690 = vsub.f32 %v650, %v683
      %v691 = vsub.f32 %v651, %v683
      %v692 = vsub.f32 %v652, %v683
      %v693 = vsub.f32 %v653, %v683
      %v694 = vsub.f32 %v654, %v684
      %v695 = vsub.f32 %v655, %v684
      %v696 = vsub.f32 %v656, %v684
      %v697 = vsub.f32 %v657, %v684
      %v698 = vsub.f32 %v658, %v685
      %v699 = vsub.f32 %v659, %v685
      %v700 = vsub.f32 %v660, %v685
      %v701 = vsub.f32 %v661, %v685
      %v702 = vmul.f32 %v686, %v686
      %v703 = vmul.f32 %v687, %v687
      %v704 = vmul.f32 %v688, %v688
      %v705 = vmul.f32 %v689, %v689
      %v706 = vmul.f32 %v690, %v690
      %v707 = vmul.f32 %v691, %v691
      %v708 = vmul.f32 %v692, %v692
      %v709 = vmul.f32 %v693, %v693
      %v710 = vmul.f32 %v694, %v694
      %v711 = vmul.f32 %v695, %v695
      %v712 = vmul.f32 %v696, %v696
      %v713 = vmul.f32 %v697, %v697
      %v714 = vmul.f32 %v698, %v698
      %v715 = vmul.f32 %v699, %v699
      %v716 = vmul.f32 %v700, %v700
      %v717 = vmul.f32 %v701, %v701
      %v718 = vadd.f32 %v702, %v703
      %v719 = vadd.f32 %v718, %v704
      %v720 = vadd.f32 %v719, %v705
      %721 = vadd.xlane.f32.xlu0 %v720
      %v722 = vpop.xlane.xlu0 %721
      %v723 = vadd.f32 %v706, %v707
      %v724 = vadd.f32 %v723, %v708
      %v725 = vadd.f32 %v724, %v709
      %726 = vadd.xlane.f32.xlu0 %v725
      %v727 = vpop.xlane.xlu0 %726
      %v728 = vadd.f32 %v710, %v711
      %v729 = vadd.f32 %v728, %v712
      %v730 = vadd.f32 %v729, %v713
      %731 = vadd.xlane.f32.xlu0 %v730
      %v732 = vpop.xlane.xlu0 %731
      %v733 = vadd.f32 %v714, %v715
      %v734 = vadd.f32 %v733, %v716
      %v735 = vadd.f32 %v734, %v717
      %736 = vadd.xlane.f32.xlu0 %v735
      %v737 = vpop.xlane.xlu0 %736
      %p738 = scmp.eq.s32.totalorder %s22, 0
      %p739 = scmp.eq.s32.totalorder %s23, 0
      %p740 = pnand %p738, %p739
      %p741 = pneg %p740
      // Predicated region
      $region41: #{keypoint_encoder.4} parent=39 // pred_check
        _
      $region42: #{keypoint_encoder.4} parent=39 // pred_check_branch
        %743 = sbr.rel (%p740) target = $region44
      $region43: #{keypoint_encoder.4} parent=39 // pred_region
        %vm744 = vcmask 7168
        %745 = vst.msk [vmem:[%s5] sm:$0xff] %vm744, %v682
        %746 = vst.msk [vmem:[%s5 + $0x8] sm:$0xff] %vm744, %v683
        %747 = vst.msk [vmem:[%s5 + $0x10] sm:$0xff] %vm744, %v684
        %748 = vst.msk [vmem:[%s5 + $0x18] sm:$0xff] %vm744, %v685
        %749 = vst.msk [vmem:[%s6] sm:$0xff] %vm744, %v722
        %750 = vst.msk [vmem:[%s6 + $0x8] sm:$0xff] %vm744, %v727
        %751 = vst.msk [vmem:[%s6 + $0x10] sm:$0xff] %vm744, %v732
        %752 = vst.msk [vmem:[%s6 + $0x18] sm:$0xff] %vm744, %v737
      $region44: #{keypoint_encoder.4} parent=39 // pred_fallthru
        _
      %p753 = pneg %p741
      // Predicated region
      $region45: #{keypoint_encoder.4} parent=39 // pred_check
        _
      $region46: #{keypoint_encoder.4} parent=39 // pred_check_branch
        %755 = sbr.rel (%p741) target = $region48
      $region47: #{keypoint_encoder.4} parent=39 // pred_region
        %s756 = smul.u32 %s22, 2
        %s757 = sadd.s32 %s756, %s23
        %s758 = smul.u32 %s757, 512
        %s759 = scvt.s32.f32 %s758
        %s760 = sadd.f32 %s759, 512.0
        %v761 = vld [vmem:[%s5] sm:$0xff]
        %v762 = vld [vmem:[%s5 + $0x8] sm:$0xff]
        %v763 = vld [vmem:[%s5 + $0x10] sm:$0xff]
        %v764 = vld [vmem:[%s5 + $0x18] sm:$0xff]
        %v765 = vsub.f32 %v682, %v761
        %v766 = vsub.f32 %v683, %v762
        %v767 = vsub.f32 %v684, %v763
        %v768 = vsub.f32 %v685, %v764
        %v769 = vstv %s760
        %v770 = vrcp.pop %v769
        %s771 = vtos %v770
        %s772 = smul.f32 512.0, %s771
        %v773 = vstv %s772
        %v774 = vmul.f32 %v765, %v773
        %v775 = vmul.f32 %v766, %v773
        %v776 = vmul.f32 %v767, %v773
        %v777 = vmul.f32 %v768, %v773
        %v778 = vadd.f32 %v761, %v774
        %v779 = vadd.f32 %v762, %v775
        %v780 = vadd.f32 %v763, %v776
        %v781 = vadd.f32 %v764, %v777
        %vm782 = vcmask 7168
        %783 = vst.msk [vmem:[%s5] sm:$0xff] %vm782, %v778
        %784 = vst.msk [vmem:[%s5 + $0x8] sm:$0xff] %vm782, %v779
        %785 = vst.msk [vmem:[%s5 + $0x10] sm:$0xff] %vm782, %v780
        %786 = vst.msk [vmem:[%s5 + $0x18] sm:$0xff] %vm782, %v781
        %v787 = vld [vmem:[%s6] sm:$0xff]
        %v788 = vld [vmem:[%s6 + $0x8] sm:$0xff]
        %v789 = vld [vmem:[%s6 + $0x10] sm:$0xff]
        %v790 = vld [vmem:[%s6 + $0x18] sm:$0xff]
        %v791 = vadd.f32 %v787, %v722
        %v792 = vadd.f32 %v788, %v727
        %v793 = vadd.f32 %v789, %v732
        %v794 = vadd.f32 %v790, %v737
        %v795 = vmul.f32 %v765, %v765
        %v796 = vmul.f32 %v766, %v766
        %v797 = vmul.f32 %v767, %v767
        %v798 = vmul.f32 %v768, %v768
        %s799 = smul.f32 %s759, 512.0
        %v800 = vstv %s760
        %v801 = vrcp.pop %v800
        %s802 = vtos %v801
        %s803 = smul.f32 %s799, %s802
        %v804 = vstv %s803
        %v805 = vmul.f32 %v795, %v804
        %v806 = vmul.f32 %v796, %v804
        %v807 = vmul.f32 %v797, %v804
        %v808 = vmul.f32 %v798, %v804
        %v809 = vadd.f32 %v791, %v805
        %v810 = vadd.f32 %v792, %v806
        %v811 = vadd.f32 %v793, %v807
        %v812 = vadd.f32 %v794, %v808
        %813 = vst.msk [vmem:[%s6] sm:$0xff] %vm782, %v809
        %814 = vst.msk [vmem:[%s6 + $0x8] sm:$0xff] %vm782, %v810
        %815 = vst.msk [vmem:[%s6 + $0x10] sm:$0xff] %vm782, %v811
        %816 = vst.msk [vmem:[%s6 + $0x18] sm:$0xff] %vm782, %v812
      $region48: #{keypoint_encoder.4} parent=39 // pred_fallthru
        _
      // Predicated region
      $region49: #{keypoint_encoder.4} parent=39 // pred_check
        %p817 = pneg %p162
      $region50: #{keypoint_encoder.4} parent=39 // pred_check_branch
        %819 = sbr.rel (%p817) target = $region52
      $region51: #{keypoint_encoder.4} parent=39 // pred_region
        _
      $region52: #{keypoint_encoder.4} parent=39 // pred_fallthru
        _
      // Predicated region
      $region53: #{keypoint_encoder.4} parent=39 // pred_check
        %p820 = pneg %p183
      $region54: #{keypoint_encoder.4} parent=39 // pred_check_branch
        %822 = sbr.rel (%p820) target = $region56
      $region55: #{keypoint_encoder.4} parent=39 // pred_region
        _
      $region56: #{keypoint_encoder.4} parent=39 // pred_fallthru
        _
      // Predicated region
      $region57: #{keypoint_encoder.4} parent=39 // pred_check
        %p823 = pneg %p162
      $region58: #{keypoint_encoder.4} parent=39 // pred_check_branch
        %825 = sbr.rel (%p823) target = $region60
      $region59: #{keypoint_encoder.4} parent=39 // pred_region
        _
      $region60: #{keypoint_encoder.4} parent=39 // pred_fallthru
        _
      // Predicated region
      $region61: #{keypoint_encoder.4} parent=39 // pred_check
        %p826 = pneg %p183
      $region62: #{keypoint_encoder.4} parent=39 // pred_check_branch
        %828 = sbr.rel (%p826) target = $region64
      $region63: #{keypoint_encoder.4} parent=39 // pred_region
        _
      $region64: #{keypoint_encoder.4} parent=39 // pred_fallthru
        _
    $region40: #{keypoint_encoder.4} parent=5 // pred_fallthru
      _
    %p829 = scmp.le.s32.totalorder 2, %s13
    // Predicated region
    $region65: #{keypoint_encoder.4} parent=5 // pred_check
      %p830 = pneg %p829
    $region66: #{keypoint_encoder.4} parent=5 // pred_check_branch
      %832 = sbr.rel (%p830) target = $region68
    $region67: #{keypoint_encoder.4} parent=5 // pred_region
      %s833 = ssub.s32 %s13, 2
    $region68: #{keypoint_encoder.4} parent=5 // pred_fallthru
      _
  $region6: #{keypoint_encoder.4} parent=0 // loop_footer
    %s17 = sadd.s32 1, %s13
  $region7: #{keypoint_encoder.4} parent=0 // loop_footer_branch
    %12 = sbr.rel target = $region3
  $region8: #{keypoint_encoder.4} parent=0 // loop_exit
    _

// kernel: keypoint_encoder.5
$region0: #{keypoint_encoder.5}
  #allocation0 [shape = 'u32[]', space=smem, size = 0x4, offset = 0x4, fixed_abs, tag = 'smem constant byte address 0x4 - core index']
  #allocation1 [shape = 'u32[144,128]{1,0:T(1,128)}', space=vmem, size = 0x12000, scoped, tag = 'internal scratch']
  %s0 = inlined_call_operand.vmem [shape: f32[2,3,1024], index: 0, kind: input, shape index: {}]
  %s1 = inlined_call_operand.vmem [shape: f32[2,1,1024], index: 1, kind: input, shape index: {}]
  %s2 = inlined_call_operand.vmem [shape: f32[32,3], index: 2, kind: input, shape index: {}]
  %s3 = inlined_call_operand.vmem [shape: f32[32,1], index: 3, kind: input, shape index: {}]
  %s4 = inlined_call_operand.vmem [shape: f32[32,1], index: 4, kind: input, shape index: {}]
  %s5 = inlined_call_operand.vmem [shape: f32[64,32], index: 5, kind: input, shape index: {}]
  %s6 = inlined_call_operand.vmem [shape: f32[64,1], index: 6, kind: input, shape index: {}]
  %s7 = inlined_call_operand.vmem [shape: f32[64,1], index: 7, kind: output, shape index: {0}]
  %s8 = inlined_call_operand.vmem [shape: f32[64,1], index: 8, kind: output, shape index: {1}]
  %9 = xla_tuple %s7, %s8
  %s10 = sld [smem:[#allocation0]]
  $region77: #{keypoint_encoder.5} parent=0
    _
  %s12 = ssub.s32 1, %s10
  %s13 = scalar_select 0, %s12, %s10
  loop: start=0, step=1, limit=6
  $region2: #{keypoint_encoder.5} parent=0 // loop_pre_header
    _
  $region3: #{keypoint_encoder.5} parent=0 // loop_header
    %s15 = sphi 0, %s19
    %p16 = scmp.ge.s32.totalorder %s15, 6
    %s22 = sphi 0, %s34
    %s23 = sphi 0, %s30
    %s24 = sphi 0, %s22
    %s25 = sphi 0, %s23
    %s26 = sphi 0, %s24
    %s27 = sphi 0, %s25
    %s39 = sphi 0, %s41
    %s42 = sphi 0, %s39
    %s43 = sphi 0, %s42
    %s59 = sphi 0, %s43
    %s67 = sphi 0, %s69
    %s70 = sphi 0, %s67
    %s71 = sphi 0, %s70
    %s87 = sphi 0, %s71
    %s91 = sphi 0, %s91
    %s93 = sphi 0, %s91
    %s94 = sphi 0, %s93
    %s108 = sphi 0, %s94
    %s112 = sphi 0, %s112
    %s114 = sphi 0, %s112
    %s115 = sphi 0, %s114
    %s129 = sphi 0, %s115
    %s133 = sphi 0, %s133
    %s135 = sphi 0, %s133
    %s136 = sphi 0, %s135
    %s150 = sphi 0, %s136
    %s154 = sphi 0, %s154
    %s156 = sphi 0, %s154
    %s157 = sphi 0, %s156
    %s171 = sphi 0, %s157
    %s175 = sphi 0, %s175
    %s177 = sphi 0, %s175
    %s178 = sphi 0, %s177
    %s192 = sphi 0, %s178
    %s196 = sphi 0, %s196
    %s198 = sphi 0, %s196
    %s199 = sphi 0, %s198
    %s213 = sphi 0, %s199
    %s217 = sphi 0, %s217
    %s219 = sphi 0, %s217
    %s220 = sphi 0, %s219
    %s234 = sphi 0, %s220
  $region4: #{keypoint_encoder.5} parent=0 // loop_header_branch
    %18 = sbr.rel (%p16) target = $region8
  $region5: #{keypoint_encoder.5} parent=0 // loop_body
    %s20 = ssub.s32 %s15, 1
    %s21 = ssub.s32 %s15, 2
    %s28 = sadd.s32 1, %s23
    %p29 = scmp.ge.s32.totalorder %s28, 2
    %s30 = scalar_select %p29, 0, %s28
    %s31 = sadd.s32 1, %s22
    %s32 = scalar_select %p29, %s31, %s22
    %p33 = scmp.ge.s32.totalorder %s32, 2
    %s34 = scalar_select %p33, 0, %s32
    %s35 = ssub.s32 %s22, %s34
    %s36 = ssub.s32 %s23, %s30
    %s37 = sor.u32 %s35, %s36
    %p38 = scmp.eq.s32.totalorder %s37, 0
    %s40 = sadd.s32 %s39, 1
    %s41 = scalar_select %p38, %s39, %s40
    %p44 = pneg %p38
    %p45 = scmp.eq.s32.totalorder %s15, 3
    %p46 = por %p44, %p45
    %p47 = scmp.ne.s32.totalorder %s39, %s42
    %p48 = scmp.eq.s32.totalorder %s15, 0
    %p49 = por %p47, %p48
    %p50 = scmp.ne.s32.totalorder %s39, %s42
    %p51 = scmp.eq.s32.totalorder %s20, 3
    %p52 = por %p50, %p51
    %p53 = scmp.ne.s32.totalorder %s42, %s43
    %p54 = scmp.eq.s32.totalorder %s20, 0
    %p55 = por %p53, %p54
    %p56 = scmp.ne.s32.totalorder %s42, %s43
    %p57 = scmp.eq.s32.totalorder %s21, 3
    %p58 = por %p56, %p57
    %p60 = scmp.ne.s32.totalorder %s43, %s59
    %p61 = scmp.eq.s32.totalorder %s21, 0
    %p62 = por %p60, %p61
    %s63 = ssub.s32 %s22, %s34
    %s64 = ssub.s32 %s23, %s30
    %s65 = sor.u32 %s63, %s64
    %p66 = scmp.eq.s32.totalorder %s65, 0
    %s68 = sadd.s32 %s67, 1
    %s69 = scalar_select %p66, %s67, %s68
    %p72 = pneg %p66
    %p73 = scmp.eq.s32.totalorder %s15, 3
    %p74 = por %p72, %p73
    %p75 = scmp.ne.s32.totalorder %s67, %s70
    %p76 = scmp.eq.s32.totalorder %s15, 0
    %p77 = por %p75, %p76
    %p78 = scmp.ne.s32.totalorder %s67, %s70
    %p79 = scmp.eq.s32.totalorder %s20, 3
    %p80 = por %p78, %p79
    %p81 = scmp.ne.s32.totalorder %s70, %s71
    %p82 = scmp.eq.s32.totalorder %s20, 0
    %p83 = por %p81, %p82
    %p84 = scmp.ne.s32.totalorder %s70, %s71
    %p85 = scmp.eq.s32.totalorder %s21, 3
    %p86 = por %p84, %p85
    %p88 = scmp.ne.s32.totalorder %s71, %s87
    %p89 = scmp.eq.s32.totalorder %s21, 0
    %p90 = por %p88, %p89
    %s92 = sadd.s32 %s91, 1
    %p95 = scmp.eq.s32.totalorder %s15, 3
    %p96 = scmp.ne.s32.totalorder %s91, %s93
    %p97 = scmp.eq.s32.totalorder %s15, 0
    %p98 = por %p96, %p97
    %p99 = scmp.ne.s32.totalorder %s91, %s93
    %p100 = scmp.eq.s32.totalorder %s20, 3
    %p101 = por %p99, %p100
    %p102 = scmp.ne.s32.totalorder %s93, %s94
    %p103 = scmp.eq.s32.totalorder %s20, 0
    %p104 = por %p102, %p103
    %p105 = scmp.ne.s32.totalorder %s93, %s94
    %p106 = scmp.eq.s32.totalorder %s21, 3
    %p107 = por %p105, %p106
    %p109 = scmp.ne.s32.totalorder %s94, %s108
    %p110 = scmp.eq.s32.totalorder %s21, 0
    %p111 = por %p109, %p110
    %s113 = sadd.s32 %s112, 1
    %p116 = scmp.eq.s32.totalorder %s15, 3
    %p117 = scmp.ne.s32.totalorder %s112, %s114
    %p118 = scmp.eq.s32.totalorder %s15, 0
    %p119 = por %p117, %p118
    %p120 = scmp.ne.s32.totalorder %s112, %s114
    %p121 = scmp.eq.s32.totalorder %s20, 3
    %p122 = por %p120, %p121
    %p123 = scmp.ne.s32.totalorder %s114, %s115
    %p124 = scmp.eq.s32.totalorder %s20, 0
    %p125 = por %p123, %p124
    %p126 = scmp.ne.s32.totalorder %s114, %s115
    %p127 = scmp.eq.s32.totalorder %s21, 3
    %p128 = por %p126, %p127
    %p130 = scmp.ne.s32.totalorder %s115, %s129
    %p131 = scmp.eq.s32.totalorder %s21, 0
    %p132 = por %p130, %p131
    %s134 = sadd.s32 %s133, 1
    %p137 = scmp.eq.s32.totalorder %s15, 3
    %p138 = scmp.ne.s32.totalorder %s133, %s135
    %p139 = scmp.eq.s32.totalorder %s15, 0
    %p140 = por %p138, %p139
    %p141 = scmp.ne.s32.totalorder %s133, %s135
    %p142 = scmp.eq.s32.totalorder %s20, 3
    %p143 = por %p141, %p142
    %p144 = scmp.ne.s32.totalorder %s135, %s136
    %p145 = scmp.eq.s32.totalorder %s20, 0
    %p146 = por %p144, %p145
    %p147 = scmp.ne.s32.totalorder %s135, %s136
    %p148 = scmp.eq.s32.totalorder %s21, 3
    %p149 = por %p147, %p148
    %p151 = scmp.ne.s32.totalorder %s136, %s150
    %p152 = scmp.eq.s32.totalorder %s21, 0
    %p153 = por %p151, %p152
    %s155 = sadd.s32 %s154, 1
    %p158 = scmp.eq.s32.totalorder %s15, 3
    %p159 = scmp.ne.s32.totalorder %s154, %s156
    %p160 = scmp.eq.s32.totalorder %s15, 0
    %p161 = por %p159, %p160
    %p162 = scmp.ne.s32.totalorder %s154, %s156
    %p163 = scmp.eq.s32.totalorder %s20, 3
    %p164 = por %p162, %p163
    %p165 = scmp.ne.s32.totalorder %s156, %s157
    %p166 = scmp.eq.s32.totalorder %s20, 0
    %p167 = por %p165, %p166
    %p168 = scmp.ne.s32.totalorder %s156, %s157
    %p169 = scmp.eq.s32.totalorder %s21, 3
    %p170 = por %p168, %p169
    %p172 = scmp.ne.s32.totalorder %s157, %s171
    %p173 = scmp.eq.s32.totalorder %s21, 0
    %p174 = por %p172, %p173
    %s176 = sadd.s32 %s175, 1
    %p179 = scmp.eq.s32.totalorder %s15, 3
    %p180 = scmp.ne.s32.totalorder %s175, %s177
    %p181 = scmp.eq.s32.totalorder %s15, 0
    %p182 = por %p180, %p181
    %p183 = scmp.ne.s32.totalorder %s175, %s177
    %p184 = scmp.eq.s32.totalorder %s20, 3
    %p185 = por %p183, %p184
    %p186 = scmp.ne.s32.totalorder %s177, %s178
    %p187 = scmp.eq.s32.totalorder %s20, 0
    %p188 = por %p186, %p187
    %p189 = scmp.ne.s32.totalorder %s177, %s178
    %p190 = scmp.eq.s32.totalorder %s21, 3
    %p191 = por %p189, %p190
    %p193 = scmp.ne.s32.totalorder %s178, %s192
    %p194 = scmp.eq.s32.totalorder %s21, 0
    %p195 = por %p193, %p194
    %s197 = sadd.s32 %s196, 1
    %p200 = scmp.eq.s32.totalorder %s15, 3
    %p201 = scmp.ne.s32.totalorder %s196, %s198
    %p202 = scmp.eq.s32.totalorder %s15, 0
    %p203 = por %p201, %p202
    %p204 = scmp.ne.s32.totalorder %s196, %s198
    %p205 = scmp.eq.s32.totalorder %s20, 3
    %p206 = por %p204, %p205
    %p207 = scmp.ne.s32.totalorder %s198, %s199
    %p208 = scmp.eq.s32.totalorder %s20, 0
    %p209 = por %p207, %p208
    %p210 = scmp.ne.s32.totalorder %s198, %s199
    %p211 = scmp.eq.s32.totalorder %s21, 3
    %p212 = por %p210, %p211
    %p214 = scmp.ne.s32.totalorder %s199, %s213
    %p215 = scmp.eq.s32.totalorder %s21, 0
    %p216 = por %p214, %p215
    %s218 = sadd.s32 %s217, 1
    %p221 = scmp.eq.s32.totalorder %s15, 3
    %p222 = scmp.ne.s32.totalorder %s217, %s219
    %p223 = scmp.eq.s32.totalorder %s15, 0
    %p224 = por %p222, %p223
    %p225 = scmp.ne.s32.totalorder %s217, %s219
    %p226 = scmp.eq.s32.totalorder %s20, 3
    %p227 = por %p225, %p226
    %p228 = scmp.ne.s32.totalorder %s219, %s220
    %p229 = scmp.eq.s32.totalorder %s20, 0
    %p230 = por %p228, %p229
    %p231 = scmp.ne.s32.totalorder %s219, %s220
    %p232 = scmp.eq.s32.totalorder %s21, 3
    %p233 = por %p231, %p232
    %p235 = scmp.ne.s32.totalorder %s220, %s234
    %p236 = scmp.eq.s32.totalorder %s21, 0
    %p237 = por %p235, %p236
    %p238 = scmp.le.s32.totalorder 1, %s15
    %p239 = scmp.lt.s32.totalorder %s15, 5
    %p240 = pnand %p238, %p239
    %p241 = pneg %p240
    // Predicated region
    $region9: #{keypoint_encoder.5} parent=5 // pred_check
      _
    $region10: #{keypoint_encoder.5} parent=5 // pred_check_branch
      %243 = sbr.rel (%p240) target = $region12
    $region11: #{keypoint_encoder.5} parent=5 // pred_region
      %s244 = ssub.s32 %s15, 1
      // Predicated region
      $region13: #{keypoint_encoder.5} parent=11 // pred_check
        %p245 = pneg %p104
      $region14: #{keypoint_encoder.5} parent=11 // pred_check_branch
        %247 = sbr.rel (%p245) target = $region16
      $region15: #{keypoint_encoder.5} parent=11 // pred_region
        _
      $region16: #{keypoint_encoder.5} parent=11 // pred_fallthru
        _
      // Predicated region
      $region17: #{keypoint_encoder.5} parent=11 // pred_check
        %p248 = pneg %p125
      $region18: #{keypoint_encoder.5} parent=11 // pred_check_branch
        %250 = sbr.rel (%p248) target = $region20
      $region19: #{keypoint_encoder.5} parent=11 // pred_region
        _
      $region20: #{keypoint_encoder.5} parent=11 // pred_fallthru
        _
      // Predicated region
      $region21: #{keypoint_encoder.5} parent=11 // pred_check
        %p251 = pneg %p146
      $region22: #{keypoint_encoder.5} parent=11 // pred_check_branch
        %253 = sbr.rel (%p251) target = $region24
      $region23: #{keypoint_encoder.5} parent=11 // pred_region
        _
      $region24: #{keypoint_encoder.5} parent=11 // pred_fallthru
        _
      // Predicated region
      $region25: #{keypoint_encoder.5} parent=11 // pred_check
        %p254 = pneg %p167
      $region26: #{keypoint_encoder.5} parent=11 // pred_check_branch
        %256 = sbr.rel (%p254) target = $region28
      $region27: #{keypoint_encoder.5} parent=11 // pred_region
        _
      $region28: #{keypoint_encoder.5} parent=11 // pred_fallthru
        _
      // Predicated region
      $region29: #{keypoint_encoder.5} parent=11 // pred_check
        %p257 = pneg %p188
      $region30: #{keypoint_encoder.5} parent=11 // pred_check_branch
        %259 = sbr.rel (%p257) target = $region32
      $region31: #{keypoint_encoder.5} parent=11 // pred_region
        _
      $region32: #{keypoint_encoder.5} parent=11 // pred_fallthru
        _
    $region12: #{keypoint_encoder.5} parent=5 // pred_fallthru
      _
    %p260 = scmp.lt.s32.totalorder %s15, 4
    // Predicated region
    $region33: #{keypoint_encoder.5} parent=5 // pred_check
      %p261 = pneg %p260
    $region34: #{keypoint_encoder.5} parent=5 // pred_check_branch
      %263 = sbr.rel (%p261) target = $region36
    $region35: #{keypoint_encoder.5} parent=5 // pred_region
      // Predicated region
      $region37: #{keypoint_encoder.5} parent=35 // pred_check
        %p264 = pneg %p49
      $region38: #{keypoint_encoder.5} parent=35 // pred_check_branch
        %266 = sbr.rel (%p264) target = $region40
      $region39: #{keypoint_encoder.5} parent=35 // pred_region
        %s267 = smul.u32 4, %s23
        %p268 = scmp.lt.s32.totalorder %s22, 1
        %s269 = scalar_select %p268, %s22, 1
        %p270 = scmp.lt.s32.totalorder %s267, 7
        %s271 = scalar_select %p270, %s267, 7
        %s272 = smul.addr %s269, 8
        %s273 = sadd.s32 %s271, %s272
        %s274 = smul.addr %s273, 4
        %s275 = scalar_lea.vmem %s0, %s274
        %s276 = smul.u32 4, %s23
      $region40: #{keypoint_encoder.5} parent=35 // pred_fallthru
        _
      // Predicated region
      $region41: #{keypoint_encoder.5} parent=35 // pred_check
        %p277 = pneg %p77
      $region42: #{keypoint_encoder.5} parent=35 // pred_check_branch
        %279 = sbr.rel (%p277) target = $region44
      $region43: #{keypoint_encoder.5} parent=35 // pred_region
        %s280 = smul.u32 4, %s23
        %p281 = scmp.lt.s32.totalorder %s22, 1
        %s282 = scalar_select %p281, %s22, 1
        %p283 = scmp.lt.s32.totalorder %s280, 7
        %s284 = scalar_select %p283, %s280, 7
        %s285 = smul.addr %s282, 8
        %s286 = sadd.s32 %s284, %s285
        %s287 = scalar_lea.vmem %s1, %s286
        %s288 = smul.u32 4, %s23
      $region44: #{keypoint_encoder.5} parent=35 // pred_fallthru
        _
    $region36: #{keypoint_encoder.5} parent=5 // pred_fallthru
      _
    %p289 = scmp.le.s32.totalorder 1, %s15
    %p290 = scmp.lt.s32.totalorder %s15, 5
    %p291 = pnand %p289, %p290
    %p292 = pneg %p291
    // Predicated region
    $region45: #{keypoint_encoder.5} parent=5 // pred_check
      _
    $region46: #{keypoint_encoder.5} parent=5 // pred_check_branch
      %294 = sbr.rel (%p291) target = $region48
    $region47: #{keypoint_encoder.5} parent=5 // pred_region
      %s295 = ssub.s32 %s15, 1
      %s296 = smul.u32 4, %s25
      %p297 = scmp.lt.s32.totalorder %s24, 1
      %s298 = scalar_select %p297, %s24, 1
      %p299 = scmp.lt.s32.totalorder %s296, 7
      %s300 = scalar_select %p299, %s296, 7
      %s301 = smul.addr %s298, 8
      %s302 = sadd.s32 %s300, %s301
      %s303 = smul.addr %s302, 4
      %s304 = scalar_lea.vmem %s0, %s303
      %p305 = pneg %p55
      %p306 = pneg %p52
      %s307 = smul.u32 4, %s25
      %p308 = scmp.lt.s32.totalorder %s24, 1
      %s309 = scalar_select %p308, %s24, 1
      %p310 = scmp.lt.s32.totalorder %s307, 7
      %s311 = scalar_select %p310, %s307, 7
      %s312 = smul.addr %s309, 8
      %s313 = sadd.s32 %s311, %s312
      %s314 = scalar_lea.vmem %s1, %s313
      %p315 = pneg %p83
      %p316 = pneg %p80
      %p317 = pneg %p104
      %p318 = pneg %p101
      %p319 = pneg %p125
      %p320 = pneg %p122
      %p321 = pneg %p146
      %p322 = pneg %p143
      %p323 = pneg %p167
      %p324 = pneg %p164
      %p325 = pneg %p188
      %p326 = pneg %p185
      %p327 = pneg %p209
      %p328 = pneg %p206
      %p329 = pneg %p230
      %p330 = pneg %p227
      %s331 = smul.u32 4, %s25
      %p332 = scmp.lt.s32.totalorder %s24, 1
      %s333 = scalar_select %p332, %s24, 1
      %p334 = scmp.lt.s32.totalorder %s331, 7
      %s335 = scalar_select %p334, %s331, 7
      %s336 = smul.addr %s333, 8
      %s337 = sadd.s32 %s335, %s336
      %s338 = smul.addr %s337, 4
      %s339 = scalar_lea.vmem %s0, %s338
      %s340 = smul.u32 4, %s25
      %s341 = smul.u32 4, %s25
      %p342 = scmp.lt.s32.totalorder %s24, 1
      %s343 = scalar_select %p342, %s24, 1
      %p344 = scmp.lt.s32.totalorder %s341, 7
      %s345 = scalar_select %p344, %s341, 7
      %s346 = smul.addr %s343, 8
      %s347 = sadd.s32 %s345, %s346
      %s348 = scalar_lea.vmem %s1, %s347
      %s349 = smul.u32 4, %s25
      %v350 = vld [vmem:[%s339] sm:$0x77]
      %v351 = vld [vmem:[%s339 + $0x8] sm:$0x77]
      %v352 = vld [vmem:[%s348] sm:$0xf]
      %v353 = vld [vmem:[%s2] sm:$0xff]
      %v354 = vld [vmem:[%s2 + $0x8] sm:$0xff]
      %v355 = vld [vmem:[%s2 + $0x10] sm:$0xff]
      %v356 = vld [vmem:[%s2 + $0x18] sm:$0xff]
      %358 = vset.pattern.permute.xlu0 0
      %359 = vperm.xlu0 %358, %v353
      %v360 = vpop.permute.xlu0 %359
      %363 = vset.pattern.permute.xlu0 0
      %364 = vperm.xlu0 %363, %v354
      %v365 = vpop.permute.xlu0 %364
      %368 = vset.pattern.permute.xlu0 0
      %369 = vperm.xlu0 %368, %v355
      %v370 = vpop.permute.xlu0 %369
      %373 = vset.pattern.permute.xlu0 0
      %374 = vperm.xlu0 %373, %v356
      %v375 = vpop.permute.xlu0 %374
      %v379 = vlaneseq
      %v380 = vshrl.u32 %v379, 7
      %v381 = vsub.s32 0, %v380
      %v382 = vrot.slane %v350, %v381
      %v383 = vlaneseq
      %v384 = vshrl.u32 %v383, 7
      %v385 = vsub.s32 4, %v384
      %v386 = vrot.slane %v350, %v385
      %v387 = vlaneseq
      %v388 = vshrl.u32 %v387, 7
      %v389 = vsub.s32 0, %v388
      %v390 = vrot.slane %v351, %v389
      %v391 = vlaneseq
      %v392 = vshrl.u32 %v391, 7
      %v393 = vsub.s32 4, %v392
      %v394 = vrot.slane %v351, %v393
      %v399 = vlaneseq
      %v400 = vshrl.u32 %v399, 7
      %v401 = vsub.s32 0, %v400
      %v402 = vrot.slane %v382, %v401
      %v403 = vlaneseq
      %v404 = vshrl.u32 %v403, 7
      %v405 = vsub.s32 0, %v404
      %v406 = vrot.slane %v386, %v405
      %v407 = vlaneseq
      %v408 = vshrl.u32 %v407, 7
      %v409 = vsub.s32 0, %v408
      %v410 = vrot.slane %v390, %v409
      %v411 = vlaneseq
      %v412 = vshrl.u32 %v411, 7
      %v413 = vsub.s32 0, %v412
      %v414 = vrot.slane %v394, %v413
      %v415 = vmul.f32 %v360, %v402
      %v416 = vmul.f32 %v360, %v406
      %v417 = vmul.f32 %v360, %v410
      %v418 = vmul.f32 %v360, %v414
      %v419 = vmul.f32 %v365, %v402
      %v420 = vmul.f32 %v365, %v406
      %v421 = vmul.f32 %v365, %v410
      %v422 = vmul.f32 %v365, %v414
      %v423 = vmul.f32 %v370, %v402
      %v424 = vmul.f32 %v370, %v406
      %v425 = vmul.f32 %v370, %v410
      %v426 = vmul.f32 %v370, %v414
      %v427 = vmul.f32 %v375, %v402
      %v428 = vmul.f32 %v375, %v406
      %v429 = vmul.f32 %v375, %v410
      %v430 = vmul.f32 %v375, %v414
      %431 = vset.pattern.permute.xlu0 1
      %432 = vperm.xlu0 %431, %v353
      %v433 = vpop.permute.xlu0 %432
      %435 = vset.pattern.permute.xlu0 1
      %436 = vperm.xlu0 %435, %v354
      %v437 = vpop.permute.xlu0 %436
      %439 = vset.pattern.permute.xlu0 1
      %440 = vperm.xlu0 %439, %v355
      %v441 = vpop.permute.xlu0 %440
      %443 = vset.pattern.permute.xlu0 1
      %444 = vperm.xlu0 %443, %v356
      %v445 = vpop.permute.xlu0 %444
      %v447 = vlaneseq
      %v448 = vshrl.u32 %v447, 7
      %v449 = vsub.s32 1, %v448
      %v450 = vrot.slane %v350, %v449
      %v451 = vlaneseq
      %v452 = vshrl.u32 %v451, 7
      %v453 = vsub.s32 5, %v452
      %v454 = vrot.slane %v350, %v453
      %v455 = vlaneseq
      %v456 = vshrl.u32 %v455, 7
      %v457 = vsub.s32 1, %v456
      %v458 = vrot.slane %v351, %v457
      %v459 = vlaneseq
      %v460 = vshrl.u32 %v459, 7
      %v461 = vsub.s32 5, %v460
      %v462 = vrot.slane %v351, %v461
      %v467 = vlaneseq
      %v468 = vshrl.u32 %v467, 7
      %v469 = vsub.s32 1, %v468
      %v470 = vrot.slane %v450, %v469
      %v471 = vlaneseq
      %v472 = vshrl.u32 %v471, 7
      %v473 = vsub.s32 1, %v472
      %v474 = vrot.slane %v454, %v473
      %v475 = vlaneseq
      %v476 = vshrl.u32 %v475, 7
      %v477 = vsub.s32 1, %v476
      %v478 = vrot.slane %v458, %v477
      %v479 = vlaneseq
      %v480 = vshrl.u32 %v479, 7
      %v481 = vsub.s32 1, %v480
      %v482 = vrot.slane %v462, %v481
      %v483 = vmul.f32 %v433, %v470
      %v484 = vmul.f32 %v433, %v474
      %v485 = vmul.f32 %v433, %v478
      %v486 = vmul.f32 %v433, %v482
      %v487 = vmul.f32 %v437, %v470
      %v488 = vmul.f32 %v437, %v474
      %v489 = vmul.f32 %v437, %v478
      %v490 = vmul.f32 %v437, %v482
      %v491 = vmul.f32 %v441, %v470
      %v492 = vmul.f32 %v441, %v474
      %v493 = vmul.f32 %v441, %v478
      %v494 = vmul.f32 %v441, %v482
      %v495 = vmul.f32 %v445, %v470
      %v496 = vmul.f32 %v445, %v474
      %v497 = vmul.f32 %v445, %v478
      %v498 = vmul.f32 %v445, %v482
      %v499 = vadd.f32 %v415, %v483
      %v500 = vadd.f32 %v416, %v484
      %v501 = vadd.f32 %v417, %v485
      %v502 = vadd.f32 %v418, %v486
      %v503 = vadd.f32 %v419, %v487
      %v504 = vadd.f32 %v420, %v488
      %v505 = vadd.f32 %v421, %v489
      %v506 = vadd.f32 %v422, %v490
      %v507 = vadd.f32 %v423, %v491
      %v508 = vadd.f32 %v424, %v492
      %v509 = vadd.f32 %v425, %v493
      %v510 = vadd.f32 %v426, %v494
      %v511 = vadd.f32 %v427, %v495
      %v512 = vadd.f32 %v428, %v496
      %v513 = vadd.f32 %v429, %v497
      %v514 = vadd.f32 %v430, %v498
      %515 = vset.pattern.permute.xlu0 2
      %516 = vperm.xlu0 %515, %v353
      %v517 = vpop.permute.xlu0 %516
      %519 = vset.pattern.permute.xlu0 2
      %520 = vperm.xlu0 %519, %v354
      %v521 = vpop.permute.xlu0 %520
      %523 = vset.pattern.permute.xlu0 2
      %524 = vperm.xlu0 %523, %v355
      %v525 = vpop.permute.xlu0 %524
      %527 = vset.pattern.permute.xlu0 2
      %528 = vperm.xlu0 %527, %v356
      %v529 = vpop.permute.xlu0 %528
      %v531 = vlaneseq
      %v532 = vshrl.u32 %v531, 7
      %v533 = vsub.s32 2, %v532
      %v534 = vrot.slane %v350, %v533
      %v535 = vlaneseq
      %v536 = vshrl.u32 %v535, 7
      %v537 = vsub.s32 6, %v536
      %v538 = vrot.slane %v350, %v537
      %v539 = vlaneseq
      %v540 = vshrl.u32 %v539, 7
      %v541 = vsub.s32 2, %v540
      %v542 = vrot.slane %v351, %v541
      %v543 = vlaneseq
      %v544 = vshrl.u32 %v543, 7
      %v545 = vsub.s32 6, %v544
      %v546 = vrot.slane %v351, %v545
      %v551 = vlaneseq
      %v552 = vshrl.u32 %v551, 7
      %v553 = vsub.s32 2, %v552
      %v554 = vrot.slane %v534, %v553
      %v555 = vlaneseq
      %v556 = vshrl.u32 %v555, 7
      %v557 = vsub.s32 2, %v556
      %v558 = vrot.slane %v538, %v557
      %v559 = vlaneseq
      %v560 = vshrl.u32 %v559, 7
      %v561 = vsub.s32 2, %v560
      %v562 = vrot.slane %v542, %v561
      %v563 = vlaneseq
      %v564 = vshrl.u32 %v563, 7
      %v565 = vsub.s32 2, %v564
      %v566 = vrot.slane %v546, %v565
      %v567 = vmul.f32 %v517, %v554
      %v568 = vmul.f32 %v517, %v558
      %v569 = vmul.f32 %v517, %v562
      %v570 = vmul.f32 %v517, %v566
      %v571 = vmul.f32 %v521, %v554
      %v572 = vmul.f32 %v521, %v558
      %v573 = vmul.f32 %v521, %v562
      %v574 = vmul.f32 %v521, %v566
      %v575 = vmul.f32 %v525, %v554
      %v576 = vmul.f32 %v525, %v558
      %v577 = vmul.f32 %v525, %v562
      %v578 = vmul.f32 %v525, %v566
      %v579 = vmul.f32 %v529, %v554
      %v580 = vmul.f32 %v529, %v558
      %v581 = vmul.f32 %v529, %v562
      %v582 = vmul.f32 %v529, %v566
      %v583 = vadd.f32 %v499, %v567
      %v584 = vadd.f32 %v500, %v568
      %v585 = vadd.f32 %v501, %v569
      %v586 = vadd.f32 %v502, %v570
      %v587 = vadd.f32 %v503, %v571
      %v588 = vadd.f32 %v504, %v572
      %v589 = vadd.f32 %v505, %v573
      %v590 = vadd.f32 %v506, %v574
      %v591 = vadd.f32 %v507, %v575
      %v592 = vadd.f32 %v508, %v576
      %v593 = vadd.f32 %v509, %v577
      %v594 = vadd.f32 %v510, %v578
      %v595 = vadd.f32 %v511, %v579
      %v596 = vadd.f32 %v512, %v580
      %v597 = vadd.f32 %v513, %v581
      %v598 = vadd.f32 %v514, %v582
      %v599 = vld [vmem:[%s3] sm:$0xff]
      %v600 = vld [vmem:[%s3 + $0x8] sm:$0xff]
      %v601 = vld [vmem:[%s3 + $0x10] sm:$0xff]
      %v602 = vld [vmem:[%s3 + $0x18] sm:$0xff]
      %604 = vset.pattern.permute.xlu0 0
      %605 = vperm.xlu0 %604, %v599
      %v606 = vpop.permute.xlu0 %605
      %609 = vset.pattern.permute.xlu0 0
      %610 = vperm.xlu0 %609, %v600
      %v611 = vpop.permute.xlu0 %610
      %614 = vset.pattern.permute.xlu0 0
      %615 = vperm.xlu0 %614, %v601
      %v616 = vpop.permute.xlu0 %615
      %619 = vset.pattern.permute.xlu0 0
      %620 = vperm.xlu0 %619, %v602
      %v621 = vpop.permute.xlu0 %620
      %v624 = vlaneseq
      %v625 = vshrl.u32 %v624, 7
      %v626 = vsub.s32 0, %v625
      %v627 = vrot.slane %v352, %v626
      %v628 = vlaneseq
      %v629 = vshrl.u32 %v628, 7
      %v630 = vsub.s32 1, %v629
      %v631 = vrot.slane %v352, %v630
      %v632 = vlaneseq
      %v633 = vshrl.u32 %v632, 7
      %v634 = vsub.s32 2, %v633
      %v635 = vrot.slane %v352, %v634
      %v636 = vlaneseq
      %v637 = vshrl.u32 %v636, 7
      %v638 = vsub.s32 3, %v637
      %v639 = vrot.slane %v352, %v638
      %v644 = vmul.f32 %v606, %v627
      %v645 = vmul.f32 %v606, %v631
      %v646 = vmul.f32 %v606, %v635
      %v647 = vmul.f32 %v606, %v639
      %v648 = vmul.f32 %v611, %v627
      %v649 = vmul.f32 %v611, %v631
      %v650 = vmul.f32 %v611, %v635
      %v651 = vmul.f32 %v611, %v639
      %v652 = vmul.f32 %v616, %v627
      %v653 = vmul.f32 %v616, %v631
      %v654 = vmul.f32 %v616, %v635
      %v655 = vmul.f32 %v616, %v639
      %v656 = vmul.f32 %v621, %v627
      %v657 = vmul.f32 %v621, %v631
      %v658 = vmul.f32 %v621, %v635
      %v659 = vmul.f32 %v621, %v639
      %v660 = vadd.f32 %v583, %v644
      %v661 = vadd.f32 %v584, %v645
      %v662 = vadd.f32 %v585, %v646
      %v663 = vadd.f32 %v586, %v647
      %v664 = vadd.f32 %v587, %v648
      %v665 = vadd.f32 %v588, %v649
      %v666 = vadd.f32 %v589, %v650
      %v667 = vadd.f32 %v590, %v651
      %v668 = vadd.f32 %v591, %v652
      %v669 = vadd.f32 %v592, %v653
      %v670 = vadd.f32 %v593, %v654
      %v671 = vadd.f32 %v594, %v655
      %v672 = vadd.f32 %v595, %v656
      %v673 = vadd.f32 %v596, %v657
      %v674 = vadd.f32 %v597, %v658
      %v675 = vadd.f32 %v598, %v659
      %v676 = vld [vmem:[%s4] sm:$0xff]
      %v677 = vld [vmem:[%s4 + $0x8] sm:$0xff]
      %v678 = vld [vmem:[%s4 + $0x10] sm:$0xff]
      %v679 = vld [vmem:[%s4 + $0x18] sm:$0xff]
      %681 = vset.pattern.permute.xlu0 0
      %682 = vperm.xlu0 %681, %v676
      %v683 = vpop.permute.xlu0 %682
      %686 = vset.pattern.permute.xlu0 0
      %687 = vperm.xlu0 %686, %v677
      %v688 = vpop.permute.xlu0 %687
      %691 = vset.pattern.permute.xlu0 0
      %692 = vperm.xlu0 %691, %v678
      %v693 = vpop.permute.xlu0 %692
      %696 = vset.pattern.permute.xlu0 0
      %697 = vperm.xlu0 %696, %v679
      %v698 = vpop.permute.xlu0 %697
      %v700 = vadd.f32 %v660, %v683
      %v701 = vadd.f32 %v661, %v683
      %v702 = vadd.f32 %v662, %v683
      %v703 = vadd.f32 %v663, %v683
      %v704 = vadd.f32 %v664, %v688
      %v705 = vadd.f32 %v665, %v688
      %v706 = vadd.f32 %v666, %v688
      %v707 = vadd.f32 %v667, %v688
      %v708 = vadd.f32 %v668, %v693
      %v709 = vadd.f32 %v669, %v693
      %v710 = vadd.f32 %v670, %v693
      %v711 = vadd.f32 %v671, %v693
      %v712 = vadd.f32 %v672, %v698
      %v713 = vadd.f32 %v673, %v698
      %v714 = vadd.f32 %v674, %v698
      %v715 = vadd.f32 %v675, %v698
      %v716 = vmax.f32 %v700, 0.0
      %v717 = vmax.f32 %v701, 0.0
      %v718 = vmax.f32 %v702, 0.0
      %v719 = vmax.f32 %v703, 0.0
      %v720 = vmax.f32 %v704, 0.0
      %v721 = vmax.f32 %v705, 0.0
      %v722 = vmax.f32 %v706, 0.0
      %v723 = vmax.f32 %v707, 0.0
      %v724 = vmax.f32 %v708, 0.0
      %v725 = vmax.f32 %v709, 0.0
      %v726 = vmax.f32 %v710, 0.0
      %v727 = vmax.f32 %v711, 0.0
      %v728 = vmax.f32 %v712, 0.0
      %v729 = vmax.f32 %v713, 0.0
      %v730 = vmax.f32 %v714, 0.0
      %v731 = vmax.f32 %v715, 0.0
      %v732 = vld [vmem:[%s5] sm:$0xff]
      %v733 = vld [vmem:[%s5 + $0x8] sm:$0xff]
      %v734 = vld [vmem:[%s5 + $0x10] sm:$0xff]
      %v735 = vld [vmem:[%s5 + $0x18] sm:$0xff]
      %v736 = vld [vmem:[%s5 + $0x20] sm:$0xff]
      %v737 = vld [vmem:[%s5 + $0x28] sm:$0xff]
      %v738 = vld [vmem:[%s5 + $0x30] sm:$0xff]
      %v739 = vld [vmem:[%s5 + $0x38] sm:$0xff]
      %v740 = vld [vmem:[%s6] sm:$0xff]
      %v741 = vld [vmem:[%s6 + $0x8] sm:$0xff]
      %v742 = vld [vmem:[%s6 + $0x10] sm:$0xff]
      %v743 = vld [vmem:[%s6 + $0x18] sm:$0xff]
      %v744 = vld [vmem:[%s6 + $0x20] sm:$0xff]
      %v745 = vld [vmem:[%s6 + $0x28] sm:$0xff]
      %v746 = vld [vmem:[%s6 + $0x30] sm:$0xff]
      %v747 = vld [vmem:[%s6 + $0x38] sm:$0xff]
      %749 = vset.pattern.permute.xlu0 0
      %750 = vperm.xlu0 %749, %v740
      %v751 = vpop.permute.xlu0 %750
      %754 = vset.pattern.permute.xlu0 0
      %755 = vperm.xlu0 %754, %v741
      %v756 = vpop.permute.xlu0 %755
      %759 = vset.pattern.permute.xlu0 0
      %760 = vperm.xlu0 %759, %v742
      %v761 = vpop.permute.xlu0 %760
      %764 = vset.pattern.permute.xlu0 0
      %765 = vperm.xlu0 %764, %v743
      %v766 = vpop.permute.xlu0 %765
      %769 = vset.pattern.permute.xlu0 0
      %770 = vperm.xlu0 %769, %v744
      %v771 = vpop.permute.xlu0 %770
      %774 = vset.pattern.permute.xlu0 0
      %775 = vperm.xlu0 %774, %v745
      %v776 = vpop.permute.xlu0 %775
      %779 = vset.pattern.permute.xlu0 0
      %780 = vperm.xlu0 %779, %v746
      %v781 = vpop.permute.xlu0 %780
      %784 = vset.pattern.permute.xlu0 0
      %785 = vperm.xlu0 %784, %v747
      %v786 = vpop.permute.xlu0 %785
      %vm788 = vcmask 261120
      %v790 = vsel %vm788, %v732, 0
      %v793 = vsel %vm788, %v733, 0
      %v796 = vsel %vm788, %v734, 0
      %v799 = vsel %vm788, %v735, 0
      %v802 = vsel %vm788, %v736, 0
      %v805 = vsel %vm788, %v737, 0
      %v808 = vsel %vm788, %v738, 0
      %v811 = vsel %vm788, %v739, 0
      %813 = vmatprep.subr.mxu0 %v717
      %814 = vmatpush1.msra.mxu0 %v716
      %815 = vmatprep.subr.mxu0 %v721
      %816 = vmatpush1.msra.mxu0 %v720
      %817 = vmatprep.subr.mxu0 %v725
      %818 = vmatpush1.msra.mxu0 %v724
      %819 = vmatprep.subr.mxu0 %v729
      %820 = vmatpush1.msra.mxu0 %v728
      %821 = vmatprep.subr.mxu0 0.0
      %822 = vmatpush1.msra.mxu0 0.0
      %823 = vmatprep.subr.mxu0 0.0
      %824 = vmatpush1.msra.mxu0 0.0
      %825 = vmatprep.subr.mxu0 0.0
      %826 = vmatpush1.msra.mxu0 0.0
      %827 = vmatprep.subr.mxu0 0.0
      %828 = vmatpush1.msra.mxu0 0.0
      %829 = vmatprep.subr.mxu0 0.0
      %830 = vmatpush1.msra.mxu0 0.0
      %831 = vmatprep.subr.mxu0 0.0
      %832 = vmatpush1.msra.mxu0 0.0
      %833 = vmatprep.subr.mxu0 0.0
      %834 = vmatpush1.msra.mxu0 0.0
      %835 = vmatprep.subr.mxu0 0.0
      %836 = vmatpush1.msra.mxu0 0.0
      %837 = vmatprep.subr.mxu0 0.0
      %838 = vmatpush1.msra.mxu0 0.0
      %839 = vmatprep.subr.mxu0 0.0
      %840 = vmatpush1.msra.mxu0 0.0
      %841 = vmatprep.subr.mxu0 0.0
      %842 = vmatpush1.msra.mxu0 0.0
      %843 = vmatprep.subr.mxu0 0.0
      %844 = vmatpush1.msra.mxu0 0.0
      %845 = vmatprep.subr.mxu0 0.0
      %846 = vmatpush1.msra.mxu0 0.0
      %847 = vmatprep.subr.mxu0 0.0
      %848 = vmatpush1.msra.mxu0 0.0
      %849 = vmatprep.subr.mxu0 0.0
      %850 = vmatpush1.msra.mxu0 0.0
      %851 = vmatprep.subr.mxu0 0.0
      %852 = vmatpush1.msra.mxu0 0.0
      %853 = vmatprep.subr.mxu0 0.0
      %854 = vmatpush1.msra.mxu0 0.0
      %855 = vmatprep.subr.mxu0 0.0
      %856 = vmatpush1.msra.mxu0 0.0
      %857 = vmatprep.subr.mxu0 0.0
      %858 = vmatpush1.msra.mxu0 0.0
      %859 = vmatprep.subr.mxu0 0.0
      %860 = vmatpush1.msra.mxu0 0.0
      %861 = vmatprep.subr.mxu0 0.0
      %862 = vmatpush1.msra.mxu0 0.0
      %863 = vmatprep.subr.mxu0 0.0
      %864 = vmatpush1.msra.mxu0 0.0
      %865 = vmatprep.subr.mxu0 0.0
      %866 = vmatpush1.msra.mxu0 0.0
      %867 = vmatprep.subr.mxu0 0.0
      %868 = vmatpush1.msra.mxu0 0.0
      %869 = vmatprep.subr.mxu0 0.0
      %870 = vmatpush1.msra.mxu0 0.0
      %871 = vmatprep.subr.mxu0 0.0
      %872 = vmatpush1.msra.mxu0 0.0
      %873 = vmatprep.subr.mxu0 0.0
      %874 = vmatpush1.msra.mxu0 0.0
      %875 = vmatprep.subr.mxu0 0.0
      %876 = vmatpush1.msra.mxu0 0.0
      %877 = vmatprep.mubr.f32.mxu0 0.0
      %878 = vmatmul.mubr.f32.gmra.mrb[0].mxu0 %v790
      %v879 = vpop.f32.mrb[0].mxu0
      %v880 = vadd.f32 %v751, %v879
      %v881 = vpop.f32.mrb[0].mxu0
      %v882 = vadd.f32 %v751, %v881
      %883 = vmatprep.mubr.f32.mxu0 0.0
      %884 = vmatmul.mubr.f32.gmra.mrb[0].mxu0 %v793
      %v885 = vpop.f32.mrb[0].mxu0
      %v886 = vadd.f32 %v756, %v885
      %v887 = vpop.f32.mrb[0].mxu0
      %v888 = vadd.f32 %v756, %v887
      %889 = vmatprep.mubr.f32.mxu0 0.0
      %890 = vmatmul.mubr.f32.gmra.mrb[0].mxu0 %v796
      %v891 = vpop.f32.mrb[0].mxu0
      %v892 = vadd.f32 %v761, %v891
      %v893 = vpop.f32.mrb[0].mxu0
      %v894 = vadd.f32 %v761, %v893
      %895 = vmatprep.mubr.f32.mxu0 0.0
      %896 = vmatmul.mubr.f32.gmra.mrb[0].mxu0 %v799
      %v897 = vpop.f32.mrb[0].mxu0
      %v898 = vadd.f32 %v766, %v897
      %v899 = vpop.f32.mrb[0].mxu0
      %v900 = vadd.f32 %v766, %v899
      %901 = vmatprep.mubr.f32.mxu0 0.0
      %902 = vmatmul.mubr.f32.gmra.mrb[0].mxu0 %v802
      %v903 = vpop.f32.mrb[0].mxu0
      %v904 = vadd.f32 %v771, %v903
      %v905 = vpop.f32.mrb[0].mxu0
      %v906 = vadd.f32 %v771, %v905
      %907 = vmatprep.mubr.f32.mxu0 0.0
      %908 = vmatmul.mubr.f32.gmra.mrb[0].mxu0 %v805
      %v909 = vpop.f32.mrb[0].mxu0
      %v910 = vadd.f32 %v776, %v909
      %v911 = vpop.f32.mrb[0].mxu0
      %v912 = vadd.f32 %v776, %v911
      %913 = vmatprep.mubr.f32.mxu0 0.0
      %914 = vmatmul.mubr.f32.gmra.mrb[0].mxu0 %v808
      %v915 = vpop.f32.mrb[0].mxu0
      %v916 = vadd.f32 %v781, %v915
      %v917 = vpop.f32.mrb[0].mxu0
      %v918 = vadd.f32 %v781, %v917
      %919 = vmatprep.mubr.f32.mxu0 0.0
      %920 = vmatmul.mubr.f32.gmra.mrb[0].mxu0 %v811
      %v921 = vpop.f32.mrb[0].mxu0
      %v922 = vadd.f32 %v786, %v921
      %v923 = vpop.f32.mrb[0].mxu0
      %v924 = vadd.f32 %v786, %v923
      %925 = vdwg.mxu0
      %926 = vmatprep.subr.mxu0 %v719
      %927 = vmatpush1.msra.mxu0 %v718
      %928 = vmatprep.subr.mxu0 %v723
      %929 = vmatpush1.msra.mxu0 %v722
      %930 = vmatprep.subr.mxu0 %v727
      %931 = vmatpush1.msra.mxu0 %v726
      %932 = vmatprep.subr.mxu0 %v731
      %933 = vmatpush1.msra.mxu0 %v730
      %934 = vmatprep.subr.mxu0 0.0
      %935 = vmatpush1.msra.mxu0 0.0
      %936 = vmatprep.subr.mxu0 0.0
      %937 = vmatpush1.msra.mxu0 0.0
      %938 = vmatprep.subr.mxu0 0.0
      %939 = vmatpush1.msra.mxu0 0.0
      %940 = vmatprep.subr.mxu0 0.0
      %941 = vmatpush1.msra.mxu0 0.0
      %942 = vmatprep.subr.mxu0 0.0
      %943 = vmatpush1.msra.mxu0 0.0
      %944 = vmatprep.subr.mxu0 0.0
      %945 = vmatpush1.msra.mxu0 0.0
      %946 = vmatprep.subr.mxu0 0.0
      %947 = vmatpush1.msra.mxu0 0.0
      %948 = vmatprep.subr.mxu0 0.0
      %949 = vmatpush1.msra.mxu0 0.0
      %950 = vmatprep.subr.mxu0 0.0
      %951 = vmatpush1.msra.mxu0 0.0
      %952 = vmatprep.subr.mxu0 0.0
      %953 = vmatpush1.msra.mxu0 0.0
      %954 = vmatprep.subr.mxu0 0.0
      %955 = vmatpush1.msra.mxu0 0.0
      %956 = vmatprep.subr.mxu0 0.0
      %957 = vmatpush1.msra.mxu0 0.0
      %958 = vmatprep.subr.mxu0 0.0
      %959 = vmatpush1.msra.mxu0 0.0
      %960 = vmatprep.subr.mxu0 0.0
      %961 = vmatpush1.msra.mxu0 0.0
      %962 = vmatprep.subr.mxu0 0.0
      %963 = vmatpush1.msra.mxu0 0.0
      %964 = vmatprep.subr.mxu0 0.0
      %965 = vmatpush1.msra.mxu0 0.0
      %966 = vmatprep.subr.mxu0 0.0
      %967 = vmatpush1.msra.mxu0 0.0
      %968 = vmatprep.subr.mxu0 0.0
      %969 = vmatpush1.msra.mxu0 0.0
      %970 = vmatprep.subr.mxu0 0.0
      %971 = vmatpush1.msra.mxu0 0.0
      %972 = vmatprep.subr.mxu0 0.0
      %973 = vmatpush1.msra.mxu0 0.0
      %974 = vmatprep.subr.mxu0 0.0
      %975 = vmatpush1.msra.mxu0 0.0
      %976 = vmatprep.subr.mxu0 0.0
      %977 = vmatpush1.msra.mxu0 0.0
      %978 = vmatprep.subr.mxu0 0.0
      %979 = vmatpush1.msra.mxu0 0.0
      %980 = vmatprep.subr.mxu0 0.0
      %981 = vmatpush1.msra.mxu0 0.0
      %982 = vmatprep.subr.mxu0 0.0
      %983 = vmatpush1.msra.mxu0 0.0
      %984 = vmatprep.subr.mxu0 0.0
      %985 = vmatpush1.msra.mxu0 0.0
      %986 = vmatprep.subr.mxu0 0.0
      %987 = vmatpush1.msra.mxu0 0.0
      %988 = vmatprep.subr.mxu0 0.0
      %989 = vmatpush1.msra.mxu0 0.0
      %990 = vmatprep.mubr.f32.mxu0 0.0
      %991 = vmatmul.mubr.f32.gmra.mrb[0].mxu0 %v790
      %v992 = vpop.f32.mrb[0].mxu0
      %v993 = vadd.f32 %v751, %v992
      %v994 = vpop.f32.mrb[0].mxu0
      %v995 = vadd.f32 %v751, %v994
      %996 = vmatprep.mubr.f32.mxu0 0.0
      %997 = vmatmul.mubr.f32.gmra.mrb[0].mxu0 %v793
      %v998 = vpop.f32.mrb[0].mxu0
      %v999 = vadd.f32 %v756, %v998
      %v1000 = vpop.f32.mrb[0].mxu0
      %v1001 = vadd.f32 %v756, %v1000
      %1002 = vmatprep.mubr.f32.mxu0 0.0
      %1003 = vmatmul.mubr.f32.gmra.mrb[0].mxu0 %v796
      %v1004 = vpop.f32.mrb[0].mxu0
      %v1005 = vadd.f32 %v761, %v1004
      %v1006 = vpop.f32.mrb[0].mxu0
      %v1007 = vadd.f32 %v761, %v1006
      %1008 = vmatprep.mubr.f32.mxu0 0.0
      %1009 = vmatmul.mubr.f32.gmra.mrb[0].mxu0 %v799
      %v1010 = vpop.f32.mrb[0].mxu0
      %v1011 = vadd.f32 %v766, %v1010
      %v1012 = vpop.f32.mrb[0].mxu0
      %v1013 = vadd.f32 %v766, %v1012
      %1014 = vmatprep.mubr.f32.mxu0 0.0
      %1015 = vmatmul.mubr.f32.gmra.mrb[0].mxu0 %v802
      %v1016 = vpop.f32.mrb[0].mxu0
      %v1017 = vadd.f32 %v771, %v1016
      %v1018 = vpop.f32.mrb[0].mxu0
      %v1019 = vadd.f32 %v771, %v1018
      %1020 = vmatprep.mubr.f32.mxu0 0.0
      %1021 = vmatmul.mubr.f32.gmra.mrb[0].mxu0 %v805
      %v1022 = vpop.f32.mrb[0].mxu0
      %v1023 = vadd.f32 %v776, %v1022
      %v1024 = vpop.f32.mrb[0].mxu0
      %v1025 = vadd.f32 %v776, %v1024
      %1026 = vmatprep.mubr.f32.mxu0 0.0
      %1027 = vmatmul.mubr.f32.gmra.mrb[0].mxu0 %v808
      %v1028 = vpop.f32.mrb[0].mxu0
      %v1029 = vadd.f32 %v781, %v1028
      %v1030 = vpop.f32.mrb[0].mxu0
      %v1031 = vadd.f32 %v781, %v1030
      %1032 = vmatprep.mubr.f32.mxu0 0.0
      %1033 = vmatmul.mubr.f32.gmra.mrb[0].mxu0 %v811
      %v1034 = vpop.f32.mrb[0].mxu0
      %v1035 = vadd.f32 %v786, %v1034
      %v1036 = vpop.f32.mrb[0].mxu0
      %v1037 = vadd.f32 %v786, %v1036
      %1038 = vdwg.mxu0
      %v1039 = vadd.f32 %v880, %v882
      %v1040 = vadd.f32 %v1039, %v993
      %v1041 = vadd.f32 %v1040, %v995
      %1042 = vadd.xlane.f32.xlu0 %v1041
      %v1043 = vpop.xlane.xlu0 %1042
      %v1044 = vadd.f32 %v886, %v888
      %v1045 = vadd.f32 %v1044, %v999
      %v1046 = vadd.f32 %v1045, %v1001
      %1047 = vadd.xlane.f32.xlu0 %v1046
      %v1048 = vpop.xlane.xlu0 %1047
      %v1049 = vadd.f32 %v892, %v894
      %v1050 = vadd.f32 %v1049, %v1005
      %v1051 = vadd.f32 %v1050, %v1007
      %1052 = vadd.xlane.f32.xlu0 %v1051
      %v1053 = vpop.xlane.xlu0 %1052
      %v1054 = vadd.f32 %v898, %v900
      %v1055 = vadd.f32 %v1054, %v1011
      %v1056 = vadd.f32 %v1055, %v1013
      %1057 = vadd.xlane.f32.xlu0 %v1056
      %v1058 = vpop.xlane.xlu0 %1057
      %v1059 = vadd.f32 %v904, %v906
      %v1060 = vadd.f32 %v1059, %v1017
      %v1061 = vadd.f32 %v1060, %v1019
      %1062 = vadd.xlane.f32.xlu0 %v1061
      %v1063 = vpop.xlane.xlu0 %1062
      %v1064 = vadd.f32 %v910, %v912
      %v1065 = vadd.f32 %v1064, %v1023
      %v1066 = vadd.f32 %v1065, %v1025
      %1067 = vadd.xlane.f32.xlu0 %v1066
      %v1068 = vpop.xlane.xlu0 %1067
      %v1069 = vadd.f32 %v916, %v918
      %v1070 = vadd.f32 %v1069, %v1029
      %v1071 = vadd.f32 %v1070, %v1031
      %1072 = vadd.xlane.f32.xlu0 %v1071
      %v1073 = vpop.xlane.xlu0 %1072
      %v1074 = vadd.f32 %v922, %v924
      %v1075 = vadd.f32 %v1074, %v1035
      %v1076 = vadd.f32 %v1075, %v1037
      %1077 = vadd.xlane.f32.xlu0 %v1076
      %v1078 = vpop.xlane.xlu0 %1077
      %v1079 = vmul.f32 %v1043, 0.001953125
      %v1080 = vmul.f32 %v1048, 0.001953125
      %v1081 = vmul.f32 %v1053, 0.001953125
      %v1082 = vmul.f32 %v1058, 0.001953125
      %v1083 = vmul.f32 %v1063, 0.001953125
      %v1084 = vmul.f32 %v1068, 0.001953125
      %v1085 = vmul.f32 %v1073, 0.001953125
      %v1086 = vmul.f32 %v1078, 0.001953125
      %v1087 = vsub.f32 %v880, %v1079
      %v1088 = vsub.f32 %v882, %v1079
      %v1089 = vsub.f32 %v993, %v1079
      %v1090 = vsub.f32 %v995, %v1079
      %v1091 = vsub.f32 %v886, %v1080
      %v1092 = vsub.f32 %v888, %v1080
      %v1093 = vsub.f32 %v999, %v1080
      %v1094 = vsub.f32 %v1001, %v1080
      %v1095 = vsub.f32 %v892, %v1081
      %v1096 = vsub.f32 %v894, %v1081
      %v1097 = vsub.f32 %v1005, %v1081
      %v1098 = vsub.f32 %v1007, %v1081
      %v1099 = vsub.f32 %v898, %v1082
      %v1100 = vsub.f32 %v900, %v1082
      %v1101 = vsub.f32 %v1011, %v1082
      %v1102 = vsub.f32 %v1013, %v1082
      %v1103 = vsub.f32 %v904, %v1083
      %v1104 = vsub.f32 %v906, %v1083
      %v1105 = vsub.f32 %v1017, %v1083
      %v1106 = vsub.f32 %v1019, %v1083
      %v1107 = vsub.f32 %v910, %v1084
      %v1108 = vsub.f32 %v912, %v1084
      %v1109 = vsub.f32 %v1023, %v1084
      %v1110 = vsub.f32 %v1025, %v1084
      %v1111 = vsub.f32 %v916, %v1085
      %v1112 = vsub.f32 %v918, %v1085
      %v1113 = vsub.f32 %v1029, %v1085
      %v1114 = vsub.f32 %v1031, %v1085
      %v1115 = vsub.f32 %v922, %v1086
      %v1116 = vsub.f32 %v924, %v1086
      %v1117 = vsub.f32 %v1035, %v1086
      %v1118 = vsub.f32 %v1037, %v1086
      %v1119 = vmul.f32 %v1087, %v1087
      %v1120 = vmul.f32 %v1088, %v1088
      %v1121 = vmul.f32 %v1089, %v1089
      %v1122 = vmul.f32 %v1090, %v1090
      %v1123 = vmul.f32 %v1091, %v1091
      %v1124 = vmul.f32 %v1092, %v1092
      %v1125 = vmul.f32 %v1093, %v1093
      %v1126 = vmul.f32 %v1094, %v1094
      %v1127 = vmul.f32 %v1095, %v1095
      %v1128 = vmul.f32 %v1096, %v1096
      %v1129 = vmul.f32 %v1097, %v1097
      %v1130 = vmul.f32 %v1098, %v1098
      %v1131 = vmul.f32 %v1099, %v1099
      %v1132 = vmul.f32 %v1100, %v1100
      %v1133 = vmul.f32 %v1101, %v1101
      %v1134 = vmul.f32 %v1102, %v1102
      %v1135 = vmul.f32 %v1103, %v1103
      %v1136 = vmul.f32 %v1104, %v1104
      %v1137 = vmul.f32 %v1105, %v1105
      %v1138 = vmul.f32 %v1106, %v1106
      %v1139 = vmul.f32 %v1107, %v1107
      %v1140 = vmul.f32 %v1108, %v1108
      %v1141 = vmul.f32 %v1109, %v1109
      %v1142 = vmul.f32 %v1110, %v1110
      %v1143 = vmul.f32 %v1111, %v1111
      %v1144 = vmul.f32 %v1112, %v1112
      %v1145 = vmul.f32 %v1113, %v1113
      %v1146 = vmul.f32 %v1114, %v1114
      %v1147 = vmul.f32 %v1115, %v1115
      %v1148 = vmul.f32 %v1116, %v1116
      %v1149 = vmul.f32 %v1117, %v1117
      %v1150 = vmul.f32 %v1118, %v1118
      %v1151 = vadd.f32 %v1119, %v1120
      %v1152 = vadd.f32 %v1151, %v1121
      %v1153 = vadd.f32 %v1152, %v1122
      %1154 = vadd.xlane.f32.xlu0 %v1153
      %v1155 = vpop.xlane.xlu0 %1154
      %v1156 = vadd.f32 %v1123, %v1124
      %v1157 = vadd.f32 %v1156, %v1125
      %v1158 = vadd.f32 %v1157, %v1126
      %1159 = vadd.xlane.f32.xlu0 %v1158
      %v1160 = vpop.xlane.xlu0 %1159
      %v1161 = vadd.f32 %v1127, %v1128
      %v1162 = vadd.f32 %v1161, %v1129
      %v1163 = vadd.f32 %v1162, %v1130
      %1164 = vadd.xlane.f32.xlu0 %v1163
      %v1165 = vpop.xlane.xlu0 %1164
      %v1166 = vadd.f32 %v1131, %v1132
      %v1167 = vadd.f32 %v1166, %v1133
      %v1168 = vadd.f32 %v1167, %v1134
      %1169 = vadd.xlane.f32.xlu0 %v1168
      %v1170 = vpop.xlane.xlu0 %1169
      %v1171 = vadd.f32 %v1135, %v1136
      %v1172 = vadd.f32 %v1171, %v1137
      %v1173 = vadd.f32 %v1172, %v1138
      %1174 = vadd.xlane.f32.xlu0 %v1173
      %v1175 = vpop.xlane.xlu0 %1174
      %v1176 = vadd.f32 %v1139, %v1140
      %v1177 = vadd.f32 %v1176, %v1141
      %v1178 = vadd.f32 %v1177, %v1142
      %1179 = vadd.xlane.f32.xlu0 %v1178
      %v1180 = vpop.xlane.xlu0 %1179
      %v1181 = vadd.f32 %v1143, %v1144
      %v1182 = vadd.f32 %v1181, %v1145
      %v1183 = vadd.f32 %v1182, %v1146
      %1184 = vadd.xlane.f32.xlu0 %v1183
      %v1185 = vpop.xlane.xlu0 %1184
      %v1186 = vadd.f32 %v1147, %v1148
      %v1187 = vadd.f32 %v1186, %v1149
      %v1188 = vadd.f32 %v1187, %v1150
      %1189 = vadd.xlane.f32.xlu0 %v1188
      %v1190 = vpop.xlane.xlu0 %1189
      %p1191 = scmp.eq.s32.totalorder %s24, 0
      %p1192 = scmp.eq.s32.totalorder %s25, 0
      %p1193 = pnand %p1191, %p1192
      %p1194 = pneg %p1193
      // Predicated region
      $region49: #{keypoint_encoder.5} parent=47 // pred_check
        _
      $region50: #{keypoint_encoder.5} parent=47 // pred_check_branch
        %1196 = sbr.rel (%p1193) target = $region52
      $region51: #{keypoint_encoder.5} parent=47 // pred_region
        %vm1197 = vcmask 7168
        %1198 = vst.msk [vmem:[%s7] sm:$0xff] %vm1197, %v1079
        %1199 = vst.msk [vmem:[%s7 + $0x8] sm:$0xff] %vm1197, %v1080
        %1200 = vst.msk [vmem:[%s7 + $0x10] sm:$0xff] %vm1197, %v1081
        %1201 = vst.msk [vmem:[%s7 + $0x18] sm:$0xff] %vm1197, %v1082
        %1202 = vst.msk [vmem:[%s7 + $0x20] sm:$0xff] %vm1197, %v1083
        %1203 = vst.msk [vmem:[%s7 + $0x28] sm:$0xff] %vm1197, %v1084
        %1204 = vst.msk [vmem:[%s7 + $0x30] sm:$0xff] %vm1197, %v1085
        %1205 = vst.msk [vmem:[%s7 + $0x38] sm:$0xff] %vm1197, %v1086
        %1206 = vst.msk [vmem:[%s8] sm:$0xff] %vm1197, %v1155
        %1207 = vst.msk [vmem:[%s8 + $0x8] sm:$0xff] %vm1197, %v1160
        %1208 = vst.msk [vmem:[%s8 + $0x10] sm:$0xff] %vm1197, %v1165
        %1209 = vst.msk [vmem:[%s8 + $0x18] sm:$0xff] %vm1197, %v1170
        %1210 = vst.msk [vmem:[%s8 + $0x20] sm:$0xff] %vm1197, %v1175
        %1211 = vst.msk [vmem:[%s8 + $0x28] sm:$0xff] %vm1197, %v1180
        %1212 = vst.msk [vmem:[%s8 + $0x30] sm:$0xff] %vm1197, %v1185
        %1213 = vst.msk [vmem:[%s8 + $0x38] sm:$0xff] %vm1197, %v1190
      $region52: #{keypoint_encoder.5} parent=47 // pred_fallthru
        _
      %p1214 = pneg %p1194
      // Predicated region
      $region53: #{keypoint_encoder.5} parent=47 // pred_check
        _
      $region54: #{keypoint_encoder.5} parent=47 // pred_check_branch
        %1216 = sbr.rel (%p1194) target = $region56
      $region55: #{keypoint_encoder.5} parent=47 // pred_region
        %s1217 = smul.u32 %s24, 2
        %s1218 = sadd.s32 %s1217, %s25
        %s1219 = smul.u32 %s1218, 512
        %s1220 = scvt.s32.f32 %s1219
        %s1221 = sadd.f32 %s1220, 512.0
        %v1222 = vld [vmem:[%s7] sm:$0xff]
        %v1223 = vld [vmem:[%s7 + $0x8] sm:$0xff]
        %v1224 = vld [vmem:[%s7 + $0x10] sm:$0xff]
        %v1225 = vld [vmem:[%s7 + $0x18] sm:$0xff]
        %v1226 = vld [vmem:[%s7 + $0x20] sm:$0xff]
        %v1227 = vld [vmem:[%s7 + $0x28] sm:$0xff]
        %v1228 = vld [vmem:[%s7 + $0x30] sm:$0xff]
        %v1229 = vld [vmem:[%s7 + $0x38] sm:$0xff]
        %v1230 = vsub.f32 %v1079, %v1222
        %v1231 = vsub.f32 %v1080, %v1223
        %v1232 = vsub.f32 %v1081, %v1224
        %v1233 = vsub.f32 %v1082, %v1225
        %v1234 = vsub.f32 %v1083, %v1226
        %v1235 = vsub.f32 %v1084, %v1227
        %v1236 = vsub.f32 %v1085, %v1228
        %v1237 = vsub.f32 %v1086, %v1229
        %v1238 = vstv %s1221
        %v1239 = vrcp.pop %v1238
        %s1240 = vtos %v1239
        %s1241 = smul.f32 512.0, %s1240
        %v1242 = vstv %s1241
        %v1243 = vmul.f32 %v1230, %v1242
        %v1244 = vmul.f32 %v1231, %v1242
        %v1245 = vmul.f32 %v1232, %v1242
        %v1246 = vmul.f32 %v1233, %v1242
        %v1247 = vmul.f32 %v1234, %v1242
        %v1248 = vmul.f32 %v1235, %v1242
        %v1249 = vmul.f32 %v1236, %v1242
        %v1250 = vmul.f32 %v1237, %v1242
        %v1251 = vadd.f32 %v1222, %v1243
        %v1252 = vadd.f32 %v1223, %v1244
        %v1253 = vadd.f32 %v1224, %v1245
        %v1254 = vadd.f32 %v1225, %v1246
        %v1255 = vadd.f32 %v1226, %v1247
        %v1256 = vadd.f32 %v1227, %v1248
        %v1257 = vadd.f32 %v1228, %v1249
        %v1258 = vadd.f32 %v1229, %v1250
        %vm1259 = vcmask 7168
        %1260 = vst.msk [vmem:[%s7] sm:$0xff] %vm1259, %v1251
        %1261 = vst.msk [vmem:[%s7 + $0x8] sm:$0xff] %vm1259, %v1252
        %1262 = vst.msk [vmem:[%s7 + $0x10] sm:$0xff] %vm1259, %v1253
        %1263 = vst.msk [vmem:[%s7 + $0x18] sm:$0xff] %vm1259, %v1254
        %1264 = vst.msk [vmem:[%s7 + $0x20] sm:$0xff] %vm1259, %v1255
        %1265 = vst.msk [vmem:[%s7 + $0x28] sm:$0xff] %vm1259, %v1256
        %1266 = vst.msk [vmem:[%s7 + $0x30] sm:$0xff] %vm1259, %v1257
        %1267 = vst.msk [vmem:[%s7 + $0x38] sm:$0xff] %vm1259, %v1258
        %v1268 = vld [vmem:[%s8] sm:$0xff]
        %v1269 = vld [vmem:[%s8 + $0x8] sm:$0xff]
        %v1270 = vld [vmem:[%s8 + $0x10] sm:$0xff]
        %v1271 = vld [vmem:[%s8 + $0x18] sm:$0xff]
        %v1272 = vld [vmem:[%s8 + $0x20] sm:$0xff]
        %v1273 = vld [vmem:[%s8 + $0x28] sm:$0xff]
        %v1274 = vld [vmem:[%s8 + $0x30] sm:$0xff]
        %v1275 = vld [vmem:[%s8 + $0x38] sm:$0xff]
        %v1276 = vadd.f32 %v1268, %v1155
        %v1277 = vadd.f32 %v1269, %v1160
        %v1278 = vadd.f32 %v1270, %v1165
        %v1279 = vadd.f32 %v1271, %v1170
        %v1280 = vadd.f32 %v1272, %v1175
        %v1281 = vadd.f32 %v1273, %v1180
        %v1282 = vadd.f32 %v1274, %v1185
        %v1283 = vadd.f32 %v1275, %v1190
        %v1284 = vmul.f32 %v1230, %v1230
        %v1285 = vmul.f32 %v1231, %v1231
        %v1286 = vmul.f32 %v1232, %v1232
        %v1287 = vmul.f32 %v1233, %v1233
        %v1288 = vmul.f32 %v1234, %v1234
        %v1289 = vmul.f32 %v1235, %v1235
        %v1290 = vmul.f32 %v1236, %v1236
        %v1291 = vmul.f32 %v1237, %v1237
        %s1292 = smul.f32 %s1220, 512.0
        %v1293 = vstv %s1221
        %v1294 = vrcp.pop %v1293
        %s1295 = vtos %v1294
        %s1296 = smul.f32 %s1292, %s1295
        %v1297 = vstv %s1296
        %v1298 = vmul.f32 %v1284, %v1297
        %v1299 = vmul.f32 %v1285, %v1297
        %v1300 = vmul.f32 %v1286, %v1297
        %v1301 = vmul.f32 %v1287, %v1297
        %v1302 = vmul.f32 %v1288, %v1297
        %v1303 = vmul.f32 %v1289, %v1297
        %v1304 = vmul.f32 %v1290, %v1297
        %v1305 = vmul.f32 %v1291, %v1297
        %v1306 = vadd.f32 %v1276, %v1298
        %v1307 = vadd.f32 %v1277, %v1299
        %v1308 = vadd.f32 %v1278, %v1300
        %v1309 = vadd.f32 %v1279, %v1301
        %v1310 = vadd.f32 %v1280, %v1302
        %v1311 = vadd.f32 %v1281, %v1303
        %v1312 = vadd.f32 %v1282, %v1304
        %v1313 = vadd.f32 %v1283, %v1305
        %1314 = vst.msk [vmem:[%s8] sm:$0xff] %vm1259, %v1306
        %1315 = vst.msk [vmem:[%s8 + $0x8] sm:$0xff] %vm1259, %v1307
        %1316 = vst.msk [vmem:[%s8 + $0x10] sm:$0xff] %vm1259, %v1308
        %1317 = vst.msk [vmem:[%s8 + $0x18] sm:$0xff] %vm1259, %v1309
        %1318 = vst.msk [vmem:[%s8 + $0x20] sm:$0xff] %vm1259, %v1310
        %1319 = vst.msk [vmem:[%s8 + $0x28] sm:$0xff] %vm1259, %v1311
        %1320 = vst.msk [vmem:[%s8 + $0x30] sm:$0xff] %vm1259, %v1312
        %1321 = vst.msk [vmem:[%s8 + $0x38] sm:$0xff] %vm1259, %v1313
      $region56: #{keypoint_encoder.5} parent=47 // pred_fallthru
        _
      // Predicated region
      $region57: #{keypoint_encoder.5} parent=47 // pred_check
        %p1322 = pneg %p206
      $region58: #{keypoint_encoder.5} parent=47 // pred_check_branch
        %1324 = sbr.rel (%p1322) target = $region60
      $region59: #{keypoint_encoder.5} parent=47 // pred_region
        _
      $region60: #{keypoint_encoder.5} parent=47 // pred_fallthru
        _
      // Predicated region
      $region61: #{keypoint_encoder.5} parent=47 // pred_check
        %p1325 = pneg %p227
      $region62: #{keypoint_encoder.5} parent=47 // pred_check_branch
        %1327 = sbr.rel (%p1325) target = $region64
      $region63: #{keypoint_encoder.5} parent=47 // pred_region
        _
      $region64: #{keypoint_encoder.5} parent=47 // pred_fallthru
        _
      // Predicated region
      $region65: #{keypoint_encoder.5} parent=47 // pred_check
        %p1328 = pneg %p206
      $region66: #{keypoint_encoder.5} parent=47 // pred_check_branch
        %1330 = sbr.rel (%p1328) target = $region68
      $region67: #{keypoint_encoder.5} parent=47 // pred_region
        _
      $region68: #{keypoint_encoder.5} parent=47 // pred_fallthru
        _
      // Predicated region
      $region69: #{keypoint_encoder.5} parent=47 // pred_check
        %p1331 = pneg %p227
      $region70: #{keypoint_encoder.5} parent=47 // pred_check_branch
        %1333 = sbr.rel (%p1331) target = $region72
      $region71: #{keypoint_encoder.5} parent=47 // pred_region
        _
      $region72: #{keypoint_encoder.5} parent=47 // pred_fallthru
        _
    $region48: #{keypoint_encoder.5} parent=5 // pred_fallthru
      _
    %p1334 = scmp.le.s32.totalorder 2, %s15
    // Predicated region
    $region73: #{keypoint_encoder.5} parent=5 // pred_check
      %p1335 = pneg %p1334
    $region74: #{keypoint_encoder.5} parent=5 // pred_check_branch
      %1337 = sbr.rel (%p1335) target = $region76
    $region75: #{keypoint_encoder.5} parent=5 // pred_region
      %s1338 = ssub.s32 %s15, 2
    $region76: #{keypoint_encoder.5} parent=5 // pred_fallthru
      _
  $region6: #{keypoint_encoder.5} parent=0 // loop_footer
    %s19 = sadd.s32 1, %s15
  $region7: #{keypoint_encoder.5} parent=0 // loop_footer_branch
    %14 = sbr.rel target = $region3
  $region8: #{keypoint_encoder.5} parent=0 // loop_exit
    _

// kernel: keypoint_encoder.6
$region0: #{keypoint_encoder.6}
  #allocation0 [shape = 'u32[]', space=smem, size = 0x4, offset = 0x4, fixed_abs, tag = 'smem constant byte address 0x4 - core index']
  #allocation1 [shape = 'u32[144,128]{1,0:T(1,128)}', space=vmem, size = 0x12000, scoped, tag = 'internal scratch']
  %s0 = inlined_call_operand.vmem [shape: f32[2,3,1024], index: 0, kind: input, shape index: {}]
  %s1 = inlined_call_operand.vmem [shape: f32[2,1,1024], index: 1, kind: input, shape index: {}]
  %s2 = inlined_call_operand.vmem [shape: f32[32,3], index: 2, kind: input, shape index: {}]
  %s3 = inlined_call_operand.vmem [shape: f32[32,1], index: 3, kind: input, shape index: {}]
  %s4 = inlined_call_operand.vmem [shape: f32[32,1], index: 4, kind: input, shape index: {}]
  %s5 = inlined_call_operand.vmem [shape: f32[64,32], index: 5, kind: input, shape index: {}]
  %s6 = inlined_call_operand.vmem [shape: f32[64,1], index: 6, kind: input, shape index: {}]
  %s7 = inlined_call_operand.vmem [shape: f32[128,64], index: 7, kind: input, shape index: {}]
  %s8 = inlined_call_operand.vmem [shape: f32[128,1], index: 8, kind: input, shape index: {}]
  %s9 = inlined_call_operand.vmem [shape: f32[128,1], index: 9, kind: output, shape index: {0}]
  %s10 = inlined_call_operand.vmem [shape: f32[128,1], index: 10, kind: output, shape index: {1}]
  %11 = xla_tuple %s9, %s10
  %s12 = sld [smem:[#allocation0]]
  $region85: #{keypoint_encoder.6} parent=0
    _
  %s14 = ssub.s32 1, %s12
  %s15 = scalar_select 0, %s14, %s12
  loop: start=0, step=1, limit=6
  $region2: #{keypoint_encoder.6} parent=0 // loop_pre_header
    _
  $region3: #{keypoint_encoder.6} parent=0 // loop_header
    %s17 = sphi 0, %s21
    %p18 = scmp.ge.s32.totalorder %s17, 6
    %s24 = sphi 0, %s36
    %s25 = sphi 0, %s32
    %s26 = sphi 0, %s24
    %s27 = sphi 0, %s25
    %s28 = sphi 0, %s26
    %s29 = sphi 0, %s27
    %s41 = sphi 0, %s43
    %s44 = sphi 0, %s41
    %s45 = sphi 0, %s44
    %s61 = sphi 0, %s45
    %s69 = sphi 0, %s71
    %s72 = sphi 0, %s69
    %s73 = sphi 0, %s72
    %s89 = sphi 0, %s73
    %s93 = sphi 0, %s93
    %s95 = sphi 0, %s93
    %s96 = sphi 0, %s95
    %s110 = sphi 0, %s96
    %s114 = sphi 0, %s114
    %s116 = sphi 0, %s114
    %s117 = sphi 0, %s116
    %s131 = sphi 0, %s117
    %s135 = sphi 0, %s135
    %s137 = sphi 0, %s135
    %s138 = sphi 0, %s137
    %s152 = sphi 0, %s138
    %s156 = sphi 0, %s156
    %s158 = sphi 0, %s156
    %s159 = sphi 0, %s158
    %s173 = sphi 0, %s159
    %s177 = sphi 0, %s177
    %s179 = sphi 0, %s177
    %s180 = sphi 0, %s179
    %s194 = sphi 0, %s180
    %s198 = sphi 0, %s198
    %s200 = sphi 0, %s198
    %s201 = sphi 0, %s200
    %s215 = sphi 0, %s201
    %s219 = sphi 0, %s219
    %s221 = sphi 0, %s219
    %s222 = sphi 0, %s221
    %s236 = sphi 0, %s222
    %s240 = sphi 0, %s240
    %s242 = sphi 0, %s240
    %s243 = sphi 0, %s242
    %s257 = sphi 0, %s243
    %s261 = sphi 0, %s261
    %s263 = sphi 0, %s261
    %s264 = sphi 0, %s263
    %s278 = sphi 0, %s264
  $region4: #{keypoint_encoder.6} parent=0 // loop_header_branch
    %20 = sbr.rel (%p18) target = $region8
  $region5: #{keypoint_encoder.6} parent=0 // loop_body
    %s22 = ssub.s32 %s17, 1
    %s23 = ssub.s32 %s17, 2
    %s30 = sadd.s32 1, %s25
    %p31 = scmp.ge.s32.totalorder %s30, 2
    %s32 = scalar_select %p31, 0, %s30
    %s33 = sadd.s32 1, %s24
    %s34 = scalar_select %p31, %s33, %s24
    %p35 = scmp.ge.s32.totalorder %s34, 2
    %s36 = scalar_select %p35, 0, %s34
    %s37 = ssub.s32 %s24, %s36
    %s38 = ssub.s32 %s25, %s32
    %s39 = sor.u32 %s37, %s38
    %p40 = scmp.eq.s32.totalorder %s39, 0
    %s42 = sadd.s32 %s41, 1
    %s43 = scalar_select %p40, %s41, %s42
    %p46 = pneg %p40
    %p47 = scmp.eq.s32.totalorder %s17, 3
    %p48 = por %p46, %p47
    %p49 = scmp.ne.s32.totalorder %s41, %s44
    %p50 = scmp.eq.s32.totalorder %s17, 0
    %p51 = por %p49, %p50
    %p52 = scmp.ne.s32.totalorder %s41, %s44
    %p53 = scmp.eq.s32.totalorder %s22, 3
    %p54 = por %p52, %p53
    %p55 = scmp.ne.s32.totalorder %s44, %s45
    %p56 = scmp.eq.s32.totalorder %s22, 0
    %p57 = por %p55, %p56
    %p58 = scmp.ne.s32.totalorder %s44, %s45
    %p59 = scmp.eq.s32.totalorder %s23, 3
    %p60 = por %p58, %p59
    %p62 = scmp.ne.s32.totalorder %s45, %s61
    %p63 = scmp.eq.s32.totalorder %s23, 0
    %p64 = por %p62, %p63
    %s65 = ssub.s32 %s24, %s36
    %s66 = ssub.s32 %s25, %s32
    %s67 = sor.u32 %s65, %s66
    %p68 = scmp.eq.s32.totalorder %s67, 0
    %s70 = sadd.s32 %s69, 1
    %s71 = scalar_select %p68, %s69, %s70
    %p74 = pneg %p68
    %p75 = scmp.eq.s32.totalorder %s17, 3
    %p76 = por %p74, %p75
    %p77 = scmp.ne.s32.totalorder %s69, %s72
    %p78 = scmp.eq.s32.totalorder %s17, 0
    %p79 = por %p77, %p78
    %p80 = scmp.ne.s32.totalorder %s69, %s72
    %p81 = scmp.eq.s32.totalorder %s22, 3
    %p82 = por %p80, %p81
    %p83 = scmp.ne.s32.totalorder %s72, %s73
    %p84 = scmp.eq.s32.totalorder %s22, 0
    %p85 = por %p83, %p84
    %p86 = scmp.ne.s32.totalorder %s72, %s73
    %p87 = scmp.eq.s32.totalorder %s23, 3
    %p88 = por %p86, %p87
    %p90 = scmp.ne.s32.totalorder %s73, %s89
    %p91 = scmp.eq.s32.totalorder %s23, 0
    %p92 = por %p90, %p91
    %s94 = sadd.s32 %s93, 1
    %p97 = scmp.eq.s32.totalorder %s17, 3
    %p98 = scmp.ne.s32.totalorder %s93, %s95
    %p99 = scmp.eq.s32.totalorder %s17, 0
    %p100 = por %p98, %p99
    %p101 = scmp.ne.s32.totalorder %s93, %s95
    %p102 = scmp.eq.s32.totalorder %s22, 3
    %p103 = por %p101, %p102
    %p104 = scmp.ne.s32.totalorder %s95, %s96
    %p105 = scmp.eq.s32.totalorder %s22, 0
    %p106 = por %p104, %p105
    %p107 = scmp.ne.s32.totalorder %s95, %s96
    %p108 = scmp.eq.s32.totalorder %s23, 3
    %p109 = por %p107, %p108
    %p111 = scmp.ne.s32.totalorder %s96, %s110
    %p112 = scmp.eq.s32.totalorder %s23, 0
    %p113 = por %p111, %p112
    %s115 = sadd.s32 %s114, 1
    %p118 = scmp.eq.s32.totalorder %s17, 3
    %p119 = scmp.ne.s32.totalorder %s114, %s116
    %p120 = scmp.eq.s32.totalorder %s17, 0
    %p121 = por %p119, %p120
    %p122 = scmp.ne.s32.totalorder %s114, %s116
    %p123 = scmp.eq.s32.totalorder %s22, 3
    %p124 = por %p122, %p123
    %p125 = scmp.ne.s32.totalorder %s116, %s117
    %p126 = scmp.eq.s32.totalorder %s22, 0
    %p127 = por %p125, %p126
    %p128 = scmp.ne.s32.totalorder %s116, %s117
    %p129 = scmp.eq.s32.totalorder %s23, 3
    %p130 = por %p128, %p129
    %p132 = scmp.ne.s32.totalorder %s117, %s131
    %p133 = scmp.eq.s32.totalorder %s23, 0
    %p134 = por %p132, %p133
    %s136 = sadd.s32 %s135, 1
    %p139 = scmp.eq.s32.totalorder %s17, 3
    %p140 = scmp.ne.s32.totalorder %s135, %s137
    %p141 = scmp.eq.s32.totalorder %s17, 0
    %p142 = por %p140, %p141
    %p143 = scmp.ne.s32.totalorder %s135, %s137
    %p144 = scmp.eq.s32.totalorder %s22, 3
    %p145 = por %p143, %p144
    %p146 = scmp.ne.s32.totalorder %s137, %s138
    %p147 = scmp.eq.s32.totalorder %s22, 0
    %p148 = por %p146, %p147
    %p149 = scmp.ne.s32.totalorder %s137, %s138
    %p150 = scmp.eq.s32.totalorder %s23, 3
    %p151 = por %p149, %p150
    %p153 = scmp.ne.s32.totalorder %s138, %s152
    %p154 = scmp.eq.s32.totalorder %s23, 0
    %p155 = por %p153, %p154
    %s157 = sadd.s32 %s156, 1
    %p160 = scmp.eq.s32.totalorder %s17, 3
    %p161 = scmp.ne.s32.totalorder %s156, %s158
    %p162 = scmp.eq.s32.totalorder %s17, 0
    %p163 = por %p161, %p162
    %p164 = scmp.ne.s32.totalorder %s156, %s158
    %p165 = scmp.eq.s32.totalorder %s22, 3
    %p166 = por %p164, %p165
    %p167 = scmp.ne.s32.totalorder %s158, %s159
    %p168 = scmp.eq.s32.totalorder %s22, 0
    %p169 = por %p167, %p168
    %p170 = scmp.ne.s32.totalorder %s158, %s159
    %p171 = scmp.eq.s32.totalorder %s23, 3
    %p172 = por %p170, %p171
    %p174 = scmp.ne.s32.totalorder %s159, %s173
    %p175 = scmp.eq.s32.totalorder %s23, 0
    %p176 = por %p174, %p175
    %s178 = sadd.s32 %s177, 1
    %p181 = scmp.eq.s32.totalorder %s17, 3
    %p182 = scmp.ne.s32.totalorder %s177, %s179
    %p183 = scmp.eq.s32.totalorder %s17, 0
    %p184 = por %p182, %p183
    %p185 = scmp.ne.s32.totalorder %s177, %s179
    %p186 = scmp.eq.s32.totalorder %s22, 3
    %p187 = por %p185, %p186
    %p188 = scmp.ne.s32.totalorder %s179, %s180
    %p189 = scmp.eq.s32.totalorder %s22, 0
    %p190 = por %p188, %p189
    %p191 = scmp.ne.s32.totalorder %s179, %s180
    %p192 = scmp.eq.s32.totalorder %s23, 3
    %p193 = por %p191, %p192
    %p195 = scmp.ne.s32.totalorder %s180, %s194
    %p196 = scmp.eq.s32.totalorder %s23, 0
    %p197 = por %p195, %p196
    %s199 = sadd.s32 %s198, 1
    %p202 = scmp.eq.s32.totalorder %s17, 3
    %p203 = scmp.ne.s32.totalorder %s198, %s200
    %p204 = scmp.eq.s32.totalorder %s17, 0
    %p205 = por %p203, %p204
    %p206 = scmp.ne.s32.totalorder %s198, %s200
    %p207 = scmp.eq.s32.totalorder %s22, 3
    %p208 = por %p206, %p207
    %p209 = scmp.ne.s32.totalorder %s200, %s201
    %p210 = scmp.eq.s32.totalorder %s22, 0
    %p211 = por %p209, %p210
    %p212 = scmp.ne.s32.totalorder %s200, %s201
    %p213 = scmp.eq.s32.totalorder %s23, 3
    %p214 = por %p212, %p213
    %p216 = scmp.ne.s32.totalorder %s201, %s215
    %p217 = scmp.eq.s32.totalorder %s23, 0
    %p218 = por %p216, %p217
    %s220 = sadd.s32 %s219, 1
    %p223 = scmp.eq.s32.totalorder %s17, 3
    %p224 = scmp.ne.s32.totalorder %s219, %s221
    %p225 = scmp.eq.s32.totalorder %s17, 0
    %p226 = por %p224, %p225
    %p227 = scmp.ne.s32.totalorder %s219, %s221
    %p228 = scmp.eq.s32.totalorder %s22, 3
    %p229 = por %p227, %p228
    %p230 = scmp.ne.s32.totalorder %s221, %s222
    %p231 = scmp.eq.s32.totalorder %s22, 0
    %p232 = por %p230, %p231
    %p233 = scmp.ne.s32.totalorder %s221, %s222
    %p234 = scmp.eq.s32.totalorder %s23, 3
    %p235 = por %p233, %p234
    %p237 = scmp.ne.s32.totalorder %s222, %s236
    %p238 = scmp.eq.s32.totalorder %s23, 0
    %p239 = por %p237, %p238
    %s241 = sadd.s32 %s240, 1
    %p244 = scmp.eq.s32.totalorder %s17, 3
    %p245 = scmp.ne.s32.totalorder %s240, %s242
    %p246 = scmp.eq.s32.totalorder %s17, 0
    %p247 = por %p245, %p246
    %p248 = scmp.ne.s32.totalorder %s240, %s242
    %p249 = scmp.eq.s32.totalorder %s22, 3
    %p250 = por %p248, %p249
    %p251 = scmp.ne.s32.totalorder %s242, %s243
    %p252 = scmp.eq.s32.totalorder %s22, 0
    %p253 = por %p251, %p252
    %p254 = scmp.ne.s32.totalorder %s242, %s243
    %p255 = scmp.eq.s32.totalorder %s23, 3
    %p256 = por %p254, %p255
    %p258 = scmp.ne.s32.totalorder %s243, %s257
    %p259 = scmp.eq.s32.totalorder %s23, 0
    %p260 = por %p258, %p259
    %s262 = sadd.s32 %s261, 1
    %p265 = scmp.eq.s32.totalorder %s17, 3
    %p266 = scmp.ne.s32.totalorder %s261, %s263
    %p267 = scmp.eq.s32.totalorder %s17, 0
    %p268 = por %p266, %p267
    %p269 = scmp.ne.s32.totalorder %s261, %s263
    %p270 = scmp.eq.s32.totalorder %s22, 3
    %p271 = por %p269, %p270
    %p272 = scmp.ne.s32.totalorder %s263, %s264
    %p273 = scmp.eq.s32.totalorder %s22, 0
    %p274 = por %p272, %p273
    %p275 = scmp.ne.s32.totalorder %s263, %s264
    %p276 = scmp.eq.s32.totalorder %s23, 3
    %p277 = por %p275, %p276
    %p279 = scmp.ne.s32.totalorder %s264, %s278
    %p280 = scmp.eq.s32.totalorder %s23, 0
    %p281 = por %p279, %p280
    %p282 = scmp.le.s32.totalorder 1, %s17
    %p283 = scmp.lt.s32.totalorder %s17, 5
    %p284 = pnand %p282, %p283
    %p285 = pneg %p284
    // Predicated region
    $region9: #{keypoint_encoder.6} parent=5 // pred_check
      _
    $region10: #{keypoint_encoder.6} parent=5 // pred_check_branch
      %287 = sbr.rel (%p284) target = $region12
    $region11: #{keypoint_encoder.6} parent=5 // pred_region
      %s288 = ssub.s32 %s17, 1
      // Predicated region
      $region13: #{keypoint_encoder.6} parent=11 // pred_check
        %p289 = pneg %p106
      $region14: #{keypoint_encoder.6} parent=11 // pred_check_branch
        %291 = sbr.rel (%p289) target = $region16
      $region15: #{keypoint_encoder.6} parent=11 // pred_region
        _
      $region16: #{keypoint_encoder.6} parent=11 // pred_fallthru
        _
      // Predicated region
      $region17: #{keypoint_encoder.6} parent=11 // pred_check
        %p292 = pneg %p127
      $region18: #{keypoint_encoder.6} parent=11 // pred_check_branch
        %294 = sbr.rel (%p292) target = $region20
      $region19: #{keypoint_encoder.6} parent=11 // pred_region
        _
      $region20: #{keypoint_encoder.6} parent=11 // pred_fallthru
        _
      // Predicated region
      $region21: #{keypoint_encoder.6} parent=11 // pred_check
        %p295 = pneg %p148
      $region22: #{keypoint_encoder.6} parent=11 // pred_check_branch
        %297 = sbr.rel (%p295) target = $region24
      $region23: #{keypoint_encoder.6} parent=11 // pred_region
        _
      $region24: #{keypoint_encoder.6} parent=11 // pred_fallthru
        _
      // Predicated region
      $region25: #{keypoint_encoder.6} parent=11 // pred_check
        %p298 = pneg %p169
      $region26: #{keypoint_encoder.6} parent=11 // pred_check_branch
        %300 = sbr.rel (%p298) target = $region28
      $region27: #{keypoint_encoder.6} parent=11 // pred_region
        _
      $region28: #{keypoint_encoder.6} parent=11 // pred_fallthru
        _
      // Predicated region
      $region29: #{keypoint_encoder.6} parent=11 // pred_check
        %p301 = pneg %p190
      $region30: #{keypoint_encoder.6} parent=11 // pred_check_branch
        %303 = sbr.rel (%p301) target = $region32
      $region31: #{keypoint_encoder.6} parent=11 // pred_region
        _
      $region32: #{keypoint_encoder.6} parent=11 // pred_fallthru
        _
      // Predicated region
      $region33: #{keypoint_encoder.6} parent=11 // pred_check
        %p304 = pneg %p211
      $region34: #{keypoint_encoder.6} parent=11 // pred_check_branch
        %306 = sbr.rel (%p304) target = $region36
      $region35: #{keypoint_encoder.6} parent=11 // pred_region
        _
      $region36: #{keypoint_encoder.6} parent=11 // pred_fallthru
        _
      // Predicated region
      $region37: #{keypoint_encoder.6} parent=11 // pred_check
        %p307 = pneg %p232
      $region38: #{keypoint_encoder.6} parent=11 // pred_check_branch
        %309 = sbr.rel (%p307) target = $region40
      $region39: #{keypoint_encoder.6} parent=11 // pred_region
        _
      $region40: #{keypoint_encoder.6} parent=11 // pred_fallthru
        _
    $region12: #{keypoint_encoder.6} parent=5 // pred_fallthru
      _
    %p310 = scmp.lt.s32.totalorder %s17, 4
    // Predicated region
    $region41: #{keypoint_encoder.6} parent=5 // pred_check
      %p311 = pneg %p310
    $region42: #{keypoint_encoder.6} parent=5 // pred_check_branch
      %313 = sbr.rel (%p311) target = $region44
    $region43: #{keypoint_encoder.6} parent=5 // pred_region
      // Predicated region
      $region45: #{keypoint_encoder.6} parent=43 // pred_check
        %p314 = pneg %p51
      $region46: #{keypoint_encoder.6} parent=43 // pred_check_branch
        %316 = sbr.rel (%p314) target = $region48
      $region47: #{keypoint_encoder.6} parent=43 // pred_region
        %s317 = smul.u32 4, %s25
        %p318 = scmp.lt.s32.totalorder %s24, 1
        %s319 = scalar_select %p318, %s24, 1
        %p320 = scmp.lt.s32.totalorder %s317, 7
        %s321 = scalar_select %p320, %s317, 7
        %s322 = smul.addr %s319, 8
        %s323 = sadd.s32 %s321, %s322
        %s324 = smul.addr %s323, 4
        %s325 = scalar_lea.vmem %s0, %s324
        %s326 = smul.u32 4, %s25
      $region48: #{keypoint_encoder.6} parent=43 // pred_fallthru
        _
      // Predicated region
      $region49: #{keypoint_encoder.6} parent=43 // pred_check
        %p327 = pneg %p79
      $region50: #{keypoint_encoder.6} parent=43 // pred_check_branch
        %329 = sbr.rel (%p327) target = $region52
      $region51: #{keypoint_encoder.6} parent=43 // pred_region
        %s330 = smul.u32 4, %s25
        %p331 = scmp.lt.s32.totalorder %s24, 1
        %s332 = scalar_select %p331, %s24, 1
        %p333 = scmp.lt.s32.totalorder %s330, 7
        %s334 = scalar_select %p333, %s330, 7
        %s335 = smul.addr %s332, 8
        %s336 = sadd.s32 %s334, %s335
        %s337 = scalar_lea.vmem %s1, %s336
        %s338 = smul.u32 4, %s25
      $region52: #{keypoint_encoder.6} parent=43 // pred_fallthru
        _
    $region44: #{keypoint_encoder.6} parent=5 // pred_fallthru
      _
    %p339 = scmp.le.s32.totalorder 1, %s17
    %p340 = scmp.lt.s32.totalorder %s17, 5
    %p341 = pnand %p339, %p340
    %p342 = pneg %p341
    // Predicated region
    $region53: #{keypoint_encoder.6} parent=5 // pred_check
      _
    $region54: #{keypoint_encoder.6} parent=5 // pred_check_branch
      %344 = sbr.rel (%p341) target = $region56
    $region55: #{keypoint_encoder.6} parent=5 // pred_region
      %s345 = ssub.s32 %s17, 1
      %s346 = smul.u32 4, %s27
      %p347 = scmp.lt.s32.totalorder %s26, 1
      %s348 = scalar_select %p347, %s26, 1
      %p349 = scmp.lt.s32.totalorder %s346, 7
      %s350 = scalar_select %p349, %s346, 7
      %s351 = smul.addr %s348, 8
      %s352 = sadd.s32 %s350, %s351
      %s353 = smul.addr %s352, 4
      %s354 = scalar_lea.vmem %s0, %s353
      %p355 = pneg %p57
      %p356 = pneg %p54
      %s357 = smul.u32 4, %s27
      %p358 = scmp.lt.s32.totalorder %s26, 1
      %s359 = scalar_select %p358, %s26, 1
      %p360 = scmp.lt.s32.totalorder %s357, 7
      %s361 = scalar_select %p360, %s357, 7
      %s362 = smul.addr %s359, 8
      %s363 = sadd.s32 %s361, %s362
      %s364 = scalar_lea.vmem %s1, %s363
      %p365 = pneg %p85
      %p366 = pneg %p82
      %p367 = pneg %p106
      %p368 = pneg %p103
      %p369 = pneg %p127
      %p370 = pneg %p124
      %p371 = pneg %p148
      %p372 = pneg %p145
      %p373 = pneg %p169
      %p374 = pneg %p166
      %p375 = pneg %p190
      %p376 = pneg %p187
      %p377 = pneg %p211
      %p378 = pneg %p208
      %p379 = pneg %p232
      %p380 = pneg %p229
      %p381 = pneg %p253
      %p382 = pneg %p250
      %p383 = pneg %p274
      %p384 = pneg %p271
      %s385 = smul.u32 4, %s27
      %p386 = scmp.lt.s32.totalorder %s26, 1
      %s387 = scalar_select %p386, %s26, 1
      %p388 = scmp.lt.s32.totalorder %s385, 7
      %s389 = scalar_select %p388, %s385, 7
      %s390 = smul.addr %s387, 8
      %s391 = sadd.s32 %s389, %s390
      %s392 = smul.addr %s391, 4
      %s393 = scalar_lea.vmem %s0, %s392
      %s394 = smul.u32 4, %s27
      %s395 = smul.u32 4, %s27
      %p396 = scmp.lt.s32.totalorder %s26, 1
      %s397 = scalar_select %p396, %s26, 1
      %p398 = scmp.lt.s32.totalorder %s395, 7
      %s399 = scalar_select %p398, %s395, 7
      %s400 = smul.addr %s397, 8
      %s401 = sadd.s32 %s399, %s400
      %s402 = scalar_lea.vmem %s1, %s401
      %s403 = smul.u32 4, %s27
      %v404 = vld [vmem:[%s393] sm:$0x77]
      %v405 = vld [vmem:[%s393 + $0x8] sm:$0x77]
      %v406 = vld [vmem:[%s402] sm:$0xf]
      %v407 = vld [vmem:[%s2] sm:$0xff]
      %v408 = vld [vmem:[%s2 + $0x8] sm:$0xff]
      %v409 = vld [vmem:[%s2 + $0x10] sm:$0xff]
      %v410 = vld [vmem:[%s2 + $0x18] sm:$0xff]
      %412 = vset.pattern.permute.xlu0 0
      %413 = vperm.xlu0 %412, %v407
      %v414 = vpop.permute.xlu0 %413
      %417 = vset.pattern.permute.xlu0 0
      %418 = vperm.xlu0 %417, %v408
      %v419 = vpop.permute.xlu0 %418
      %422 = vset.pattern.permute.xlu0 0
      %423 = vperm.xlu0 %422, %v409
      %v424 = vpop.permute.xlu0 %423
      %427 = vset.pattern.permute.xlu0 0
      %428 = vperm.xlu0 %427, %v410
      %v429 = vpop.permute.xlu0 %428
      %v433 = vlaneseq
      %v434 = vshrl.u32 %v433, 7
      %v435 = vsub.s32 0, %v434
      %v436 = vrot.slane %v404, %v435
      %v437 = vlaneseq
      %v438 = vshrl.u32 %v437, 7
      %v439 = vsub.s32 4, %v438
      %v440 = vrot.slane %v404, %v439
      %v441 = vlaneseq
      %v442 = vshrl.u32 %v441, 7
      %v443 = vsub.s32 0, %v442
      %v444 = vrot.slane %v405, %v443
      %v445 = vlaneseq
      %v446 = vshrl.u32 %v445, 7
      %v447 = vsub.s32 4, %v446
      %v448 = vrot.slane %v405, %v447
      %v453 = vlaneseq
      %v454 = vshrl.u32 %v453, 7
      %v455 = vsub.s32 0, %v454
      %v456 = vrot.slane %v436, %v455
      %v457 = vlaneseq
      %v458 = vshrl.u32 %v457, 7
      %v459 = vsub.s32 0, %v458
      %v460 = vrot.slane %v440, %v459
      %v461 = vlaneseq
      %v462 = vshrl.u32 %v461, 7
      %v463 = vsub.s32 0, %v462
      %v464 = vrot.slane %v444, %v463
      %v465 = vlaneseq
      %v466 = vshrl.u32 %v465, 7
      %v467 = vsub.s32 0, %v466
      %v468 = vrot.slane %v448, %v467
      %v469 = vmul.f32 %v414, %v456
      %v470 = vmul.f32 %v414, %v460
      %v471 = vmul.f32 %v414, %v464
      %v472 = vmul.f32 %v414, %v468
      %v473 = vmul.f32 %v419, %v456
      %v474 = vmul.f32 %v419, %v460
      %v475 = vmul.f32 %v419, %v464
      %v476 = vmul.f32 %v419, %v468
      %v477 = vmul.f32 %v424, %v456
      %v478 = vmul.f32 %v424, %v460
      %v479 = vmul.f32 %v424, %v464
      %v480 = vmul.f32 %v424, %v468
      %v481 = vmul.f32 %v429, %v456
      %v482 = vmul.f32 %v429, %v460
      %v483 = vmul.f32 %v429, %v464
      %v484 = vmul.f32 %v429, %v468
      %485 = vset.pattern.permute.xlu0 1
      %486 = vperm.xlu0 %485, %v407
      %v487 = vpop.permute.xlu0 %486
      %489 = vset.pattern.permute.xlu0 1
      %490 = vperm.xlu0 %489, %v408
      %v491 = vpop.permute.xlu0 %490
      %493 = vset.pattern.permute.xlu0 1
      %494 = vperm.xlu0 %493, %v409
      %v495 = vpop.permute.xlu0 %494
      %497 = vset.pattern.permute.xlu0 1
      %498 = vperm.xlu0 %497, %v410
      %v499 = vpop.permute.xlu0 %498
      %v501 = vlaneseq
      %v502 = vshrl.u32 %v501, 7
      %v503 = vsub.s32 1, %v502
      %v504 = vrot.slane %v404, %v503
      %v505 = vlaneseq
      %v506 = vshrl.u32 %v505, 7
      %v507 = vsub.s32 5, %v506
      %v508 = vrot.slane %v404, %v507
      %v509 = vlaneseq
      %v510 = vshrl.u32 %v509, 7
      %v511 = vsub.s32 1, %v510
      %v512 = vrot.slane %v405, %v511
      %v513 = vlaneseq
      %v514 = vshrl.u32 %v513, 7
      %v515 = vsub.s32 5, %v514
      %v516 = vrot.slane %v405, %v515
      %v521 = vlaneseq
      %v522 = vshrl.u32 %v521, 7
      %v523 = vsub.s32 1, %v522
      %v524 = vrot.slane %v504, %v523
      %v525 = vlaneseq
      %v526 = vshrl.u32 %v525, 7
      %v527 = vsub.s32 1, %v526
      %v528 = vrot.slane %v508, %v527
      %v529 = vlaneseq
      %v530 = vshrl.u32 %v529, 7
      %v531 = vsub.s32 1, %v530
      %v532 = vrot.slane %v512, %v531
      %v533 = vlaneseq
      %v534 = vshrl.u32 %v533, 7
      %v535 = vsub.s32 1, %v534
      %v536 = vrot.slane %v516, %v535
      %v537 = vmul.f32 %v487, %v524
      %v538 = vmul.f32 %v487, %v528
      %v539 = vmul.f32 %v487, %v532
      %v540 = vmul.f32 %v487, %v536
      %v541 = vmul.f32 %v491, %v524
      %v542 = vmul.f32 %v491, %v528
      %v543 = vmul.f32 %v491, %v532
      %v544 = vmul.f32 %v491, %v536
      %v545 = vmul.f32 %v495, %v524
      %v546 = vmul.f32 %v495, %v528
      %v547 = vmul.f32 %v495, %v532
      %v548 = vmul.f32 %v495, %v536
      %v549 = vmul.f32 %v499, %v524
      %v550 = vmul.f32 %v499, %v528
      %v551 = vmul.f32 %v499, %v532
      %v552 = vmul.f32 %v499, %v536
      %v553 = vadd.f32 %v469, %v537
      %v554 = vadd.f32 %v470, %v538
      %v555 = vadd.f32 %v471, %v539
      %v556 = vadd.f32 %v472, %v540
      %v557 = vadd.f32 %v473, %v541
      %v558 = vadd.f32 %v474, %v542
      %v559 = vadd.f32 %v475, %v543
      %v560 = vadd.f32 %v476, %v544
      %v561 = vadd.f32 %v477, %v545
      %v562 = vadd.f32 %v478, %v546
      %v563 = vadd.f32 %v479, %v547
      %v564 = vadd.f32 %v480, %v548
      %v565 = vadd.f32 %v481, %v549
      %v566 = vadd.f32 %v482, %v550
      %v567 = vadd.f32 %v483, %v551
      %v568 = vadd.f32 %v484, %v552
      %569 = vset.pattern.permute.xlu0 2
      %570 = vperm.xlu0 %569, %v407
      %v571 = vpop.permute.xlu0 %570
      %573 = vset.pattern.permute.xlu0 2
      %574 = vperm.xlu0 %573, %v408
      %v575 = vpop.permute.xlu0 %574
      %577 = vset.pattern.permute.xlu0 2
      %578 = vperm.xlu0 %577, %v409
      %v579 = vpop.permute.xlu0 %578
      %581 = vset.pattern.permute.xlu0 2
      %582 = vperm.xlu0 %581, %v410
      %v583 = vpop.permute.xlu0 %582
      %v585 = vlaneseq
      %v586 = vshrl.u32 %v585, 7
      %v587 = vsub.s32 2, %v586
      %v588 = vrot.slane %v404, %v587
      %v589 = vlaneseq
      %v590 = vshrl.u32 %v589, 7
      %v591 = vsub.s32 6, %v590
      %v592 = vrot.slane %v404, %v591
      %v593 = vlaneseq
      %v594 = vshrl.u32 %v593, 7
      %v595 = vsub.s32 2, %v594
      %v596 = vrot.slane %v405, %v595
      %v597 = vlaneseq
      %v598 = vshrl.u32 %v597, 7
      %v599 = vsub.s32 6, %v598
      %v600 = vrot.slane %v405, %v599
      %v605 = vlaneseq
      %v606 = vshrl.u32 %v605, 7
      %v607 = vsub.s32 2, %v606
      %v608 = vrot.slane %v588, %v607
      %v609 = vlaneseq
      %v610 = vshrl.u32 %v609, 7
      %v611 = vsub.s32 2, %v610
      %v612 = vrot.slane %v592, %v611
      %v613 = vlaneseq
      %v614 = vshrl.u32 %v613, 7
      %v615 = vsub.s32 2, %v614
      %v616 = vrot.slane %v596, %v615
      %v617 = vlaneseq
      %v618 = vshrl.u32 %v617, 7
      %v619 = vsub.s32 2, %v618
      %v620 = vrot.slane %v600, %v619
      %v621 = vmul.f32 %v571, %v608
      %v622 = vmul.f32 %v571, %v612
      %v623 = vmul.f32 %v571, %v616
      %v624 = vmul.f32 %v571, %v620
      %v625 = vmul.f32 %v575, %v608
      %v626 = vmul.f32 %v575, %v612
      %v627 = vmul.f32 %v575, %v616
      %v628 = vmul.f32 %v575, %v620
      %v629 = vmul.f32 %v579, %v608
      %v630 = vmul.f32 %v579, %v612
      %v631 = vmul.f32 %v579, %v616
      %v632 = vmul.f32 %v579, %v620
      %v633 = vmul.f32 %v583, %v608
      %v634 = vmul.f32 %v583, %v612
      %v635 = vmul.f32 %v583, %v616
      %v636 = vmul.f32 %v583, %v620
      %v637 = vadd.f32 %v553, %v621
      %v638 = vadd.f32 %v554, %v622
      %v639 = vadd.f32 %v555, %v623
      %v640 = vadd.f32 %v556, %v624
      %v641 = vadd.f32 %v557, %v625
      %v642 = vadd.f32 %v558, %v626
      %v643 = vadd.f32 %v559, %v627
      %v644 = vadd.f32 %v560, %v628
      %v645 = vadd.f32 %v561, %v629
      %v646 = vadd.f32 %v562, %v630
      %v647 = vadd.f32 %v563, %v631
      %v648 = vadd.f32 %v564, %v632
      %v649 = vadd.f32 %v565, %v633
      %v650 = vadd.f32 %v566, %v634
      %v651 = vadd.f32 %v567, %v635
      %v652 = vadd.f32 %v568, %v636
      %v653 = vld [vmem:[%s3] sm:$0xff]
      %v654 = vld [vmem:[%s3 + $0x8] sm:$0xff]
      %v655 = vld [vmem:[%s3 + $0x10] sm:$0xff]
      %v656 = vld [vmem:[%s3 + $0x18] sm:$0xff]
      %658 = vset.pattern.permute.xlu0 0
      %659 = vperm.xlu0 %658, %v653
      %v660 = vpop.permute.xlu0 %659
      %663 = vset.pattern.permute.xlu0 0
      %664 = vperm.xlu0 %663, %v654
      %v665 = vpop.permute.xlu0 %664
      %668 = vset.pattern.permute.xlu0 0
      %669 = vperm.xlu0 %668, %v655
      %v670 = vpop.permute.xlu0 %669
      %673 = vset.pattern.permute.xlu0 0
      %674 = vperm.xlu0 %673, %v656
      %v675 = vpop.permute.xlu0 %674
      %v678 = vlaneseq
      %v679 = vshrl.u32 %v678, 7
      %v680 = vsub.s32 0, %v679
      %v681 = vrot.slane %v406, %v680
      %v682 = vlaneseq
      %v683 = vshrl.u32 %v682, 7
      %v684 = vsub.s32 1, %v683
      %v685 = vrot.slane %v406, %v684
      %v686 = vlaneseq
      %v687 = vshrl.u32 %v686, 7
      %v688 = vsub.s32 2, %v687
      %v689 = vrot.slane %v406, %v688
      %v690 = vlaneseq
      %v691 = vshrl.u32 %v690, 7
      %v692 = vsub.s32 3, %v691
      %v693 = vrot.slane %v406, %v692
      %v698 = vmul.f32 %v660, %v681
      %v699 = vmul.f32 %v660, %v685
      %v700 = vmul.f32 %v660, %v689
      %v701 = vmul.f32 %v660, %v693
      %v702 = vmul.f32 %v665, %v681
      %v703 = vmul.f32 %v665, %v685
      %v704 = vmul.f32 %v665, %v689
      %v705 = vmul.f32 %v665, %v693
      %v706 = vmul.f32 %v670, %v681
      %v707 = vmul.f32 %v670, %v685
      %v708 = vmul.f32 %v670, %v689
      %v709 = vmul.f32 %v670, %v693
      %v710 = vmul.f32 %v675, %v681
      %v711 = vmul.f32 %v675, %v685
      %v712 = vmul.f32 %v675, %v689
      %v713 = vmul.f32 %v675, %v693
      %v714 = vadd.f32 %v637, %v698
      %v715 = vadd.f32 %v638, %v699
      %v716 = vadd.f32 %v639, %v700
      %v717 = vadd.f32 %v640, %v701
      %v718 = vadd.f32 %v641, %v702
      %v719 = vadd.f32 %v642, %v703
      %v720 = vadd.f32 %v643, %v704
      %v721 = vadd.f32 %v644, %v705
      %v722 = vadd.f32 %v645, %v706
      %v723 = vadd.f32 %v646, %v707
      %v724 = vadd.f32 %v647, %v708
      %v725 = vadd.f32 %v648, %v709
      %v726 = vadd.f32 %v649, %v710
      %v727 = vadd.f32 %v650, %v711
      %v728 = vadd.f32 %v651, %v712
      %v729 = vadd.f32 %v652, %v713
      %v730 = vld [vmem:[%s4] sm:$0xff]
      %v731 = vld [vmem:[%s4 + $0x8] sm:$0xff]
      %v732 = vld [vmem:[%s4 + $0x10] sm:$0xff]
      %v733 = vld [vmem:[%s4 + $0x18] sm:$0xff]
      %735 = vset.pattern.permute.xlu0 0
      %736 = vperm.xlu0 %735, %v730
      %v737 = vpop.permute.xlu0 %736
      %740 = vset.pattern.permute.xlu0 0
      %741 = vperm.xlu0 %740, %v731
      %v742 = vpop.permute.xlu0 %741
      %745 = vset.pattern.permute.xlu0 0
      %746 = vperm.xlu0 %745, %v732
      %v747 = vpop.permute.xlu0 %746
      %750 = vset.pattern.permute.xlu0 0
      %751 = vperm.xlu0 %750, %v733
      %v752 = vpop.permute.xlu0 %751
      %v754 = vadd.f32 %v714, %v737
      %v755 = vadd.f32 %v715, %v737
      %v756 = vadd.f32 %v716, %v737
      %v757 = vadd.f32 %v717, %v737
      %v758 = vadd.f32 %v718, %v742
      %v759 = vadd.f32 %v719, %v742
      %v760 = vadd.f32 %v720, %v742
      %v761 = vadd.f32 %v721, %v742
      %v762 = vadd.f32 %v722, %v747
      %v763 = vadd.f32 %v723, %v747
      %v764 = vadd.f32 %v724, %v747
      %v765 = vadd.f32 %v725, %v747
      %v766 = vadd.f32 %v726, %v752
      %v767 = vadd.f32 %v727, %v752
      %v768 = vadd.f32 %v728, %v752
      %v769 = vadd.f32 %v729, %v752
      %v770 = vmax.f32 %v754, 0.0
      %v771 = vmax.f32 %v755, 0.0
      %v772 = vmax.f32 %v756, 0.0
      %v773 = vmax.f32 %v757, 0.0
      %v774 = vmax.f32 %v758, 0.0
      %v775 = vmax.f32 %v759, 0.0
      %v776 = vmax.f32 %v760, 0.0
      %v777 = vmax.f32 %v761, 0.0
      %v778 = vmax.f32 %v762, 0.0
      %v779 = vmax.f32 %v763, 0.0
      %v780 = vmax.f32 %v764, 0.0
      %v781 = vmax.f32 %v765, 0.0
      %v782 = vmax.f32 %v766, 0.0
      %v783 = vmax.f32 %v767, 0.0
      %v784 = vmax.f32 %v768, 0.0
      %v785 = vmax.f32 %v769, 0.0
      %v786 = vld [vmem:[%s5] sm:$0xff]
      %v787 = vld [vmem:[%s5 + $0x8] sm:$0xff]
      %v788 = vld [vmem:[%s5 + $0x10] sm:$0xff]
      %v789 = vld [vmem:[%s5 + $0x18] sm:$0xff]
      %v790 = vld [vmem:[%s5 + $0x20] sm:$0xff]
      %v791 = vld [vmem:[%s5 + $0x28] sm:$0xff]
      %v792 = vld [vmem:[%s5 + $0x30] sm:$0xff]
      %v793 = vld [vmem:[%s5 + $0x38] sm:$0xff]
      %v794 = vld [vmem:[%s6] sm:$0xff]
      %v795 = vld [vmem:[%s6 + $0x8] sm:$0xff]
      %v796 = vld [vmem:[%s6 + $0x10] sm:$0xff]
      %v797 = vld [vmem:[%s6 + $0x18] sm:$0xff]
      %v798 = vld [vmem:[%s6 + $0x20] sm:$0xff]
      %v799 = vld [vmem:[%s6 + $0x28] sm:$0xff]
      %v800 = vld [vmem:[%s6 + $0x30] sm:$0xff]
      %v801 = vld [vmem:[%s6 + $0x38] sm:$0xff]
      %803 = vset.pattern.permute.xlu0 0
      %804 = vperm.xlu0 %803, %v794
      %v805 = vpop.permute.xlu0 %804
      %808 = vset.pattern.permute.xlu0 0
      %809 = vperm.xlu0 %808, %v795
      %v810 = vpop.permute.xlu0 %809
      %813 = vset.pattern.permute.xlu0 0
      %814 = vperm.xlu0 %813, %v796
      %v815 = vpop.permute.xlu0 %814
      %818 = vset.pattern.permute.xlu0 0
      %819 = vperm.xlu0 %818, %v797
      %v820 = vpop.permute.xlu0 %819
      %823 = vset.pattern.permute.xlu0 0
      %824 = vperm.xlu0 %823, %v798
      %v825 = vpop.permute.xlu0 %824
      %828 = vset.pattern.permute.xlu0 0
      %829 = vperm.xlu0 %828, %v799
      %v830 = vpop.permute.xlu0 %829
      %833 = vset.pattern.permute.xlu0 0
      %834 = vperm.xlu0 %833, %v800
      %v835 = vpop.permute.xlu0 %834
      %838 = vset.pattern.permute.xlu0 0
      %839 = vperm.xlu0 %838, %v801
      %v840 = vpop.permute.xlu0 %839
      %vm842 = vcmask 261120
      %v844 = vsel %vm842, %v786, 0
      %v847 = vsel %vm842, %v787, 0
      %v850 = vsel %vm842, %v788, 0
      %v853 = vsel %vm842, %v789, 0
      %v856 = vsel %vm842, %v790, 0
      %v859 = vsel %vm842, %v791, 0
      %v862 = vsel %vm842, %v792, 0
      %v865 = vsel %vm842, %v793, 0
      %867 = vmatprep.subr.mxu0 %v771
      %868 = vmatpush1.msra.mxu0 %v770
      %869 = vmatprep.subr.mxu0 %v775
      %870 = vmatpush1.msra.mxu0 %v774
      %871 = vmatprep.subr.mxu0 %v779
      %872 = vmatpush1.msra.mxu0 %v778
      %873 = vmatprep.subr.mxu0 %v783
      %874 = vmatpush1.msra.mxu0 %v782
      %875 = vmatprep.subr.mxu0 0.0
      %876 = vmatpush1.msra.mxu0 0.0
      %877 = vmatprep.subr.mxu0 0.0
      %878 = vmatpush1.msra.mxu0 0.0
      %879 = vmatprep.subr.mxu0 0.0
      %880 = vmatpush1.msra.mxu0 0.0
      %881 = vmatprep.subr.mxu0 0.0
      %882 = vmatpush1.msra.mxu0 0.0
      %883 = vmatprep.subr.mxu0 0.0
      %884 = vmatpush1.msra.mxu0 0.0
      %885 = vmatprep.subr.mxu0 0.0
      %886 = vmatpush1.msra.mxu0 0.0
      %887 = vmatprep.subr.mxu0 0.0
      %888 = vmatpush1.msra.mxu0 0.0
      %889 = vmatprep.subr.mxu0 0.0
      %890 = vmatpush1.msra.mxu0 0.0
      %891 = vmatprep.subr.mxu0 0.0
      %892 = vmatpush1.msra.mxu0 0.0
      %893 = vmatprep.subr.mxu0 0.0
      %894 = vmatpush1.msra.mxu0 0.0
      %895 = vmatprep.subr.mxu0 0.0
      %896 = vmatpush1.msra.mxu0 0.0
      %897 = vmatprep.subr.mxu0 0.0
      %898 = vmatpush1.msra.mxu0 0.0
      %899 = vmatprep.subr.mxu0 0.0
      %900 = vmatpush1.msra.mxu0 0.0
      %901 = vmatprep.subr.mxu0 0.0
      %902 = vmatpush1.msra.mxu0 0.0
      %903 = vmatprep.subr.mxu0 0.0
      %904 = vmatpush1.msra.mxu0 0.0
      %905 = vmatprep.subr.mxu0 0.0
      %906 = vmatpush1.msra.mxu0 0.0
      %907 = vmatprep.subr.mxu0 0.0
      %908 = vmatpush1.msra.mxu0 0.0
      %909 = vmatprep.subr.mxu0 0.0
      %910 = vmatpush1.msra.mxu0 0.0
      %911 = vmatprep.subr.mxu0 0.0
      %912 = vmatpush1.msra.mxu0 0.0
      %913 = vmatprep.subr.mxu0 0.0
      %914 = vmatpush1.msra.mxu0 0.0
      %915 = vmatprep.subr.mxu0 0.0
      %916 = vmatpush1.msra.mxu0 0.0
      %917 = vmatprep.subr.mxu0 0.0
      %918 = vmatpush1.msra.mxu0 0.0
      %919 = vmatprep.subr.mxu0 0.0
      %920 = vmatpush1.msra.mxu0 0.0
      %921 = vmatprep.subr.mxu0 0.0
      %922 = vmatpush1.msra.mxu0 0.0
      %923 = vmatprep.subr.mxu0 0.0
      %924 = vmatpush1.msra.mxu0 0.0
      %925 = vmatprep.subr.mxu0 0.0
      %926 = vmatpush1.msra.mxu0 0.0
      %927 = vmatprep.subr.mxu0 0.0
      %928 = vmatpush1.msra.mxu0 0.0
      %929 = vmatprep.subr.mxu0 0.0
      %930 = vmatpush1.msra.mxu0 0.0
      %931 = vmatprep.mubr.f32.mxu0 0.0
      %932 = vmatmul.mubr.f32.gmra.mrb[0].mxu0 %v844
      %v933 = vpop.f32.mrb[0].mxu0
      %v934 = vadd.f32 %v805, %v933
      %v935 = vpop.f32.mrb[0].mxu0
      %v936 = vadd.f32 %v805, %v935
      %937 = vmatprep.mubr.f32.mxu0 0.0
      %938 = vmatmul.mubr.f32.gmra.mrb[0].mxu0 %v847
      %v939 = vpop.f32.mrb[0].mxu0
      %v940 = vadd.f32 %v810, %v939
      %v941 = vpop.f32.mrb[0].mxu0
      %v942 = vadd.f32 %v810, %v941
      %943 = vmatprep.mubr.f32.mxu0 0.0
      %944 = vmatmul.mubr.f32.gmra.mrb[0].mxu0 %v850
      %v945 = vpop.f32.mrb[0].mxu0
      %v946 = vadd.f32 %v815, %v945
      %v947 = vpop.f32.mrb[0].mxu0
      %v948 = vadd.f32 %v815, %v947
      %949 = vmatprep.mubr.f32.mxu0 0.0
      %950 = vmatmul.mubr.f32.gmra.mrb[0].mxu0 %v853
      %v951 = vpop.f32.mrb[0].mxu0
      %v952 = vadd.f32 %v820, %v951
      %v953 = vpop.f32.mrb[0].mxu0
      %v954 = vadd.f32 %v820, %v953
      %955 = vmatprep.mubr.f32.mxu0 0.0
      %956 = vmatmul.mubr.f32.gmra.mrb[0].mxu0 %v856
      %v957 = vpop.f32.mrb[0].mxu0
      %v958 = vadd.f32 %v825, %v957
      %v959 = vpop.f32.mrb[0].mxu0
      %v960 = vadd.f32 %v825, %v959
      %961 = vmatprep.mubr.f32.mxu0 0.0
      %962 = vmatmul.mubr.f32.gmra.mrb[0].mxu0 %v859
      %v963 = vpop.f32.mrb[0].mxu0
      %v964 = vadd.f32 %v830, %v963
      %v965 = vpop.f32.mrb[0].mxu0
      %v966 = vadd.f32 %v830, %v965
      %967 = vmatprep.mubr.f32.mxu0 0.0
      %968 = vmatmul.mubr.f32.gmra.mrb[0].mxu0 %v862
      %v969 = vpop.f32.mrb[0].mxu0
      %v970 = vadd.f32 %v835, %v969
      %v971 = vpop.f32.mrb[0].mxu0
      %v972 = vadd.f32 %v835, %v971
      %973 = vmatprep.mubr.f32.mxu0 0.0
      %974 = vmatmul.mubr.f32.gmra.mrb[0].mxu0 %v865
      %v975 = vpop.f32.mrb[0].mxu0
      %v976 = vadd.f32 %v840, %v975
      %v977 = vpop.f32.mrb[0].mxu0
      %v978 = vadd.f32 %v840, %v977
      %979 = vdwg.mxu0
      %980 = vmatprep.subr.mxu0 %v773
      %981 = vmatpush1.msra.mxu0 %v772
      %982 = vmatprep.subr.mxu0 %v777
      %983 = vmatpush1.msra.mxu0 %v776
      %984 = vmatprep.subr.mxu0 %v781
      %985 = vmatpush1.msra.mxu0 %v780
      %986 = vmatprep.subr.mxu0 %v785
      %987 = vmatpush1.msra.mxu0 %v784
      %988 = vmatprep.subr.mxu0 0.0
      %989 = vmatpush1.msra.mxu0 0.0
      %990 = vmatprep.subr.mxu0 0.0
      %991 = vmatpush1.msra.mxu0 0.0
      %992 = vmatprep.subr.mxu0 0.0
      %993 = vmatpush1.msra.mxu0 0.0
      %994 = vmatprep.subr.mxu0 0.0
      %995 = vmatpush1.msra.mxu0 0.0
      %996 = vmatprep.subr.mxu0 0.0
      %997 = vmatpush1.msra.mxu0 0.0
      %998 = vmatprep.subr.mxu0 0.0
      %999 = vmatpush1.msra.mxu0 0.0
      %1000 = vmatprep.subr.mxu0 0.0
      %1001 = vmatpush1.msra.mxu0 0.0
      %1002 = vmatprep.subr.mxu0 0.0
      %1003 = vmatpush1.msra.mxu0 0.0
      %1004 = vmatprep.subr.mxu0 0.0
      %1005 = vmatpush1.msra.mxu0 0.0
      %1006 = vmatprep.subr.mxu0 0.0
      %1007 = vmatpush1.msra.mxu0 0.0
      %1008 = vmatprep.subr.mxu0 0.0
      %1009 = vmatpush1.msra.mxu0 0.0
      %1010 = vmatprep.subr.mxu0 0.0
      %1011 = vmatpush1.msra.mxu0 0.0
      %1012 = vmatprep.subr.mxu0 0.0
      %1013 = vmatpush1.msra.mxu0 0.0
      %1014 = vmatprep.subr.mxu0 0.0
      %1015 = vmatpush1.msra.mxu0 0.0
      %1016 = vmatprep.subr.mxu0 0.0
      %1017 = vmatpush1.msra.mxu0 0.0
      %1018 = vmatprep.subr.mxu0 0.0
      %1019 = vmatpush1.msra.mxu0 0.0
      %1020 = vmatprep.subr.mxu0 0.0
      %1021 = vmatpush1.msra.mxu0 0.0
      %1022 = vmatprep.subr.mxu0 0.0
      %1023 = vmatpush1.msra.mxu0 0.0
      %1024 = vmatprep.subr.mxu0 0.0
      %1025 = vmatpush1.msra.mxu0 0.0
      %1026 = vmatprep.subr.mxu0 0.0
      %1027 = vmatpush1.msra.mxu0 0.0
      %1028 = vmatprep.subr.mxu0 0.0
      %1029 = vmatpush1.msra.mxu0 0.0
      %1030 = vmatprep.subr.mxu0 0.0
      %1031 = vmatpush1.msra.mxu0 0.0
      %1032 = vmatprep.subr.mxu0 0.0
      %1033 = vmatpush1.msra.mxu0 0.0
      %1034 = vmatprep.subr.mxu0 0.0
      %1035 = vmatpush1.msra.mxu0 0.0
      %1036 = vmatprep.subr.mxu0 0.0
      %1037 = vmatpush1.msra.mxu0 0.0
      %1038 = vmatprep.subr.mxu0 0.0
      %1039 = vmatpush1.msra.mxu0 0.0
      %1040 = vmatprep.subr.mxu0 0.0
      %1041 = vmatpush1.msra.mxu0 0.0
      %1042 = vmatprep.subr.mxu0 0.0
      %1043 = vmatpush1.msra.mxu0 0.0
      %1044 = vmatprep.mubr.f32.mxu0 0.0
      %1045 = vmatmul.mubr.f32.gmra.mrb[0].mxu0 %v844
      %v1046 = vpop.f32.mrb[0].mxu0
      %v1047 = vadd.f32 %v805, %v1046
      %v1048 = vpop.f32.mrb[0].mxu0
      %v1049 = vadd.f32 %v805, %v1048
      %1050 = vmatprep.mubr.f32.mxu0 0.0
      %1051 = vmatmul.mubr.f32.gmra.mrb[0].mxu0 %v847
      %v1052 = vpop.f32.mrb[0].mxu0
      %v1053 = vadd.f32 %v810, %v1052
      %v1054 = vpop.f32.mrb[0].mxu0
      %v1055 = vadd.f32 %v810, %v1054
      %1056 = vmatprep.mubr.f32.mxu0 0.0
      %1057 = vmatmul.mubr.f32.gmra.mrb[0].mxu0 %v850
      %v1058 = vpop.f32.mrb[0].mxu0
      %v1059 = vadd.f32 %v815, %v1058
      %v1060 = vpop.f32.mrb[0].mxu0
      %v1061 = vadd.f32 %v815, %v1060
      %1062 = vmatprep.mubr.f32.mxu0 0.0
      %1063 = vmatmul.mubr.f32.gmra.mrb[0].mxu0 %v853
      %v1064 = vpop.f32.mrb[0].mxu0
      %v1065 = vadd.f32 %v820, %v1064
      %v1066 = vpop.f32.mrb[0].mxu0
      %v1067 = vadd.f32 %v820, %v1066
      %1068 = vmatprep.mubr.f32.mxu0 0.0
      %1069 = vmatmul.mubr.f32.gmra.mrb[0].mxu0 %v856
      %v1070 = vpop.f32.mrb[0].mxu0
      %v1071 = vadd.f32 %v825, %v1070
      %v1072 = vpop.f32.mrb[0].mxu0
      %v1073 = vadd.f32 %v825, %v1072
      %1074 = vmatprep.mubr.f32.mxu0 0.0
      %1075 = vmatmul.mubr.f32.gmra.mrb[0].mxu0 %v859
      %v1076 = vpop.f32.mrb[0].mxu0
      %v1077 = vadd.f32 %v830, %v1076
      %v1078 = vpop.f32.mrb[0].mxu0
      %v1079 = vadd.f32 %v830, %v1078
      %1080 = vmatprep.mubr.f32.mxu0 0.0
      %1081 = vmatmul.mubr.f32.gmra.mrb[0].mxu0 %v862
      %v1082 = vpop.f32.mrb[0].mxu0
      %v1083 = vadd.f32 %v835, %v1082
      %v1084 = vpop.f32.mrb[0].mxu0
      %v1085 = vadd.f32 %v835, %v1084
      %1086 = vmatprep.mubr.f32.mxu0 0.0
      %1087 = vmatmul.mubr.f32.gmra.mrb[0].mxu0 %v865
      %v1088 = vpop.f32.mrb[0].mxu0
      %v1089 = vadd.f32 %v840, %v1088
      %v1090 = vpop.f32.mrb[0].mxu0
      %v1091 = vadd.f32 %v840, %v1090
      %1092 = vdwg.mxu0
      %v1093 = vmax.f32 %v934, 0.0
      %v1094 = vmax.f32 %v936, 0.0
      %v1095 = vmax.f32 %v1047, 0.0
      %v1096 = vmax.f32 %v1049, 0.0
      %v1097 = vmax.f32 %v940, 0.0
      %v1098 = vmax.f32 %v942, 0.0
      %v1099 = vmax.f32 %v1053, 0.0
      %v1100 = vmax.f32 %v1055, 0.0
      %v1101 = vmax.f32 %v946, 0.0
      %v1102 = vmax.f32 %v948, 0.0
      %v1103 = vmax.f32 %v1059, 0.0
      %v1104 = vmax.f32 %v1061, 0.0
      %v1105 = vmax.f32 %v952, 0.0
      %v1106 = vmax.f32 %v954, 0.0
      %v1107 = vmax.f32 %v1065, 0.0
      %v1108 = vmax.f32 %v1067, 0.0
      %v1109 = vmax.f32 %v958, 0.0
      %v1110 = vmax.f32 %v960, 0.0
      %v1111 = vmax.f32 %v1071, 0.0
      %v1112 = vmax.f32 %v1073, 0.0
      %v1113 = vmax.f32 %v964, 0.0
      %v1114 = vmax.f32 %v966, 0.0
      %v1115 = vmax.f32 %v1077, 0.0
      %v1116 = vmax.f32 %v1079, 0.0
      %v1117 = vmax.f32 %v970, 0.0
      %v1118 = vmax.f32 %v972, 0.0
      %v1119 = vmax.f32 %v1083, 0.0
      %v1120 = vmax.f32 %v1085, 0.0
      %v1121 = vmax.f32 %v976, 0.0
      %v1122 = vmax.f32 %v978, 0.0
      %v1123 = vmax.f32 %v1089, 0.0
      %v1124 = vmax.f32 %v1091, 0.0
      %v1125 = vld [vmem:[%s7] sm:$0xff]
      %v1126 = vld [vmem:[%s7 + $0x8] sm:$0xff]
      %v1127 = vld [vmem:[%s7 + $0x10] sm:$0xff]
      %v1128 = vld [vmem:[%s7 + $0x18] sm:$0xff]
      %v1129 = vld [vmem:[%s7 + $0x20] sm:$0xff]
      %v1130 = vld [vmem:[%s7 + $0x28] sm:$0xff]
      %v1131 = vld [vmem:[%s7 + $0x30] sm:$0xff]
      %v1132 = vld [vmem:[%s7 + $0x38] sm:$0xff]
      %v1133 = vld [vmem:[%s7 + $0x40] sm:$0xff]
      %v1134 = vld [vmem:[%s7 + $0x48] sm:$0xff]
      %v1135 = vld [vmem:[%s7 + $0x50] sm:$0xff]
      %v1136 = vld [vmem:[%s7 + $0x58] sm:$0xff]
      %v1137 = vld [vmem:[%s7 + $0x60] sm:$0xff]
      %v1138 = vld [vmem:[%s7 + $0x68] sm:$0xff]
      %v1139 = vld [vmem:[%s7 + $0x70] sm:$0xff]
      %v1140 = vld [vmem:[%s7 + $0x78] sm:$0xff]
      %v1141 = vld [vmem:[%s8] sm:$0xff]
      %v1142 = vld [vmem:[%s8 + $0x8] sm:$0xff]
      %v1143 = vld [vmem:[%s8 + $0x10] sm:$0xff]
      %v1144 = vld [vmem:[%s8 + $0x18] sm:$0xff]
      %v1145 = vld [vmem:[%s8 + $0x20] sm:$0xff]
      %v1146 = vld [vmem:[%s8 + $0x28] sm:$0xff]
      %v1147 = vld [vmem:[%s8 + $0x30] sm:$0xff]
      %v1148 = vld [vmem:[%s8 + $0x38] sm:$0xff]
      %v1149 = vld [vmem:[%s8 + $0x40] sm:$0xff]
      %v1150 = vld [vmem:[%s8 + $0x48] sm:$0xff]
      %v1151 = vld [vmem:[%s8 + $0x50] sm:$0xff]
      %v1152 = vld [vmem:[%s8 + $0x58] sm:$0xff]
      %v1153 = vld [vmem:[%s8 + $0x60] sm:$0xff]
      %v1154 = vld [vmem:[%s8 + $0x68] sm:$0xff]
      %v1155 = vld [vmem:[%s8 + $0x70] sm:$0xff]
      %v1156 = vld [vmem:[%s8 + $0x78] sm:$0xff]
      %1158 = vset.pattern.permute.xlu0 0
      %1159 = vperm.xlu0 %1158, %v1141
      %v1160 = vpop.permute.xlu0 %1159
      %1163 = vset.pattern.permute.xlu0 0
      %1164 = vperm.xlu0 %1163, %v1142
      %v1165 = vpop.permute.xlu0 %1164
      %1168 = vset.pattern.permute.xlu0 0
      %1169 = vperm.xlu0 %1168, %v1143
      %v1170 = vpop.permute.xlu0 %1169
      %1173 = vset.pattern.permute.xlu0 0
      %1174 = vperm.xlu0 %1173, %v1144
      %v1175 = vpop.permute.xlu0 %1174
      %1178 = vset.pattern.permute.xlu0 0
      %1179 = vperm.xlu0 %1178, %v1145
      %v1180 = vpop.permute.xlu0 %1179
      %1183 = vset.pattern.permute.xlu0 0
      %1184 = vperm.xlu0 %1183, %v1146
      %v1185 = vpop.permute.xlu0 %1184
      %1188 = vset.pattern.permute.xlu0 0
      %1189 = vperm.xlu0 %1188, %v1147
      %v1190 = vpop.permute.xlu0 %1189
      %1193 = vset.pattern.permute.xlu0 0
      %1194 = vperm.xlu0 %1193, %v1148
      %v1195 = vpop.permute.xlu0 %1194
      %1198 = vset.pattern.permute.xlu0 0
      %1199 = vperm.xlu0 %1198, %v1149
      %v1200 = vpop.permute.xlu0 %1199
      %1203 = vset.pattern.permute.xlu0 0
      %1204 = vperm.xlu0 %1203, %v1150
      %v1205 = vpop.permute.xlu0 %1204
      %1208 = vset.pattern.permute.xlu0 0
      %1209 = vperm.xlu0 %1208, %v1151
      %v1210 = vpop.permute.xlu0 %1209
      %1213 = vset.pattern.permute.xlu0 0
      %1214 = vperm.xlu0 %1213, %v1152
      %v1215 = vpop.permute.xlu0 %1214
      %1218 = vset.pattern.permute.xlu0 0
      %1219 = vperm.xlu0 %1218, %v1153
      %v1220 = vpop.permute.xlu0 %1219
      %1223 = vset.pattern.permute.xlu0 0
      %1224 = vperm.xlu0 %1223, %v1154
      %v1225 = vpop.permute.xlu0 %1224
      %1228 = vset.pattern.permute.xlu0 0
      %1229 = vperm.xlu0 %1228, %v1155
      %v1230 = vpop.permute.xlu0 %1229
      %1233 = vset.pattern.permute.xlu0 0
      %1234 = vperm.xlu0 %1233, %v1156
      %v1235 = vpop.permute.xlu0 %1234
      %vm1237 = vcmask 523264
      %v1239 = vsel %vm1237, %v1125, 0
      %v1242 = vsel %vm1237, %v1126, 0
      %v1245 = vsel %vm1237, %v1127, 0
      %v1248 = vsel %vm1237, %v1128, 0
      %v1251 = vsel %vm1237, %v1129, 0
      %v1254 = vsel %vm1237, %v1130, 0
      %v1257 = vsel %vm1237, %v1131, 0
      %v1260 = vsel %vm1237, %v1132, 0
      %v1263 = vsel %vm1237, %v1133, 0
      %v1266 = vsel %vm1237, %v1134, 0
      %v1269 = vsel %vm1237, %v1135, 0
      %v1272 = vsel %vm1237, %v1136, 0
      %v1275 = vsel %vm1237, %v1137, 0
      %v1278 = vsel %vm1237, %v1138, 0
      %v1281 = vsel %vm1237, %v1139, 0
      %v1284 = vsel %vm1237, %v1140, 0
      %1286 = vmatprep.subr.mxu0 %v1094
      %1287 = vmatpush1.msra.mxu0 %v1093
      %1288 = vmatprep.subr.mxu0 %v1098
      %1289 = vmatpush1.msra.mxu0 %v1097
      %1290 = vmatprep.subr.mxu0 %v1102
      %1291 = vmatpush1.msra.mxu0 %v1101
      %1292 = vmatprep.subr.mxu0 %v1106
      %1293 = vmatpush1.msra.mxu0 %v1105
      %1294 = vmatprep.subr.mxu0 %v1110
      %1295 = vmatpush1.msra.mxu0 %v1109
      %1296 = vmatprep.subr.mxu0 %v1114
      %1297 = vmatpush1.msra.mxu0 %v1113
      %1298 = vmatprep.subr.mxu0 %v1118
      %1299 = vmatpush1.msra.mxu0 %v1117
      %1300 = vmatprep.subr.mxu0 %v1122
      %1301 = vmatpush1.msra.mxu0 %v1121
      %1302 = vmatprep.subr.mxu0 0.0
      %1303 = vmatpush1.msra.mxu0 0.0
      %1304 = vmatprep.subr.mxu0 0.0
      %1305 = vmatpush1.msra.mxu0 0.0
      %1306 = vmatprep.subr.mxu0 0.0
      %1307 = vmatpush1.msra.mxu0 0.0
      %1308 = vmatprep.subr.mxu0 0.0
      %1309 = vmatpush1.msra.mxu0 0.0
      %1310 = vmatprep.subr.mxu0 0.0
      %1311 = vmatpush1.msra.mxu0 0.0
      %1312 = vmatprep.subr.mxu0 0.0
      %1313 = vmatpush1.msra.mxu0 0.0
      %1314 = vmatprep.subr.mxu0 0.0
      %1315 = vmatpush1.msra.mxu0 0.0
      %1316 = vmatprep.subr.mxu0 0.0
      %1317 = vmatpush1.msra.mxu0 0.0
      %1318 = vmatprep.subr.mxu0 0.0
      %1319 = vmatpush1.msra.mxu0 0.0
      %1320 = vmatprep.subr.mxu0 0.0
      %1321 = vmatpush1.msra.mxu0 0.0
      %1322 = vmatprep.subr.mxu0 0.0
      %1323 = vmatpush1.msra.mxu0 0.0
      %1324 = vmatprep.subr.mxu0 0.0
      %1325 = vmatpush1.msra.mxu0 0.0
      %1326 = vmatprep.subr.mxu0 0.0
      %1327 = vmatpush1.msra.mxu0 0.0
      %1328 = vmatprep.subr.mxu0 0.0
      %1329 = vmatpush1.msra.mxu0 0.0
      %1330 = vmatprep.subr.mxu0 0.0
      %1331 = vmatpush1.msra.mxu0 0.0
      %1332 = vmatprep.subr.mxu0 0.0
      %1333 = vmatpush1.msra.mxu0 0.0
      %1334 = vmatprep.subr.mxu0 0.0
      %1335 = vmatpush1.msra.mxu0 0.0
      %1336 = vmatprep.subr.mxu0 0.0
      %1337 = vmatpush1.msra.mxu0 0.0
      %1338 = vmatprep.subr.mxu0 0.0
      %1339 = vmatpush1.msra.mxu0 0.0
      %1340 = vmatprep.subr.mxu0 0.0
      %1341 = vmatpush1.msra.mxu0 0.0
      %1342 = vmatprep.subr.mxu0 0.0
      %1343 = vmatpush1.msra.mxu0 0.0
      %1344 = vmatprep.subr.mxu0 0.0
      %1345 = vmatpush1.msra.mxu0 0.0
      %1346 = vmatprep.subr.mxu0 0.0
      %1347 = vmatpush1.msra.mxu0 0.0
      %1348 = vmatprep.subr.mxu0 0.0
      %1349 = vmatpush1.msra.mxu0 0.0
      %1350 = vmatprep.mubr.f32.mxu0 0.0
      %1351 = vmatmul.mubr.f32.gmra.mrb[0].mxu0 %v1239
      %v1352 = vpop.f32.mrb[0].mxu0
      %v1353 = vadd.f32 %v1160, %v1352
      %v1354 = vpop.f32.mrb[0].mxu0
      %v1355 = vadd.f32 %v1160, %v1354
      %1356 = vmatprep.mubr.f32.mxu0 0.0
      %1357 = vmatmul.mubr.f32.gmra.mrb[0].mxu0 %v1242
      %v1358 = vpop.f32.mrb[0].mxu0
      %v1359 = vadd.f32 %v1165, %v1358
      %v1360 = vpop.f32.mrb[0].mxu0
      %v1361 = vadd.f32 %v1165, %v1360
      %1362 = vmatprep.mubr.f32.mxu0 0.0
      %1363 = vmatmul.mubr.f32.gmra.mrb[0].mxu0 %v1245
      %v1364 = vpop.f32.mrb[0].mxu0
      %v1365 = vadd.f32 %v1170, %v1364
      %v1366 = vpop.f32.mrb[0].mxu0
      %v1367 = vadd.f32 %v1170, %v1366
      %1368 = vmatprep.mubr.f32.mxu0 0.0
      %1369 = vmatmul.mubr.f32.gmra.mrb[0].mxu0 %v1248
      %v1370 = vpop.f32.mrb[0].mxu0
      %v1371 = vadd.f32 %v1175, %v1370
      %v1372 = vpop.f32.mrb[0].mxu0
      %v1373 = vadd.f32 %v1175, %v1372
      %1374 = vmatprep.mubr.f32.mxu0 0.0
      %1375 = vmatmul.mubr.f32.gmra.mrb[0].mxu0 %v1251
      %v1376 = vpop.f32.mrb[0].mxu0
      %v1377 = vadd.f32 %v1180, %v1376
      %v1378 = vpop.f32.mrb[0].mxu0
      %v1379 = vadd.f32 %v1180, %v1378
      %1380 = vmatprep.mubr.f32.mxu0 0.0
      %1381 = vmatmul.mubr.f32.gmra.mrb[0].mxu0 %v1254
      %v1382 = vpop.f32.mrb[0].mxu0
      %v1383 = vadd.f32 %v1185, %v1382
      %v1384 = vpop.f32.mrb[0].mxu0
      %v1385 = vadd.f32 %v1185, %v1384
      %1386 = vmatprep.mubr.f32.mxu0 0.0
      %1387 = vmatmul.mubr.f32.gmra.mrb[0].mxu0 %v1257
      %v1388 = vpop.f32.mrb[0].mxu0
      %v1389 = vadd.f32 %v1190, %v1388
      %v1390 = vpop.f32.mrb[0].mxu0
      %v1391 = vadd.f32 %v1190, %v1390
      %1392 = vmatprep.mubr.f32.mxu0 0.0
      %1393 = vmatmul.mubr.f32.gmra.mrb[0].mxu0 %v1260
      %v1394 = vpop.f32.mrb[0].mxu0
      %v1395 = vadd.f32 %v1195, %v1394
      %v1396 = vpop.f32.mrb[0].mxu0
      %v1397 = vadd.f32 %v1195, %v1396
      %1398 = vmatprep.mubr.f32.mxu0 0.0
      %1399 = vmatmul.mubr.f32.gmra.mrb[0].mxu0 %v1263
      %v1400 = vpop.f32.mrb[0].mxu0
      %v1401 = vadd.f32 %v1200, %v1400
      %v1402 = vpop.f32.mrb[0].mxu0
      %v1403 = vadd.f32 %v1200, %v1402
      %1404 = vmatprep.mubr.f32.mxu0 0.0
      %1405 = vmatmul.mubr.f32.gmra.mrb[0].mxu0 %v1266
      %v1406 = vpop.f32.mrb[0].mxu0
      %v1407 = vadd.f32 %v1205, %v1406
      %v1408 = vpop.f32.mrb[0].mxu0
      %v1409 = vadd.f32 %v1205, %v1408
      %1410 = vmatprep.mubr.f32.mxu0 0.0
      %1411 = vmatmul.mubr.f32.gmra.mrb[0].mxu0 %v1269
      %v1412 = vpop.f32.mrb[0].mxu0
      %v1413 = vadd.f32 %v1210, %v1412
      %v1414 = vpop.f32.mrb[0].mxu0
      %v1415 = vadd.f32 %v1210, %v1414
      %1416 = vmatprep.mubr.f32.mxu0 0.0
      %1417 = vmatmul.mubr.f32.gmra.mrb[0].mxu0 %v1272
      %v1418 = vpop.f32.mrb[0].mxu0
      %v1419 = vadd.f32 %v1215, %v1418
      %v1420 = vpop.f32.mrb[0].mxu0
      %v1421 = vadd.f32 %v1215, %v1420
      %1422 = vmatprep.mubr.f32.mxu0 0.0
      %1423 = vmatmul.mubr.f32.gmra.mrb[0].mxu0 %v1275
      %v1424 = vpop.f32.mrb[0].mxu0
      %v1425 = vadd.f32 %v1220, %v1424
      %v1426 = vpop.f32.mrb[0].mxu0
      %v1427 = vadd.f32 %v1220, %v1426
      %1428 = vmatprep.mubr.f32.mxu0 0.0
      %1429 = vmatmul.mubr.f32.gmra.mrb[0].mxu0 %v1278
      %v1430 = vpop.f32.mrb[0].mxu0
      %v1431 = vadd.f32 %v1225, %v1430
      %v1432 = vpop.f32.mrb[0].mxu0
      %v1433 = vadd.f32 %v1225, %v1432
      %1434 = vmatprep.mubr.f32.mxu0 0.0
      %1435 = vmatmul.mubr.f32.gmra.mrb[0].mxu0 %v1281
      %v1436 = vpop.f32.mrb[0].mxu0
      %v1437 = vadd.f32 %v1230, %v1436
      %v1438 = vpop.f32.mrb[0].mxu0
      %v1439 = vadd.f32 %v1230, %v1438
      %1440 = vmatprep.mubr.f32.mxu0 0.0
      %1441 = vmatmul.mubr.f32.gmra.mrb[0].mxu0 %v1284
      %v1442 = vpop.f32.mrb[0].mxu0
      %v1443 = vadd.f32 %v1235, %v1442
      %v1444 = vpop.f32.mrb[0].mxu0
      %v1445 = vadd.f32 %v1235, %v1444
      %1446 = vdwg.mxu0
      %1447 = vmatprep.subr.mxu0 %v1096
      %1448 = vmatpush1.msra.mxu0 %v1095
      %1449 = vmatprep.subr.mxu0 %v1100
      %1450 = vmatpush1.msra.mxu0 %v1099
      %1451 = vmatprep.subr.mxu0 %v1104
      %1452 = vmatpush1.msra.mxu0 %v1103
      %1453 = vmatprep.subr.mxu0 %v1108
      %1454 = vmatpush1.msra.mxu0 %v1107
      %1455 = vmatprep.subr.mxu0 %v1112
      %1456 = vmatpush1.msra.mxu0 %v1111
      %1457 = vmatprep.subr.mxu0 %v1116
      %1458 = vmatpush1.msra.mxu0 %v1115
      %1459 = vmatprep.subr.mxu0 %v1120
      %1460 = vmatpush1.msra.mxu0 %v1119
      %1461 = vmatprep.subr.mxu0 %v1124
      %1462 = vmatpush1.msra.mxu0 %v1123
      %1463 = vmatprep.subr.mxu0 0.0
      %1464 = vmatpush1.msra.mxu0 0.0
      %1465 = vmatprep.subr.mxu0 0.0
      %1466 = vmatpush1.msra.mxu0 0.0
      %1467 = vmatprep.subr.mxu0 0.0
      %1468 = vmatpush1.msra.mxu0 0.0
      %1469 = vmatprep.subr.mxu0 0.0
      %1470 = vmatpush1.msra.mxu0 0.0
      %1471 = vmatprep.subr.mxu0 0.0
      %1472 = vmatpush1.msra.mxu0 0.0
      %1473 = vmatprep.subr.mxu0 0.0
      %1474 = vmatpush1.msra.mxu0 0.0
      %1475 = vmatprep.subr.mxu0 0.0
      %1476 = vmatpush1.msra.mxu0 0.0
      %1477 = vmatprep.subr.mxu0 0.0
      %1478 = vmatpush1.msra.mxu0 0.0
      %1479 = vmatprep.subr.mxu0 0.0
      %1480 = vmatpush1.msra.mxu0 0.0
      %1481 = vmatprep.subr.mxu0 0.0
      %1482 = vmatpush1.msra.mxu0 0.0
      %1483 = vmatprep.subr.mxu0 0.0
      %1484 = vmatpush1.msra.mxu0 0.0
      %1485 = vmatprep.subr.mxu0 0.0
      %1486 = vmatpush1.msra.mxu0 0.0
      %1487 = vmatprep.subr.mxu0 0.0
      %1488 = vmatpush1.msra.mxu0 0.0
      %1489 = vmatprep.subr.mxu0 0.0
      %1490 = vmatpush1.msra.mxu0 0.0
      %1491 = vmatprep.subr.mxu0 0.0
      %1492 = vmatpush1.msra.mxu0 0.0
      %1493 = vmatprep.subr.mxu0 0.0
      %1494 = vmatpush1.msra.mxu0 0.0
      %1495 = vmatprep.subr.mxu0 0.0
      %1496 = vmatpush1.msra.mxu0 0.0
      %1497 = vmatprep.subr.mxu0 0.0
      %1498 = vmatpush1.msra.mxu0 0.0
      %1499 = vmatprep.subr.mxu0 0.0
      %1500 = vmatpush1.msra.mxu0 0.0
      %1501 = vmatprep.subr.mxu0 0.0
      %1502 = vmatpush1.msra.mxu0 0.0
      %1503 = vmatprep.subr.mxu0 0.0
      %1504 = vmatpush1.msra.mxu0 0.0
      %1505 = vmatprep.subr.mxu0 0.0
      %1506 = vmatpush1.msra.mxu0 0.0
      %1507 = vmatprep.subr.mxu0 0.0
      %1508 = vmatpush1.msra.mxu0 0.0
      %1509 = vmatprep.subr.mxu0 0.0
      %1510 = vmatpush1.msra.mxu0 0.0
      %1511 = vmatprep.mubr.f32.mxu0 0.0
      %1512 = vmatmul.mubr.f32.gmra.mrb[0].mxu0 %v1239
      %v1513 = vpop.f32.mrb[0].mxu0
      %v1514 = vadd.f32 %v1160, %v1513
      %v1515 = vpop.f32.mrb[0].mxu0
      %v1516 = vadd.f32 %v1160, %v1515
      %1517 = vmatprep.mubr.f32.mxu0 0.0
      %1518 = vmatmul.mubr.f32.gmra.mrb[0].mxu0 %v1242
      %v1519 = vpop.f32.mrb[0].mxu0
      %v1520 = vadd.f32 %v1165, %v1519
      %v1521 = vpop.f32.mrb[0].mxu0
      %v1522 = vadd.f32 %v1165, %v1521
      %1523 = vmatprep.mubr.f32.mxu0 0.0
      %1524 = vmatmul.mubr.f32.gmra.mrb[0].mxu0 %v1245
      %v1525 = vpop.f32.mrb[0].mxu0
      %v1526 = vadd.f32 %v1170, %v1525
      %v1527 = vpop.f32.mrb[0].mxu0
      %v1528 = vadd.f32 %v1170, %v1527
      %1529 = vmatprep.mubr.f32.mxu0 0.0
      %1530 = vmatmul.mubr.f32.gmra.mrb[0].mxu0 %v1248
      %v1531 = vpop.f32.mrb[0].mxu0
      %v1532 = vadd.f32 %v1175, %v1531
      %v1533 = vpop.f32.mrb[0].mxu0
      %v1534 = vadd.f32 %v1175, %v1533
      %1535 = vmatprep.mubr.f32.mxu0 0.0
      %1536 = vmatmul.mubr.f32.gmra.mrb[0].mxu0 %v1251
      %v1537 = vpop.f32.mrb[0].mxu0
      %v1538 = vadd.f32 %v1180, %v1537
      %v1539 = vpop.f32.mrb[0].mxu0
      %v1540 = vadd.f32 %v1180, %v1539
      %1541 = vmatprep.mubr.f32.mxu0 0.0
      %1542 = vmatmul.mubr.f32.gmra.mrb[0].mxu0 %v1254
      %v1543 = vpop.f32.mrb[0].mxu0
      %v1544 = vadd.f32 %v1185, %v1543
      %v1545 = vpop.f32.mrb[0].mxu0
      %v1546 = vadd.f32 %v1185, %v1545
      %1547 = vmatprep.mubr.f32.mxu0 0.0
      %1548 = vmatmul.mubr.f32.gmra.mrb[0].mxu0 %v1257
      %v1549 = vpop.f32.mrb[0].mxu0
      %v1550 = vadd.f32 %v1190, %v1549
      %v1551 = vpop.f32.mrb[0].mxu0
      %v1552 = vadd.f32 %v1190, %v1551
      %1553 = vmatprep.mubr.f32.mxu0 0.0
      %1554 = vmatmul.mubr.f32.gmra.mrb[0].mxu0 %v1260
      %v1555 = vpop.f32.mrb[0].mxu0
      %v1556 = vadd.f32 %v1195, %v1555
      %v1557 = vpop.f32.mrb[0].mxu0
      %v1558 = vadd.f32 %v1195, %v1557
      %1559 = vmatprep.mubr.f32.mxu0 0.0
      %1560 = vmatmul.mubr.f32.gmra.mrb[0].mxu0 %v1263
      %v1561 = vpop.f32.mrb[0].mxu0
      %v1562 = vadd.f32 %v1200, %v1561
      %v1563 = vpop.f32.mrb[0].mxu0
      %v1564 = vadd.f32 %v1200, %v1563
      %1565 = vmatprep.mubr.f32.mxu0 0.0
      %1566 = vmatmul.mubr.f32.gmra.mrb[0].mxu0 %v1266
      %v1567 = vpop.f32.mrb[0].mxu0
      %v1568 = vadd.f32 %v1205, %v1567
      %v1569 = vpop.f32.mrb[0].mxu0
      %v1570 = vadd.f32 %v1205, %v1569
      %1571 = vmatprep.mubr.f32.mxu0 0.0
      %1572 = vmatmul.mubr.f32.gmra.mrb[0].mxu0 %v1269
      %v1573 = vpop.f32.mrb[0].mxu0
      %v1574 = vadd.f32 %v1210, %v1573
      %v1575 = vpop.f32.mrb[0].mxu0
      %v1576 = vadd.f32 %v1210, %v1575
      %1577 = vmatprep.mubr.f32.mxu0 0.0
      %1578 = vmatmul.mubr.f32.gmra.mrb[0].mxu0 %v1272
      %v1579 = vpop.f32.mrb[0].mxu0
      %v1580 = vadd.f32 %v1215, %v1579
      %v1581 = vpop.f32.mrb[0].mxu0
      %v1582 = vadd.f32 %v1215, %v1581
      %1583 = vmatprep.mubr.f32.mxu0 0.0
      %1584 = vmatmul.mubr.f32.gmra.mrb[0].mxu0 %v1275
      %v1585 = vpop.f32.mrb[0].mxu0
      %v1586 = vadd.f32 %v1220, %v1585
      %v1587 = vpop.f32.mrb[0].mxu0
      %v1588 = vadd.f32 %v1220, %v1587
      %1589 = vmatprep.mubr.f32.mxu0 0.0
      %1590 = vmatmul.mubr.f32.gmra.mrb[0].mxu0 %v1278
      %v1591 = vpop.f32.mrb[0].mxu0
      %v1592 = vadd.f32 %v1225, %v1591
      %v1593 = vpop.f32.mrb[0].mxu0
      %v1594 = vadd.f32 %v1225, %v1593
      %1595 = vmatprep.mubr.f32.mxu0 0.0
      %1596 = vmatmul.mubr.f32.gmra.mrb[0].mxu0 %v1281
      %v1597 = vpop.f32.mrb[0].mxu0
      %v1598 = vadd.f32 %v1230, %v1597
      %v1599 = vpop.f32.mrb[0].mxu0
      %v1600 = vadd.f32 %v1230, %v1599
      %1601 = vmatprep.mubr.f32.mxu0 0.0
      %1602 = vmatmul.mubr.f32.gmra.mrb[0].mxu0 %v1284
      %v1603 = vpop.f32.mrb[0].mxu0
      %v1604 = vadd.f32 %v1235, %v1603
      %v1605 = vpop.f32.mrb[0].mxu0
      %v1606 = vadd.f32 %v1235, %v1605
      %1607 = vdwg.mxu0
      %v1608 = vadd.f32 %v1353, %v1355
      %v1609 = vadd.f32 %v1608, %v1514
      %v1610 = vadd.f32 %v1609, %v1516
      %1611 = vadd.xlane.f32.xlu0 %v1610
      %v1612 = vpop.xlane.xlu0 %1611
      %v1613 = vadd.f32 %v1359, %v1361
      %v1614 = vadd.f32 %v1613, %v1520
      %v1615 = vadd.f32 %v1614, %v1522
      %1616 = vadd.xlane.f32.xlu0 %v1615
      %v1617 = vpop.xlane.xlu0 %1616
      %v1618 = vadd.f32 %v1365, %v1367
      %v1619 = vadd.f32 %v1618, %v1526
      %v1620 = vadd.f32 %v1619, %v1528
      %1621 = vadd.xlane.f32.xlu0 %v1620
      %v1622 = vpop.xlane.xlu0 %1621
      %v1623 = vadd.f32 %v1371, %v1373
      %v1624 = vadd.f32 %v1623, %v1532
      %v1625 = vadd.f32 %v1624, %v1534
      %1626 = vadd.xlane.f32.xlu0 %v1625
      %v1627 = vpop.xlane.xlu0 %1626
      %v1628 = vadd.f32 %v1377, %v1379
      %v1629 = vadd.f32 %v1628, %v1538
      %v1630 = vadd.f32 %v1629, %v1540
      %1631 = vadd.xlane.f32.xlu0 %v1630
      %v1632 = vpop.xlane.xlu0 %1631
      %v1633 = vadd.f32 %v1383, %v1385
      %v1634 = vadd.f32 %v1633, %v1544
      %v1635 = vadd.f32 %v1634, %v1546
      %1636 = vadd.xlane.f32.xlu0 %v1635
      %v1637 = vpop.xlane.xlu0 %1636
      %v1638 = vadd.f32 %v1389, %v1391
      %v1639 = vadd.f32 %v1638, %v1550
      %v1640 = vadd.f32 %v1639, %v1552
      %1641 = vadd.xlane.f32.xlu0 %v1640
      %v1642 = vpop.xlane.xlu0 %1641
      %v1643 = vadd.f32 %v1395, %v1397
      %v1644 = vadd.f32 %v1643, %v1556
      %v1645 = vadd.f32 %v1644, %v1558
      %1646 = vadd.xlane.f32.xlu0 %v1645
      %v1647 = vpop.xlane.xlu0 %1646
      %v1648 = vadd.f32 %v1401, %v1403
      %v1649 = vadd.f32 %v1648, %v1562
      %v1650 = vadd.f32 %v1649, %v1564
      %1651 = vadd.xlane.f32.xlu0 %v1650
      %v1652 = vpop.xlane.xlu0 %1651
      %v1653 = vadd.f32 %v1407, %v1409
      %v1654 = vadd.f32 %v1653, %v1568
      %v1655 = vadd.f32 %v1654, %v1570
      %1656 = vadd.xlane.f32.xlu0 %v1655
      %v1657 = vpop.xlane.xlu0 %1656
      %v1658 = vadd.f32 %v1413, %v1415
      %v1659 = vadd.f32 %v1658, %v1574
      %v1660 = vadd.f32 %v1659, %v1576
      %1661 = vadd.xlane.f32.xlu0 %v1660
      %v1662 = vpop.xlane.xlu0 %1661
      %v1663 = vadd.f32 %v1419, %v1421
      %v1664 = vadd.f32 %v1663, %v1580
      %v1665 = vadd.f32 %v1664, %v1582
      %1666 = vadd.xlane.f32.xlu0 %v1665
      %v1667 = vpop.xlane.xlu0 %1666
      %v1668 = vadd.f32 %v1425, %v1427
      %v1669 = vadd.f32 %v1668, %v1586
      %v1670 = vadd.f32 %v1669, %v1588
      %1671 = vadd.xlane.f32.xlu0 %v1670
      %v1672 = vpop.xlane.xlu0 %1671
      %v1673 = vadd.f32 %v1431, %v1433
      %v1674 = vadd.f32 %v1673, %v1592
      %v1675 = vadd.f32 %v1674, %v1594
      %1676 = vadd.xlane.f32.xlu0 %v1675
      %v1677 = vpop.xlane.xlu0 %1676
      %v1678 = vadd.f32 %v1437, %v1439
      %v1679 = vadd.f32 %v1678, %v1598
      %v1680 = vadd.f32 %v1679, %v1600
      %1681 = vadd.xlane.f32.xlu0 %v1680
      %v1682 = vpop.xlane.xlu0 %1681
      %v1683 = vadd.f32 %v1443, %v1445
      %v1684 = vadd.f32 %v1683, %v1604
      %v1685 = vadd.f32 %v1684, %v1606
      %1686 = vadd.xlane.f32.xlu0 %v1685
      %v1687 = vpop.xlane.xlu0 %1686
      %v1688 = vmul.f32 %v1612, 0.001953125
      %v1689 = vmul.f32 %v1617, 0.001953125
      %v1690 = vmul.f32 %v1622, 0.001953125
      %v1691 = vmul.f32 %v1627, 0.001953125
      %v1692 = vmul.f32 %v1632, 0.001953125
      %v1693 = vmul.f32 %v1637, 0.001953125
      %v1694 = vmul.f32 %v1642, 0.001953125
      %v1695 = vmul.f32 %v1647, 0.001953125
      %v1696 = vmul.f32 %v1652, 0.001953125
      %v1697 = vmul.f32 %v1657, 0.001953125
      %v1698 = vmul.f32 %v1662, 0.001953125
      %v1699 = vmul.f32 %v1667, 0.001953125
      %v1700 = vmul.f32 %v1672, 0.001953125
      %v1701 = vmul.f32 %v1677, 0.001953125
      %v1702 = vmul.f32 %v1682, 0.001953125
      %v1703 = vmul.f32 %v1687, 0.001953125
      %v1704 = vsub.f32 %v1353, %v1688
      %v1705 = vsub.f32 %v1355, %v1688
      %v1706 = vsub.f32 %v1514, %v1688
      %v1707 = vsub.f32 %v1516, %v1688
      %v1708 = vsub.f32 %v1359, %v1689
      %v1709 = vsub.f32 %v1361, %v1689
      %v1710 = vsub.f32 %v1520, %v1689
      %v1711 = vsub.f32 %v1522, %v1689
      %v1712 = vsub.f32 %v1365, %v1690
      %v1713 = vsub.f32 %v1367, %v1690
      %v1714 = vsub.f32 %v1526, %v1690
      %v1715 = vsub.f32 %v1528, %v1690
      %v1716 = vsub.f32 %v1371, %v1691
      %v1717 = vsub.f32 %v1373, %v1691
      %v1718 = vsub.f32 %v1532, %v1691
      %v1719 = vsub.f32 %v1534, %v1691
      %v1720 = vsub.f32 %v1377, %v1692
      %v1721 = vsub.f32 %v1379, %v1692
      %v1722 = vsub.f32 %v1538, %v1692
      %v1723 = vsub.f32 %v1540, %v1692
      %v1724 = vsub.f32 %v1383, %v1693
      %v1725 = vsub.f32 %v1385, %v1693
      %v1726 = vsub.f32 %v1544, %v1693
      %v1727 = vsub.f32 %v1546, %v1693
      %v1728 = vsub.f32 %v1389, %v1694
      %v1729 = vsub.f32 %v1391, %v1694
      %v1730 = vsub.f32 %v1550, %v1694
      %v1731 = vsub.f32 %v1552, %v1694
      %v1732 = vsub.f32 %v1395, %v1695
      %v1733 = vsub.f32 %v1397, %v1695
      %v1734 = vsub.f32 %v1556, %v1695
      %v1735 = vsub.f32 %v1558, %v1695
      %v1736 = vsub.f32 %v1401, %v1696
      %v1737 = vsub.f32 %v1403, %v1696
      %v1738 = vsub.f32 %v1562, %v1696
      %v1739 = vsub.f32 %v1564, %v1696
      %v1740 = vsub.f32 %v1407, %v1697
      %v1741 = vsub.f32 %v1409, %v1697
      %v1742 = vsub.f32 %v1568, %v1697
      %v1743 = vsub.f32 %v1570, %v1697
      %v1744 = vsub.f32 %v1413, %v1698
      %v1745 = vsub.f32 %v1415, %v1698
      %v1746 = vsub.f32 %v1574, %v1698
      %v1747 = vsub.f32 %v1576, %v1698
      %v1748 = vsub.f32 %v1419, %v1699
      %v1749 = vsub.f32 %v1421, %v1699
      %v1750 = vsub.f32 %v1580, %v1699
      %v1751 = vsub.f32 %v1582, %v1699
      %v1752 = vsub.f32 %v1425, %v1700
      %v1753 = vsub.f32 %v1427, %v1700
      %v1754 = vsub.f32 %v1586, %v1700
      %v1755 = vsub.f32 %v1588, %v1700
      %v1756 = vsub.f32 %v1431, %v1701
      %v1757 = vsub.f32 %v1433, %v1701
      %v1758 = vsub.f32 %v1592, %v1701
      %v1759 = vsub.f32 %v1594, %v1701
      %v1760 = vsub.f32 %v1437, %v1702
      %v1761 = vsub.f32 %v1439, %v1702
      %v1762 = vsub.f32 %v1598, %v1702
      %v1763 = vsub.f32 %v1600, %v1702
      %v1764 = vsub.f32 %v1443, %v1703
      %v1765 = vsub.f32 %v1445, %v1703
      %v1766 = vsub.f32 %v1604, %v1703
      %v1767 = vsub.f32 %v1606, %v1703
      %v1768 = vmul.f32 %v1704, %v1704
      %v1769 = vmul.f32 %v1705, %v1705
      %v1770 = vmul.f32 %v1706, %v1706
      %v1771 = vmul.f32 %v1707, %v1707
      %v1772 = vmul.f32 %v1708, %v1708
      %v1773 = vmul.f32 %v1709, %v1709
      %v1774 = vmul.f32 %v1710, %v1710
      %v1775 = vmul.f32 %v1711, %v1711
      %v1776 = vmul.f32 %v1712, %v1712
      %v1777 = vmul.f32 %v1713, %v1713
      %v1778 = vmul.f32 %v1714, %v1714
      %v1779 = vmul.f32 %v1715, %v1715
      %v1780 = vmul.f32 %v1716, %v1716
      %v1781 = vmul.f32 %v1717, %v1717
      %v1782 = vmul.f32 %v1718, %v1718
      %v1783 = vmul.f32 %v1719, %v1719
      %v1784 = vmul.f32 %v1720, %v1720
      %v1785 = vmul.f32 %v1721, %v1721
      %v1786 = vmul.f32 %v1722, %v1722
      %v1787 = vmul.f32 %v1723, %v1723
      %v1788 = vmul.f32 %v1724, %v1724
      %v1789 = vmul.f32 %v1725, %v1725
      %v1790 = vmul.f32 %v1726, %v1726
      %v1791 = vmul.f32 %v1727, %v1727
      %v1792 = vmul.f32 %v1728, %v1728
      %v1793 = vmul.f32 %v1729, %v1729
      %v1794 = vmul.f32 %v1730, %v1730
      %v1795 = vmul.f32 %v1731, %v1731
      %v1796 = vmul.f32 %v1732, %v1732
      %v1797 = vmul.f32 %v1733, %v1733
      %v1798 = vmul.f32 %v1734, %v1734
      %v1799 = vmul.f32 %v1735, %v1735
      %v1800 = vmul.f32 %v1736, %v1736
      %v1801 = vmul.f32 %v1737, %v1737
      %v1802 = vmul.f32 %v1738, %v1738
      %v1803 = vmul.f32 %v1739, %v1739
      %v1804 = vmul.f32 %v1740, %v1740
      %v1805 = vmul.f32 %v1741, %v1741
      %v1806 = vmul.f32 %v1742, %v1742
      %v1807 = vmul.f32 %v1743, %v1743
      %v1808 = vmul.f32 %v1744, %v1744
      %v1809 = vmul.f32 %v1745, %v1745
      %v1810 = vmul.f32 %v1746, %v1746
      %v1811 = vmul.f32 %v1747, %v1747
      %v1812 = vmul.f32 %v1748, %v1748
      %v1813 = vmul.f32 %v1749, %v1749
      %v1814 = vmul.f32 %v1750, %v1750
      %v1815 = vmul.f32 %v1751, %v1751
      %v1816 = vmul.f32 %v1752, %v1752
      %v1817 = vmul.f32 %v1753, %v1753
      %v1818 = vmul.f32 %v1754, %v1754
      %v1819 = vmul.f32 %v1755, %v1755
      %v1820 = vmul.f32 %v1756, %v1756
      %v1821 = vmul.f32 %v1757, %v1757
      %v1822 = vmul.f32 %v1758, %v1758
      %v1823 = vmul.f32 %v1759, %v1759
      %v1824 = vmul.f32 %v1760, %v1760
      %v1825 = vmul.f32 %v1761, %v1761
      %v1826 = vmul.f32 %v1762, %v1762
      %v1827 = vmul.f32 %v1763, %v1763
      %v1828 = vmul.f32 %v1764, %v1764
      %v1829 = vmul.f32 %v1765, %v1765
      %v1830 = vmul.f32 %v1766, %v1766
      %v1831 = vmul.f32 %v1767, %v1767
      %v1832 = vadd.f32 %v1768, %v1769
      %v1833 = vadd.f32 %v1832, %v1770
      %v1834 = vadd.f32 %v1833, %v1771
      %1835 = vadd.xlane.f32.xlu0 %v1834
      %v1836 = vpop.xlane.xlu0 %1835
      %v1837 = vadd.f32 %v1772, %v1773
      %v1838 = vadd.f32 %v1837, %v1774
      %v1839 = vadd.f32 %v1838, %v1775
      %1840 = vadd.xlane.f32.xlu0 %v1839
      %v1841 = vpop.xlane.xlu0 %1840
      %v1842 = vadd.f32 %v1776, %v1777
      %v1843 = vadd.f32 %v1842, %v1778
      %v1844 = vadd.f32 %v1843, %v1779
      %1845 = vadd.xlane.f32.xlu0 %v1844
      %v1846 = vpop.xlane.xlu0 %1845
      %v1847 = vadd.f32 %v1780, %v1781
      %v1848 = vadd.f32 %v1847, %v1782
      %v1849 = vadd.f32 %v1848, %v1783
      %1850 = vadd.xlane.f32.xlu0 %v1849
      %v1851 = vpop.xlane.xlu0 %1850
      %v1852 = vadd.f32 %v1784, %v1785
      %v1853 = vadd.f32 %v1852, %v1786
      %v1854 = vadd.f32 %v1853, %v1787
      %1855 = vadd.xlane.f32.xlu0 %v1854
      %v1856 = vpop.xlane.xlu0 %1855
      %v1857 = vadd.f32 %v1788, %v1789
      %v1858 = vadd.f32 %v1857, %v1790
      %v1859 = vadd.f32 %v1858, %v1791
      %1860 = vadd.xlane.f32.xlu0 %v1859
      %v1861 = vpop.xlane.xlu0 %1860
      %v1862 = vadd.f32 %v1792, %v1793
      %v1863 = vadd.f32 %v1862, %v1794
      %v1864 = vadd.f32 %v1863, %v1795
      %1865 = vadd.xlane.f32.xlu0 %v1864
      %v1866 = vpop.xlane.xlu0 %1865
      %v1867 = vadd.f32 %v1796, %v1797
      %v1868 = vadd.f32 %v1867, %v1798
      %v1869 = vadd.f32 %v1868, %v1799
      %1870 = vadd.xlane.f32.xlu0 %v1869
      %v1871 = vpop.xlane.xlu0 %1870
      %v1872 = vadd.f32 %v1800, %v1801
      %v1873 = vadd.f32 %v1872, %v1802
      %v1874 = vadd.f32 %v1873, %v1803
      %1875 = vadd.xlane.f32.xlu0 %v1874
      %v1876 = vpop.xlane.xlu0 %1875
      %v1877 = vadd.f32 %v1804, %v1805
      %v1878 = vadd.f32 %v1877, %v1806
      %v1879 = vadd.f32 %v1878, %v1807
      %1880 = vadd.xlane.f32.xlu0 %v1879
      %v1881 = vpop.xlane.xlu0 %1880
      %v1882 = vadd.f32 %v1808, %v1809
      %v1883 = vadd.f32 %v1882, %v1810
      %v1884 = vadd.f32 %v1883, %v1811
      %1885 = vadd.xlane.f32.xlu0 %v1884
      %v1886 = vpop.xlane.xlu0 %1885
      %v1887 = vadd.f32 %v1812, %v1813
      %v1888 = vadd.f32 %v1887, %v1814
      %v1889 = vadd.f32 %v1888, %v1815
      %1890 = vadd.xlane.f32.xlu0 %v1889
      %v1891 = vpop.xlane.xlu0 %1890
      %v1892 = vadd.f32 %v1816, %v1817
      %v1893 = vadd.f32 %v1892, %v1818
      %v1894 = vadd.f32 %v1893, %v1819
      %1895 = vadd.xlane.f32.xlu0 %v1894
      %v1896 = vpop.xlane.xlu0 %1895
      %v1897 = vadd.f32 %v1820, %v1821
      %v1898 = vadd.f32 %v1897, %v1822
      %v1899 = vadd.f32 %v1898, %v1823
      %1900 = vadd.xlane.f32.xlu0 %v1899
      %v1901 = vpop.xlane.xlu0 %1900
      %v1902 = vadd.f32 %v1824, %v1825
      %v1903 = vadd.f32 %v1902, %v1826
      %v1904 = vadd.f32 %v1903, %v1827
      %1905 = vadd.xlane.f32.xlu0 %v1904
      %v1906 = vpop.xlane.xlu0 %1905
      %v1907 = vadd.f32 %v1828, %v1829
      %v1908 = vadd.f32 %v1907, %v1830
      %v1909 = vadd.f32 %v1908, %v1831
      %1910 = vadd.xlane.f32.xlu0 %v1909
      %v1911 = vpop.xlane.xlu0 %1910
      %p1912 = scmp.eq.s32.totalorder %s26, 0
      %p1913 = scmp.eq.s32.totalorder %s27, 0
      %p1914 = pnand %p1912, %p1913
      %p1915 = pneg %p1914
      // Predicated region
      $region57: #{keypoint_encoder.6} parent=55 // pred_check
        _
      $region58: #{keypoint_encoder.6} parent=55 // pred_check_branch
        %1917 = sbr.rel (%p1914) target = $region60
      $region59: #{keypoint_encoder.6} parent=55 // pred_region
        %vm1918 = vcmask 7168
        %1919 = vst.msk [vmem:[%s9] sm:$0xff] %vm1918, %v1688
        %1920 = vst.msk [vmem:[%s9 + $0x8] sm:$0xff] %vm1918, %v1689
        %1921 = vst.msk [vmem:[%s9 + $0x10] sm:$0xff] %vm1918, %v1690
        %1922 = vst.msk [vmem:[%s9 + $0x18] sm:$0xff] %vm1918, %v1691
        %1923 = vst.msk [vmem:[%s9 + $0x20] sm:$0xff] %vm1918, %v1692
        %1924 = vst.msk [vmem:[%s9 + $0x28] sm:$0xff] %vm1918, %v1693
        %1925 = vst.msk [vmem:[%s9 + $0x30] sm:$0xff] %vm1918, %v1694
        %1926 = vst.msk [vmem:[%s9 + $0x38] sm:$0xff] %vm1918, %v1695
        %1927 = vst.msk [vmem:[%s9 + $0x40] sm:$0xff] %vm1918, %v1696
        %1928 = vst.msk [vmem:[%s9 + $0x48] sm:$0xff] %vm1918, %v1697
        %1929 = vst.msk [vmem:[%s9 + $0x50] sm:$0xff] %vm1918, %v1698
        %1930 = vst.msk [vmem:[%s9 + $0x58] sm:$0xff] %vm1918, %v1699
        %1931 = vst.msk [vmem:[%s9 + $0x60] sm:$0xff] %vm1918, %v1700
        %1932 = vst.msk [vmem:[%s9 + $0x68] sm:$0xff] %vm1918, %v1701
        %1933 = vst.msk [vmem:[%s9 + $0x70] sm:$0xff] %vm1918, %v1702
        %1934 = vst.msk [vmem:[%s9 + $0x78] sm:$0xff] %vm1918, %v1703
        %1935 = vst.msk [vmem:[%s10] sm:$0xff] %vm1918, %v1836
        %1936 = vst.msk [vmem:[%s10 + $0x8] sm:$0xff] %vm1918, %v1841
        %1937 = vst.msk [vmem:[%s10 + $0x10] sm:$0xff] %vm1918, %v1846
        %1938 = vst.msk [vmem:[%s10 + $0x18] sm:$0xff] %vm1918, %v1851
        %1939 = vst.msk [vmem:[%s10 + $0x20] sm:$0xff] %vm1918, %v1856
        %1940 = vst.msk [vmem:[%s10 + $0x28] sm:$0xff] %vm1918, %v1861
        %1941 = vst.msk [vmem:[%s10 + $0x30] sm:$0xff] %vm1918, %v1866
        %1942 = vst.msk [vmem:[%s10 + $0x38] sm:$0xff] %vm1918, %v1871
        %1943 = vst.msk [vmem:[%s10 + $0x40] sm:$0xff] %vm1918, %v1876
        %1944 = vst.msk [vmem:[%s10 + $0x48] sm:$0xff] %vm1918, %v1881
        %1945 = vst.msk [vmem:[%s10 + $0x50] sm:$0xff] %vm1918, %v1886
        %1946 = vst.msk [vmem:[%s10 + $0x58] sm:$0xff] %vm1918, %v1891
        %1947 = vst.msk [vmem:[%s10 + $0x60] sm:$0xff] %vm1918, %v1896
        %1948 = vst.msk [vmem:[%s10 + $0x68] sm:$0xff] %vm1918, %v1901
        %1949 = vst.msk [vmem:[%s10 + $0x70] sm:$0xff] %vm1918, %v1906
        %1950 = vst.msk [vmem:[%s10 + $0x78] sm:$0xff] %vm1918, %v1911
      $region60: #{keypoint_encoder.6} parent=55 // pred_fallthru
        _
      %p1951 = pneg %p1915
      // Predicated region
      $region61: #{keypoint_encoder.6} parent=55 // pred_check
        _
      $region62: #{keypoint_encoder.6} parent=55 // pred_check_branch
        %1953 = sbr.rel (%p1915) target = $region64
      $region63: #{keypoint_encoder.6} parent=55 // pred_region
        %s1954 = smul.u32 %s26, 2
        %s1955 = sadd.s32 %s1954, %s27
        %s1956 = smul.u32 %s1955, 512
        %s1957 = scvt.s32.f32 %s1956
        %s1958 = sadd.f32 %s1957, 512.0
        %v1959 = vld [vmem:[%s9] sm:$0xff]
        %v1960 = vld [vmem:[%s9 + $0x8] sm:$0xff]
        %v1961 = vld [vmem:[%s9 + $0x10] sm:$0xff]
        %v1962 = vld [vmem:[%s9 + $0x18] sm:$0xff]
        %v1963 = vld [vmem:[%s9 + $0x20] sm:$0xff]
        %v1964 = vld [vmem:[%s9 + $0x28] sm:$0xff]
        %v1965 = vld [vmem:[%s9 + $0x30] sm:$0xff]
        %v1966 = vld [vmem:[%s9 + $0x38] sm:$0xff]
        %v1967 = vld [vmem:[%s9 + $0x40] sm:$0xff]
        %v1968 = vld [vmem:[%s9 + $0x48] sm:$0xff]
        %v1969 = vld [vmem:[%s9 + $0x50] sm:$0xff]
        %v1970 = vld [vmem:[%s9 + $0x58] sm:$0xff]
        %v1971 = vld [vmem:[%s9 + $0x60] sm:$0xff]
        %v1972 = vld [vmem:[%s9 + $0x68] sm:$0xff]
        %v1973 = vld [vmem:[%s9 + $0x70] sm:$0xff]
        %v1974 = vld [vmem:[%s9 + $0x78] sm:$0xff]
        %v1975 = vsub.f32 %v1688, %v1959
        %v1976 = vsub.f32 %v1689, %v1960
        %v1977 = vsub.f32 %v1690, %v1961
        %v1978 = vsub.f32 %v1691, %v1962
        %v1979 = vsub.f32 %v1692, %v1963
        %v1980 = vsub.f32 %v1693, %v1964
        %v1981 = vsub.f32 %v1694, %v1965
        %v1982 = vsub.f32 %v1695, %v1966
        %v1983 = vsub.f32 %v1696, %v1967
        %v1984 = vsub.f32 %v1697, %v1968
        %v1985 = vsub.f32 %v1698, %v1969
        %v1986 = vsub.f32 %v1699, %v1970
        %v1987 = vsub.f32 %v1700, %v1971
        %v1988 = vsub.f32 %v1701, %v1972
        %v1989 = vsub.f32 %v1702, %v1973
        %v1990 = vsub.f32 %v1703, %v1974
        %v1991 = vstv %s1958
        %v1992 = vrcp.pop %v1991
        %s1993 = vtos %v1992
        %s1994 = smul.f32 512.0, %s1993
        %v1995 = vstv %s1994
        %v1996 = vmul.f32 %v1975, %v1995
        %v1997 = vmul.f32 %v1976, %v1995
        %v1998 = vmul.f32 %v1977, %v1995
        %v1999 = vmul.f32 %v1978, %v1995
        %v2000 = vmul.f32 %v1979, %v1995
        %v2001 = vmul.f32 %v1980, %v1995
        %v2002 = vmul.f32 %v1981, %v1995
        %v2003 = vmul.f32 %v1982, %v1995
        %v2004 = vmul.f32 %v1983, %v1995
        %v2005 = vmul.f32 %v1984, %v1995
        %v2006 = vmul.f32 %v1985, %v1995
        %v2007 = vmul.f32 %v1986, %v1995
        %v2008 = vmul.f32 %v1987, %v1995
        %v2009 = vmul.f32 %v1988, %v1995
        %v2010 = vmul.f32 %v1989, %v1995
        %v2011 = vmul.f32 %v1990, %v1995
        %v2012 = vadd.f32 %v1959, %v1996
        %v2013 = vadd.f32 %v1960, %v1997
        %v2014 = vadd.f32 %v1961, %v1998
        %v2015 = vadd.f32 %v1962, %v1999
        %v2016 = vadd.f32 %v1963, %v2000
        %v2017 = vadd.f32 %v1964, %v2001
        %v2018 = vadd.f32 %v1965, %v2002
        %v2019 = vadd.f32 %v1966, %v2003
        %v2020 = vadd.f32 %v1967, %v2004
        %v2021 = vadd.f32 %v1968, %v2005
        %v2022 = vadd.f32 %v1969, %v2006
        %v2023 = vadd.f32 %v1970, %v2007
        %v2024 = vadd.f32 %v1971, %v2008
        %v2025 = vadd.f32 %v1972, %v2009
        %v2026 = vadd.f32 %v1973, %v2010
        %v2027 = vadd.f32 %v1974, %v2011
        %vm2028 = vcmask 7168
        %2029 = vst.msk [vmem:[%s9] sm:$0xff] %vm2028, %v2012
        %2030 = vst.msk [vmem:[%s9 + $0x8] sm:$0xff] %vm2028, %v2013
        %2031 = vst.msk [vmem:[%s9 + $0x10] sm:$0xff] %vm2028, %v2014
        %2032 = vst.msk [vmem:[%s9 + $0x18] sm:$0xff] %vm2028, %v2015
        %2033 = vst.msk [vmem:[%s9 + $0x20] sm:$0xff] %vm2028, %v2016
        %2034 = vst.msk [vmem:[%s9 + $0x28] sm:$0xff] %vm2028, %v2017
        %2035 = vst.msk [vmem:[%s9 + $0x30] sm:$0xff] %vm2028, %v2018
        %2036 = vst.msk [vmem:[%s9 + $0x38] sm:$0xff] %vm2028, %v2019
        %2037 = vst.msk [vmem:[%s9 + $0x40] sm:$0xff] %vm2028, %v2020
        %2038 = vst.msk [vmem:[%s9 + $0x48] sm:$0xff] %vm2028, %v2021
        %2039 = vst.msk [vmem:[%s9 + $0x50] sm:$0xff] %vm2028, %v2022
        %2040 = vst.msk [vmem:[%s9 + $0x58] sm:$0xff] %vm2028, %v2023
        %2041 = vst.msk [vmem:[%s9 + $0x60] sm:$0xff] %vm2028, %v2024
        %2042 = vst.msk [vmem:[%s9 + $0x68] sm:$0xff] %vm2028, %v2025
        %2043 = vst.msk [vmem:[%s9 + $0x70] sm:$0xff] %vm2028, %v2026
        %2044 = vst.msk [vmem:[%s9 + $0x78] sm:$0xff] %vm2028, %v2027
        %v2045 = vld [vmem:[%s10] sm:$0xff]
        %v2046 = vld [vmem:[%s10 + $0x8] sm:$0xff]
        %v2047 = vld [vmem:[%s10 + $0x10] sm:$0xff]
        %v2048 = vld [vmem:[%s10 + $0x18] sm:$0xff]
        %v2049 = vld [vmem:[%s10 + $0x20] sm:$0xff]
        %v2050 = vld [vmem:[%s10 + $0x28] sm:$0xff]
        %v2051 = vld [vmem:[%s10 + $0x30] sm:$0xff]
        %v2052 = vld [vmem:[%s10 + $0x38] sm:$0xff]
        %v2053 = vld [vmem:[%s10 + $0x40] sm:$0xff]
        %v2054 = vld [vmem:[%s10 + $0x48] sm:$0xff]
        %v2055 = vld [vmem:[%s10 + $0x50] sm:$0xff]
        %v2056 = vld [vmem:[%s10 + $0x58] sm:$0xff]
        %v2057 = vld [vmem:[%s10 + $0x60] sm:$0xff]
        %v2058 = vld [vmem:[%s10 + $0x68] sm:$0xff]
        %v2059 = vld [vmem:[%s10 + $0x70] sm:$0xff]
        %v2060 = vld [vmem:[%s10 + $0x78] sm:$0xff]
        %v2061 = vadd.f32 %v2045, %v1836
        %v2062 = vadd.f32 %v2046, %v1841
        %v2063 = vadd.f32 %v2047, %v1846
        %v2064 = vadd.f32 %v2048, %v1851
        %v2065 = vadd.f32 %v2049, %v1856
        %v2066 = vadd.f32 %v2050, %v1861
        %v2067 = vadd.f32 %v2051, %v1866
        %v2068 = vadd.f32 %v2052, %v1871
        %v2069 = vadd.f32 %v2053, %v1876
        %v2070 = vadd.f32 %v2054, %v1881
        %v2071 = vadd.f32 %v2055, %v1886
        %v2072 = vadd.f32 %v2056, %v1891
        %v2073 = vadd.f32 %v2057, %v1896
        %v2074 = vadd.f32 %v2058, %v1901
        %v2075 = vadd.f32 %v2059, %v1906
        %v2076 = vadd.f32 %v2060, %v1911
        %v2077 = vmul.f32 %v1975, %v1975
        %v2078 = vmul.f32 %v1976, %v1976
        %v2079 = vmul.f32 %v1977, %v1977
        %v2080 = vmul.f32 %v1978, %v1978
        %v2081 = vmul.f32 %v1979, %v1979
        %v2082 = vmul.f32 %v1980, %v1980
        %v2083 = vmul.f32 %v1981, %v1981
        %v2084 = vmul.f32 %v1982, %v1982
        %v2085 = vmul.f32 %v1983, %v1983
        %v2086 = vmul.f32 %v1984, %v1984
        %v2087 = vmul.f32 %v1985, %v1985
        %v2088 = vmul.f32 %v1986, %v1986
        %v2089 = vmul.f32 %v1987, %v1987
        %v2090 = vmul.f32 %v1988, %v1988
        %v2091 = vmul.f32 %v1989, %v1989
        %v2092 = vmul.f32 %v1990, %v1990
        %s2093 = smul.f32 %s1957, 512.0
        %v2094 = vstv %s1958
        %v2095 = vrcp.pop %v2094
        %s2096 = vtos %v2095
        %s2097 = smul.f32 %s2093, %s2096
        %v2098 = vstv %s2097
        %v2099 = vmul.f32 %v2077, %v2098
        %v2100 = vmul.f32 %v2078, %v2098
        %v2101 = vmul.f32 %v2079, %v2098
        %v2102 = vmul.f32 %v2080, %v2098
        %v2103 = vmul.f32 %v2081, %v2098
        %v2104 = vmul.f32 %v2082, %v2098
        %v2105 = vmul.f32 %v2083, %v2098
        %v2106 = vmul.f32 %v2084, %v2098
        %v2107 = vmul.f32 %v2085, %v2098
        %v2108 = vmul.f32 %v2086, %v2098
        %v2109 = vmul.f32 %v2087, %v2098
        %v2110 = vmul.f32 %v2088, %v2098
        %v2111 = vmul.f32 %v2089, %v2098
        %v2112 = vmul.f32 %v2090, %v2098
        %v2113 = vmul.f32 %v2091, %v2098
        %v2114 = vmul.f32 %v2092, %v2098
        %v2115 = vadd.f32 %v2061, %v2099
        %v2116 = vadd.f32 %v2062, %v2100
        %v2117 = vadd.f32 %v2063, %v2101
        %v2118 = vadd.f32 %v2064, %v2102
        %v2119 = vadd.f32 %v2065, %v2103
        %v2120 = vadd.f32 %v2066, %v2104
        %v2121 = vadd.f32 %v2067, %v2105
        %v2122 = vadd.f32 %v2068, %v2106
        %v2123 = vadd.f32 %v2069, %v2107
        %v2124 = vadd.f32 %v2070, %v2108
        %v2125 = vadd.f32 %v2071, %v2109
        %v2126 = vadd.f32 %v2072, %v2110
        %v2127 = vadd.f32 %v2073, %v2111
        %v2128 = vadd.f32 %v2074, %v2112
        %v2129 = vadd.f32 %v2075, %v2113
        %v2130 = vadd.f32 %v2076, %v2114
        %2131 = vst.msk [vmem:[%s10] sm:$0xff] %vm2028, %v2115
        %2132 = vst.msk [vmem:[%s10 + $0x8] sm:$0xff] %vm2028, %v2116
        %2133 = vst.msk [vmem:[%s10 + $0x10] sm:$0xff] %vm2028, %v2117
        %2134 = vst.msk [vmem:[%s10 + $0x18] sm:$0xff] %vm2028, %v2118
        %2135 = vst.msk [vmem:[%s10 + $0x20] sm:$0xff] %vm2028, %v2119
        %2136 = vst.msk [vmem:[%s10 + $0x28] sm:$0xff] %vm2028, %v2120
        %2137 = vst.msk [vmem:[%s10 + $0x30] sm:$0xff] %vm2028, %v2121
        %2138 = vst.msk [vmem:[%s10 + $0x38] sm:$0xff] %vm2028, %v2122
        %2139 = vst.msk [vmem:[%s10 + $0x40] sm:$0xff] %vm2028, %v2123
        %2140 = vst.msk [vmem:[%s10 + $0x48] sm:$0xff] %vm2028, %v2124
        %2141 = vst.msk [vmem:[%s10 + $0x50] sm:$0xff] %vm2028, %v2125
        %2142 = vst.msk [vmem:[%s10 + $0x58] sm:$0xff] %vm2028, %v2126
        %2143 = vst.msk [vmem:[%s10 + $0x60] sm:$0xff] %vm2028, %v2127
        %2144 = vst.msk [vmem:[%s10 + $0x68] sm:$0xff] %vm2028, %v2128
        %2145 = vst.msk [vmem:[%s10 + $0x70] sm:$0xff] %vm2028, %v2129
        %2146 = vst.msk [vmem:[%s10 + $0x78] sm:$0xff] %vm2028, %v2130
      $region64: #{keypoint_encoder.6} parent=55 // pred_fallthru
        _
      // Predicated region
      $region65: #{keypoint_encoder.6} parent=55 // pred_check
        %p2147 = pneg %p250
      $region66: #{keypoint_encoder.6} parent=55 // pred_check_branch
        %2149 = sbr.rel (%p2147) target = $region68
      $region67: #{keypoint_encoder.6} parent=55 // pred_region
        _
      $region68: #{keypoint_encoder.6} parent=55 // pred_fallthru
        _
      // Predicated region
      $region69: #{keypoint_encoder.6} parent=55 // pred_check
        %p2150 = pneg %p271
      $region70: #{keypoint_encoder.6} parent=55 // pred_check_branch
        %2152 = sbr.rel (%p2150) target = $region72
      $region71: #{keypoint_encoder.6} parent=55 // pred_region
        _
      $region72: #{keypoint_encoder.6} parent=55 // pred_fallthru
        _
      // Predicated region
      $region73: #{keypoint_encoder.6} parent=55 // pred_check
        %p2153 = pneg %p250
      $region74: #{keypoint_encoder.6} parent=55 // pred_check_branch
        %2155 = sbr.rel (%p2153) target = $region76
      $region75: #{keypoint_encoder.6} parent=55 // pred_region
        _
      $region76: #{keypoint_encoder.6} parent=55 // pred_fallthru
        _
      // Predicated region
      $region77: #{keypoint_encoder.6} parent=55 // pred_check
        %p2156 = pneg %p271
      $region78: #{keypoint_encoder.6} parent=55 // pred_check_branch
        %2158 = sbr.rel (%p2156) target = $region80
      $region79: #{keypoint_encoder.6} parent=55 // pred_region
        _
      $region80: #{keypoint_encoder.6} parent=55 // pred_fallthru
        _
    $region56: #{keypoint_encoder.6} parent=5 // pred_fallthru
      _
    %p2159 = scmp.le.s32.totalorder 2, %s17
    // Predicated region
    $region81: #{keypoint_encoder.6} parent=5 // pred_check
      %p2160 = pneg %p2159
    $region82: #{keypoint_encoder.6} parent=5 // pred_check_branch
      %2162 = sbr.rel (%p2160) target = $region84
    $region83: #{keypoint_encoder.6} parent=5 // pred_region
      %s2163 = ssub.s32 %s17, 2
    $region84: #{keypoint_encoder.6} parent=5 // pred_fallthru
      _
  $region6: #{keypoint_encoder.6} parent=0 // loop_footer
    %s21 = sadd.s32 1, %s17
  $region7: #{keypoint_encoder.6} parent=0 // loop_footer_branch
    %16 = sbr.rel target = $region3
  $region8: #{keypoint_encoder.6} parent=0 // loop_exit
    _

// kernel: keypoint_encoder.7
$region0: #{keypoint_encoder.7}
  #allocation0 [shape = 'u32[]', space=smem, size = 0x4, offset = 0x4, fixed_abs, tag = 'smem constant byte address 0x4 - core index']
  #allocation1 [shape = 'u32[144,128]{1,0:T(1,128)}', space=vmem, size = 0x12000, scoped, tag = 'internal scratch']
  %s0 = inlined_call_operand.vmem [shape: f32[2,3,1024], index: 0, kind: input, shape index: {}]
  %s1 = inlined_call_operand.vmem [shape: f32[2,1,1024], index: 1, kind: input, shape index: {}]
  %s2 = inlined_call_operand.vmem [shape: f32[32,3], index: 2, kind: input, shape index: {}]
  %s3 = inlined_call_operand.vmem [shape: f32[32,1], index: 3, kind: input, shape index: {}]
  %s4 = inlined_call_operand.vmem [shape: f32[32,1], index: 4, kind: input, shape index: {}]
  %s5 = inlined_call_operand.vmem [shape: f32[64,32], index: 5, kind: input, shape index: {}]
  %s6 = inlined_call_operand.vmem [shape: f32[64,1], index: 6, kind: input, shape index: {}]
  %s7 = inlined_call_operand.vmem [shape: f32[128,64], index: 7, kind: input, shape index: {}]
  %s8 = inlined_call_operand.vmem [shape: f32[128,1], index: 8, kind: input, shape index: {}]
  %s9 = inlined_call_operand.vmem [shape: f32[128,128], index: 9, kind: input, shape index: {}]
  %s10 = inlined_call_operand.vmem [shape: f32[128,1], index: 10, kind: input, shape index: {}]
  %s11 = inlined_call_operand.hbm [shape: f32[2,128,1024], index: 11, kind: output, shape index: {}]
  %s12 = sld [smem:[#allocation0]]
  $region77: #{keypoint_encoder.7} parent=0
    _
  %s14 = ssub.s32 1, %s12
  %s15 = scalar_select 0, %s14, %s12
  $region1: #{keypoint_encoder.7} parent=0
    #allocation2 [shape = 'u8[524288]{0}', space=vmem, size = 0x80000, scoped, tag = 'output window, operand 0']
    #allocation3 [shape = 's32[2]{0}', space=sflag, size = 0x8, scoped, tag = 'scoped memory for keypoint_encoder.7']
    %16 = vsyncpa [#allocation3], 0
    %s17 = scalar_lea.sflag [#allocation3], 1
    %18 = vsyncpa %s17, 0
    loop: start=0, step=1, limit=6
    $region2: #{keypoint_encoder.7} parent=1 // loop_pre_header
      _
    $region3: #{keypoint_encoder.7} parent=1 // loop_header
      %s20 = sphi 0, %s24
      %p21 = scmp.ge.s32.totalorder %s20, 6
      %s27 = sphi 0, %s39
      %s28 = sphi 0, %s35
      %s29 = sphi 0, %s27
      %s30 = sphi 0, %s28
      %s31 = sphi 0, %s29
      %s32 = sphi 0, %s30
      %s44 = sphi 0, %s46
      %s47 = sphi 0, %s44
      %s48 = sphi 0, %s47
      %s64 = sphi 0, %s48
      %s72 = sphi 0, %s74
      %s75 = sphi 0, %s72
      %s76 = sphi 0, %s75
      %s92 = sphi 0, %s76
      %s96 = sphi 0, %s96
      %s98 = sphi 0, %s96
      %s99 = sphi 0, %s98
      %s113 = sphi 0, %s99
      %s117 = sphi 0, %s117
      %s119 = sphi 0, %s117
      %s120 = sphi 0, %s119
      %s134 = sphi 0, %s120
      %s138 = sphi 0, %s138
      %s140 = sphi 0, %s138
      %s141 = sphi 0, %s140
      %s155 = sphi 0, %s141
      %s159 = sphi 0, %s159
      %s161 = sphi 0, %s159
      %s162 = sphi 0, %s161
      %s176 = sphi 0, %s162
      %s180 = sphi 0, %s180
      %s182 = sphi 0, %s180
      %s183 = sphi 0, %s182
      %s197 = sphi 0, %s183
      %s201 = sphi 0, %s201
      %s203 = sphi 0, %s201
      %s204 = sphi 0, %s203
      %s218 = sphi 0, %s204
      %s222 = sphi 0, %s222
      %s224 = sphi 0, %s222
      %s225 = sphi 0, %s224
      %s239 = sphi 0, %s225
      %s243 = sphi 0, %s243
      %s245 = sphi 0, %s243
      %s246 = sphi 0, %s245
      %s260 = sphi 0, %s246
      %s264 = sphi 0, %s264
      %s266 = sphi 0, %s264
      %s267 = sphi 0, %s266
      %s281 = sphi 0, %s267
      %s289 = sphi 0, %s291
      %s292 = sphi 0, %s289
      %s293 = sphi 0, %s292
      %s309 = sphi 0, %s293
    $region4: #{keypoint_encoder.7} parent=1 // loop_header_branch
      %23 = sbr.rel (%p21) target = $region8
    $region5: #{keypoint_encoder.7} parent=1 // loop_body
      %s25 = ssub.s32 %s20, 1
      %s26 = ssub.s32 %s20, 2
      %s33 = sadd.s32 1, %s28
      %p34 = scmp.ge.s32.totalorder %s33, 2
      %s35 = scalar_select %p34, 0, %s33
      %s36 = sadd.s32 1, %s27
      %s37 = scalar_select %p34, %s36, %s27
      %p38 = scmp.ge.s32.totalorder %s37, 2
      %s39 = scalar_select %p38, 0, %s37
      %s40 = ssub.s32 %s27, %s39
      %s41 = ssub.s32 %s28, %s35
      %s42 = sor.u32 %s40, %s41
      %p43 = scmp.eq.s32.totalorder %s42, 0
      %s45 = sadd.s32 %s44, 1
      %s46 = scalar_select %p43, %s44, %s45
      %p49 = pneg %p43
      %p50 = scmp.eq.s32.totalorder %s20, 3
      %p51 = por %p49, %p50
      %p52 = scmp.ne.s32.totalorder %s44, %s47
      %p53 = scmp.eq.s32.totalorder %s20, 0
      %p54 = por %p52, %p53
      %p55 = scmp.ne.s32.totalorder %s44, %s47
      %p56 = scmp.eq.s32.totalorder %s25, 3
      %p57 = por %p55, %p56
      %p58 = scmp.ne.s32.totalorder %s47, %s48
      %p59 = scmp.eq.s32.totalorder %s25, 0
      %p60 = por %p58, %p59
      %p61 = scmp.ne.s32.totalorder %s47, %s48
      %p62 = scmp.eq.s32.totalorder %s26, 3
      %p63 = por %p61, %p62
      %p65 = scmp.ne.s32.totalorder %s48, %s64
      %p66 = scmp.eq.s32.totalorder %s26, 0
      %p67 = por %p65, %p66
      %s68 = ssub.s32 %s27, %s39
      %s69 = ssub.s32 %s28, %s35
      %s70 = sor.u32 %s68, %s69
      %p71 = scmp.eq.s32.totalorder %s70, 0
      %s73 = sadd.s32 %s72, 1
      %s74 = scalar_select %p71, %s72, %s73
      %p77 = pneg %p71
      %p78 = scmp.eq.s32.totalorder %s20, 3
      %p79 = por %p77, %p78
      %p80 = scmp.ne.s32.totalorder %s72, %s75
      %p81 = scmp.eq.s32.totalorder %s20, 0
      %p82 = por %p80, %p81
      %p83 = scmp.ne.s32.totalorder %s72, %s75
      %p84 = scmp.eq.s32.totalorder %s25, 3
      %p85 = por %p83, %p84
      %p86 = scmp.ne.s32.totalorder %s75, %s76
      %p87 = scmp.eq.s32.totalorder %s25, 0
      %p88 = por %p86, %p87
      %p89 = scmp.ne.s32.totalorder %s75, %s76
      %p90 = scmp.eq.s32.totalorder %s26, 3
      %p91 = por %p89, %p90
      %p93 = scmp.ne.s32.totalorder %s76, %s92
      %p94 = scmp.eq.s32.totalorder %s26, 0
      %p95 = por %p93, %p94
      %s97 = sadd.s32 %s96, 1
      %p100 = scmp.eq.s32.totalorder %s20, 3
      %p101 = scmp.ne.s32.totalorder %s96, %s98
      %p102 = scmp.eq.s32.totalorder %s20, 0
      %p103 = por %p101, %p102
      %p104 = scmp.ne.s32.totalorder %s96, %s98
      %p105 = scmp.eq.s32.totalorder %s25, 3
      %p106 = por %p104, %p105
      %p107 = scmp.ne.s32.totalorder %s98, %s99
      %p108 = scmp.eq.s32.totalorder %s25, 0
      %p109 = por %p107, %p108
      %p110 = scmp.ne.s32.totalorder %s98, %s99
      %p111 = scmp.eq.s32.totalorder %s26, 3
      %p112 = por %p110, %p111
      %p114 = scmp.ne.s32.totalorder %s99, %s113
      %p115 = scmp.eq.s32.totalorder %s26, 0
      %p116 = por %p114, %p115
      %s118 = sadd.s32 %s117, 1
      %p121 = scmp.eq.s32.totalorder %s20, 3
      %p122 = scmp.ne.s32.totalorder %s117, %s119
      %p123 = scmp.eq.s32.totalorder %s20, 0
      %p124 = por %p122, %p123
      %p125 = scmp.ne.s32.totalorder %s117, %s119
      %p126 = scmp.eq.s32.totalorder %s25, 3
      %p127 = por %p125, %p126
      %p128 = scmp.ne.s32.totalorder %s119, %s120
      %p129 = scmp.eq.s32.totalorder %s25, 0
      %p130 = por %p128, %p129
      %p131 = scmp.ne.s32.totalorder %s119, %s120
      %p132 = scmp.eq.s32.totalorder %s26, 3
      %p133 = por %p131, %p132
      %p135 = scmp.ne.s32.totalorder %s120, %s134
      %p136 = scmp.eq.s32.totalorder %s26, 0
      %p137 = por %p135, %p136
      %s139 = sadd.s32 %s138, 1
      %p142 = scmp.eq.s32.totalorder %s20, 3
      %p143 = scmp.ne.s32.totalorder %s138, %s140
      %p144 = scmp.eq.s32.totalorder %s20, 0
      %p145 = por %p143, %p144
      %p146 = scmp.ne.s32.totalorder %s138, %s140
      %p147 = scmp.eq.s32.totalorder %s25, 3
      %p148 = por %p146, %p147
      %p149 = scmp.ne.s32.totalorder %s140, %s141
      %p150 = scmp.eq.s32.totalorder %s25, 0
      %p151 = por %p149, %p150
      %p152 = scmp.ne.s32.totalorder %s140, %s141
      %p153 = scmp.eq.s32.totalorder %s26, 3
      %p154 = por %p152, %p153
      %p156 = scmp.ne.s32.totalorder %s141, %s155
      %p157 = scmp.eq.s32.totalorder %s26, 0
      %p158 = por %p156, %p157
      %s160 = sadd.s32 %s159, 1
      %p163 = scmp.eq.s32.totalorder %s20, 3
      %p164 = scmp.ne.s32.totalorder %s159, %s161
      %p165 = scmp.eq.s32.totalorder %s20, 0
      %p166 = por %p164, %p165
      %p167 = scmp.ne.s32.totalorder %s159, %s161
      %p168 = scmp.eq.s32.totalorder %s25, 3
      %p169 = por %p167, %p168
      %p170 = scmp.ne.s32.totalorder %s161, %s162
      %p171 = scmp.eq.s32.totalorder %s25, 0
      %p172 = por %p170, %p171
      %p173 = scmp.ne.s32.totalorder %s161, %s162
      %p174 = scmp.eq.s32.totalorder %s26, 3
      %p175 = por %p173, %p174
      %p177 = scmp.ne.s32.totalorder %s162, %s176
      %p178 = scmp.eq.s32.totalorder %s26, 0
      %p179 = por %p177, %p178
      %s181 = sadd.s32 %s180, 1
      %p184 = scmp.eq.s32.totalorder %s20, 3
      %p185 = scmp.ne.s32.totalorder %s180, %s182
      %p186 = scmp.eq.s32.totalorder %s20, 0
      %p187 = por %p185, %p186
      %p188 = scmp.ne.s32.totalorder %s180, %s182
      %p189 = scmp.eq.s32.totalorder %s25, 3
      %p190 = por %p188, %p189
      %p191 = scmp.ne.s32.totalorder %s182, %s183
      %p192 = scmp.eq.s32.totalorder %s25, 0
      %p193 = por %p191, %p192
      %p194 = scmp.ne.s32.totalorder %s182, %s183
      %p195 = scmp.eq.s32.totalorder %s26, 3
      %p196 = por %p194, %p195
      %p198 = scmp.ne.s32.totalorder %s183, %s197
      %p199 = scmp.eq.s32.totalorder %s26, 0
      %p200 = por %p198, %p199
      %s202 = sadd.s32 %s201, 1
      %p205 = scmp.eq.s32.totalorder %s20, 3
      %p206 = scmp.ne.s32.totalorder %s201, %s203
      %p207 = scmp.eq.s32.totalorder %s20, 0
      %p208 = por %p206, %p207
      %p209 = scmp.ne.s32.totalorder %s201, %s203
      %p210 = scmp.eq.s32.totalorder %s25, 3
      %p211 = por %p209, %p210
      %p212 = scmp.ne.s32.totalorder %s203, %s204
      %p213 = scmp.eq.s32.totalorder %s25, 0
      %p214 = por %p212, %p213
      %p215 = scmp.ne.s32.totalorder %s203, %s204
      %p216 = scmp.eq.s32.totalorder %s26, 3
      %p217 = por %p215, %p216
      %p219 = scmp.ne.s32.totalorder %s204, %s218
      %p220 = scmp.eq.s32.totalorder %s26, 0
      %p221 = por %p219, %p220
      %s223 = sadd.s32 %s222, 1
      %p226 = scmp.eq.s32.totalorder %s20, 3
      %p227 = scmp.ne.s32.totalorder %s222, %s224
      %p228 = scmp.eq.s32.totalorder %s20, 0
      %p229 = por %p227, %p228
      %p230 = scmp.ne.s32.totalorder %s222, %s224
      %p231 = scmp.eq.s32.totalorder %s25, 3
      %p232 = por %p230, %p231
      %p233 = scmp.ne.s32.totalorder %s224, %s225
      %p234 = scmp.eq.s32.totalorder %s25, 0
      %p235 = por %p233, %p234
      %p236 = scmp.ne.s32.totalorder %s224, %s225
      %p237 = scmp.eq.s32.totalorder %s26, 3
      %p238 = por %p236, %p237
      %p240 = scmp.ne.s32.totalorder %s225, %s239
      %p241 = scmp.eq.s32.totalorder %s26, 0
      %p242 = por %p240, %p241
      %s244 = sadd.s32 %s243, 1
      %p247 = scmp.eq.s32.totalorder %s20, 3
      %p248 = scmp.ne.s32.totalorder %s243, %s245
      %p249 = scmp.eq.s32.totalorder %s20, 0
      %p250 = por %p248, %p249
      %p251 = scmp.ne.s32.totalorder %s243, %s245
      %p252 = scmp.eq.s32.totalorder %s25, 3
      %p253 = por %p251, %p252
      %p254 = scmp.ne.s32.totalorder %s245, %s246
      %p255 = scmp.eq.s32.totalorder %s25, 0
      %p256 = por %p254, %p255
      %p257 = scmp.ne.s32.totalorder %s245, %s246
      %p258 = scmp.eq.s32.totalorder %s26, 3
      %p259 = por %p257, %p258
      %p261 = scmp.ne.s32.totalorder %s246, %s260
      %p262 = scmp.eq.s32.totalorder %s26, 0
      %p263 = por %p261, %p262
      %s265 = sadd.s32 %s264, 1
      %p268 = scmp.eq.s32.totalorder %s20, 3
      %p269 = scmp.ne.s32.totalorder %s264, %s266
      %p270 = scmp.eq.s32.totalorder %s20, 0
      %p271 = por %p269, %p270
      %p272 = scmp.ne.s32.totalorder %s264, %s266
      %p273 = scmp.eq.s32.totalorder %s25, 3
      %p274 = por %p272, %p273
      %p275 = scmp.ne.s32.totalorder %s266, %s267
      %p276 = scmp.eq.s32.totalorder %s25, 0
      %p277 = por %p275, %p276
      %p278 = scmp.ne.s32.totalorder %s266, %s267
      %p279 = scmp.eq.s32.totalorder %s26, 3
      %p280 = por %p278, %p279
      %p282 = scmp.ne.s32.totalorder %s267, %s281
      %p283 = scmp.eq.s32.totalorder %s26, 0
      %p284 = por %p282, %p283
      %s285 = ssub.s32 %s27, %s39
      %s286 = ssub.s32 %s28, %s35
      %s287 = sor.u32 %s285, %s286
      %p288 = scmp.eq.s32.totalorder %s287, 0
      %s290 = sadd.s32 %s289, 1
      %s291 = scalar_select %p288, %s289, %s290
      %p294 = pneg %p288
      %p295 = scmp.eq.s32.totalorder %s20, 3
      %p296 = por %p294, %p295
      %p297 = scmp.ne.s32.totalorder %s289, %s292
      %p298 = scmp.eq.s32.totalorder %s20, 0
      %p299 = por %p297, %p298
      %p300 = scmp.ne.s32.totalorder %s289, %s292
      %p301 = scmp.eq.s32.totalorder %s25, 3
      %p302 = por %p300, %p301
      %p303 = scmp.ne.s32.totalorder %s292, %s293
      %p304 = scmp.eq.s32.totalorder %s25, 0
      %p305 = por %p303, %p304
      %p306 = scmp.ne.s32.totalorder %s292, %s293
      %p307 = scmp.eq.s32.totalorder %s26, 3
      %p308 = por %p306, %p307
      %p310 = scmp.ne.s32.totalorder %s293, %s309
      %p311 = scmp.eq.s32.totalorder %s26, 0
      %p312 = por %p310, %p311
      %p313 = scmp.le.s32.totalorder 1, %s20
      %p314 = scmp.lt.s32.totalorder %s20, 5
      %p315 = pnand %p313, %p314
      %p316 = pneg %p315
      // Predicated region
      $region9: #{keypoint_encoder.7} parent=5 // pred_check
        _
      $region10: #{keypoint_encoder.7} parent=5 // pred_check_branch
        %318 = sbr.rel (%p315) target = $region12
      $region11: #{keypoint_encoder.7} parent=5 // pred_region
        %s319 = ssub.s32 %s20, 1
        // Predicated region
        $region13: #{keypoint_encoder.7} parent=11 // pred_check
          %p320 = pneg %p109
        $region14: #{keypoint_encoder.7} parent=11 // pred_check_branch
          %322 = sbr.rel (%p320) target = $region16
        $region15: #{keypoint_encoder.7} parent=11 // pred_region
          _
        $region16: #{keypoint_encoder.7} parent=11 // pred_fallthru
          _
        // Predicated region
        $region17: #{keypoint_encoder.7} parent=11 // pred_check
          %p323 = pneg %p130
        $region18: #{keypoint_encoder.7} parent=11 // pred_check_branch
          %325 = sbr.rel (%p323) target = $region20
        $region19: #{keypoint_encoder.7} parent=11 // pred_region
          _
        $region20: #{keypoint_encoder.7} parent=11 // pred_fallthru
          _
        // Predicated region
        $region21: #{keypoint_encoder.7} parent=11 // pred_check
          %p326 = pneg %p151
        $region22: #{keypoint_encoder.7} parent=11 // pred_check_branch
          %328 = sbr.rel (%p326) target = $region24
        $region23: #{keypoint_encoder.7} parent=11 // pred_region
          _
        $region24: #{keypoint_encoder.7} parent=11 // pred_fallthru
          _
        // Predicated region
        $region25: #{keypoint_encoder.7} parent=11 // pred_check
          %p329 = pneg %p172
        $region26: #{keypoint_encoder.7} parent=11 // pred_check_branch
          %331 = sbr.rel (%p329) target = $region28
        $region27: #{keypoint_encoder.7} parent=11 // pred_region
          _
        $region28: #{keypoint_encoder.7} parent=11 // pred_fallthru
          _
        // Predicated region
        $region29: #{keypoint_encoder.7} parent=11 // pred_check
          %p332 = pneg %p193
        $region30: #{keypoint_encoder.7} parent=11 // pred_check_branch
          %334 = sbr.rel (%p332) target = $region32
        $region31: #{keypoint_encoder.7} parent=11 // pred_region
          _
        $region32: #{keypoint_encoder.7} parent=11 // pred_fallthru
          _
        // Predicated region
        $region33: #{keypoint_encoder.7} parent=11 // pred_check
          %p335 = pneg %p214
        $region34: #{keypoint_encoder.7} parent=11 // pred_check_branch
          %337 = sbr.rel (%p335) target = $region36
        $region35: #{keypoint_encoder.7} parent=11 // pred_region
          _
        $region36: #{keypoint_encoder.7} parent=11 // pred_fallthru
          _
        // Predicated region
        $region37: #{keypoint_encoder.7} parent=11 // pred_check
          %p338 = pneg %p235
        $region38: #{keypoint_encoder.7} parent=11 // pred_check_branch
          %340 = sbr.rel (%p338) target = $region40
        $region39: #{keypoint_encoder.7} parent=11 // pred_region
          _
        $region40: #{keypoint_encoder.7} parent=11 // pred_fallthru
          _
        // Predicated region
        $region41: #{keypoint_encoder.7} parent=11 // pred_check
          %p341 = pneg %p256
        $region42: #{keypoint_encoder.7} parent=11 // pred_check_branch
          %343 = sbr.rel (%p341) target = $region44
        $region43: #{keypoint_encoder.7} parent=11 // pred_region
          _
        $region44: #{keypoint_encoder.7} parent=11 // pred_fallthru
          _
        // Predicated region
        $region45: #{keypoint_encoder.7} parent=11 // pred_check
          %p344 = pneg %p277
        $region46: #{keypoint_encoder.7} parent=11 // pred_check_branch
          %346 = sbr.rel (%p344) target = $region48
        $region47: #{keypoint_encoder.7} parent=11 // pred_region
          _
        $region48: #{keypoint_encoder.7} parent=11 // pred_fallthru
          _
      $region12: #{keypoint_encoder.7} parent=5 // pred_fallthru
        _
      %p347 = scmp.lt.s32.totalorder %s20, 4
      // Predicated region
      $region49: #{keypoint_encoder.7} parent=5 // pred_check
        %p348 = pneg %p347
      $region50: #{keypoint_encoder.7} parent=5 // pred_check_branch
        %350 = sbr.rel (%p348) target = $region52
      $region51: #{keypoint_encoder.7} parent=5 // pred_region
        // Predicated region
        $region53: #{keypoint_encoder.7} parent=51 // pred_check
          %p351 = pneg %p54
        $region54: #{keypoint_encoder.7} parent=51 // pred_check_branch
          %353 = sbr.rel (%p351) target = $region56
        $region55: #{keypoint_encoder.7} parent=51 // pred_region
          %s354 = smul.u32 4, %s28
          %p355 = scmp.lt.s32.totalorder %s27, 1
          %s356 = scalar_select %p355, %s27, 1
          %p357 = scmp.lt.s32.totalorder %s354, 7
          %s358 = scalar_select %p357, %s354, 7
          %s359 = smul.addr %s356, 8
          %s360 = sadd.s32 %s358, %s359
          %s361 = smul.addr %s360, 4
          %s362 = scalar_lea.vmem %s0, %s361
          %s363 = smul.u32 4, %s28
        $region56: #{keypoint_encoder.7} parent=51 // pred_fallthru
          _
        // Predicated region
        $region57: #{keypoint_encoder.7} parent=51 // pred_check
          %p364 = pneg %p82
        $region58: #{keypoint_encoder.7} parent=51 // pred_check_branch
          %366 = sbr.rel (%p364) target = $region60
        $region59: #{keypoint_encoder.7} parent=51 // pred_region
          %s367 = smul.u32 4, %s28
          %p368 = scmp.lt.s32.totalorder %s27, 1
          %s369 = scalar_select %p368, %s27, 1
          %p370 = scmp.lt.s32.totalorder %s367, 7
          %s371 = scalar_select %p370, %s367, 7
          %s372 = smul.addr %s369, 8
          %s373 = sadd.s32 %s371, %s372
          %s374 = scalar_lea.vmem %s1, %s373
          %s375 = smul.u32 4, %s28
        $region60: #{keypoint_encoder.7} parent=51 // pred_fallthru
          _
      $region52: #{keypoint_encoder.7} parent=5 // pred_fallthru
        _
      %p376 = scmp.le.s32.totalorder 1, %s20
      %p377 = scmp.lt.s32.totalorder %s20, 5
      %p378 = pnand %p376, %p377
      %p379 = pneg %p378
      // Predicated region
      $region61: #{keypoint_encoder.7} parent=5 // pred_check
        _
      $region62: #{keypoint_encoder.7} parent=5 // pred_check_branch
        %381 = sbr.rel (%p378) target = $region64
      $region63: #{keypoint_encoder.7} parent=5 // pred_region
        %s382 = ssub.s32 %s20, 1
        %s383 = smul.u32 4, %s30
        %p384 = scmp.lt.s32.totalorder %s29, 1
        %s385 = scalar_select %p384, %s29, 1
        %p386 = scmp.lt.s32.totalorder %s383, 7
        %s387 = scalar_select %p386, %s383, 7
        %s388 = smul.addr %s385, 8
        %s389 = sadd.s32 %s387, %s388
        %s390 = smul.addr %s389, 4
        %s391 = scalar_lea.vmem %s0, %s390
        %p392 = pneg %p60
        %p393 = pneg %p57
        %s394 = smul.u32 4, %s30
        %p395 = scmp.lt.s32.totalorder %s29, 1
        %s396 = scalar_select %p395, %s29, 1
        %p397 = scmp.lt.s32.totalorder %s394, 7
        %s398 = scalar_select %p397, %s394, 7
        %s399 = smul.addr %s396, 8
        %s400 = sadd.s32 %s398, %s399
        %s401 = scalar_lea.vmem %s1, %s400
        %p402 = pneg %p88
        %p403 = pneg %p85
        %p404 = pneg %p109
        %p405 = pneg %p106
        %p406 = pneg %p130
        %p407 = pneg %p127
        %p408 = pneg %p151
        %p409 = pneg %p148
        %p410 = pneg %p172
        %p411 = pneg %p169
        %p412 = pneg %p193
        %p413 = pneg %p190
        %p414 = pneg %p214
        %p415 = pneg %p211
        %p416 = pneg %p235
        %p417 = pneg %p232
        %p418 = pneg %p256
        %p419 = pneg %p253
        %p420 = pneg %p277
        %p421 = pneg %p274
        %p422 = pneg %p305
        %p423 = pneg %p302
        %s424 = sand.u32 %s292, 1
        %s425 = scalar_lea.sflag [#allocation3], %s424
        %s426 = sand.u32 %s292, 1
        %s427 = smul.addr %s426, 512
        %s428 = scalar_lea.vmem [#allocation2], %s427
        %s429 = smul.u32 4, %s30
        %p430 = scmp.lt.s32.totalorder %s29, 1
        %s431 = scalar_select %p430, %s29, 1
        %p432 = scmp.lt.s32.totalorder %s429, 7
        %s433 = scalar_select %p432, %s429, 7
        %s434 = smul.addr %s431, 8
        %s435 = sadd.s32 %s433, %s434
        %s436 = smul.addr %s435, 4
        %s437 = scalar_lea.vmem %s0, %s436
        %s438 = smul.u32 4, %s30
        %s439 = smul.u32 4, %s30
        %p440 = scmp.lt.s32.totalorder %s29, 1
        %s441 = scalar_select %p440, %s29, 1
        %p442 = scmp.lt.s32.totalorder %s439, 7
        %s443 = scalar_select %p442, %s439, 7
        %s444 = smul.addr %s441, 8
        %s445 = sadd.s32 %s443, %s444
        %s446 = scalar_lea.vmem %s1, %s445
        %s447 = smul.u32 4, %s30
        %s448 = smul.u32 4, %s30
        %v449 = vld [vmem:[%s437] sm:$0x77]
        %v450 = vld [vmem:[%s437 + $0x8] sm:$0x77]
        %v451 = vld [vmem:[%s446] sm:$0xf]
        %v452 = vld [vmem:[%s2] sm:$0xff]
        %v453 = vld [vmem:[%s2 + $0x8] sm:$0xff]
        %v454 = vld [vmem:[%s2 + $0x10] sm:$0xff]
        %v455 = vld [vmem:[%s2 + $0x18] sm:$0xff]
        %457 = vset.pattern.permute.xlu0 0
        %458 = vperm.xlu0 %457, %v452
        %v459 = vpop.permute.xlu0 %458
        %462 = vset.pattern.permute.xlu0 0
        %463 = vperm.xlu0 %462, %v453
        %v464 = vpop.permute.xlu0 %463
        %467 = vset.pattern.permute.xlu0 0
        %468 = vperm.xlu0 %467, %v454
        %v469 = vpop.permute.xlu0 %468
        %472 = vset.pattern.permute.xlu0 0
        %473 = vperm.xlu0 %472, %v455
        %v474 = vpop.permute.xlu0 %473
        %v478 = vlaneseq
        %v479 = vshrl.u32 %v478, 7
        %v480 = vsub.s32 0, %v479
        %v481 = vrot.slane %v449, %v480
        %v482 = vlaneseq
        %v483 = vshrl.u32 %v482, 7
        %v484 = vsub.s32 4, %v483
        %v485 = vrot.slane %v449, %v484
        %v486 = vlaneseq
        %v487 = vshrl.u32 %v486, 7
        %v488 = vsub.s32 0, %v487
        %v489 = vrot.slane %v450, %v488
        %v490 = vlaneseq
        %v491 = vshrl.u32 %v490, 7
        %v492 = vsub.s32 4, %v491
        %v493 = vrot.slane %v450, %v492
        %v498 = vlaneseq
        %v499 = vshrl.u32 %v498, 7
        %v500 = vsub.s32 0, %v499
        %v501 = vrot.slane %v481, %v500
        %v502 = vlaneseq
        %v503 = vshrl.u32 %v502, 7
        %v504 = vsub.s32 0, %v503
        %v505 = vrot.slane %v485, %v504
        %v506 = vlaneseq
        %v507 = vshrl.u32 %v506, 7
        %v508 = vsub.s32 0, %v507
        %v509 = vrot.slane %v489, %v508
        %v510 = vlaneseq
        %v511 = vshrl.u32 %v510, 7
        %v512 = vsub.s32 0, %v511
        %v513 = vrot.slane %v493, %v512
        %v514 = vmul.f32 %v459, %v501
        %v515 = vmul.f32 %v459, %v505
        %v516 = vmul.f32 %v459, %v509
        %v517 = vmul.f32 %v459, %v513
        %v518 = vmul.f32 %v464, %v501
        %v519 = vmul.f32 %v464, %v505
        %v520 = vmul.f32 %v464, %v509
        %v521 = vmul.f32 %v464, %v513
        %v522 = vmul.f32 %v469, %v501
        %v523 = vmul.f32 %v469, %v505
        %v524 = vmul.f32 %v469, %v509
        %v525 = vmul.f32 %v469, %v513
        %v526 = vmul.f32 %v474, %v501
        %v527 = vmul.f32 %v474, %v505
        %v528 = vmul.f32 %v474, %v509
        %v529 = vmul.f32 %v474, %v513
        %530 = vset.pattern.permute.xlu0 1
        %531 = vperm.xlu0 %530, %v452
        %v532 = vpop.permute.xlu0 %531
        %534 = vset.pattern.permute.xlu0 1
        %535 = vperm.xlu0 %534, %v453
        %v536 = vpop.permute.xlu0 %535
        %538 = vset.pattern.permute.xlu0 1
        %539 = vperm.xlu0 %538, %v454
        %v540 = vpop.permute.xlu0 %539
        %542 = vset.pattern.permute.xlu0 1
        %543 = vperm.xlu0 %542, %v455
        %v544 = vpop.permute.xlu0 %543
        %v546 = vlaneseq
        %v547 = vshrl.u32 %v546, 7
        %v548 = vsub.s32 1, %v547
        %v549 = vrot.slane %v449, %v548
        %v550 = vlaneseq
        %v551 = vshrl.u32 %v550, 7
        %v552 = vsub.s32 5, %v551
        %v553 = vrot.slane %v449, %v552
        %v554 = vlaneseq
        %v555 = vshrl.u32 %v554, 7
        %v556 = vsub.s32 1, %v555
        %v557 = vrot.slane %v450, %v556
        %v558 = vlaneseq
        %v559 = vshrl.u32 %v558, 7
        %v560 = vsub.s32 5, %v559
        %v561 = vrot.slane %v450, %v560
        %v566 = vlaneseq
        %v567 = vshrl.u32 %v566, 7
        %v568 = vsub.s32 1, %v567
        %v569 = vrot.slane %v549, %v568
        %v570 = vlaneseq
        %v571 = vshrl.u32 %v570, 7
        %v572 = vsub.s32 1, %v571
        %v573 = vrot.slane %v553, %v572
        %v574 = vlaneseq
        %v575 = vshrl.u32 %v574, 7
        %v576 = vsub.s32 1, %v575
        %v577 = vrot.slane %v557, %v576
        %v578 = vlaneseq
        %v579 = vshrl.u32 %v578, 7
        %v580 = vsub.s32 1, %v579
        %v581 = vrot.slane %v561, %v580
        %v582 = vmul.f32 %v532, %v569
        %v583 = vmul.f32 %v532, %v573
        %v584 = vmul.f32 %v532, %v577
        %v585 = vmul.f32 %v532, %v581
        %v586 = vmul.f32 %v536, %v569
        %v587 = vmul.f32 %v536, %v573
        %v588 = vmul.f32 %v536, %v577
        %v589 = vmul.f32 %v536, %v581
        %v590 = vmul.f32 %v540, %v569
        %v591 = vmul.f32 %v540, %v573
        %v592 = vmul.f32 %v540, %v577
        %v593 = vmul.f32 %v540, %v581
        %v594 = vmul.f32 %v544, %v569
        %v595 = vmul.f32 %v544, %v573
        %v596 = vmul.f32 %v544, %v577
        %v597 = vmul.f32 %v544, %v581
        %v598 = vadd.f32 %v514, %v582
        %v599 = vadd.f32 %v515, %v583
        %v600 = vadd.f32 %v516, %v584
        %v601 = vadd.f32 %v517, %v585
        %v602 = vadd.f32 %v518, %v586
        %v603 = vadd.f32 %v519, %v587
        %v604 = vadd.f32 %v520, %v588
        %v605 = vadd.f32 %v521, %v589
        %v606 = vadd.f32 %v522, %v590
        %v607 = vadd.f32 %v523, %v591
        %v608 = vadd.f32 %v524, %v592
        %v609 = vadd.f32 %v525, %v593
        %v610 = vadd.f32 %v526, %v594
        %v611 = vadd.f32 %v527, %v595
        %v612 = vadd.f32 %v528, %v596
        %v613 = vadd.f32 %v529, %v597
        %614 = vset.pattern.permute.xlu0 2
        %615 = vperm.xlu0 %614, %v452
        %v616 = vpop.permute.xlu0 %615
        %618 = vset.pattern.permute.xlu0 2
        %619 = vperm.xlu0 %618, %v453
        %v620 = vpop.permute.xlu0 %619
        %622 = vset.pattern.permute.xlu0 2
        %623 = vperm.xlu0 %622, %v454
        %v624 = vpop.permute.xlu0 %623
        %626 = vset.pattern.permute.xlu0 2
        %627 = vperm.xlu0 %626, %v455
        %v628 = vpop.permute.xlu0 %627
        %v630 = vlaneseq
        %v631 = vshrl.u32 %v630, 7
        %v632 = vsub.s32 2, %v631
        %v633 = vrot.slane %v449, %v632
        %v634 = vlaneseq
        %v635 = vshrl.u32 %v634, 7
        %v636 = vsub.s32 6, %v635
        %v637 = vrot.slane %v449, %v636
        %v638 = vlaneseq
        %v639 = vshrl.u32 %v638, 7
        %v640 = vsub.s32 2, %v639
        %v641 = vrot.slane %v450, %v640
        %v642 = vlaneseq
        %v643 = vshrl.u32 %v642, 7
        %v644 = vsub.s32 6, %v643
        %v645 = vrot.slane %v450, %v644
        %v650 = vlaneseq
        %v651 = vshrl.u32 %v650, 7
        %v652 = vsub.s32 2, %v651
        %v653 = vrot.slane %v633, %v652
        %v654 = vlaneseq
        %v655 = vshrl.u32 %v654, 7
        %v656 = vsub.s32 2, %v655
        %v657 = vrot.slane %v637, %v656
        %v658 = vlaneseq
        %v659 = vshrl.u32 %v658, 7
        %v660 = vsub.s32 2, %v659
        %v661 = vrot.slane %v641, %v660
        %v662 = vlaneseq
        %v663 = vshrl.u32 %v662, 7
        %v664 = vsub.s32 2, %v663
        %v665 = vrot.slane %v645, %v664
        %v666 = vmul.f32 %v616, %v653
        %v667 = vmul.f32 %v616, %v657
        %v668 = vmul.f32 %v616, %v661
        %v669 = vmul.f32 %v616, %v665
        %v670 = vmul.f32 %v620, %v653
        %v671 = vmul.f32 %v620, %v657
        %v672 = vmul.f32 %v620, %v661
        %v673 = vmul.f32 %v620, %v665
        %v674 = vmul.f32 %v624, %v653
        %v675 = vmul.f32 %v624, %v657
        %v676 = vmul.f32 %v624, %v661
        %v677 = vmul.f32 %v624, %v665
        %v678 = vmul.f32 %v628, %v653
        %v679 = vmul.f32 %v628, %v657
        %v680 = vmul.f32 %v628, %v661
        %v681 = vmul.f32 %v628, %v665
        %v682 = vadd.f32 %v598, %v666
        %v683 = vadd.f32 %v599, %v667
        %v684 = vadd.f32 %v600, %v668
        %v685 = vadd.f32 %v601, %v669
        %v686 = vadd.f32 %v602, %v670
        %v687 = vadd.f32 %v603, %v671
        %v688 = vadd.f32 %v604, %v672
        %v689 = vadd.f32 %v605, %v673
        %v690 = vadd.f32 %v606, %v674
        %v691 = vadd.f32 %v607, %v675
        %v692 = vadd.f32 %v608, %v676
        %v693 = vadd.f32 %v609, %v677
        %v694 = vadd.f32 %v610, %v678
        %v695 = vadd.f32 %v611, %v679
        %v696 = vadd.f32 %v612, %v680
        %v697 = vadd.f32 %v613, %v681
        %v698 = vld [vmem:[%s3] sm:$0xff]
        %v699 = vld [vmem:[%s3 + $0x8] sm:$0xff]
        %v700 = vld [vmem:[%s3 + $0x10] sm:$0xff]
        %v701 = vld [vmem:[%s3 + $0x18] sm:$0xff]
        %703 = vset.pattern.permute.xlu0 0
        %704 = vperm.xlu0 %703, %v698
        %v705 = vpop.permute.xlu0 %704
        %708 = vset.pattern.permute.xlu0 0
        %709 = vperm.xlu0 %708, %v699
        %v710 = vpop.permute.xlu0 %709
        %713 = vset.pattern.permute.xlu0 0
        %714 = vperm.xlu0 %713, %v700
        %v715 = vpop.permute.xlu0 %714
        %718 = vset.pattern.permute.xlu0 0
        %719 = vperm.xlu0 %718, %v701
        %v720 = vpop.permute.xlu0 %719
        %v723 = vlaneseq
        %v724 = vshrl.u32 %v723, 7
        %v725 = vsub.s32 0, %v724
        %v726 = vrot.slane %v451, %v725
        %v727 = vlaneseq
        %v728 = vshrl.u32 %v727, 7
        %v729 = vsub.s32 1, %v728
        %v730 = vrot.slane %v451, %v729
        %v731 = vlaneseq
        %v732 = vshrl.u32 %v731, 7
        %v733 = vsub.s32 2, %v732
        %v734 = vrot.slane %v451, %v733
        %v735 = vlaneseq
        %v736 = vshrl.u32 %v735, 7
        %v737 = vsub.s32 3, %v736
        %v738 = vrot.slane %v451, %v737
        %v743 = vmul.f32 %v705, %v726
        %v744 = vmul.f32 %v705, %v730
        %v745 = vmul.f32 %v705, %v734
        %v746 = vmul.f32 %v705, %v738
        %v747 = vmul.f32 %v710, %v726
        %v748 = vmul.f32 %v710, %v730
        %v749 = vmul.f32 %v710, %v734
        %v750 = vmul.f32 %v710, %v738
        %v751 = vmul.f32 %v715, %v726
        %v752 = vmul.f32 %v715, %v730
        %v753 = vmul.f32 %v715, %v734
        %v754 = vmul.f32 %v715, %v738
        %v755 = vmul.f32 %v720, %v726
        %v756 = vmul.f32 %v720, %v730
        %v757 = vmul.f32 %v720, %v734
        %v758 = vmul.f32 %v720, %v738
        %v759 = vadd.f32 %v682, %v743
        %v760 = vadd.f32 %v683, %v744
        %v761 = vadd.f32 %v684, %v745
        %v762 = vadd.f32 %v685, %v746
        %v763 = vadd.f32 %v686, %v747
        %v764 = vadd.f32 %v687, %v748
        %v765 = vadd.f32 %v688, %v749
        %v766 = vadd.f32 %v689, %v750
        %v767 = vadd.f32 %v690, %v751
        %v768 = vadd.f32 %v691, %v752
        %v769 = vadd.f32 %v692, %v753
        %v770 = vadd.f32 %v693, %v754
        %v771 = vadd.f32 %v694, %v755
        %v772 = vadd.f32 %v695, %v756
        %v773 = vadd.f32 %v696, %v757
        %v774 = vadd.f32 %v697, %v758
        %v775 = vld [vmem:[%s4] sm:$0xff]
        %v776 = vld [vmem:[%s4 + $0x8] sm:$0xff]
        %v777 = vld [vmem:[%s4 + $0x10] sm:$0xff]
        %v778 = vld [vmem:[%s4 + $0x18] sm:$0xff]
        %780 = vset.pattern.permute.xlu0 0
        %781 = vperm.xlu0 %780, %v775
        %v782 = vpop.permute.xlu0 %781
        %785 = vset.pattern.permute.xlu0 0
        %786 = vperm.xlu0 %785, %v776
        %v787 = vpop.permute.xlu0 %786
        %790 = vset.pattern.permute.xlu0 0
        %791 = vperm.xlu0 %790, %v777
        %v792 = vpop.permute.xlu0 %791
        %795 = vset.pattern.permute.xlu0 0
        %796 = vperm.xlu0 %795, %v778
        %v797 = vpop.permute.xlu0 %796
        %v799 = vadd.f32 %v759, %v782
        %v800 = vadd.f32 %v760, %v782
        %v801 = vadd.f32 %v761, %v782
        %v802 = vadd.f32 %v762, %v782
        %v803 = vadd.f32 %v763, %v787
        %v804 = vadd.f32 %v764, %v787
        %v805 = vadd.f32 %v765, %v787
        %v806 = vadd.f32 %v766, %v787
        %v807 = vadd.f32 %v767, %v792
        %v808 = vadd.f32 %v768, %v792
        %v809 = vadd.f32 %v769, %v792
        %v810 = vadd.f32 %v770, %v792
        %v811 = vadd.f32 %v771, %v797
        %v812 = vadd.f32 %v772, %v797
        %v813 = vadd.f32 %v773, %v797
        %v814 = vadd.f32 %v774, %v797
        %v815 = vmax.f32 %v799, 0.0
        %v816 = vmax.f32 %v800, 0.0
        %v817 = vmax.f32 %v801, 0.0
        %v818 = vmax.f32 %v802, 0.0
        %v819 = vmax.f32 %v803, 0.0
        %v820 = vmax.f32 %v804, 0.0
        %v821 = vmax.f32 %v805, 0.0
        %v822 = vmax.f32 %v806, 0.0
        %v823 = vmax.f32 %v807, 0.0
        %v824 = vmax.f32 %v808, 0.0
        %v825 = vmax.f32 %v809, 0.0
        %v826 = vmax.f32 %v810, 0.0
        %v827 = vmax.f32 %v811, 0.0
        %v828 = vmax.f32 %v812, 0.0
        %v829 = vmax.f32 %v813, 0.0
        %v830 = vmax.f32 %v814, 0.0
        %v831 = vld [vmem:[%s5] sm:$0xff]
        %v832 = vld [vmem:[%s5 + $0x8] sm:$0xff]
        %v833 = vld [vmem:[%s5 + $0x10] sm:$0xff]
        %v834 = vld [vmem:[%s5 + $0x18] sm:$0xff]
        %v835 = vld [vmem:[%s5 + $0x20] sm:$0xff]
        %v836 = vld [vmem:[%s5 + $0x28] sm:$0xff]
        %v837 = vld [vmem:[%s5 + $0x30] sm:$0xff]
        %v838 = vld [vmem:[%s5 + $0x38] sm:$0xff]
        %v839 = vld [vmem:[%s6] sm:$0xff]
        %v840 = vld [vmem:[%s6 + $0x8] sm:$0xff]
        %v841 = vld [vmem:[%s6 + $0x10] sm:$0xff]
        %v842 = vld [vmem:[%s6 + $0x18] sm:$0xff]
        %v843 = vld [vmem:[%s6 + $0x20] sm:$0xff]
        %v844 = vld [vmem:[%s6 + $0x28] sm:$0xff]
        %v845 = vld [vmem:[%s6 + $0x30] sm:$0xff]
        %v846 = vld [vmem:[%s6 + $0x38] sm:$0xff]
        %848 = vset.pattern.permute.xlu0 0
        %849 = vperm.xlu0 %848, %v839
        %v850 = vpop.permute.xlu0 %849
        %853 = vset.pattern.permute.xlu0 0
        %854 = vperm.xlu0 %853, %v840
        %v855 = vpop.permute.xlu0 %854
        %858 = vset.pattern.permute.xlu0 0
        %859 = vperm.xlu0 %858, %v841
        %v860 = vpop.permute.xlu0 %859
        %863 = vset.pattern.permute.xlu0 0
        %864 = vperm.xlu0 %863, %v842
        %v865 = vpop.permute.xlu0 %864
        %868 = vset.pattern.permute.xlu0 0
        %869 = vperm.xlu0 %868, %v843
        %v870 = vpop.permute.xlu0 %869
        %873 = vset.pattern.permute.xlu0 0
        %874 = vperm.xlu0 %873, %v844
        %v875 = vpop.permute.xlu0 %874
        %878 = vset.pattern.permute.xlu0 0
        %879 = vperm.xlu0 %878, %v845
        %v880 = vpop.permute.xlu0 %879
        %883 = vset.pattern.permute.xlu0 0
        %884 = vperm.xlu0 %883, %v846
        %v885 = vpop.permute.xlu0 %884
        %vm887 = vcmask 261120
        %v889 = vsel %vm887, %v831, 0
        %v892 = vsel %vm887, %v832, 0
        %v895 = vsel %vm887, %v833, 0
        %v898 = vsel %vm887, %v834, 0
        %v901 = vsel %vm887, %v835, 0
        %v904 = vsel %vm887, %v836, 0
        %v907 = vsel %vm887, %v837, 0
        %v910 = vsel %vm887, %v838, 0
        %912 = vmatprep.subr.mxu0 %v816
        %913 = vmatpush1.msra.mxu0 %v815
        %914 = vmatprep.subr.mxu0 %v820
        %915 = vmatpush1.msra.mxu0 %v819
        %916 = vmatprep.subr.mxu0 %v824
        %917 = vmatpush1.msra.mxu0 %v823
        %918 = vmatprep.subr.mxu0 %v828
        %919 = vmatpush1.msra.mxu0 %v827
        %920 = vmatprep.subr.mxu0 0.0
        %921 = vmatpush1.msra.mxu0 0.0
        %922 = vmatprep.subr.mxu0 0.0
        %923 = vmatpush1.msra.mxu0 0.0
        %924 = vmatprep.subr.mxu0 0.0
        %925 = vmatpush1.msra.mxu0 0.0
        %926 = vmatprep.subr.mxu0 0.0
        %927 = vmatpush1.msra.mxu0 0.0
        %928 = vmatprep.subr.mxu0 0.0
        %929 = vmatpush1.msra.mxu0 0.0
        %930 = vmatprep.subr.mxu0 0.0
        %931 = vmatpush1.msra.mxu0 0.0
        %932 = vmatprep.subr.mxu0 0.0
        %933 = vmatpush1.msra.mxu0 0.0
        %934 = vmatprep.subr.mxu0 0.0
        %935 = vmatpush1.msra.mxu0 0.0
        %936 = vmatprep.subr.mxu0 0.0
        %937 = vmatpush1.msra.mxu0 0.0
        %938 = vmatprep.subr.mxu0 0.0
        %939 = vmatpush1.msra.mxu0 0.0
        %940 = vmatprep.subr.mxu0 0.0
        %941 = vmatpush1.msra.mxu0 0.0
        %942 = vmatprep.subr.mxu0 0.0
        %943 = vmatpush1.msra.mxu0 0.0
        %944 = vmatprep.subr.mxu0 0.0
        %945 = vmatpush1.msra.mxu0 0.0
        %946 = vmatprep.subr.mxu0 0.0
        %947 = vmatpush1.msra.mxu0 0.0
        %948 = vmatprep.subr.mxu0 0.0
        %949 = vmatpush1.msra.mxu0 0.0
        %950 = vmatprep.subr.mxu0 0.0
        %951 = vmatpush1.msra.mxu0 0.0
        %952 = vmatprep.subr.mxu0 0.0
        %953 = vmatpush1.msra.mxu0 0.0
        %954 = vmatprep.subr.mxu0 0.0
        %955 = vmatpush1.msra.mxu0 0.0
        %956 = vmatprep.subr.mxu0 0.0
        %957 = vmatpush1.msra.mxu0 0.0
        %958 = vmatprep.subr.mxu0 0.0
        %959 = vmatpush1.msra.mxu0 0.0
        %960 = vmatprep.subr.mxu0 0.0
        %961 = vmatpush1.msra.mxu0 0.0
        %962 = vmatprep.subr.mxu0 0.0
        %963 = vmatpush1.msra.mxu0 0.0
        %964 = vmatprep.subr.mxu0 0.0
        %965 = vmatpush1.msra.mxu0 0.0
        %966 = vmatprep.subr.mxu0 0.0
        %967 = vmatpush1.msra.mxu0 0.0
        %968 = vmatprep.subr.mxu0 0.0
        %969 = vmatpush1.msra.mxu0 0.0
        %970 = vmatprep.subr.mxu0 0.0
        %971 = vmatpush1.msra.mxu0 0.0
        %972 = vmatprep.subr.mxu0 0.0
        %973 = vmatpush1.msra.mxu0 0.0
        %974 = vmatprep.subr.mxu0 0.0
        %975 = vmatpush1.msra.mxu0 0.0
        %976 = vmatprep.mubr.f32.mxu0 0.0
        %977 = vmatmul.mubr.f32.gmra.mrb[0].mxu0 %v889
        %v978 = vpop.f32.mrb[0].mxu0
        %v979 = vadd.f32 %v850, %v978
        %v980 = vpop.f32.mrb[0].mxu0
        %v981 = vadd.f32 %v850, %v980
        %982 = vmatprep.mubr.f32.mxu0 0.0
        %983 = vmatmul.mubr.f32.gmra.mrb[0].mxu0 %v892
        %v984 = vpop.f32.mrb[0].mxu0
        %v985 = vadd.f32 %v855, %v984
        %v986 = vpop.f32.mrb[0].mxu0
        %v987 = vadd.f32 %v855, %v986
        %988 = vmatprep.mubr.f32.mxu0 0.0
        %989 = vmatmul.mubr.f32.gmra.mrb[0].mxu0 %v895
        %v990 = vpop.f32.mrb[0].mxu0
        %v991 = vadd.f32 %v860, %v990
        %v992 = vpop.f32.mrb[0].mxu0
        %v993 = vadd.f32 %v860, %v992
        %994 = vmatprep.mubr.f32.mxu0 0.0
        %995 = vmatmul.mubr.f32.gmra.mrb[0].mxu0 %v898
        %v996 = vpop.f32.mrb[0].mxu0
        %v997 = vadd.f32 %v865, %v996
        %v998 = vpop.f32.mrb[0].mxu0
        %v999 = vadd.f32 %v865, %v998
        %1000 = vmatprep.mubr.f32.mxu0 0.0
        %1001 = vmatmul.mubr.f32.gmra.mrb[0].mxu0 %v901
        %v1002 = vpop.f32.mrb[0].mxu0
        %v1003 = vadd.f32 %v870, %v1002
        %v1004 = vpop.f32.mrb[0].mxu0
        %v1005 = vadd.f32 %v870, %v1004
        %1006 = vmatprep.mubr.f32.mxu0 0.0
        %1007 = vmatmul.mubr.f32.gmra.mrb[0].mxu0 %v904
        %v1008 = vpop.f32.mrb[0].mxu0
        %v1009 = vadd.f32 %v875, %v1008
        %v1010 = vpop.f32.mrb[0].mxu0
        %v1011 = vadd.f32 %v875, %v1010
        %1012 = vmatprep.mubr.f32.mxu0 0.0
        %1013 = vmatmul.mubr.f32.gmra.mrb[0].mxu0 %v907
        %v1014 = vpop.f32.mrb[0].mxu0
        %v1015 = vadd.f32 %v880, %v1014
        %v1016 = vpop.f32.mrb[0].mxu0
        %v1017 = vadd.f32 %v880, %v1016
        %1018 = vmatprep.mubr.f32.mxu0 0.0
        %1019 = vmatmul.mubr.f32.gmra.mrb[0].mxu0 %v910
        %v1020 = vpop.f32.mrb[0].mxu0
        %v1021 = vadd.f32 %v885, %v1020
        %v1022 = vpop.f32.mrb[0].mxu0
        %v1023 = vadd.f32 %v885, %v1022
        %1024 = vdwg.mxu0
        %1025 = vmatprep.subr.mxu0 %v818
        %1026 = vmatpush1.msra.mxu0 %v817
        %1027 = vmatprep.subr.mxu0 %v822
        %1028 = vmatpush1.msra.mxu0 %v821
        %1029 = vmatprep.subr.mxu0 %v826
        %1030 = vmatpush1.msra.mxu0 %v825
        %1031 = vmatprep.subr.mxu0 %v830
        %1032 = vmatpush1.msra.mxu0 %v829
        %1033 = vmatprep.subr.mxu0 0.0
        %1034 = vmatpush1.msra.mxu0 0.0
        %1035 = vmatprep.subr.mxu0 0.0
        %1036 = vmatpush1.msra.mxu0 0.0
        %1037 = vmatprep.subr.mxu0 0.0
        %1038 = vmatpush1.msra.mxu0 0.0
        %1039 = vmatprep.subr.mxu0 0.0
        %1040 = vmatpush1.msra.mxu0 0.0
        %1041 = vmatprep.subr.mxu0 0.0
        %1042 = vmatpush1.msra.mxu0 0.0
        %1043 = vmatprep.subr.mxu0 0.0
        %1044 = vmatpush1.msra.mxu0 0.0
        %1045 = vmatprep.subr.mxu0 0.0
        %1046 = vmatpush1.msra.mxu0 0.0
        %1047 = vmatprep.subr.mxu0 0.0
        %1048 = vmatpush1.msra.mxu0 0.0
        %1049 = vmatprep.subr.mxu0 0.0
        %1050 = vmatpush1.msra.mxu0 0.0
        %1051 = vmatprep.subr.mxu0 0.0
        %1052 = vmatpush1.msra.mxu0 0.0
        %1053 = vmatprep.subr.mxu0 0.0
        %1054 = vmatpush1.msra.mxu0 0.0
        %1055 = vmatprep.subr.mxu0 0.0
        %1056 = vmatpush1.msra.mxu0 0.0
        %1057 = vmatprep.subr.mxu0 0.0
        %1058 = vmatpush1.msra.mxu0 0.0
        %1059 = vmatprep.subr.mxu0 0.0
        %1060 = vmatpush1.msra.mxu0 0.0
        %1061 = vmatprep.subr.mxu0 0.0
        %1062 = vmatpush1.msra.mxu0 0.0
        %1063 = vmatprep.subr.mxu0 0.0
        %1064 = vmatpush1.msra.mxu0 0.0
        %1065 = vmatprep.subr.mxu0 0.0
        %1066 = vmatpush1.msra.mxu0 0.0
        %1067 = vmatprep.subr.mxu0 0.0
        %1068 = vmatpush1.msra.mxu0 0.0
        %1069 = vmatprep.subr.mxu0 0.0
        %1070 = vmatpush1.msra.mxu0 0.0
        %1071 = vmatprep.subr.mxu0 0.0
        %1072 = vmatpush1.msra.mxu0 0.0
        %1073 = vmatprep.subr.mxu0 0.0
        %1074 = vmatpush1.msra.mxu0 0.0
        %1075 = vmatprep.subr.mxu0 0.0
        %1076 = vmatpush1.msra.mxu0 0.0
        %1077 = vmatprep.subr.mxu0 0.0
        %1078 = vmatpush1.msra.mxu0 0.0
        %1079 = vmatprep.subr.mxu0 0.0
        %1080 = vmatpush1.msra.mxu0 0.0
        %1081 = vmatprep.subr.mxu0 0.0
        %1082 = vmatpush1.msra.mxu0 0.0
        %1083 = vmatprep.subr.mxu0 0.0
        %1084 = vmatpush1.msra.mxu0 0.0
        %1085 = vmatprep.subr.mxu0 0.0
        %1086 = vmatpush1.msra.mxu0 0.0
        %1087 = vmatprep.subr.mxu0 0.0
        %1088 = vmatpush1.msra.mxu0 0.0
        %1089 = vmatprep.mubr.f32.mxu0 0.0
        %1090 = vmatmul.mubr.f32.gmra.mrb[0].mxu0 %v889
        %v1091 = vpop.f32.mrb[0].mxu0
        %v1092 = vadd.f32 %v850, %v1091
        %v1093 = vpop.f32.mrb[0].mxu0
        %v1094 = vadd.f32 %v850, %v1093
        %1095 = vmatprep.mubr.f32.mxu0 0.0
        %1096 = vmatmul.mubr.f32.gmra.mrb[0].mxu0 %v892
        %v1097 = vpop.f32.mrb[0].mxu0
        %v1098 = vadd.f32 %v855, %v1097
        %v1099 = vpop.f32.mrb[0].mxu0
        %v1100 = vadd.f32 %v855, %v1099
        %1101 = vmatprep.mubr.f32.mxu0 0.0
        %1102 = vmatmul.mubr.f32.gmra.mrb[0].mxu0 %v895
        %v1103 = vpop.f32.mrb[0].mxu0
        %v1104 = vadd.f32 %v860, %v1103
        %v1105 = vpop.f32.mrb[0].mxu0
        %v1106 = vadd.f32 %v860, %v1105
        %1107 = vmatprep.mubr.f32.mxu0 0.0
        %1108 = vmatmul.mubr.f32.gmra.mrb[0].mxu0 %v898
        %v1109 = vpop.f32.mrb[0].mxu0
        %v1110 = vadd.f32 %v865, %v1109
        %v1111 = vpop.f32.mrb[0].mxu0
        %v1112 = vadd.f32 %v865, %v1111
        %1113 = vmatprep.mubr.f32.mxu0 0.0
        %1114 = vmatmul.mubr.f32.gmra.mrb[0].mxu0 %v901
        %v1115 = vpop.f32.mrb[0].mxu0
        %v1116 = vadd.f32 %v870, %v1115
        %v1117 = vpop.f32.mrb[0].mxu0
        %v1118 = vadd.f32 %v870, %v1117
        %1119 = vmatprep.mubr.f32.mxu0 0.0
        %1120 = vmatmul.mubr.f32.gmra.mrb[0].mxu0 %v904
        %v1121 = vpop.f32.mrb[0].mxu0
        %v1122 = vadd.f32 %v875, %v1121
        %v1123 = vpop.f32.mrb[0].mxu0
        %v1124 = vadd.f32 %v875, %v1123
        %1125 = vmatprep.mubr.f32.mxu0 0.0
        %1126 = vmatmul.mubr.f32.gmra.mrb[0].mxu0 %v907
        %v1127 = vpop.f32.mrb[0].mxu0
        %v1128 = vadd.f32 %v880, %v1127
        %v1129 = vpop.f32.mrb[0].mxu0
        %v1130 = vadd.f32 %v880, %v1129
        %1131 = vmatprep.mubr.f32.mxu0 0.0
        %1132 = vmatmul.mubr.f32.gmra.mrb[0].mxu0 %v910
        %v1133 = vpop.f32.mrb[0].mxu0
        %v1134 = vadd.f32 %v885, %v1133
        %v1135 = vpop.f32.mrb[0].mxu0
        %v1136 = vadd.f32 %v885, %v1135
        %1137 = vdwg.mxu0
        %v1138 = vmax.f32 %v979, 0.0
        %v1139 = vmax.f32 %v981, 0.0
        %v1140 = vmax.f32 %v1092, 0.0
        %v1141 = vmax.f32 %v1094, 0.0
        %v1142 = vmax.f32 %v985, 0.0
        %v1143 = vmax.f32 %v987, 0.0
        %v1144 = vmax.f32 %v1098, 0.0
        %v1145 = vmax.f32 %v1100, 0.0
        %v1146 = vmax.f32 %v991, 0.0
        %v1147 = vmax.f32 %v993, 0.0
        %v1148 = vmax.f32 %v1104, 0.0
        %v1149 = vmax.f32 %v1106, 0.0
        %v1150 = vmax.f32 %v997, 0.0
        %v1151 = vmax.f32 %v999, 0.0
        %v1152 = vmax.f32 %v1110, 0.0
        %v1153 = vmax.f32 %v1112, 0.0
        %v1154 = vmax.f32 %v1003, 0.0
        %v1155 = vmax.f32 %v1005, 0.0
        %v1156 = vmax.f32 %v1116, 0.0
        %v1157 = vmax.f32 %v1118, 0.0
        %v1158 = vmax.f32 %v1009, 0.0
        %v1159 = vmax.f32 %v1011, 0.0
        %v1160 = vmax.f32 %v1122, 0.0
        %v1161 = vmax.f32 %v1124, 0.0
        %v1162 = vmax.f32 %v1015, 0.0
        %v1163 = vmax.f32 %v1017, 0.0
        %v1164 = vmax.f32 %v1128, 0.0
        %v1165 = vmax.f32 %v1130, 0.0
        %v1166 = vmax.f32 %v1021, 0.0
        %v1167 = vmax.f32 %v1023, 0.0
        %v1168 = vmax.f32 %v1134, 0.0
        %v1169 = vmax.f32 %v1136, 0.0
        %v1170 = vld [vmem:[%s7] sm:$0xff]
        %v1171 = vld [vmem:[%s7 + $0x8] sm:$0xff]
        %v1172 = vld [vmem:[%s7 + $0x10] sm:$0xff]
        %v1173 = vld [vmem:[%s7 + $0x18] sm:$0xff]
        %v1174 = vld [vmem:[%s7 + $0x20] sm:$0xff]
        %v1175 = vld [vmem:[%s7 + $0x28] sm:$0xff]
        %v1176 = vld [vmem:[%s7 + $0x30] sm:$0xff]
        %v1177 = vld [vmem:[%s7 + $0x38] sm:$0xff]
        %v1178 = vld [vmem:[%s7 + $0x40] sm:$0xff]
        %v1179 = vld [vmem:[%s7 + $0x48] sm:$0xff]
        %v1180 = vld [vmem:[%s7 + $0x50] sm:$0xff]
        %v1181 = vld [vmem:[%s7 + $0x58] sm:$0xff]
        %v1182 = vld [vmem:[%s7 + $0x60] sm:$0xff]
        %v1183 = vld [vmem:[%s7 + $0x68] sm:$0xff]
        %v1184 = vld [vmem:[%s7 + $0x70] sm:$0xff]
        %v1185 = vld [vmem:[%s7 + $0x78] sm:$0xff]
        %v1186 = vld [vmem:[%s8] sm:$0xff]
        %v1187 = vld [vmem:[%s8 + $0x8] sm:$0xff]
        %v1188 = vld [vmem:[%s8 + $0x10] sm:$0xff]
        %v1189 = vld [vmem:[%s8 + $0x18] sm:$0xff]
        %v1190 = vld [vmem:[%s8 + $0x20] sm:$0xff]
        %v1191 = vld [vmem:[%s8 + $0x28] sm:$0xff]
        %v1192 = vld [vmem:[%s8 + $0x30] sm:$0xff]
        %v1193 = vld [vmem:[%s8 + $0x38] sm:$0xff]
        %v1194 = vld [vmem:[%s8 + $0x40] sm:$0xff]
        %v1195 = vld [vmem:[%s8 + $0x48] sm:$0xff]
        %v1196 = vld [vmem:[%s8 + $0x50] sm:$0xff]
        %v1197 = vld [vmem:[%s8 + $0x58] sm:$0xff]
        %v1198 = vld [vmem:[%s8 + $0x60] sm:$0xff]
        %v1199 = vld [vmem:[%s8 + $0x68] sm:$0xff]
        %v1200 = vld [vmem:[%s8 + $0x70] sm:$0xff]
        %v1201 = vld [vmem:[%s8 + $0x78] sm:$0xff]
        %1203 = vset.pattern.permute.xlu0 0
        %1204 = vperm.xlu0 %1203, %v1186
        %v1205 = vpop.permute.xlu0 %1204
        %1208 = vset.pattern.permute.xlu0 0
        %1209 = vperm.xlu0 %1208, %v1187
        %v1210 = vpop.permute.xlu0 %1209
        %1213 = vset.pattern.permute.xlu0 0
        %1214 = vperm.xlu0 %1213, %v1188
        %v1215 = vpop.permute.xlu0 %1214
        %1218 = vset.pattern.permute.xlu0 0
        %1219 = vperm.xlu0 %1218, %v1189
        %v1220 = vpop.permute.xlu0 %1219
        %1223 = vset.pattern.permute.xlu0 0
        %1224 = vperm.xlu0 %1223, %v1190
        %v1225 = vpop.permute.xlu0 %1224
        %1228 = vset.pattern.permute.xlu0 0
        %1229 = vperm.xlu0 %1228, %v1191
        %v1230 = vpop.permute.xlu0 %1229
        %1233 = vset.pattern.permute.xlu0 0
        %1234 = vperm.xlu0 %1233, %v1192
        %v1235 = vpop.permute.xlu0 %1234
        %1238 = vset.pattern.permute.xlu0 0
        %1239 = vperm.xlu0 %1238, %v1193
        %v1240 = vpop.permute.xlu0 %1239
        %1243 = vset.pattern.permute.xlu0 0
        %1244 = vperm.xlu0 %1243, %v1194
        %v1245 = vpop.permute.xlu0 %1244
        %1248 = vset.pattern.permute.xlu0 0
        %1249 = vperm.xlu0 %1248, %v1195
        %v1250 = vpop.permute.xlu0 %1249
        %1253 = vset.pattern.permute.xlu0 0
        %1254 = vperm.xlu0 %1253, %v1196
        %v1255 = vpop.permute.xlu0 %1254
        %1258 = vset.pattern.permute.xlu0 0
        %1259 = vperm.xlu0 %1258, %v1197
        %v1260 = vpop.permute.xlu0 %1259
        %1263 = vset.pattern.permute.xlu0 0
        %1264 = vperm.xlu0 %1263, %v1198
        %v1265 = vpop.permute.xlu0 %1264
        %1268 = vset.pattern.permute.xlu0 0
        %1269 = vperm.xlu0 %1268, %v1199
        %v1270 = vpop.permute.xlu0 %1269
        %1273 = vset.pattern.permute.xlu0 0
        %1274 = vperm.xlu0 %1273, %v1200
        %v1275 = vpop.permute.xlu0 %1274
        %1278 = vset.pattern.permute.xlu0 0
        %1279 = vperm.xlu0 %1278, %v1201
        %v1280 = vpop.permute.xlu0 %1279
        %vm1282 = vcmask 523264
        %v1284 = vsel %vm1282, %v1170, 0
        %v1287 = vsel %vm1282, %v1171, 0
        %v1290 = vsel %vm1282, %v1172, 0
        %v1293 = vsel %vm1282, %v1173, 0
        %v1296 = vsel %vm1282, %v1174, 0
        %v1299 = vsel %vm1282, %v1175, 0
        %v1302 = vsel %vm1282, %v1176, 0
        %v1305 = vsel %vm1282, %v1177, 0
        %v1308 = vsel %vm1282, %v1178, 0
        %v1311 = vsel %vm1282, %v1179, 0
        %v1314 = vsel %vm1282, %v1180, 0
        %v1317 = vsel %vm1282, %v1181, 0
        %v1320 = vsel %vm1282, %v1182, 0
        %v1323 = vsel %vm1282, %v1183, 0
        %v1326 = vsel %vm1282, %v1184, 0
        %v1329 = vsel %vm1282, %v1185, 0
        %1331 = vmatprep.subr.mxu0 %v1139
        %1332 = vmatpush1.msra.mxu0 %v1138
        %1333 = vmatprep.subr.mxu0 %v1143
        %1334 = vmatpush1.msra.mxu0 %v1142
        %1335 = vmatprep.subr.mxu0 %v1147
        %1336 = vmatpush1.msra.mxu0 %v1146
        %1337 = vmatprep.subr.mxu0 %v1151
        %1338 = vmatpush1.msra.mxu0 %v1150
        %1339 = vmatprep.subr.mxu0 %v1155
        %1340 = vmatpush1.msra.mxu0 %v1154
        %1341 = vmatprep.subr.mxu0 %v1159
        %1342 = vmatpush1.msra.mxu0 %v1158
        %1343 = vmatprep.subr.mxu0 %v1163
        %1344 = vmatpush1.msra.mxu0 %v1162
        %1345 = vmatprep.subr.mxu0 %v1167
        %1346 = vmatpush1.msra.mxu0 %v1166
        %1347 = vmatprep.subr.mxu0 0.0
        %1348 = vmatpush1.msra.mxu0 0.0
        %1349 = vmatprep.subr.mxu0 0.0
        %1350 = vmatpush1.msra.mxu0 0.0
        %1351 = vmatprep.subr.mxu0 0.0
        %1352 = vmatpush1.msra.mxu0 0.0
        %1353 = vmatprep.subr.mxu0 0.0
        %1354 = vmatpush1.msra.mxu0 0.0
        %1355 = vmatprep.subr.mxu0 0.0
        %1356 = vmatpush1.msra.mxu0 0.0
        %1357 = vmatprep.subr.mxu0 0.0
        %1358 = vmatpush1.msra.mxu0 0.0
        %1359 = vmatprep.subr.mxu0 0.0
        %1360 = vmatpush1.msra.mxu0 0.0
        %1361 = vmatprep.subr.mxu0 0.0
        %1362 = vmatpush1.msra.mxu0 0.0
        %1363 = vmatprep.subr.mxu0 0.0
        %1364 = vmatpush1.msra.mxu0 0.0
        %1365 = vmatprep.subr.mxu0 0.0
        %1366 = vmatpush1.msra.mxu0 0.0
        %1367 = vmatprep.subr.mxu0 0.0
        %1368 = vmatpush1.msra.mxu0 0.0
        %1369 = vmatprep.subr.mxu0 0.0
        %1370 = vmatpush1.msra.mxu0 0.0
        %1371 = vmatprep.subr.mxu0 0.0
        %1372 = vmatpush1.msra.mxu0 0.0
        %1373 = vmatprep.subr.mxu0 0.0
        %1374 = vmatpush1.msra.mxu0 0.0
        %1375 = vmatprep.subr.mxu0 0.0
        %1376 = vmatpush1.msra.mxu0 0.0
        %1377 = vmatprep.subr.mxu0 0.0
        %1378 = vmatpush1.msra.mxu0 0.0
        %1379 = vmatprep.subr.mxu0 0.0
        %1380 = vmatpush1.msra.mxu0 0.0
        %1381 = vmatprep.subr.mxu0 0.0
        %1382 = vmatpush1.msra.mxu0 0.0
        %1383 = vmatprep.subr.mxu0 0.0
        %1384 = vmatpush1.msra.mxu0 0.0
        %1385 = vmatprep.subr.mxu0 0.0
        %1386 = vmatpush1.msra.mxu0 0.0
        %1387 = vmatprep.subr.mxu0 0.0
        %1388 = vmatpush1.msra.mxu0 0.0
        %1389 = vmatprep.subr.mxu0 0.0
        %1390 = vmatpush1.msra.mxu0 0.0
        %1391 = vmatprep.subr.mxu0 0.0
        %1392 = vmatpush1.msra.mxu0 0.0
        %1393 = vmatprep.subr.mxu0 0.0
        %1394 = vmatpush1.msra.mxu0 0.0
        %1395 = vmatprep.mubr.f32.mxu0 0.0
        %1396 = vmatmul.mubr.f32.gmra.mrb[0].mxu0 %v1284
        %v1397 = vpop.f32.mrb[0].mxu0
        %v1398 = vadd.f32 %v1205, %v1397
        %v1399 = vpop.f32.mrb[0].mxu0
        %v1400 = vadd.f32 %v1205, %v1399
        %1401 = vmatprep.mubr.f32.mxu0 0.0
        %1402 = vmatmul.mubr.f32.gmra.mrb[0].mxu0 %v1287
        %v1403 = vpop.f32.mrb[0].mxu0
        %v1404 = vadd.f32 %v1210, %v1403
        %v1405 = vpop.f32.mrb[0].mxu0
        %v1406 = vadd.f32 %v1210, %v1405
        %1407 = vmatprep.mubr.f32.mxu0 0.0
        %1408 = vmatmul.mubr.f32.gmra.mrb[0].mxu0 %v1290
        %v1409 = vpop.f32.mrb[0].mxu0
        %v1410 = vadd.f32 %v1215, %v1409
        %v1411 = vpop.f32.mrb[0].mxu0
        %v1412 = vadd.f32 %v1215, %v1411
        %1413 = vmatprep.mubr.f32.mxu0 0.0
        %1414 = vmatmul.mubr.f32.gmra.mrb[0].mxu0 %v1293
        %v1415 = vpop.f32.mrb[0].mxu0
        %v1416 = vadd.f32 %v1220, %v1415
        %v1417 = vpop.f32.mrb[0].mxu0
        %v1418 = vadd.f32 %v1220, %v1417
        %1419 = vmatprep.mubr.f32.mxu0 0.0
        %1420 = vmatmul.mubr.f32.gmra.mrb[0].mxu0 %v1296
        %v1421 = vpop.f32.mrb[0].mxu0
        %v1422 = vadd.f32 %v1225, %v1421
        %v1423 = vpop.f32.mrb[0].mxu0
        %v1424 = vadd.f32 %v1225, %v1423
        %1425 = vmatprep.mubr.f32.mxu0 0.0
        %1426 = vmatmul.mubr.f32.gmra.mrb[0].mxu0 %v1299
        %v1427 = vpop.f32.mrb[0].mxu0
        %v1428 = vadd.f32 %v1230, %v1427
        %v1429 = vpop.f32.mrb[0].mxu0
        %v1430 = vadd.f32 %v1230, %v1429
        %1431 = vmatprep.mubr.f32.mxu0 0.0
        %1432 = vmatmul.mubr.f32.gmra.mrb[0].mxu0 %v1302
        %v1433 = vpop.f32.mrb[0].mxu0
        %v1434 = vadd.f32 %v1235, %v1433
        %v1435 = vpop.f32.mrb[0].mxu0
        %v1436 = vadd.f32 %v1235, %v1435
        %1437 = vmatprep.mubr.f32.mxu0 0.0
        %1438 = vmatmul.mubr.f32.gmra.mrb[0].mxu0 %v1305
        %v1439 = vpop.f32.mrb[0].mxu0
        %v1440 = vadd.f32 %v1240, %v1439
        %v1441 = vpop.f32.mrb[0].mxu0
        %v1442 = vadd.f32 %v1240, %v1441
        %1443 = vmatprep.mubr.f32.mxu0 0.0
        %1444 = vmatmul.mubr.f32.gmra.mrb[0].mxu0 %v1308
        %v1445 = vpop.f32.mrb[0].mxu0
        %v1446 = vadd.f32 %v1245, %v1445
        %v1447 = vpop.f32.mrb[0].mxu0
        %v1448 = vadd.f32 %v1245, %v1447
        %1449 = vmatprep.mubr.f32.mxu0 0.0
        %1450 = vmatmul.mubr.f32.gmra.mrb[0].mxu0 %v1311
        %v1451 = vpop.f32.mrb[0].mxu0
        %v1452 = vadd.f32 %v1250, %v1451
        %v1453 = vpop.f32.mrb[0].mxu0
        %v1454 = vadd.f32 %v1250, %v1453
        %1455 = vmatprep.mubr.f32.mxu0 0.0
        %1456 = vmatmul.mubr.f32.gmra.mrb[0].mxu0 %v1314
        %v1457 = vpop.f32.mrb[0].mxu0
        %v1458 = vadd.f32 %v1255, %v1457
        %v1459 = vpop.f32.mrb[0].mxu0
        %v1460 = vadd.f32 %v1255, %v1459
        %1461 = vmatprep.mubr.f32.mxu0 0.0
        %1462 = vmatmul.mubr.f32.gmra.mrb[0].mxu0 %v1317
        %v1463 = vpop.f32.mrb[0].mxu0
        %v1464 = vadd.f32 %v1260, %v1463
        %v1465 = vpop.f32.mrb[0].mxu0
        %v1466 = vadd.f32 %v1260, %v1465
        %1467 = vmatprep.mubr.f32.mxu0 0.0
        %1468 = vmatmul.mubr.f32.gmra.mrb[0].mxu0 %v1320
        %v1469 = vpop.f32.mrb[0].mxu0
        %v1470 = vadd.f32 %v1265, %v1469
        %v1471 = vpop.f32.mrb[0].mxu0
        %v1472 = vadd.f32 %v1265, %v1471
        %1473 = vmatprep.mubr.f32.mxu0 0.0
        %1474 = vmatmul.mubr.f32.gmra.mrb[0].mxu0 %v1323
        %v1475 = vpop.f32.mrb[0].mxu0
        %v1476 = vadd.f32 %v1270, %v1475
        %v1477 = vpop.f32.mrb[0].mxu0
        %v1478 = vadd.f32 %v1270, %v1477
        %1479 = vmatprep.mubr.f32.mxu0 0.0
        %1480 = vmatmul.mubr.f32.gmra.mrb[0].mxu0 %v1326
        %v1481 = vpop.f32.mrb[0].mxu0
        %v1482 = vadd.f32 %v1275, %v1481
        %v1483 = vpop.f32.mrb[0].mxu0
        %v1484 = vadd.f32 %v1275, %v1483
        %1485 = vmatprep.mubr.f32.mxu0 0.0
        %1486 = vmatmul.mubr.f32.gmra.mrb[0].mxu0 %v1329
        %v1487 = vpop.f32.mrb[0].mxu0
        %v1488 = vadd.f32 %v1280, %v1487
        %v1489 = vpop.f32.mrb[0].mxu0
        %v1490 = vadd.f32 %v1280, %v1489
        %1491 = vdwg.mxu0
        %1492 = vmatprep.subr.mxu0 %v1141
        %1493 = vmatpush1.msra.mxu0 %v1140
        %1494 = vmatprep.subr.mxu0 %v1145
        %1495 = vmatpush1.msra.mxu0 %v1144
        %1496 = vmatprep.subr.mxu0 %v1149
        %1497 = vmatpush1.msra.mxu0 %v1148
        %1498 = vmatprep.subr.mxu0 %v1153
        %1499 = vmatpush1.msra.mxu0 %v1152
        %1500 = vmatprep.subr.mxu0 %v1157
        %1501 = vmatpush1.msra.mxu0 %v1156
        %1502 = vmatprep.subr.mxu0 %v1161
        %1503 = vmatpush1.msra.mxu0 %v1160
        %1504 = vmatprep.subr.mxu0 %v1165
        %1505 = vmatpush1.msra.mxu0 %v1164
        %1506 = vmatprep.subr.mxu0 %v1169
        %1507 = vmatpush1.msra.mxu0 %v1168
        %1508 = vmatprep.subr.mxu0 0.0
        %1509 = vmatpush1.msra.mxu0 0.0
        %1510 = vmatprep.subr.mxu0 0.0
        %1511 = vmatpush1.msra.mxu0 0.0
        %1512 = vmatprep.subr.mxu0 0.0
        %1513 = vmatpush1.msra.mxu0 0.0
        %1514 = vmatprep.subr.mxu0 0.0
        %1515 = vmatpush1.msra.mxu0 0.0
        %1516 = vmatprep.subr.mxu0 0.0
        %1517 = vmatpush1.msra.mxu0 0.0
        %1518 = vmatprep.subr.mxu0 0.0
        %1519 = vmatpush1.msra.mxu0 0.0
        %1520 = vmatprep.subr.mxu0 0.0
        %1521 = vmatpush1.msra.mxu0 0.0
        %1522 = vmatprep.subr.mxu0 0.0
        %1523 = vmatpush1.msra.mxu0 0.0
        %1524 = vmatprep.subr.mxu0 0.0
        %1525 = vmatpush1.msra.mxu0 0.0
        %1526 = vmatprep.subr.mxu0 0.0
        %1527 = vmatpush1.msra.mxu0 0.0
        %1528 = vmatprep.subr.mxu0 0.0
        %1529 = vmatpush1.msra.mxu0 0.0
        %1530 = vmatprep.subr.mxu0 0.0
        %1531 = vmatpush1.msra.mxu0 0.0
        %1532 = vmatprep.subr.mxu0 0.0
        %1533 = vmatpush1.msra.mxu0 0.0
        %1534 = vmatprep.subr.mxu0 0.0
        %1535 = vmatpush1.msra.mxu0 0.0
        %1536 = vmatprep.subr.mxu0 0.0
        %1537 = vmatpush1.msra.mxu0 0.0
        %1538 = vmatprep.subr.mxu0 0.0
        %1539 = vmatpush1.msra.mxu0 0.0
        %1540 = vmatprep.subr.mxu0 0.0
        %1541 = vmatpush1.msra.mxu0 0.0
        %1542 = vmatprep.subr.mxu0 0.0
        %1543 = vmatpush1.msra.mxu0 0.0
        %1544 = vmatprep.subr.mxu0 0.0
        %1545 = vmatpush1.msra.mxu0 0.0
        %1546 = vmatprep.subr.mxu0 0.0
        %1547 = vmatpush1.msra.mxu0 0.0
        %1548 = vmatprep.subr.mxu0 0.0
        %1549 = vmatpush1.msra.mxu0 0.0
        %1550 = vmatprep.subr.mxu0 0.0
        %1551 = vmatpush1.msra.mxu0 0.0
        %1552 = vmatprep.subr.mxu0 0.0
        %1553 = vmatpush1.msra.mxu0 0.0
        %1554 = vmatprep.subr.mxu0 0.0
        %1555 = vmatpush1.msra.mxu0 0.0
        %1556 = vmatprep.mubr.f32.mxu0 0.0
        %1557 = vmatmul.mubr.f32.gmra.mrb[0].mxu0 %v1284
        %v1558 = vpop.f32.mrb[0].mxu0
        %v1559 = vadd.f32 %v1205, %v1558
        %v1560 = vpop.f32.mrb[0].mxu0
        %v1561 = vadd.f32 %v1205, %v1560
        %1562 = vmatprep.mubr.f32.mxu0 0.0
        %1563 = vmatmul.mubr.f32.gmra.mrb[0].mxu0 %v1287
        %v1564 = vpop.f32.mrb[0].mxu0
        %v1565 = vadd.f32 %v1210, %v1564
        %v1566 = vpop.f32.mrb[0].mxu0
        %v1567 = vadd.f32 %v1210, %v1566
        %1568 = vmatprep.mubr.f32.mxu0 0.0
        %1569 = vmatmul.mubr.f32.gmra.mrb[0].mxu0 %v1290
        %v1570 = vpop.f32.mrb[0].mxu0
        %v1571 = vadd.f32 %v1215, %v1570
        %v1572 = vpop.f32.mrb[0].mxu0
        %v1573 = vadd.f32 %v1215, %v1572
        %1574 = vmatprep.mubr.f32.mxu0 0.0
        %1575 = vmatmul.mubr.f32.gmra.mrb[0].mxu0 %v1293
        %v1576 = vpop.f32.mrb[0].mxu0
        %v1577 = vadd.f32 %v1220, %v1576
        %v1578 = vpop.f32.mrb[0].mxu0
        %v1579 = vadd.f32 %v1220, %v1578
        %1580 = vmatprep.mubr.f32.mxu0 0.0
        %1581 = vmatmul.mubr.f32.gmra.mrb[0].mxu0 %v1296
        %v1582 = vpop.f32.mrb[0].mxu0
        %v1583 = vadd.f32 %v1225, %v1582
        %v1584 = vpop.f32.mrb[0].mxu0
        %v1585 = vadd.f32 %v1225, %v1584
        %1586 = vmatprep.mubr.f32.mxu0 0.0
        %1587 = vmatmul.mubr.f32.gmra.mrb[0].mxu0 %v1299
        %v1588 = vpop.f32.mrb[0].mxu0
        %v1589 = vadd.f32 %v1230, %v1588
        %v1590 = vpop.f32.mrb[0].mxu0
        %v1591 = vadd.f32 %v1230, %v1590
        %1592 = vmatprep.mubr.f32.mxu0 0.0
        %1593 = vmatmul.mubr.f32.gmra.mrb[0].mxu0 %v1302
        %v1594 = vpop.f32.mrb[0].mxu0
        %v1595 = vadd.f32 %v1235, %v1594
        %v1596 = vpop.f32.mrb[0].mxu0
        %v1597 = vadd.f32 %v1235, %v1596
        %1598 = vmatprep.mubr.f32.mxu0 0.0
        %1599 = vmatmul.mubr.f32.gmra.mrb[0].mxu0 %v1305
        %v1600 = vpop.f32.mrb[0].mxu0
        %v1601 = vadd.f32 %v1240, %v1600
        %v1602 = vpop.f32.mrb[0].mxu0
        %v1603 = vadd.f32 %v1240, %v1602
        %1604 = vmatprep.mubr.f32.mxu0 0.0
        %1605 = vmatmul.mubr.f32.gmra.mrb[0].mxu0 %v1308
        %v1606 = vpop.f32.mrb[0].mxu0
        %v1607 = vadd.f32 %v1245, %v1606
        %v1608 = vpop.f32.mrb[0].mxu0
        %v1609 = vadd.f32 %v1245, %v1608
        %1610 = vmatprep.mubr.f32.mxu0 0.0
        %1611 = vmatmul.mubr.f32.gmra.mrb[0].mxu0 %v1311
        %v1612 = vpop.f32.mrb[0].mxu0
        %v1613 = vadd.f32 %v1250, %v1612
        %v1614 = vpop.f32.mrb[0].mxu0
        %v1615 = vadd.f32 %v1250, %v1614
        %1616 = vmatprep.mubr.f32.mxu0 0.0
        %1617 = vmatmul.mubr.f32.gmra.mrb[0].mxu0 %v1314
        %v1618 = vpop.f32.mrb[0].mxu0
        %v1619 = vadd.f32 %v1255, %v1618
        %v1620 = vpop.f32.mrb[0].mxu0
        %v1621 = vadd.f32 %v1255, %v1620
        %1622 = vmatprep.mubr.f32.mxu0 0.0
        %1623 = vmatmul.mubr.f32.gmra.mrb[0].mxu0 %v1317
        %v1624 = vpop.f32.mrb[0].mxu0
        %v1625 = vadd.f32 %v1260, %v1624
        %v1626 = vpop.f32.mrb[0].mxu0
        %v1627 = vadd.f32 %v1260, %v1626
        %1628 = vmatprep.mubr.f32.mxu0 0.0
        %1629 = vmatmul.mubr.f32.gmra.mrb[0].mxu0 %v1320
        %v1630 = vpop.f32.mrb[0].mxu0
        %v1631 = vadd.f32 %v1265, %v1630
        %v1632 = vpop.f32.mrb[0].mxu0
        %v1633 = vadd.f32 %v1265, %v1632
        %1634 = vmatprep.mubr.f32.mxu0 0.0
        %1635 = vmatmul.mubr.f32.gmra.mrb[0].mxu0 %v1323
        %v1636 = vpop.f32.mrb[0].mxu0
        %v1637 = vadd.f32 %v1270, %v1636
        %v1638 = vpop.f32.mrb[0].mxu0
        %v1639 = vadd.f32 %v1270, %v1638
        %1640 = vmatprep.mubr.f32.mxu0 0.0
        %1641 = vmatmul.mubr.f32.gmra.mrb[0].mxu0 %v1326
        %v1642 = vpop.f32.mrb[0].mxu0
        %v1643 = vadd.f32 %v1275, %v1642
        %v1644 = vpop.f32.mrb[0].mxu0
        %v1645 = vadd.f32 %v1275, %v1644
        %1646 = vmatprep.mubr.f32.mxu0 0.0
        %1647 = vmatmul.mubr.f32.gmra.mrb[0].mxu0 %v1329
        %v1648 = vpop.f32.mrb[0].mxu0
        %v1649 = vadd.f32 %v1280, %v1648
        %v1650 = vpop.f32.mrb[0].mxu0
        %v1651 = vadd.f32 %v1280, %v1650
        %1652 = vdwg.mxu0
        %v1653 = vmax.f32 %v1398, 0.0
        %v1654 = vmax.f32 %v1400, 0.0
        %v1655 = vmax.f32 %v1559, 0.0
        %v1656 = vmax.f32 %v1561, 0.0
        %v1657 = vmax.f32 %v1404, 0.0
        %v1658 = vmax.f32 %v1406, 0.0
        %v1659 = vmax.f32 %v1565, 0.0
        %v1660 = vmax.f32 %v1567, 0.0
        %v1661 = vmax.f32 %v1410, 0.0
        %v1662 = vmax.f32 %v1412, 0.0
        %v1663 = vmax.f32 %v1571, 0.0
        %v1664 = vmax.f32 %v1573, 0.0
        %v1665 = vmax.f32 %v1416, 0.0
        %v1666 = vmax.f32 %v1418, 0.0
        %v1667 = vmax.f32 %v1577, 0.0
        %v1668 = vmax.f32 %v1579, 0.0
        %v1669 = vmax.f32 %v1422, 0.0
        %v1670 = vmax.f32 %v1424, 0.0
        %v1671 = vmax.f32 %v1583, 0.0
        %v1672 = vmax.f32 %v1585, 0.0
        %v1673 = vmax.f32 %v1428, 0.0
        %v1674 = vmax.f32 %v1430, 0.0
        %v1675 = vmax.f32 %v1589, 0.0
        %v1676 = vmax.f32 %v1591, 0.0
        %v1677 = vmax.f32 %v1434, 0.0
        %v1678 = vmax.f32 %v1436, 0.0
        %v1679 = vmax.f32 %v1595, 0.0
        %v1680 = vmax.f32 %v1597, 0.0
        %v1681 = vmax.f32 %v1440, 0.0
        %v1682 = vmax.f32 %v1442, 0.0
        %v1683 = vmax.f32 %v1601, 0.0
        %v1684 = vmax.f32 %v1603, 0.0
        %v1685 = vmax.f32 %v1446, 0.0
        %v1686 = vmax.f32 %v1448, 0.0
        %v1687 = vmax.f32 %v1607, 0.0
        %v1688 = vmax.f32 %v1609, 0.0
        %v1689 = vmax.f32 %v1452, 0.0
        %v1690 = vmax.f32 %v1454, 0.0
        %v1691 = vmax.f32 %v1613, 0.0
        %v1692 = vmax.f32 %v1615, 0.0
        %v1693 = vmax.f32 %v1458, 0.0
        %v1694 = vmax.f32 %v1460, 0.0
        %v1695 = vmax.f32 %v1619, 0.0
        %v1696 = vmax.f32 %v1621, 0.0
        %v1697 = vmax.f32 %v1464, 0.0
        %v1698 = vmax.f32 %v1466, 0.0
        %v1699 = vmax.f32 %v1625, 0.0
        %v1700 = vmax.f32 %v1627, 0.0
        %v1701 = vmax.f32 %v1470, 0.0
        %v1702 = vmax.f32 %v1472, 0.0
        %v1703 = vmax.f32 %v1631, 0.0
        %v1704 = vmax.f32 %v1633, 0.0
        %v1705 = vmax.f32 %v1476, 0.0
        %v1706 = vmax.f32 %v1478, 0.0
        %v1707 = vmax.f32 %v1637, 0.0
        %v1708 = vmax.f32 %v1639, 0.0
        %v1709 = vmax.f32 %v1482, 0.0
        %v1710 = vmax.f32 %v1484, 0.0
        %v1711 = vmax.f32 %v1643, 0.0
        %v1712 = vmax.f32 %v1645, 0.0
        %v1713 = vmax.f32 %v1488, 0.0
        %v1714 = vmax.f32 %v1490, 0.0
        %v1715 = vmax.f32 %v1649, 0.0
        %v1716 = vmax.f32 %v1651, 0.0
        %v1717 = vld [vmem:[%s9] sm:$0xff]
        %v1718 = vld [vmem:[%s9 + $0x8] sm:$0xff]
        %v1719 = vld [vmem:[%s9 + $0x10] sm:$0xff]
        %v1720 = vld [vmem:[%s9 + $0x18] sm:$0xff]
        %v1721 = vld [vmem:[%s9 + $0x20] sm:$0xff]
        %v1722 = vld [vmem:[%s9 + $0x28] sm:$0xff]
        %v1723 = vld [vmem:[%s9 + $0x30] sm:$0xff]
        %v1724 = vld [vmem:[%s9 + $0x38] sm:$0xff]
        %v1725 = vld [vmem:[%s9 + $0x40] sm:$0xff]
        %v1726 = vld [vmem:[%s9 + $0x48] sm:$0xff]
        %v1727 = vld [vmem:[%s9 + $0x50] sm:$0xff]
        %v1728 = vld [vmem:[%s9 + $0x58] sm:$0xff]
        %v1729 = vld [vmem:[%s9 + $0x60] sm:$0xff]
        %v1730 = vld [vmem:[%s9 + $0x68] sm:$0xff]
        %v1731 = vld [vmem:[%s9 + $0x70] sm:$0xff]
        %v1732 = vld [vmem:[%s9 + $0x78] sm:$0xff]
        %v1733 = vld [vmem:[%s10] sm:$0xff]
        %v1734 = vld [vmem:[%s10 + $0x8] sm:$0xff]
        %v1735 = vld [vmem:[%s10 + $0x10] sm:$0xff]
        %v1736 = vld [vmem:[%s10 + $0x18] sm:$0xff]
        %v1737 = vld [vmem:[%s10 + $0x20] sm:$0xff]
        %v1738 = vld [vmem:[%s10 + $0x28] sm:$0xff]
        %v1739 = vld [vmem:[%s10 + $0x30] sm:$0xff]
        %v1740 = vld [vmem:[%s10 + $0x38] sm:$0xff]
        %v1741 = vld [vmem:[%s10 + $0x40] sm:$0xff]
        %v1742 = vld [vmem:[%s10 + $0x48] sm:$0xff]
        %v1743 = vld [vmem:[%s10 + $0x50] sm:$0xff]
        %v1744 = vld [vmem:[%s10 + $0x58] sm:$0xff]
        %v1745 = vld [vmem:[%s10 + $0x60] sm:$0xff]
        %v1746 = vld [vmem:[%s10 + $0x68] sm:$0xff]
        %v1747 = vld [vmem:[%s10 + $0x70] sm:$0xff]
        %v1748 = vld [vmem:[%s10 + $0x78] sm:$0xff]
        %1750 = vset.pattern.permute.xlu0 0
        %1751 = vperm.xlu0 %1750, %v1733
        %v1752 = vpop.permute.xlu0 %1751
        %1755 = vset.pattern.permute.xlu0 0
        %1756 = vperm.xlu0 %1755, %v1734
        %v1757 = vpop.permute.xlu0 %1756
        %1760 = vset.pattern.permute.xlu0 0
        %1761 = vperm.xlu0 %1760, %v1735
        %v1762 = vpop.permute.xlu0 %1761
        %1765 = vset.pattern.permute.xlu0 0
        %1766 = vperm.xlu0 %1765, %v1736
        %v1767 = vpop.permute.xlu0 %1766
        %1770 = vset.pattern.permute.xlu0 0
        %1771 = vperm.xlu0 %1770, %v1737
        %v1772 = vpop.permute.xlu0 %1771
        %1775 = vset.pattern.permute.xlu0 0
        %1776 = vperm.xlu0 %1775, %v1738
        %v1777 = vpop.permute.xlu0 %1776
        %1780 = vset.pattern.permute.xlu0 0
        %1781 = vperm.xlu0 %1780, %v1739
        %v1782 = vpop.permute.xlu0 %1781
        %1785 = vset.pattern.permute.xlu0 0
        %1786 = vperm.xlu0 %1785, %v1740
        %v1787 = vpop.permute.xlu0 %1786
        %1790 = vset.pattern.permute.xlu0 0
        %1791 = vperm.xlu0 %1790, %v1741
        %v1792 = vpop.permute.xlu0 %1791
        %1795 = vset.pattern.permute.xlu0 0
        %1796 = vperm.xlu0 %1795, %v1742
        %v1797 = vpop.permute.xlu0 %1796
        %1800 = vset.pattern.permute.xlu0 0
        %1801 = vperm.xlu0 %1800, %v1743
        %v1802 = vpop.permute.xlu0 %1801
        %1805 = vset.pattern.permute.xlu0 0
        %1806 = vperm.xlu0 %1805, %v1744
        %v1807 = vpop.permute.xlu0 %1806
        %1810 = vset.pattern.permute.xlu0 0
        %1811 = vperm.xlu0 %1810, %v1745
        %v1812 = vpop.permute.xlu0 %1811
        %1815 = vset.pattern.permute.xlu0 0
        %1816 = vperm.xlu0 %1815, %v1746
        %v1817 = vpop.permute.xlu0 %1816
        %1820 = vset.pattern.permute.xlu0 0
        %1821 = vperm.xlu0 %1820, %v1747
        %v1822 = vpop.permute.xlu0 %1821
        %1825 = vset.pattern.permute.xlu0 0
        %1826 = vperm.xlu0 %1825, %v1748
        %v1827 = vpop.permute.xlu0 %1826
        %1829 = vmatprep.subr.mxu0 %v1654
        %1830 = vmatpush1.msra.mxu0 %v1653
        %1831 = vmatprep.subr.mxu0 %v1658
        %1832 = vmatpush1.msra.mxu0 %v1657
        %1833 = vmatprep.subr.mxu0 %v1662
        %1834 = vmatpush1.msra.mxu0 %v1661
        %1835 = vmatprep.subr.mxu0 %v1666
        %1836 = vmatpush1.msra.mxu0 %v1665
        %1837 = vmatprep.subr.mxu0 %v1670
        %1838 = vmatpush1.msra.mxu0 %v1669
        %1839 = vmatprep.subr.mxu0 %v1674
        %1840 = vmatpush1.msra.mxu0 %v1673
        %1841 = vmatprep.subr.mxu0 %v1678
        %1842 = vmatpush1.msra.mxu0 %v1677
        %1843 = vmatprep.subr.mxu0 %v1682
        %1844 = vmatpush1.msra.mxu0 %v1681
        %1845 = vmatprep.subr.mxu0 %v1686
        %1846 = vmatpush1.msra.mxu0 %v1685
        %1847 = vmatprep.subr.mxu0 %v1690
        %1848 = vmatpush1.msra.mxu0 %v1689
        %1849 = vmatprep.subr.mxu0 %v1694
        %1850 = vmatpush1.msra.mxu0 %v1693
        %1851 = vmatprep.subr.mxu0 %v1698
        %1852 = vmatpush1.msra.mxu0 %v1697
        %1853 = vmatprep.subr.mxu0 %v1702
        %1854 = vmatpush1.msra.mxu0 %v1701
        %1855 = vmatprep.subr.mxu0 %v1706
        %1856 = vmatpush1.msra.mxu0 %v1705
        %1857 = vmatprep.subr.mxu0 %v1710
        %1858 = vmatpush1.msra.mxu0 %v1709
        %1859 = vmatprep.subr.mxu0 %v1714
        %1860 = vmatpush1.msra.mxu0 %v1713
        %1861 = vmatprep.subr.mxu0 0.0
        %1862 = vmatpush1.msra.mxu0 0.0
        %1863 = vmatprep.subr.mxu0 0.0
        %1864 = vmatpush1.msra.mxu0 0.0
        %1865 = vmatprep.subr.mxu0 0.0
        %1866 = vmatpush1.msra.mxu0 0.0
        %1867 = vmatprep.subr.mxu0 0.0
        %1868 = vmatpush1.msra.mxu0 0.0
        %1869 = vmatprep.subr.mxu0 0.0
        %1870 = vmatpush1.msra.mxu0 0.0
        %1871 = vmatprep.subr.mxu0 0.0
        %1872 = vmatpush1.msra.mxu0 0.0
        %1873 = vmatprep.subr.mxu0 0.0
        %1874 = vmatpush1.msra.mxu0 0.0
        %1875 = vmatprep.subr.mxu0 0.0
        %1876 = vmatpush1.msra.mxu0 0.0
        %1877 = vmatprep.subr.mxu0 0.0
        %1878 = vmatpush1.msra.mxu0 0.0
        %1879 = vmatprep.subr.mxu0 0.0
        %1880 = vmatpush1.msra.mxu0 0.0
        %1881 = vmatprep.subr.mxu0 0.0
        %1882 = vmatpush1.msra.mxu0 0.0
        %1883 = vmatprep.subr.mxu0 0.0
        %1884 = vmatpush1.msra.mxu0 0.0
        %1885 = vmatprep.subr.mxu0 0.0
        %1886 = vmatpush1.msra.mxu0 0.0
        %1887 = vmatprep.subr.mxu0 0.0
        %1888 = vmatpush1.msra.mxu0 0.0
        %1889 = vmatprep.subr.mxu0 0.0
        %1890 = vmatpush1.msra.mxu0 0.0
        %1891 = vmatprep.subr.mxu0 0.0
        %1892 = vmatpush1.msra.mxu0 0.0
        %1893 = vmatprep.mubr.f32.mxu0 0.0
        %1894 = vmatmul.mubr.f32.gmra.mrb[0].mxu0 %v1717
        %v1895 = vpop.f32.mrb[0].mxu0
        %v1896 = vadd.f32 %v1752, %v1895
        %v1897 = vpop.f32.mrb[0].mxu0
        %v1898 = vadd.f32 %v1752, %v1897
        %1899 = vmatprep.mubr.f32.mxu0 0.0
        %1900 = vmatmul.mubr.f32.gmra.mrb[0].mxu0 %v1718
        %v1901 = vpop.f32.mrb[0].mxu0
        %v1902 = vadd.f32 %v1757, %v1901
        %v1903 = vpop.f32.mrb[0].mxu0
        %v1904 = vadd.f32 %v1757, %v1903
        %1905 = vmatprep.mubr.f32.mxu0 0.0
        %1906 = vmatmul.mubr.f32.gmra.mrb[0].mxu0 %v1719
        %v1907 = vpop.f32.mrb[0].mxu0
        %v1908 = vadd.f32 %v1762, %v1907
        %v1909 = vpop.f32.mrb[0].mxu0
        %v1910 = vadd.f32 %v1762, %v1909
        %1911 = vmatprep.mubr.f32.mxu0 0.0
        %1912 = vmatmul.mubr.f32.gmra.mrb[0].mxu0 %v1720
        %v1913 = vpop.f32.mrb[0].mxu0
        %v1914 = vadd.f32 %v1767, %v1913
        %v1915 = vpop.f32.mrb[0].mxu0
        %v1916 = vadd.f32 %v1767, %v1915
        %1917 = vmatprep.mubr.f32.mxu0 0.0
        %1918 = vmatmul.mubr.f32.gmra.mrb[0].mxu0 %v1721
        %v1919 = vpop.f32.mrb[0].mxu0
        %v1920 = vadd.f32 %v1772, %v1919
        %v1921 = vpop.f32.mrb[0].mxu0
        %v1922 = vadd.f32 %v1772, %v1921
        %1923 = vmatprep.mubr.f32.mxu0 0.0
        %1924 = vmatmul.mubr.f32.gmra.mrb[0].mxu0 %v1722
        %v1925 = vpop.f32.mrb[0].mxu0
        %v1926 = vadd.f32 %v1777, %v1925
        %v1927 = vpop.f32.mrb[0].mxu0
        %v1928 = vadd.f32 %v1777, %v1927
        %1929 = vmatprep.mubr.f32.mxu0 0.0
        %1930 = vmatmul.mubr.f32.gmra.mrb[0].mxu0 %v1723
        %v1931 = vpop.f32.mrb[0].mxu0
        %v1932 = vadd.f32 %v1782, %v1931
        %v1933 = vpop.f32.mrb[0].mxu0
        %v1934 = vadd.f32 %v1782, %v1933
        %1935 = vmatprep.mubr.f32.mxu0 0.0
        %1936 = vmatmul.mubr.f32.gmra.mrb[0].mxu0 %v1724
        %v1937 = vpop.f32.mrb[0].mxu0
        %v1938 = vadd.f32 %v1787, %v1937
        %v1939 = vpop.f32.mrb[0].mxu0
        %v1940 = vadd.f32 %v1787, %v1939
        %1941 = vmatprep.mubr.f32.mxu0 0.0
        %1942 = vmatmul.mubr.f32.gmra.mrb[0].mxu0 %v1725
        %v1943 = vpop.f32.mrb[0].mxu0
        %v1944 = vadd.f32 %v1792, %v1943
        %v1945 = vpop.f32.mrb[0].mxu0
        %v1946 = vadd.f32 %v1792, %v1945
        %1947 = vmatprep.mubr.f32.mxu0 0.0
        %1948 = vmatmul.mubr.f32.gmra.mrb[0].mxu0 %v1726
        %v1949 = vpop.f32.mrb[0].mxu0
        %v1950 = vadd.f32 %v1797, %v1949
        %v1951 = vpop.f32.mrb[0].mxu0
        %v1952 = vadd.f32 %v1797, %v1951
        %1953 = vmatprep.mubr.f32.mxu0 0.0
        %1954 = vmatmul.mubr.f32.gmra.mrb[0].mxu0 %v1727
        %v1955 = vpop.f32.mrb[0].mxu0
        %v1956 = vadd.f32 %v1802, %v1955
        %v1957 = vpop.f32.mrb[0].mxu0
        %v1958 = vadd.f32 %v1802, %v1957
        %1959 = vmatprep.mubr.f32.mxu0 0.0
        %1960 = vmatmul.mubr.f32.gmra.mrb[0].mxu0 %v1728
        %v1961 = vpop.f32.mrb[0].mxu0
        %v1962 = vadd.f32 %v1807, %v1961
        %v1963 = vpop.f32.mrb[0].mxu0
        %v1964 = vadd.f32 %v1807, %v1963
        %1965 = vmatprep.mubr.f32.mxu0 0.0
        %1966 = vmatmul.mubr.f32.gmra.mrb[0].mxu0 %v1729
        %v1967 = vpop.f32.mrb[0].mxu0
        %v1968 = vadd.f32 %v1812, %v1967
        %v1969 = vpop.f32.mrb[0].mxu0
        %v1970 = vadd.f32 %v1812, %v1969
        %1971 = vmatprep.mubr.f32.mxu0 0.0
        %1972 = vmatmul.mubr.f32.gmra.mrb[0].mxu0 %v1730
        %v1973 = vpop.f32.mrb[0].mxu0
        %v1974 = vadd.f32 %v1817, %v1973
        %v1975 = vpop.f32.mrb[0].mxu0
        %v1976 = vadd.f32 %v1817, %v1975
        %1977 = vmatprep.mubr.f32.mxu0 0.0
        %1978 = vmatmul.mubr.f32.gmra.mrb[0].mxu0 %v1731
        %v1979 = vpop.f32.mrb[0].mxu0
        %v1980 = vadd.f32 %v1822, %v1979
        %v1981 = vpop.f32.mrb[0].mxu0
        %v1982 = vadd.f32 %v1822, %v1981
        %1983 = vmatprep.mubr.f32.mxu0 0.0
        %1984 = vmatmul.mubr.f32.gmra.mrb[0].mxu0 %v1732
        %v1985 = vpop.f32.mrb[0].mxu0
        %v1986 = vadd.f32 %v1827, %v1985
        %v1987 = vpop.f32.mrb[0].mxu0
        %v1988 = vadd.f32 %v1827, %v1987
        %1989 = vdwg.mxu0
        %1990 = vmatprep.subr.mxu0 %v1656
        %1991 = vmatpush1.msra.mxu0 %v1655
        %1992 = vmatprep.subr.mxu0 %v1660
        %1993 = vmatpush1.msra.mxu0 %v1659
        %1994 = vmatprep.subr.mxu0 %v1664
        %1995 = vmatpush1.msra.mxu0 %v1663
        %1996 = vmatprep.subr.mxu0 %v1668
        %1997 = vmatpush1.msra.mxu0 %v1667
        %1998 = vmatprep.subr.mxu0 %v1672
        %1999 = vmatpush1.msra.mxu0 %v1671
        %2000 = vmatprep.subr.mxu0 %v1676
        %2001 = vmatpush1.msra.mxu0 %v1675
        %2002 = vmatprep.subr.mxu0 %v1680
        %2003 = vmatpush1.msra.mxu0 %v1679
        %2004 = vmatprep.subr.mxu0 %v1684
        %2005 = vmatpush1.msra.mxu0 %v1683
        %2006 = vmatprep.subr.mxu0 %v1688
        %2007 = vmatpush1.msra.mxu0 %v1687
        %2008 = vmatprep.subr.mxu0 %v1692
        %2009 = vmatpush1.msra.mxu0 %v1691
        %2010 = vmatprep.subr.mxu0 %v1696
        %2011 = vmatpush1.msra.mxu0 %v1695
        %2012 = vmatprep.subr.mxu0 %v1700
        %2013 = vmatpush1.msra.mxu0 %v1699
        %2014 = vmatprep.subr.mxu0 %v1704
        %2015 = vmatpush1.msra.mxu0 %v1703
        %2016 = vmatprep.subr.mxu0 %v1708
        %2017 = vmatpush1.msra.mxu0 %v1707
        %2018 = vmatprep.subr.mxu0 %v1712
        %2019 = vmatpush1.msra.mxu0 %v1711
        %2020 = vmatprep.subr.mxu0 %v1716
        %2021 = vmatpush1.msra.mxu0 %v1715
        %2022 = vmatprep.subr.mxu0 0.0
        %2023 = vmatpush1.msra.mxu0 0.0
        %2024 = vmatprep.subr.mxu0 0.0
        %2025 = vmatpush1.msra.mxu0 0.0
        %2026 = vmatprep.subr.mxu0 0.0
        %2027 = vmatpush1.msra.mxu0 0.0
        %2028 = vmatprep.subr.mxu0 0.0
        %2029 = vmatpush1.msra.mxu0 0.0
        %2030 = vmatprep.subr.mxu0 0.0
        %2031 = vmatpush1.msra.mxu0 0.0
        %2032 = vmatprep.subr.mxu0 0.0
        %2033 = vmatpush1.msra.mxu0 0.0
        %2034 = vmatprep.subr.mxu0 0.0
        %2035 = vmatpush1.msra.mxu0 0.0
        %2036 = vmatprep.subr.mxu0 0.0
        %2037 = vmatpush1.msra.mxu0 0.0
        %2038 = vmatprep.subr.mxu0 0.0
        %2039 = vmatpush1.msra.mxu0 0.0
        %2040 = vmatprep.subr.mxu0 0.0
        %2041 = vmatpush1.msra.mxu0 0.0
        %2042 = vmatprep.subr.mxu0 0.0
        %2043 = vmatpush1.msra.mxu0 0.0
        %2044 = vmatprep.subr.mxu0 0.0
        %2045 = vmatpush1.msra.mxu0 0.0
        %2046 = vmatprep.subr.mxu0 0.0
        %2047 = vmatpush1.msra.mxu0 0.0
        %2048 = vmatprep.subr.mxu0 0.0
        %2049 = vmatpush1.msra.mxu0 0.0
        %2050 = vmatprep.subr.mxu0 0.0
        %2051 = vmatpush1.msra.mxu0 0.0
        %2052 = vmatprep.subr.mxu0 0.0
        %2053 = vmatpush1.msra.mxu0 0.0
        %2054 = vmatprep.mubr.f32.mxu0 0.0
        %2055 = vmatmul.mubr.f32.gmra.mrb[0].mxu0 %v1717
        %v2056 = vpop.f32.mrb[0].mxu0
        %v2057 = vadd.f32 %v1752, %v2056
        %v2058 = vpop.f32.mrb[0].mxu0
        %v2059 = vadd.f32 %v1752, %v2058
        %2060 = vmatprep.mubr.f32.mxu0 0.0
        %2061 = vmatmul.mubr.f32.gmra.mrb[0].mxu0 %v1718
        %v2062 = vpop.f32.mrb[0].mxu0
        %v2063 = vadd.f32 %v1757, %v2062
        %v2064 = vpop.f32.mrb[0].mxu0
        %v2065 = vadd.f32 %v1757, %v2064
        %2066 = vmatprep.mubr.f32.mxu0 0.0
        %2067 = vmatmul.mubr.f32.gmra.mrb[0].mxu0 %v1719
        %v2068 = vpop.f32.mrb[0].mxu0
        %v2069 = vadd.f32 %v1762, %v2068
        %v2070 = vpop.f32.mrb[0].mxu0
        %v2071 = vadd.f32 %v1762, %v2070
        %2072 = vmatprep.mubr.f32.mxu0 0.0
        %2073 = vmatmul.mubr.f32.gmra.mrb[0].mxu0 %v1720
        %v2074 = vpop.f32.mrb[0].mxu0
        %v2075 = vadd.f32 %v1767, %v2074
        %v2076 = vpop.f32.mrb[0].mxu0
        %v2077 = vadd.f32 %v1767, %v2076
        %2078 = vmatprep.mubr.f32.mxu0 0.0
        %2079 = vmatmul.mubr.f32.gmra.mrb[0].mxu0 %v1721
        %v2080 = vpop.f32.mrb[0].mxu0
        %v2081 = vadd.f32 %v1772, %v2080
        %v2082 = vpop.f32.mrb[0].mxu0
        %v2083 = vadd.f32 %v1772, %v2082
        %2084 = vmatprep.mubr.f32.mxu0 0.0
        %2085 = vmatmul.mubr.f32.gmra.mrb[0].mxu0 %v1722
        %v2086 = vpop.f32.mrb[0].mxu0
        %v2087 = vadd.f32 %v1777, %v2086
        %v2088 = vpop.f32.mrb[0].mxu0
        %v2089 = vadd.f32 %v1777, %v2088
        %2090 = vmatprep.mubr.f32.mxu0 0.0
        %2091 = vmatmul.mubr.f32.gmra.mrb[0].mxu0 %v1723
        %v2092 = vpop.f32.mrb[0].mxu0
        %v2093 = vadd.f32 %v1782, %v2092
        %v2094 = vpop.f32.mrb[0].mxu0
        %v2095 = vadd.f32 %v1782, %v2094
        %2096 = vmatprep.mubr.f32.mxu0 0.0
        %2097 = vmatmul.mubr.f32.gmra.mrb[0].mxu0 %v1724
        %v2098 = vpop.f32.mrb[0].mxu0
        %v2099 = vadd.f32 %v1787, %v2098
        %v2100 = vpop.f32.mrb[0].mxu0
        %v2101 = vadd.f32 %v1787, %v2100
        %2102 = vmatprep.mubr.f32.mxu0 0.0
        %2103 = vmatmul.mubr.f32.gmra.mrb[0].mxu0 %v1725
        %v2104 = vpop.f32.mrb[0].mxu0
        %v2105 = vadd.f32 %v1792, %v2104
        %v2106 = vpop.f32.mrb[0].mxu0
        %v2107 = vadd.f32 %v1792, %v2106
        %2108 = vmatprep.mubr.f32.mxu0 0.0
        %2109 = vmatmul.mubr.f32.gmra.mrb[0].mxu0 %v1726
        %v2110 = vpop.f32.mrb[0].mxu0
        %v2111 = vadd.f32 %v1797, %v2110
        %v2112 = vpop.f32.mrb[0].mxu0
        %v2113 = vadd.f32 %v1797, %v2112
        %2114 = vmatprep.mubr.f32.mxu0 0.0
        %2115 = vmatmul.mubr.f32.gmra.mrb[0].mxu0 %v1727
        %v2116 = vpop.f32.mrb[0].mxu0
        %v2117 = vadd.f32 %v1802, %v2116
        %v2118 = vpop.f32.mrb[0].mxu0
        %v2119 = vadd.f32 %v1802, %v2118
        %2120 = vmatprep.mubr.f32.mxu0 0.0
        %2121 = vmatmul.mubr.f32.gmra.mrb[0].mxu0 %v1728
        %v2122 = vpop.f32.mrb[0].mxu0
        %v2123 = vadd.f32 %v1807, %v2122
        %v2124 = vpop.f32.mrb[0].mxu0
        %v2125 = vadd.f32 %v1807, %v2124
        %2126 = vmatprep.mubr.f32.mxu0 0.0
        %2127 = vmatmul.mubr.f32.gmra.mrb[0].mxu0 %v1729
        %v2128 = vpop.f32.mrb[0].mxu0
        %v2129 = vadd.f32 %v1812, %v2128
        %v2130 = vpop.f32.mrb[0].mxu0
        %v2131 = vadd.f32 %v1812, %v2130
        %2132 = vmatprep.mubr.f32.mxu0 0.0
        %2133 = vmatmul.mubr.f32.gmra.mrb[0].mxu0 %v1730
        %v2134 = vpop.f32.mrb[0].mxu0
        %v2135 = vadd.f32 %v1817, %v2134
        %v2136 = vpop.f32.mrb[0].mxu0
        %v2137 = vadd.f32 %v1817, %v2136
        %2138 = vmatprep.mubr.f32.mxu0 0.0
        %2139 = vmatmul.mubr.f32.gmra.mrb[0].mxu0 %v1731
        %v2140 = vpop.f32.mrb[0].mxu0
        %v2141 = vadd.f32 %v1822, %v2140
        %v2142 = vpop.f32.mrb[0].mxu0
        %v2143 = vadd.f32 %v1822, %v2142
        %2144 = vmatprep.mubr.f32.mxu0 0.0
        %2145 = vmatmul.mubr.f32.gmra.mrb[0].mxu0 %v1732
        %v2146 = vpop.f32.mrb[0].mxu0
        %v2147 = vadd.f32 %v1827, %v2146
        %v2148 = vpop.f32.mrb[0].mxu0
        %v2149 = vadd.f32 %v1827, %v2148
        %2150 = vdwg.mxu0
        %2151 = vst [vmem:[%s428] sm:$0xff] %v1896
        %2152 = vst [vmem:[%s428 + $0x8] sm:$0xff] %v1898
        %2153 = vst [vmem:[%s428 + $0x10] sm:$0xff] %v2057
        %2154 = vst [vmem:[%s428 + $0x18] sm:$0xff] %v2059
        %2155 = vst [vmem:[%s428 + $0x20] sm:$0xff] %v1902
        %2156 = vst [vmem:[%s428 + $0x28] sm:$0xff] %v1904
        %2157 = vst [vmem:[%s428 + $0x30] sm:$0xff] %v2063
        %2158 = vst [vmem:[%s428 + $0x38] sm:$0xff] %v2065
        %2159 = vst [vmem:[%s428 + $0x40] sm:$0xff] %v1908
        %2160 = vst [vmem:[%s428 + $0x48] sm:$0xff] %v1910
        %2161 = vst [vmem:[%s428 + $0x50] sm:$0xff] %v2069
        %2162 = vst [vmem:[%s428 + $0x58] sm:$0xff] %v2071
        %2163 = vst [vmem:[%s428 + $0x60] sm:$0xff] %v1914
        %2164 = vst [vmem:[%s428 + $0x68] sm:$0xff] %v1916
        %2165 = vst [vmem:[%s428 + $0x70] sm:$0xff] %v2075
        %2166 = vst [vmem:[%s428 + $0x78] sm:$0xff] %v2077
        %2167 = vst [vmem:[%s428 + $0x80] sm:$0xff] %v1920
        %2168 = vst [vmem:[%s428 + $0x88] sm:$0xff] %v1922
        %2169 = vst [vmem:[%s428 + $0x90] sm:$0xff] %v2081
        %2170 = vst [vmem:[%s428 + $0x98] sm:$0xff] %v2083
        %2171 = vst [vmem:[%s428 + $0xa0] sm:$0xff] %v1926
        %2172 = vst [vmem:[%s428 + $0xa8] sm:$0xff] %v1928
        %2173 = vst [vmem:[%s428 + $0xb0] sm:$0xff] %v2087
        %2174 = vst [vmem:[%s428 + $0xb8] sm:$0xff] %v2089
        %2175 = vst [vmem:[%s428 + $0xc0] sm:$0xff] %v1932
        %2176 = vst [vmem:[%s428 + $0xc8] sm:$0xff] %v1934
        %2177 = vst [vmem:[%s428 + $0xd0] sm:$0xff] %v2093
        %2178 = vst [vmem:[%s428 + $0xd8] sm:$0xff] %v2095
        %2179 = vst [vmem:[%s428 + $0xe0] sm:$0xff] %v1938
        %2180 = vst [vmem:[%s428 + $0xe8] sm:$0xff] %v1940
        %2181 = vst [vmem:[%s428 + $0xf0] sm:$0xff] %v2099
        %2182 = vst [vmem:[%s428 + $0xf8] sm:$0xff] %v2101
        %2183 = vst [vmem:[%s428 + $0x100] sm:$0xff] %v1944
        %2184 = vst [vmem:[%s428 + $0x108] sm:$0xff] %v1946
        %2185 = vst [vmem:[%s428 + $0x110] sm:$0xff] %v2105
        %2186 = vst [vmem:[%s428 + $0x118] sm:$0xff] %v2107
        %2187 = vst [vmem:[%s428 + $0x120] sm:$0xff] %v1950
        %2188 = vst [vmem:[%s428 + $0x128] sm:$0xff] %v1952
        %2189 = vst [vmem:[%s428 + $0x130] sm:$0xff] %v2111
        %2190 = vst [vmem:[%s428 + $0x138] sm:$0xff] %v2113
        %2191 = vst [vmem:[%s428 + $0x140] sm:$0xff] %v1956
        %2192 = vst [vmem:[%s428 + $0x148] sm:$0xff] %v1958
        %2193 = vst [vmem:[%s428 + $0x150] sm:$0xff] %v2117
        %2194 = vst [vmem:[%s428 + $0x158] sm:$0xff] %v2119
        %2195 = vst [vmem:[%s428 + $0x160] sm:$0xff] %v1962
        %2196 = vst [vmem:[%s428 + $0x168] sm:$0xff] %v1964
        %2197 = vst [vmem:[%s428 + $0x170] sm:$0xff] %v2123
        %2198 = vst [vmem:[%s428 + $0x178] sm:$0xff] %v2125
        %2199 = vst [vmem:[%s428 + $0x180] sm:$0xff] %v1968
        %2200 = vst [vmem:[%s428 + $0x188] sm:$0xff] %v1970
        %2201 = vst [vmem:[%s428 + $0x190] sm:$0xff] %v2129
        %2202 = vst [vmem:[%s428 + $0x198] sm:$0xff] %v2131
        %2203 = vst [vmem:[%s428 + $0x1a0] sm:$0xff] %v1974
        %2204 = vst [vmem:[%s428 + $0x1a8] sm:$0xff] %v1976
        %2205 = vst [vmem:[%s428 + $0x1b0] sm:$0xff] %v2135
        %2206 = vst [vmem:[%s428 + $0x1b8] sm:$0xff] %v2137
        %2207 = vst [vmem:[%s428 + $0x1c0] sm:$0xff] %v1980
        %2208 = vst [vmem:[%s428 + $0x1c8] sm:$0xff] %v1982
        %2209 = vst [vmem:[%s428 + $0x1d0] sm:$0xff] %v2141
        %2210 = vst [vmem:[%s428 + $0x1d8] sm:$0xff] %v2143
        %2211 = vst [vmem:[%s428 + $0x1e0] sm:$0xff] %v1986
        %2212 = vst [vmem:[%s428 + $0x1e8] sm:$0xff] %v1988
        %2213 = vst [vmem:[%s428 + $0x1f0] sm:$0xff] %v2147
        %2214 = vst [vmem:[%s428 + $0x1f8] sm:$0xff] %v2149
        %s2215 = sand.u32 %s292, 1
        %s2216 = scalar_lea.sflag [#allocation3], %s2215
        %s2217 = sand.u32 %s292, 1
        %s2218 = smul.addr %s2217, 512
        %s2219 = scalar_lea.vmem [#allocation2], %s2218
        // Predicated region
        $region65: #{keypoint_encoder.7} parent=63 // pred_check
          %p2220 = pneg %p302
        $region66: #{keypoint_encoder.7} parent=63 // pred_check_branch
          %2222 = sbr.rel (%p2220) target = $region68
        $region67: #{keypoint_encoder.7} parent=63 // pred_region
          %s2223 = smul.u32 4, %s30
          %s2225 = ssub.s32 8192, 8192
          %2226 = vsyncadd %s2216, %s2225
          %s2227 = smul.addr %s29, 128
          %s2228 = sadd.s32 %s2223, %s2227
          %s2229 = smul.addr %s2228, 128
          %s2230 = scalar_lea.hbm %s11, %s2229
          %s2231 = sshll.u32 %s2219, 4
          %s2232 = int_to_ptr.vmem [resolvable:$true] %s2231
          %2237 = dma.vmem_to_hbm [thread:$0]  %s2232, 8192, %s2230, %s2216, 512, 1024, 32
        $region68: #{keypoint_encoder.7} parent=63 // pred_fallthru
          _
      $region64: #{keypoint_encoder.7} parent=5 // pred_fallthru
        _
      %p2238 = scmp.le.s32.totalorder 2, %s20
      // Predicated region
      $region69: #{keypoint_encoder.7} parent=5 // pred_check
        %p2239 = pneg %p2238
      $region70: #{keypoint_encoder.7} parent=5 // pred_check_branch
        %2241 = sbr.rel (%p2239) target = $region72
      $region71: #{keypoint_encoder.7} parent=5 // pred_region
        %s2242 = ssub.s32 %s20, 2
        // Predicated region
        $region73: #{keypoint_encoder.7} parent=71 // pred_check
          %p2243 = pneg %p308
        $region74: #{keypoint_encoder.7} parent=71 // pred_check_branch
          %2245 = sbr.rel (%p2243) target = $region76
        $region75: #{keypoint_encoder.7} parent=71 // pred_region
          %s2246 = sand.u32 %s293, 1
          %s2247 = scalar_lea.sflag [#allocation3], %s2246
          %s2248 = sand.u32 %s293, 1
          %s2249 = smul.addr %s2248, 512
          %s2250 = scalar_lea.vmem [#allocation2], %s2249
          %2251 = dma.done %s2247, 8192
        $region76: #{keypoint_encoder.7} parent=71 // pred_fallthru
          _
      $region72: #{keypoint_encoder.7} parent=5 // pred_fallthru
        _
    $region6: #{keypoint_encoder.7} parent=1 // loop_footer
      %s24 = sadd.s32 1, %s20
    $region7: #{keypoint_encoder.7} parent=1 // loop_footer_branch
      %19 = sbr.rel target = $region3
    $region8: #{keypoint_encoder.7} parent=1 // loop_exit
      _
    %2252 = vsyncpa [#allocation3], 1
    %s2253 = scalar_lea.sflag [#allocation3], 1
    %2254 = vsyncpa %s2253, 1

</llo_original>
